<compile_context>
chip_gen: v5e
topology: v5e:2x2
jax: 0.10.0
libtpu: 0.0.40
codegen_flags: <defaults>
</compile_context>

<pallas_src>
import math
from functools import partial

import jax
import jax.numpy as jnp
from jax import lax
from jax.experimental import pallas as pl
from jax.experimental.pallas import tpu as pltpu


# --------------------------------------------------------------------------- #
# Kernel
# --------------------------------------------------------------------------- #
def attn_block_kernel(xp_ref, wq_ref, wk_ref, wv_ref, bq_ref, bk_ref, bv_ref,
                      wp_ref, bp_ref, o_ref, xcol_ref, *, kv_chunk, scale):
    """One grid step = BT batch elements; everything lives in VMEM."""
    BT, HP, WP, C = xp_ref.shape
    H, W = HP - 2, WP - 2
    HW = H * W
    M = BT * HW

    xp = xp_ref[...]                                   # (BT, H+2, W+2, C) f32
    xp_bf = xp.astype(jnp.bfloat16)                    # cast ONCE (hoisted)

    # ---- im2col: assemble one bf16 (M, 9C) tile from the 9 shifted views ----
    for tap in range(9):                               # static unroll (dh, dw)
        dh, dw = tap // 3, tap % 3
        xcol_ref[:, :, :, tap * C:(tap + 1) * C] = xp_bf[:, dh:dh + H, dw:dw + W, :]
    xcol = xcol_ref[...].reshape(M, 9 * C)             # (M, 9C) bf16

    # ---- proj_qkv: three deep-K (K = 9C) MXU matmuls, f32 accumulate + bias ----
    q = (jnp.dot(xcol, wq_ref[...], preferred_element_type=jnp.float32)
         + bq_ref[...]) * scale                        # C**-0.5 applied in f32
    k = jnp.dot(xcol, wk_ref[...], preferred_element_type=jnp.float32) + bk_ref[...]
    v = jnp.dot(xcol, wv_ref[...], preferred_element_type=jnp.float32) + bv_ref[...]

    q_bf = q.reshape(BT, HW, C).astype(jnp.bfloat16)
    k_bf = k.reshape(BT, HW, C).astype(jnp.bfloat16)
    v_bf = v.reshape(BT, HW, C).astype(jnp.bfloat16)

    # ---- attention: kv-chunked online softmax (never materializes (HW, HW)
    #      when HW > kv_chunk); statistics/accumulator in f32, matmuls bf16 ----
    n_kv = HW // kv_chunk
    m_run = l_run = acc = None
    for t in range(n_kv):                              # static unroll
        k_t = k_bf[:, t * kv_chunk:(t + 1) * kv_chunk, :]
        v_t = v_bf[:, t * kv_chunk:(t + 1) * kv_chunk, :]
        s = lax.dot_general(q_bf, k_t, (((2,), (2,)), ((0,), (0,))),
                            preferred_element_type=jnp.float32)  # (BT, HW, tk)
        m_t = jnp.max(s, axis=-1, keepdims=True)
        if t == 0:
            m_run = m_t
            e = jnp.exp(s - m_run)
            l_run = jnp.sum(e, axis=-1, keepdims=True)
            acc = lax.dot_general(e.astype(jnp.bfloat16), v_t,
                                  (((2,), (1,)), ((0,), (0,))),
                                  preferred_element_type=jnp.float32)
        else:
            m_new = jnp.maximum(m_run, m_t)
            alpha = jnp.exp(m_run - m_new)
            e = jnp.exp(s - m_new)
            l_run = alpha * l_run + jnp.sum(e, axis=-1, keepdims=True)
            acc = alpha * acc + lax.dot_general(e.astype(jnp.bfloat16), v_t,
                                                (((2,), (1,)), ((0,), (0,))),
                                                preferred_element_type=jnp.float32)
            m_run = m_new
    # exact per-row normalization (one reciprocal per row, then broadcast mul)
    attn = acc * pl.reciprocal(l_run, approx=False)    # (BT, HW, C) f32

    # ---- 1x1 output projection + residual (residual in exact f32) ----
    h = jnp.dot(attn.reshape(M, C).astype(jnp.bfloat16), wp_ref[...],
                preferred_element_type=jnp.float32) + bp_ref[...]
    x_res = xp[:, 1:1 + H, 1:1 + W, :].reshape(M, C)   # f32 interior
    o_ref[...] = (x_res + h).reshape(BT, HW, C).astype(o_ref.dtype)


# --------------------------------------------------------------------------- #
# Tiling / budgeting helpers
# --------------------------------------------------------------------------- #
def _vmem_limit_bytes():
    """Generation-aware VMEM limit: 3/4 of the per-core capacity
    (~48 MiB on v7x, ~96 MiB on v5e/v6e)."""
    cap = 64 * 1024 * 1024            # conservative default = v7x per-core VMEM
    try:
        info = pltpu.get_tpu_info()
        cap = int(getattr(info, "vmem_capacity_bytes", cap)) or cap
    except Exception:
        pass
    return (3 * cap) // 4


def _pick_kv_chunk(HW):
    """Largest divisor of HW <= 512 (bounds per-chunk score temporaries)."""
    if HW <= 512:
        return HW
    for tk in range(512, 0, -1):
        if HW % tk == 0:
            return tk
    return HW


def _step_vmem_bytes(bt, H, W, C, tk, out_itemsize):
    """Rough per-grid-step VMEM footprint (bytes) of the kernel."""
    HW = H * W
    M = bt * HW
    halo = bt * (H + 2) * (W + 2) * C
    b = 0
    b += halo * 4 * 2                     # x_pad f32 tile, double-buffered
    b += bt * HW * C * out_itemsize * 2   # output tile, double-buffered
    b += halo * 2                         # hoisted bf16 copy of x_pad
    b += M * 9 * C * 2                    # im2col scratch (bf16)
    b += 3 * M * C * 4                    # q/k/v f32
    b += 3 * M * C * 2                    # q/k/v bf16 copies
    b += bt * HW * tk * (4 + 4 + 2)       # per-chunk s, exp(s), bf16 probs
    b += M * C * 4                        # online-softmax accumulator
    b += M * C * 4                        # residual / output staging
    return b


def _pick_block_batch(B, H, W, C, tk, out_itemsize, budget_bytes):
    """Fold batch elements per grid step (bigger M = bt*HW -> better MXU fill)
    subject to the VMEM budget; keep >= 2 grid steps when B >= 2 so both v7x
    TensorCores get work."""
    best = 1
    for cand in range(1, B + 1):
        if B % cand:
            continue
        if B >= 2 and B // cand < 2:
            break
        if _step_vmem_bytes(cand, H, W, C, tk, out_itemsize) > budget_bytes:
            break
        best = cand
    # TODO(synk): if even bt=1 exceeds the budget (huge HW*C) a query/spatial
    # grid tiling is required; the compiler will flag the VMEM overflow.
    return best


# --------------------------------------------------------------------------- #
# Wrapper
# --------------------------------------------------------------------------- #
@partial(jax.jit, static_argnames=("weight_buffers",))
def attn_block_forward(x_nchw, params, weight_buffers=1):
    B, C, H, W = x_nchw.shape
    HW = H * W
    scale = float(C) ** -0.5

    # NCHW -> NHWC with a 1-pixel zero halo; under jit this fuses with the
    # pallas_call instead of round-tripping the activation through HBM twice.
    x_nhwc = jnp.transpose(x_nchw, (0, 2, 3, 1))                  # (B, H, W, C)
    x_pad = jnp.pad(x_nhwc, ((0, 0), (1, 1), (1, 1), (0, 0)))     # (B,H+2,W+2,C)

    # PyTorch conv weights -> im2col matmul slabs (K = 9C, tap-major rows).
    # w_qkv: (3C, C, 3, 3) -> (kh, kw, c_in, c_out) -> (9C, 3C) -> q/k/v slabs.
    w_qkv = jnp.transpose(params["w_qkv"], (2, 3, 1, 0)).reshape(9 * C, 3 * C)
    wq = w_qkv[:, 0 * C:1 * C].astype(jnp.bfloat16)
    wk = w_qkv[:, 1 * C:2 * C].astype(jnp.bfloat16)
    wv = w_qkv[:, 2 * C:3 * C].astype(jnp.bfloat16)
    b_qkv = params["b_qkv"].astype(jnp.float32)
    bq = b_qkv[0 * C:1 * C].reshape(1, C)
    bk = b_qkv[1 * C:2 * C].reshape(1, C)
    bv = b_qkv[2 * C:3 * C].reshape(1, C)
    # w_proj: (C, C, 1, 1) -> (C_in, C_out)
    wp = jnp.transpose(params["w_proj"][:, :, 0, 0], (1, 0)).astype(jnp.bfloat16)
    bp = params["b_proj"].reshape(1, C).astype(jnp.float32)

    tk = _pick_kv_chunk(HW)
    vmem_limit = _vmem_limit_bytes()
    weight_bytes = weight_buffers * ((3 * 9 * C * C + C * C) * 2 + 4 * C * 4)
    budget = int(vmem_limit * 0.7) - weight_bytes
    bt = _pick_block_batch(B, H, W, C, tk, x_nchw.dtype.itemsize, budget)

    # Constant-index weights/biases: single-buffer when supported (frees up to
    # ~27 MiB of dead double-buffer at C=512 — critical on v7x's 64 MiB VMEM).
    def wspec(shape):
        zeros = (0,) * len(shape)
        if weight_buffers == 1:
            return pl.BlockSpec(shape, lambda b: zeros, pipeline_mode=pl.Buffered(1))
        return pl.BlockSpec(shape, lambda b: zeros)

    grid_spec = pltpu.PrefetchScalarGridSpec(
        num_scalar_prefetch=0,
        grid=(B // bt,),
        in_specs=[
            pl.BlockSpec((bt, H + 2, W + 2, C), lambda b: (b, 0, 0, 0)),   # x_pad
            wspec((9 * C, C)), wspec((9 * C, C)), wspec((9 * C, C)),       # w_q/k/v
            wspec((1, C)), wspec((1, C)), wspec((1, C)),                   # b_q/k/v
            wspec((C, C)),                                                 # w_proj
            wspec((1, C)),                                                 # b_proj
        ],
        out_specs=pl.BlockSpec((bt, HW, C), lambda b: (b, 0, 0)),
        scratch_shapes=[pltpu.VMEM((bt, H, W, 9 * C), jnp.bfloat16)],      # im2col
    )

    out_flat = pl.pallas_call(
        partial(attn_block_kernel, kv_chunk=tk, scale=scale),
        out_shape=jax.ShapeDtypeStruct((B, HW, C), x_nchw.dtype),
        grid_spec=grid_spec,
        compiler_params=pltpu.CompilerParams(
            dimension_semantics=("parallel",),
            vmem_limit_bytes=vmem_limit,
        ),
    )(x_pad, wq, wk, wv, bq, bk, bv, wp, bp)

    return jnp.transpose(out_flat.reshape(B, H, W, C), (0, 3, 1, 2))


def attn_block(x_nchw, params):
    """Entry point: prefer single-buffered resident weights; fall back to the
    default double-buffered pipeline if this Pallas build rejects Buffered(1)."""
    try:
        return attn_block_forward(x_nchw, params, weight_buffers=1)
    except Exception:
        return attn_block_forward(x_nchw, params, weight_buffers=2)


# --------------------------------------------------------------------------- #
# Reference & test
# --------------------------------------------------------------------------- #
def xavier_uniform_conv(key, shape, gain=1.0):
    """PyTorch nn.init.xavier_uniform_ for a conv weight (out, in, kh, kw)."""
    out_ch, in_ch, kh, kw = shape
    fan_in = in_ch * kh * kw
    fan_out = out_ch * kh * kw
    bound = gain * math.sqrt(6.0 / (fan_in + fan_out))
    return jax.random.uniform(key, shape, jnp.float32, -bound, bound)


def reference_forward(x, params):
    """Pure-JAX f32 reference of the PyTorch forward (sans dead GroupNorm)."""
    B, C, H, W = x.shape
    hp = lax.Precision.HIGHEST
    qkv = lax.conv_general_dilated(
        x, params["w_qkv"], window_strides=(1, 1), padding="SAME",
        dimension_numbers=("NCHW", "OIHW", "NCHW"), precision=hp)
    qkv = qkv + params["b_qkv"][None, :, None, None]
    q, k, v = jnp.split(qkv, 3, axis=1)
    q = jnp.transpose(q, (0, 2, 3, 1)).reshape(B, H * W, C)
    k = k.reshape(B, C, H * W)
    w = jnp.einsum("bqc,bck->bqk", q, k, precision=hp) * (float(C) ** -0.5)
    w = jax.nn.softmax(w, axis=-1)
    v = jnp.transpose(v, (0, 2, 3, 1)).reshape(B, H * W, C)
    h = jnp.einsum("bqk,bkc->bqc", w, v, precision=hp)
    h = jnp.transpose(h.reshape(B, H, W, C), (0, 3, 1, 2))
    h = lax.conv_general_dilated(
        h, params["w_proj"], (1, 1), "VALID",
        dimension_numbers=("NCHW", "OIHW", "NCHW"), precision=hp)
    h = h + params["b_proj"][None, :, None, None]
    return x + h


if __name__ == "__main__":
    # GroupNorm(32, in_ch) in the reference module needs in_ch % 32 == 0;
    # C = 128 keeps the lane dimension 128-aligned (lane-dense stores, typical
    # UNet attention width).  The second config (HW = 576 > kv_chunk) exercises
    # the kv-chunked online-softmax (flash) path.
    configs = [(2, 128, 8, 8), (2, 128, 24, 24)]
    key = jax.random.PRNGKey(0)
    for (B, C, H, W) in configs:
        key, k_x, k_qkv, k_proj = jax.random.split(key, 4)
        x = jax.random.normal(k_x, (B, C, H, W), jnp.float32)
        params = {
            # proj_qkv: xavier_uniform (gain=1), zero bias
            "w_qkv": xavier_uniform_conv(k_qkv, (3 * C, C, 3, 3), gain=1.0),
            "b_qkv": jnp.zeros((3 * C,), jnp.float32),
            # proj: xavier_uniform with gain=1e-5 (second init wins), zero bias
            "w_proj": xavier_uniform_conv(k_proj, (C, C, 1, 1), gain=1e-5),
            "b_proj": jnp.zeros((C,), jnp.float32),
        }

        out = attn_block(x, params)
        jax.block_until_ready(out)

        ref = reference_forward(x, params)
        assert out.shape == (B, C, H, W)
        assert jnp.allclose(out, ref, atol=1e-4, rtol=1e-4), \
            f"mismatch vs reference at {(B, C, H, W)}"
        # The residual dominates (proj init gain = 1e-5), so also compare the
        # attention branch itself for a meaningful numerical check.
        assert jnp.allclose(out - x, ref - x, atol=2e-6, rtol=1e-1), \
            f"attention-branch mismatch at {(B, C, H, W)}"

    print("KERNEL_OK")
</pallas_src>

<mosaic_0001>
module attributes {stable_mosaic.version = 11 : i64} {
  func.func @attn_block_kernel(%arg0: i32, %arg1: memref<1x10x10x128xf32, #tpu.memory_space<vmem>>, %arg2: memref<1152x128xbf16, #tpu.memory_space<vmem>>, %arg3: memref<1152x128xbf16, #tpu.memory_space<vmem>>, %arg4: memref<1152x128xbf16, #tpu.memory_space<vmem>>, %arg5: memref<1x128xf32, #tpu.memory_space<vmem>>, %arg6: memref<1x128xf32, #tpu.memory_space<vmem>>, %arg7: memref<1x128xf32, #tpu.memory_space<vmem>>, %arg8: memref<128x128xbf16, #tpu.memory_space<vmem>>, %arg9: memref<1x128xf32, #tpu.memory_space<vmem>>, %arg10: memref<1x64x128xf32, #tpu.memory_space<vmem>>, %arg11: memref<1x8x8x1152xbf16, #tpu.memory_space<vmem>>) attributes {dimension_semantics = [#tpu.dimension_semantics<parallel>], iteration_bounds = array<i64: 2>, scalar_prefetch = 0 : i64, scratch_operands = 1 : i64, tpu.core_type = #tpu.core_type<tc>, window_params = [{transform_indices = @transform_0, window_bounds = array<i64: 1, 10, 10, 128>}, {pipeline_mode = #tpu.pipeline_mode<synchronous>, transform_indices = @transform_1, window_bounds = array<i64: 1152, 128>}, {pipeline_mode = #tpu.pipeline_mode<synchronous>, transform_indices = @transform_2, window_bounds = array<i64: 1152, 128>}, {pipeline_mode = #tpu.pipeline_mode<synchronous>, transform_indices = @transform_3, window_bounds = array<i64: 1152, 128>}, {pipeline_mode = #tpu.pipeline_mode<synchronous>, transform_indices = @transform_4, window_bounds = array<i64: 1, 128>}, {pipeline_mode = #tpu.pipeline_mode<synchronous>, transform_indices = @transform_5, window_bounds = array<i64: 1, 128>}, {pipeline_mode = #tpu.pipeline_mode<synchronous>, transform_indices = @transform_6, window_bounds = array<i64: 1, 128>}, {pipeline_mode = #tpu.pipeline_mode<synchronous>, transform_indices = @transform_7, window_bounds = array<i64: 128, 128>}, {pipeline_mode = #tpu.pipeline_mode<synchronous>, transform_indices = @transform_8, window_bounds = array<i64: 1, 128>}, {transform_indices = @transform_9, window_bounds = array<i64: 1, 64, 128>}]} {
    %c0 = arith.constant 0 : index
    %c0_0 = arith.constant 0 : index
    %c0_1 = arith.constant 0 : index
    %c0_2 = arith.constant 0 : index
    %0 = vector.load %arg1[%c0, %c0_0, %c0_1, %c0_2] : memref<1x10x10x128xf32, #tpu.memory_space<vmem>>, vector<1x10x10x128xf32>
    %1 = arith.truncf %0 : vector<1x10x10x128xf32> to vector<1x10x10x128xbf16>
    %2 = vector.extract_strided_slice %1 {offsets = [0, 0, 0, 0], sizes = [1, 8, 8, 128], strides = [1, 1, 1, 1]} : vector<1x10x10x128xbf16> to vector<1x8x8x128xbf16>
    %c0_3 = arith.constant 0 : index
    %c0_4 = arith.constant 0 : index
    %c0_5 = arith.constant 0 : index
    %c0_6 = arith.constant 0 : index
    %3 = vector.load %arg11[%c0_3, %c0_4, %c0_5, %c0_6] : memref<1x8x8x1152xbf16, #tpu.memory_space<vmem>>, vector<1x8x8x128xbf16>
    tpu.vector_store %arg11[%c0_3, %c0_4, %c0_5, %c0_6], %2 {strides = array<i32>} : memref<1x8x8x1152xbf16, #tpu.memory_space<vmem>>, vector<1x8x8x128xbf16>,
    %4 = vector.extract_strided_slice %1 {offsets = [0, 0, 1, 0], sizes = [1, 8, 8, 128], strides = [1, 1, 1, 1]} : vector<1x10x10x128xbf16> to vector<1x8x8x128xbf16>
    %c0_7 = arith.constant 0 : index
    %c0_8 = arith.constant 0 : index
    %c0_9 = arith.constant 0 : index
    %c128 = arith.constant 128 : index
    %5 = vector.load %arg11[%c0_7, %c0_8, %c0_9, %c128] : memref<1x8x8x1152xbf16, #tpu.memory_space<vmem>>, vector<1x8x8x128xbf16>
    tpu.vector_store %arg11[%c0_7, %c0_8, %c0_9, %c128], %4 {strides = array<i32>} : memref<1x8x8x1152xbf16, #tpu.memory_space<vmem>>, vector<1x8x8x128xbf16>,
    %6 = vector.extract_strided_slice %1 {offsets = [0, 0, 2, 0], sizes = [1, 8, 8, 128], strides = [1, 1, 1, 1]} : vector<1x10x10x128xbf16> to vector<1x8x8x128xbf16>
    %c0_10 = arith.constant 0 : index
    %c0_11 = arith.constant 0 : index
    %c0_12 = arith.constant 0 : index
    %c256 = arith.constant 256 : index
    %7 = vector.load %arg11[%c0_10, %c0_11, %c0_12, %c256] : memref<1x8x8x1152xbf16, #tpu.memory_space<vmem>>, vector<1x8x8x128xbf16>
    tpu.vector_store %arg11[%c0_10, %c0_11, %c0_12, %c256], %6 {strides = array<i32>} : memref<1x8x8x1152xbf16, #tpu.memory_space<vmem>>, vector<1x8x8x128xbf16>,
    %8 = vector.extract_strided_slice %1 {offsets = [0, 1, 0, 0], sizes = [1, 8, 8, 128], strides = [1, 1, 1, 1]} : vector<1x10x10x128xbf16> to vector<1x8x8x128xbf16>
    %c0_13 = arith.constant 0 : index
    %c0_14 = arith.constant 0 : index
    %c0_15 = arith.constant 0 : index
    %c384 = arith.constant 384 : index
    %9 = vector.load %arg11[%c0_13, %c0_14, %c0_15, %c384] : memref<1x8x8x1152xbf16, #tpu.memory_space<vmem>>, vector<1x8x8x128xbf16>
    tpu.vector_store %arg11[%c0_13, %c0_14, %c0_15, %c384], %8 {strides = array<i32>} : memref<1x8x8x1152xbf16, #tpu.memory_space<vmem>>, vector<1x8x8x128xbf16>,
    %10 = vector.extract_strided_slice %1 {offsets = [0, 1, 1, 0], sizes = [1, 8, 8, 128], strides = [1, 1, 1, 1]} : vector<1x10x10x128xbf16> to vector<1x8x8x128xbf16>
    %c0_16 = arith.constant 0 : index
    %c0_17 = arith.constant 0 : index
    %c0_18 = arith.constant 0 : index
    %c512 = arith.constant 512 : index
    %11 = vector.load %arg11[%c0_16, %c0_17, %c0_18, %c512] : memref<1x8x8x1152xbf16, #tpu.memory_space<vmem>>, vector<1x8x8x128xbf16>
    tpu.vector_store %arg11[%c0_16, %c0_17, %c0_18, %c512], %10 {strides = array<i32>} : memref<1x8x8x1152xbf16, #tpu.memory_space<vmem>>, vector<1x8x8x128xbf16>,
    %12 = vector.extract_strided_slice %1 {offsets = [0, 1, 2, 0], sizes = [1, 8, 8, 128], strides = [1, 1, 1, 1]} : vector<1x10x10x128xbf16> to vector<1x8x8x128xbf16>
    %c0_19 = arith.constant 0 : index
    %c0_20 = arith.constant 0 : index
    %c0_21 = arith.constant 0 : index
    %c640 = arith.constant 640 : index
    %13 = vector.load %arg11[%c0_19, %c0_20, %c0_21, %c640] : memref<1x8x8x1152xbf16, #tpu.memory_space<vmem>>, vector<1x8x8x128xbf16>
    tpu.vector_store %arg11[%c0_19, %c0_20, %c0_21, %c640], %12 {strides = array<i32>} : memref<1x8x8x1152xbf16, #tpu.memory_space<vmem>>, vector<1x8x8x128xbf16>,
    %14 = vector.extract_strided_slice %1 {offsets = [0, 2, 0, 0], sizes = [1, 8, 8, 128], strides = [1, 1, 1, 1]} : vector<1x10x10x128xbf16> to vector<1x8x8x128xbf16>
    %c0_22 = arith.constant 0 : index
    %c0_23 = arith.constant 0 : index
    %c0_24 = arith.constant 0 : index
    %c768 = arith.constant 768 : index
    %15 = vector.load %arg11[%c0_22, %c0_23, %c0_24, %c768] : memref<1x8x8x1152xbf16, #tpu.memory_space<vmem>>, vector<1x8x8x128xbf16>
    tpu.vector_store %arg11[%c0_22, %c0_23, %c0_24, %c768], %14 {strides = array<i32>} : memref<1x8x8x1152xbf16, #tpu.memory_space<vmem>>, vector<1x8x8x128xbf16>,
    %16 = vector.extract_strided_slice %1 {offsets = [0, 2, 1, 0], sizes = [1, 8, 8, 128], strides = [1, 1, 1, 1]} : vector<1x10x10x128xbf16> to vector<1x8x8x128xbf16>
    %c0_25 = arith.constant 0 : index
    %c0_26 = arith.constant 0 : index
    %c0_27 = arith.constant 0 : index
    %c896 = arith.constant 896 : index
    %17 = vector.load %arg11[%c0_25, %c0_26, %c0_27, %c896] : memref<1x8x8x1152xbf16, #tpu.memory_space<vmem>>, vector<1x8x8x128xbf16>
    tpu.vector_store %arg11[%c0_25, %c0_26, %c0_27, %c896], %16 {strides = array<i32>} : memref<1x8x8x1152xbf16, #tpu.memory_space<vmem>>, vector<1x8x8x128xbf16>,
    %18 = vector.extract_strided_slice %1 {offsets = [0, 2, 2, 0], sizes = [1, 8, 8, 128], strides = [1, 1, 1, 1]} : vector<1x10x10x128xbf16> to vector<1x8x8x128xbf16>
    %c0_28 = arith.constant 0 : index
    %c0_29 = arith.constant 0 : index
    %c0_30 = arith.constant 0 : index
    %c1024 = arith.constant 1024 : index
    %19 = vector.load %arg11[%c0_28, %c0_29, %c0_30, %c1024] : memref<1x8x8x1152xbf16, #tpu.memory_space<vmem>>, vector<1x8x8x128xbf16>
    tpu.vector_store %arg11[%c0_28, %c0_29, %c0_30, %c1024], %18 {strides = array<i32>} : memref<1x8x8x1152xbf16, #tpu.memory_space<vmem>>, vector<1x8x8x128xbf16>,
    %c0_31 = arith.constant 0 : index
    %c0_32 = arith.constant 0 : index
    %c0_33 = arith.constant 0 : index
    %c0_34 = arith.constant 0 : index
    %20 = vector.load %arg11[%c0_31, %c0_32, %c0_33, %c0_34] : memref<1x8x8x1152xbf16, #tpu.memory_space<vmem>>, vector<1x8x8x1152xbf16>
    %21 = vector.shape_cast %20 : vector<1x8x8x1152xbf16> to vector<64x1152xbf16>
    %c0_35 = arith.constant 0 : index
    %c0_36 = arith.constant 0 : index
    %22 = vector.load %arg2[%c0_35, %c0_36] : memref<1152x128xbf16, #tpu.memory_space<vmem>>, vector<1152x128xbf16>
    %cst = arith.constant dense<0.000000e+00> : vector<64x128xf32>
    %23 = tpu.matmul %21, %22, %cst {dimension_numbers = #tpu.dot_dimension_numbers<[1], [0], [0], [1], [0, 0, 1, 1], [], []>} : vector<64x1152xbf16>, vector<1152x128xbf16>, vector<64x128xf32> -> vector<64x128xf32>
    %c0_37 = arith.constant 0 : index
    %c0_38 = arith.constant 0 : index
    %24 = vector.load %arg5[%c0_37, %c0_38] : memref<1x128xf32, #tpu.memory_space<vmem>>, vector<1x128xf32>
    %25 = vector.broadcast %24 : vector<1x128xf32> to vector<64x128xf32>
    %26 = arith.addf %23, %25 : vector<64x128xf32>
    %cst_39 = arith.constant 0.0883883461 : f32
    %27 = vector.broadcast %cst_39 : f32 to vector<64x128xf32>
    %28 = arith.mulf %26, %27 : vector<64x128xf32>
    %c0_40 = arith.constant 0 : index
    %c0_41 = arith.constant 0 : index
    %29 = vector.load %arg3[%c0_40, %c0_41] : memref<1152x128xbf16, #tpu.memory_space<vmem>>, vector<1152x128xbf16>
    %cst_42 = arith.constant dense<0.000000e+00> : vector<64x128xf32>
    %30 = tpu.matmul %21, %29, %cst_42 {dimension_numbers = #tpu.dot_dimension_numbers<[1], [0], [0], [1], [0, 0, 1, 1], [], []>} : vector<64x1152xbf16>, vector<1152x128xbf16>, vector<64x128xf32> -> vector<64x128xf32>
    %c0_43 = arith.constant 0 : index
    %c0_44 = arith.constant 0 : index
    %31 = vector.load %arg6[%c0_43, %c0_44] : memref<1x128xf32, #tpu.memory_space<vmem>>, vector<1x128xf32>
    %32 = vector.broadcast %31 : vector<1x128xf32> to vector<64x128xf32>
    %33 = arith.addf %30, %32 : vector<64x128xf32>
    %c0_45 = arith.constant 0 : index
    %c0_46 = arith.constant 0 : index
    %34 = vector.load %arg4[%c0_45, %c0_46] : memref<1152x128xbf16, #tpu.memory_space<vmem>>, vector<1152x128xbf16>
    %cst_47 = arith.constant dense<0.000000e+00> : vector<64x128xf32>
    %35 = tpu.matmul %21, %34, %cst_47 {dimension_numbers = #tpu.dot_dimension_numbers<[1], [0], [0], [1], [0, 0, 1, 1], [], []>} : vector<64x1152xbf16>, vector<1152x128xbf16>, vector<64x128xf32> -> vector<64x128xf32>
    %c0_48 = arith.constant 0 : index
    %c0_49 = arith.constant 0 : index
    %36 = vector.load %arg7[%c0_48, %c0_49] : memref<1x128xf32, #tpu.memory_space<vmem>>, vector<1x128xf32>
    %37 = vector.broadcast %36 : vector<1x128xf32> to vector<64x128xf32>
    %38 = arith.addf %35, %37 : vector<64x128xf32>
    %39 = vector.shape_cast %28 : vector<64x128xf32> to vector<1x64x128xf32>
    %40 = arith.truncf %39 : vector<1x64x128xf32> to vector<1x64x128xbf16>
    %41 = vector.shape_cast %33 : vector<64x128xf32> to vector<1x64x128xf32>
    %42 = arith.truncf %41 : vector<1x64x128xf32> to vector<1x64x128xbf16>
    %43 = vector.shape_cast %38 : vector<64x128xf32> to vector<1x64x128xf32>
    %44 = arith.truncf %43 : vector<1x64x128xf32> to vector<1x64x128xbf16>
    %cst_50 = arith.constant dense<0.000000e+00> : vector<1x64x64xf32>
    %45 = tpu.matmul %40, %42, %cst_50 {dimension_numbers = #tpu.dot_dimension_numbers<[2], [2], [1], [1], [0, 0, 0, 1, 1, 1], [0], [0]>} : vector<1x64x128xbf16>, vector<1x64x128xbf16>, vector<1x64x64xf32> -> vector<1x64x64xf32>
    %cst_51 = arith.constant dense<0xFF800000> : vector<1x64xf32>
    %46 = vector.multi_reduction <maximumf>, %45, %cst_51 [2] : vector<1x64x64xf32> to vector<1x64xf32>
    %47 = vector.shape_cast %46 : vector<1x64xf32> to vector<1x64x1xf32>
    %48 = vector.broadcast %47 : vector<1x64x1xf32> to vector<1x64x64xf32>
    %49 = arith.subf %45, %48 : vector<1x64x64xf32>
    %50 = math.exp %49 : vector<1x64x64xf32>
    %cst_52 = arith.constant dense<0.000000e+00> : vector<1x64xf32>
    %51 = vector.multi_reduction <add>, %50, %cst_52 [2] : vector<1x64x64xf32> to vector<1x64xf32>
    %52 = vector.shape_cast %51 : vector<1x64xf32> to vector<1x64x1xf32>
    %53 = arith.truncf %50 : vector<1x64x64xf32> to vector<1x64x64xbf16>
    %cst_53 = arith.constant dense<0.000000e+00> : vector<1x64x128xf32>
    %54 = tpu.matmul %53, %44, %cst_53 {dimension_numbers = #tpu.dot_dimension_numbers<[2], [1], [1], [2], [0, 0, 0, 1, 1, 2], [0], [0]>} : vector<1x64x64xbf16>, vector<1x64x128xbf16>, vector<1x64x128xf32> -> vector<1x64x128xf32>
    %55 = tpu.reciprocal %52 : vector<1x64x1xf32> -> vector<1x64x1xf32>
    %56 = vector.broadcast %55 : vector<1x64x1xf32> to vector<1x64x128xf32>
    %57 = arith.mulf %54, %56 : vector<1x64x128xf32>
    %58 = vector.shape_cast %57 : vector<1x64x128xf32> to vector<64x128xf32>
    %59 = arith.truncf %58 : vector<64x128xf32> to vector<64x128xbf16>
    %c0_54 = arith.constant 0 : index
    %c0_55 = arith.constant 0 : index
    %60 = vector.load %arg8[%c0_54, %c0_55] : memref<128x128xbf16, #tpu.memory_space<vmem>>, vector<128x128xbf16>
    %cst_56 = arith.constant dense<0.000000e+00> : vector<64x128xf32>
    %61 = tpu.matmul %59, %60, %cst_56 {dimension_numbers = #tpu.dot_dimension_numbers<[1], [0], [0], [1], [0, 0, 1, 1], [], []>} : vector<64x128xbf16>, vector<128x128xbf16>, vector<64x128xf32> -> vector<64x128xf32>
    %c0_57 = arith.constant 0 : index
    %c0_58 = arith.constant 0 : index
    %62 = vector.load %arg9[%c0_57, %c0_58] : memref<1x128xf32, #tpu.memory_space<vmem>>, vector<1x128xf32>
    %63 = vector.broadcast %62 : vector<1x128xf32> to vector<64x128xf32>
    %64 = arith.addf %61, %63 : vector<64x128xf32>
    %65 = vector.extract_strided_slice %0 {offsets = [0, 1, 1, 0], sizes = [1, 8, 8, 128], strides = [1, 1, 1, 1]} : vector<1x10x10x128xf32> to vector<1x8x8x128xf32>
    %66 = vector.shape_cast %65 : vector<1x8x8x128xf32> to vector<64x128xf32>
    %67 = arith.addf %66, %64 : vector<64x128xf32>
    %68 = vector.shape_cast %67 : vector<64x128xf32> to vector<1x64x128xf32>
    %c0_59 = arith.constant 0 : index
    %c0_60 = arith.constant 0 : index
    %c0_61 = arith.constant 0 : index
    %69 = vector.load %arg10[%c0_59, %c0_60, %c0_61] : memref<1x64x128xf32, #tpu.memory_space<vmem>>, vector<1x64x128xf32>
    tpu.vector_store %arg10[%c0_59, %c0_60, %c0_61], %68 {strides = array<i32>} : memref<1x64x128xf32, #tpu.memory_space<vmem>>, vector<1x64x128xf32>,
    return
  }
  func.func @transform_0(%arg0: i32) -> (i32, i32, i32, i32) {
    %c0_i32 = arith.constant 0 : i32
    %c0_i32_0 = arith.constant 0 : i32
    %c0_i32_1 = arith.constant 0 : i32
    %c0_i32_2 = arith.constant 0 : i32
    return %arg0, %c0_i32, %c0_i32_0, %c0_i32_1 : i32, i32, i32, i32
  }
  func.func @transform_1(%arg0: i32) -> (i32, i32) {
    %c0_i32 = arith.constant 0 : i32
    %c0_i32_0 = arith.constant 0 : i32
    %c0_i32_1 = arith.constant 0 : i32
    return %c0_i32, %c0_i32_0 : i32, i32
  }
  func.func @transform_2(%arg0: i32) -> (i32, i32) {
    %c0_i32 = arith.constant 0 : i32
    %c0_i32_0 = arith.constant 0 : i32
    %c0_i32_1 = arith.constant 0 : i32
    return %c0_i32, %c0_i32_0 : i32, i32
  }
  func.func @transform_3(%arg0: i32) -> (i32, i32) {
    %c0_i32 = arith.constant 0 : i32
    %c0_i32_0 = arith.constant 0 : i32
    %c0_i32_1 = arith.constant 0 : i32
    return %c0_i32, %c0_i32_0 : i32, i32
  }
  func.func @transform_4(%arg0: i32) -> (i32, i32) {
    %c0_i32 = arith.constant 0 : i32
    %c0_i32_0 = arith.constant 0 : i32
    %c0_i32_1 = arith.constant 0 : i32
    return %c0_i32, %c0_i32_0 : i32, i32
  }
  func.func @transform_5(%arg0: i32) -> (i32, i32) {
    %c0_i32 = arith.constant 0 : i32
    %c0_i32_0 = arith.constant 0 : i32
    %c0_i32_1 = arith.constant 0 : i32
    return %c0_i32, %c0_i32_0 : i32, i32
  }
  func.func @transform_6(%arg0: i32) -> (i32, i32) {
    %c0_i32 = arith.constant 0 : i32
    %c0_i32_0 = arith.constant 0 : i32
    %c0_i32_1 = arith.constant 0 : i32
    return %c0_i32, %c0_i32_0 : i32, i32
  }
  func.func @transform_7(%arg0: i32) -> (i32, i32) {
    %c0_i32 = arith.constant 0 : i32
    %c0_i32_0 = arith.constant 0 : i32
    %c0_i32_1 = arith.constant 0 : i32
    return %c0_i32, %c0_i32_0 : i32, i32
  }
  func.func @transform_8(%arg0: i32) -> (i32, i32) {
    %c0_i32 = arith.constant 0 : i32
    %c0_i32_0 = arith.constant 0 : i32
    %c0_i32_1 = arith.constant 0 : i32
    return %c0_i32, %c0_i32_0 : i32, i32
  }
  func.func @transform_9(%arg0: i32) -> (i32, i32, i32) {
    %c0_i32 = arith.constant 0 : i32
    %c0_i32_0 = arith.constant 0 : i32
    %c0_i32_1 = arith.constant 0 : i32
    return %arg0, %c0_i32, %c0_i32_0 : i32, i32, i32
  }
}

module attributes {stable_mosaic.version = 11 : i64} {
  func.func @attn_block_kernel(%arg0: i32, %arg1: memref<1x10x10x128xf32, #tpu.memory_space<vmem>>, %arg2: memref<1152x128xbf16, #tpu.memory_space<vmem>>, %arg3: memref<1152x128xbf16, #tpu.memory_space<vmem>>, %arg4: memref<1152x128xbf16, #tpu.memory_space<vmem>>, %arg5: memref<1x128xf32, #tpu.memory_space<vmem>>, %arg6: memref<1x128xf32, #tpu.memory_space<vmem>>, %arg7: memref<1x128xf32, #tpu.memory_space<vmem>>, %arg8: memref<128x128xbf16, #tpu.memory_space<vmem>>, %arg9: memref<1x128xf32, #tpu.memory_space<vmem>>, %arg10: memref<1x64x128xf32, #tpu.memory_space<vmem>>, %arg11: memref<1x8x8x1152xbf16, #tpu.memory_space<vmem>>) attributes {dimension_semantics = [#tpu.dimension_semantics<parallel>], iteration_bounds = array<i64: 2>, scalar_prefetch = 0 : i64, scratch_operands = 1 : i64, tpu.core_type = #tpu.core_type<tc>, window_params = [{transform_indices = @transform_0, window_bounds = array<i64: 1, 10, 10, 128>}, {pipeline_mode = #tpu.pipeline_mode<synchronous>, transform_indices = @transform_1, window_bounds = array<i64: 1152, 128>}, {pipeline_mode = #tpu.pipeline_mode<synchronous>, transform_indices = @transform_2, window_bounds = array<i64: 1152, 128>}, {pipeline_mode = #tpu.pipeline_mode<synchronous>, transform_indices = @transform_3, window_bounds = array<i64: 1152, 128>}, {pipeline_mode = #tpu.pipeline_mode<synchronous>, transform_indices = @transform_4, window_bounds = array<i64: 1, 128>}, {pipeline_mode = #tpu.pipeline_mode<synchronous>, transform_indices = @transform_5, window_bounds = array<i64: 1, 128>}, {pipeline_mode = #tpu.pipeline_mode<synchronous>, transform_indices = @transform_6, window_bounds = array<i64: 1, 128>}, {pipeline_mode = #tpu.pipeline_mode<synchronous>, transform_indices = @transform_7, window_bounds = array<i64: 128, 128>}, {pipeline_mode = #tpu.pipeline_mode<synchronous>, transform_indices = @transform_8, window_bounds = array<i64: 1, 128>}, {transform_indices = @transform_9, window_bounds = array<i64: 1, 64, 128>}]} {
    %c0 = arith.constant 0 : index
    %c0_0 = arith.constant 0 : index
    %c0_1 = arith.constant 0 : index
    %c0_2 = arith.constant 0 : index
    %0 = vector.load %arg1[%c0, %c0_0, %c0_1, %c0_2] : memref<1x10x10x128xf32, #tpu.memory_space<vmem>>, vector<1x10x10x128xf32>
    %1 = arith.truncf %0 : vector<1x10x10x128xf32> to vector<1x10x10x128xbf16>
    %2 = vector.extract_strided_slice %1 {offsets = [0, 0, 0, 0], sizes = [1, 8, 8, 128], strides = [1, 1, 1, 1]} : vector<1x10x10x128xbf16> to vector<1x8x8x128xbf16>
    %c0_3 = arith.constant 0 : index
    %c0_4 = arith.constant 0 : index
    %c0_5 = arith.constant 0 : index
    %c0_6 = arith.constant 0 : index
    %3 = vector.load %arg11[%c0_3, %c0_4, %c0_5, %c0_6] : memref<1x8x8x1152xbf16, #tpu.memory_space<vmem>>, vector<1x8x8x128xbf16>
    tpu.vector_store %arg11[%c0_3, %c0_4, %c0_5, %c0_6], %2 {strides = array<i32>} : memref<1x8x8x1152xbf16, #tpu.memory_space<vmem>>, vector<1x8x8x128xbf16>,
    %4 = vector.extract_strided_slice %1 {offsets = [0, 0, 1, 0], sizes = [1, 8, 8, 128], strides = [1, 1, 1, 1]} : vector<1x10x10x128xbf16> to vector<1x8x8x128xbf16>
    %c0_7 = arith.constant 0 : index
    %c0_8 = arith.constant 0 : index
    %c0_9 = arith.constant 0 : index
    %c128 = arith.constant 128 : index
    %5 = vector.load %arg11[%c0_7, %c0_8, %c0_9, %c128] : memref<1x8x8x1152xbf16, #tpu.memory_space<vmem>>, vector<1x8x8x128xbf16>
    tpu.vector_store %arg11[%c0_7, %c0_8, %c0_9, %c128], %4 {strides = array<i32>} : memref<1x8x8x1152xbf16, #tpu.memory_space<vmem>>, vector<1x8x8x128xbf16>,
    %6 = vector.extract_strided_slice %1 {offsets = [0, 0, 2, 0], sizes = [1, 8, 8, 128], strides = [1, 1, 1, 1]} : vector<1x10x10x128xbf16> to vector<1x8x8x128xbf16>
    %c0_10 = arith.constant 0 : index
    %c0_11 = arith.constant 0 : index
    %c0_12 = arith.constant 0 : index
    %c256 = arith.constant 256 : index
    %7 = vector.load %arg11[%c0_10, %c0_11, %c0_12, %c256] : memref<1x8x8x1152xbf16, #tpu.memory_space<vmem>>, vector<1x8x8x128xbf16>
    tpu.vector_store %arg11[%c0_10, %c0_11, %c0_12, %c256], %6 {strides = array<i32>} : memref<1x8x8x1152xbf16, #tpu.memory_space<vmem>>, vector<1x8x8x128xbf16>,
    %8 = vector.extract_strided_slice %1 {offsets = [0, 1, 0, 0], sizes = [1, 8, 8, 128], strides = [1, 1, 1, 1]} : vector<1x10x10x128xbf16> to vector<1x8x8x128xbf16>
    %c0_13 = arith.constant 0 : index
    %c0_14 = arith.constant 0 : index
    %c0_15 = arith.constant 0 : index
    %c384 = arith.constant 384 : index
    %9 = vector.load %arg11[%c0_13, %c0_14, %c0_15, %c384] : memref<1x8x8x1152xbf16, #tpu.memory_space<vmem>>, vector<1x8x8x128xbf16>
    tpu.vector_store %arg11[%c0_13, %c0_14, %c0_15, %c384], %8 {strides = array<i32>} : memref<1x8x8x1152xbf16, #tpu.memory_space<vmem>>, vector<1x8x8x128xbf16>,
    %10 = vector.extract_strided_slice %1 {offsets = [0, 1, 1, 0], sizes = [1, 8, 8, 128], strides = [1, 1, 1, 1]} : vector<1x10x10x128xbf16> to vector<1x8x8x128xbf16>
    %c0_16 = arith.constant 0 : index
    %c0_17 = arith.constant 0 : index
    %c0_18 = arith.constant 0 : index
    %c512 = arith.constant 512 : index
    %11 = vector.load %arg11[%c0_16, %c0_17, %c0_18, %c512] : memref<1x8x8x1152xbf16, #tpu.memory_space<vmem>>, vector<1x8x8x128xbf16>
    tpu.vector_store %arg11[%c0_16, %c0_17, %c0_18, %c512], %10 {strides = array<i32>} : memref<1x8x8x1152xbf16, #tpu.memory_space<vmem>>, vector<1x8x8x128xbf16>,
    %12 = vector.extract_strided_slice %1 {offsets = [0, 1, 2, 0], sizes = [1, 8, 8, 128], strides = [1, 1, 1, 1]} : vector<1x10x10x128xbf16> to vector<1x8x8x128xbf16>
    %c0_19 = arith.constant 0 : index
    %c0_20 = arith.constant 0 : index
    %c0_21 = arith.constant 0 : index
    %c640 = arith.constant 640 : index
    %13 = vector.load %arg11[%c0_19, %c0_20, %c0_21, %c640] : memref<1x8x8x1152xbf16, #tpu.memory_space<vmem>>, vector<1x8x8x128xbf16>
    tpu.vector_store %arg11[%c0_19, %c0_20, %c0_21, %c640], %12 {strides = array<i32>} : memref<1x8x8x1152xbf16, #tpu.memory_space<vmem>>, vector<1x8x8x128xbf16>,
    %14 = vector.extract_strided_slice %1 {offsets = [0, 2, 0, 0], sizes = [1, 8, 8, 128], strides = [1, 1, 1, 1]} : vector<1x10x10x128xbf16> to vector<1x8x8x128xbf16>
    %c0_22 = arith.constant 0 : index
    %c0_23 = arith.constant 0 : index
    %c0_24 = arith.constant 0 : index
    %c768 = arith.constant 768 : index
    %15 = vector.load %arg11[%c0_22, %c0_23, %c0_24, %c768] : memref<1x8x8x1152xbf16, #tpu.memory_space<vmem>>, vector<1x8x8x128xbf16>
    tpu.vector_store %arg11[%c0_22, %c0_23, %c0_24, %c768], %14 {strides = array<i32>} : memref<1x8x8x1152xbf16, #tpu.memory_space<vmem>>, vector<1x8x8x128xbf16>,
    %16 = vector.extract_strided_slice %1 {offsets = [0, 2, 1, 0], sizes = [1, 8, 8, 128], strides = [1, 1, 1, 1]} : vector<1x10x10x128xbf16> to vector<1x8x8x128xbf16>
    %c0_25 = arith.constant 0 : index
    %c0_26 = arith.constant 0 : index
    %c0_27 = arith.constant 0 : index
    %c896 = arith.constant 896 : index
    %17 = vector.load %arg11[%c0_25, %c0_26, %c0_27, %c896] : memref<1x8x8x1152xbf16, #tpu.memory_space<vmem>>, vector<1x8x8x128xbf16>
    tpu.vector_store %arg11[%c0_25, %c0_26, %c0_27, %c896], %16 {strides = array<i32>} : memref<1x8x8x1152xbf16, #tpu.memory_space<vmem>>, vector<1x8x8x128xbf16>,
    %18 = vector.extract_strided_slice %1 {offsets = [0, 2, 2, 0], sizes = [1, 8, 8, 128], strides = [1, 1, 1, 1]} : vector<1x10x10x128xbf16> to vector<1x8x8x128xbf16>
    %c0_28 = arith.constant 0 : index
    %c0_29 = arith.constant 0 : index
    %c0_30 = arith.constant 0 : index
    %c1024 = arith.constant 1024 : index
    %19 = vector.load %arg11[%c0_28, %c0_29, %c0_30, %c1024] : memref<1x8x8x1152xbf16, #tpu.memory_space<vmem>>, vector<1x8x8x128xbf16>
    tpu.vector_store %arg11[%c0_28, %c0_29, %c0_30, %c1024], %18 {strides = array<i32>} : memref<1x8x8x1152xbf16, #tpu.memory_space<vmem>>, vector<1x8x8x128xbf16>,
    %c0_31 = arith.constant 0 : index
    %c0_32 = arith.constant 0 : index
    %c0_33 = arith.constant 0 : index
    %c0_34 = arith.constant 0 : index
    %20 = vector.load %arg11[%c0_31, %c0_32, %c0_33, %c0_34] : memref<1x8x8x1152xbf16, #tpu.memory_space<vmem>>, vector<1x8x8x1152xbf16>
    %21 = vector.shape_cast %20 : vector<1x8x8x1152xbf16> to vector<64x1152xbf16>
    %c0_35 = arith.constant 0 : index
    %c0_36 = arith.constant 0 : index
    %22 = vector.load %arg2[%c0_35, %c0_36] : memref<1152x128xbf16, #tpu.memory_space<vmem>>, vector<1152x128xbf16>
    %cst = arith.constant dense<0.000000e+00> : vector<64x128xf32>
    %23 = tpu.matmul %21, %22, %cst {dimension_numbers = #tpu.dot_dimension_numbers<[1], [0], [0], [1], [0, 0, 1, 1], [], []>} : vector<64x1152xbf16>, vector<1152x128xbf16>, vector<64x128xf32> -> vector<64x128xf32>
    %c0_37 = arith.constant 0 : index
    %c0_38 = arith.constant 0 : index
    %24 = vector.load %arg5[%c0_37, %c0_38] : memref<1x128xf32, #tpu.memory_space<vmem>>, vector<1x128xf32>
    %25 = vector.broadcast %24 : vector<1x128xf32> to vector<64x128xf32>
    %26 = arith.addf %23, %25 : vector<64x128xf32>
    %cst_39 = arith.constant 0.0883883461 : f32
    %27 = vector.broadcast %cst_39 : f32 to vector<64x128xf32>
    %28 = arith.mulf %26, %27 : vector<64x128xf32>
    %c0_40 = arith.constant 0 : index
    %c0_41 = arith.constant 0 : index
    %29 = vector.load %arg3[%c0_40, %c0_41] : memref<1152x128xbf16, #tpu.memory_space<vmem>>, vector<1152x128xbf16>
    %cst_42 = arith.constant dense<0.000000e+00> : vector<64x128xf32>
    %30 = tpu.matmul %21, %29, %cst_42 {dimension_numbers = #tpu.dot_dimension_numbers<[1], [0], [0], [1], [0, 0, 1, 1], [], []>} : vector<64x1152xbf16>, vector<1152x128xbf16>, vector<64x128xf32> -> vector<64x128xf32>
    %c0_43 = arith.constant 0 : index
    %c0_44 = arith.constant 0 : index
    %31 = vector.load %arg6[%c0_43, %c0_44] : memref<1x128xf32, #tpu.memory_space<vmem>>, vector<1x128xf32>
    %32 = vector.broadcast %31 : vector<1x128xf32> to vector<64x128xf32>
    %33 = arith.addf %30, %32 : vector<64x128xf32>
    %c0_45 = arith.constant 0 : index
    %c0_46 = arith.constant 0 : index
    %34 = vector.load %arg4[%c0_45, %c0_46] : memref<1152x128xbf16, #tpu.memory_space<vmem>>, vector<1152x128xbf16>
    %cst_47 = arith.constant dense<0.000000e+00> : vector<64x128xf32>
    %35 = tpu.matmul %21, %34, %cst_47 {dimension_numbers = #tpu.dot_dimension_numbers<[1], [0], [0], [1], [0, 0, 1, 1], [], []>} : vector<64x1152xbf16>, vector<1152x128xbf16>, vector<64x128xf32> -> vector<64x128xf32>
    %c0_48 = arith.constant 0 : index
    %c0_49 = arith.constant 0 : index
    %36 = vector.load %arg7[%c0_48, %c0_49] : memref<1x128xf32, #tpu.memory_space<vmem>>, vector<1x128xf32>
    %37 = vector.broadcast %36 : vector<1x128xf32> to vector<64x128xf32>
    %38 = arith.addf %35, %37 : vector<64x128xf32>
    %39 = vector.shape_cast %28 : vector<64x128xf32> to vector<1x64x128xf32>
    %40 = arith.truncf %39 : vector<1x64x128xf32> to vector<1x64x128xbf16>
    %41 = vector.shape_cast %33 : vector<64x128xf32> to vector<1x64x128xf32>
    %42 = arith.truncf %41 : vector<1x64x128xf32> to vector<1x64x128xbf16>
    %43 = vector.shape_cast %38 : vector<64x128xf32> to vector<1x64x128xf32>
    %44 = arith.truncf %43 : vector<1x64x128xf32> to vector<1x64x128xbf16>
    %cst_50 = arith.constant dense<0.000000e+00> : vector<1x64x64xf32>
    %45 = tpu.matmul %40, %42, %cst_50 {dimension_numbers = #tpu.dot_dimension_numbers<[2], [2], [1], [1], [0, 0, 0, 1, 1, 1], [0], [0]>} : vector<1x64x128xbf16>, vector<1x64x128xbf16>, vector<1x64x64xf32> -> vector<1x64x64xf32>
    %cst_51 = arith.constant dense<0xFF800000> : vector<1x64xf32>
    %46 = vector.multi_reduction <maximumf>, %45, %cst_51 [2] : vector<1x64x64xf32> to vector<1x64xf32>
    %47 = vector.shape_cast %46 : vector<1x64xf32> to vector<1x64x1xf32>
    %48 = vector.broadcast %47 : vector<1x64x1xf32> to vector<1x64x64xf32>
    %49 = arith.subf %45, %48 : vector<1x64x64xf32>
    %50 = math.exp %49 : vector<1x64x64xf32>
    %cst_52 = arith.constant dense<0.000000e+00> : vector<1x64xf32>
    %51 = vector.multi_reduction <add>, %50, %cst_52 [2] : vector<1x64x64xf32> to vector<1x64xf32>
    %52 = vector.shape_cast %51 : vector<1x64xf32> to vector<1x64x1xf32>
    %53 = arith.truncf %50 : vector<1x64x64xf32> to vector<1x64x64xbf16>
    %cst_53 = arith.constant dense<0.000000e+00> : vector<1x64x128xf32>
    %54 = tpu.matmul %53, %44, %cst_53 {dimension_numbers = #tpu.dot_dimension_numbers<[2], [1], [1], [2], [0, 0, 0, 1, 1, 2], [0], [0]>} : vector<1x64x64xbf16>, vector<1x64x128xbf16>, vector<1x64x128xf32> -> vector<1x64x128xf32>
    %55 = tpu.reciprocal %52 : vector<1x64x1xf32> -> vector<1x64x1xf32>
    %56 = vector.broadcast %55 : vector<1x64x1xf32> to vector<1x64x128xf32>
    %57 = arith.mulf %54, %56 : vector<1x64x128xf32>
    %58 = vector.shape_cast %57 : vector<1x64x128xf32> to vector<64x128xf32>
    %59 = arith.truncf %58 : vector<64x128xf32> to vector<64x128xbf16>
    %c0_54 = arith.constant 0 : index
    %c0_55 = arith.constant 0 : index
    %60 = vector.load %arg8[%c0_54, %c0_55] : memref<128x128xbf16, #tpu.memory_space<vmem>>, vector<128x128xbf16>
    %cst_56 = arith.constant dense<0.000000e+00> : vector<64x128xf32>
    %61 = tpu.matmul %59, %60, %cst_56 {dimension_numbers = #tpu.dot_dimension_numbers<[1], [0], [0], [1], [0, 0, 1, 1], [], []>} : vector<64x128xbf16>, vector<128x128xbf16>, vector<64x128xf32> -> vector<64x128xf32>
    %c0_57 = arith.constant 0 : index
    %c0_58 = arith.constant 0 : index
    %62 = vector.load %arg9[%c0_57, %c0_58] : memref<1x128xf32, #tpu.memory_space<vmem>>, vector<1x128xf32>
    %63 = vector.broadcast %62 : vector<1x128xf32> to vector<64x128xf32>
    %64 = arith.addf %61, %63 : vector<64x128xf32>
    %65 = vector.extract_strided_slice %0 {offsets = [0, 1, 1, 0], sizes = [1, 8, 8, 128], strides = [1, 1, 1, 1]} : vector<1x10x10x128xf32> to vector<1x8x8x128xf32>
    %66 = vector.shape_cast %65 : vector<1x8x8x128xf32> to vector<64x128xf32>
    %67 = arith.addf %66, %64 : vector<64x128xf32>
    %68 = vector.shape_cast %67 : vector<64x128xf32> to vector<1x64x128xf32>
    %c0_59 = arith.constant 0 : index
    %c0_60 = arith.constant 0 : index
    %c0_61 = arith.constant 0 : index
    %69 = vector.load %arg10[%c0_59, %c0_60, %c0_61] : memref<1x64x128xf32, #tpu.memory_space<vmem>>, vector<1x64x128xf32>
    tpu.vector_store %arg10[%c0_59, %c0_60, %c0_61], %68 {strides = array<i32>} : memref<1x64x128xf32, #tpu.memory_space<vmem>>, vector<1x64x128xf32>,
    return
  }
  func.func @transform_0(%arg0: i32) -> (i32, i32, i32, i32) {
    %c0_i32 = arith.constant 0 : i32
    %c0_i32_0 = arith.constant 0 : i32
    %c0_i32_1 = arith.constant 0 : i32
    %c0_i32_2 = arith.constant 0 : i32
    return %arg0, %c0_i32, %c0_i32_0, %c0_i32_1 : i32, i32, i32, i32
  }
  func.func @transform_1(%arg0: i32) -> (i32, i32) {
    %c0_i32 = arith.constant 0 : i32
    %c0_i32_0 = arith.constant 0 : i32
    %c0_i32_1 = arith.constant 0 : i32
    return %c0_i32, %c0_i32_0 : i32, i32
  }
  func.func @transform_2(%arg0: i32) -> (i32, i32) {
    %c0_i32 = arith.constant 0 : i32
    %c0_i32_0 = arith.constant 0 : i32
    %c0_i32_1 = arith.constant 0 : i32
    return %c0_i32, %c0_i32_0 : i32, i32
  }
  func.func @transform_3(%arg0: i32) -> (i32, i32) {
    %c0_i32 = arith.constant 0 : i32
    %c0_i32_0 = arith.constant 0 : i32
    %c0_i32_1 = arith.constant 0 : i32
    return %c0_i32, %c0_i32_0 : i32, i32
  }
  func.func @transform_4(%arg0: i32) -> (i32, i32) {
    %c0_i32 = arith.constant 0 : i32
    %c0_i32_0 = arith.constant 0 : i32
    %c0_i32_1 = arith.constant 0 : i32
    return %c0_i32, %c0_i32_0 : i32, i32
  }
  func.func @transform_5(%arg0: i32) -> (i32, i32) {
    %c0_i32 = arith.constant 0 : i32
    %c0_i32_0 = arith.constant 0 : i32
    %c0_i32_1 = arith.constant 0 : i32
    return %c0_i32, %c0_i32_0 : i32, i32
  }
  func.func @transform_6(%arg0: i32) -> (i32, i32) {
    %c0_i32 = arith.constant 0 : i32
    %c0_i32_0 = arith.constant 0 : i32
    %c0_i32_1 = arith.constant 0 : i32
    return %c0_i32, %c0_i32_0 : i32, i32
  }
  func.func @transform_7(%arg0: i32) -> (i32, i32) {
    %c0_i32 = arith.constant 0 : i32
    %c0_i32_0 = arith.constant 0 : i32
    %c0_i32_1 = arith.constant 0 : i32
    return %c0_i32, %c0_i32_0 : i32, i32
  }
  func.func @transform_8(%arg0: i32) -> (i32, i32) {
    %c0_i32 = arith.constant 0 : i32
    %c0_i32_0 = arith.constant 0 : i32
    %c0_i32_1 = arith.constant 0 : i32
    return %c0_i32, %c0_i32_0 : i32, i32
  }
  func.func @transform_9(%arg0: i32) -> (i32, i32, i32) {
    %c0_i32 = arith.constant 0 : i32
    %c0_i32_0 = arith.constant 0 : i32
    %c0_i32_1 = arith.constant 0 : i32
    return %arg0, %c0_i32, %c0_i32_0 : i32, i32, i32
  }
}

</mosaic_0001>

<llo_original>
// kernel: attn_block_forward.1
$region0: #{attn_block_forward.1}
  #allocation0 [shape = 'u32[]', space=smem, size = 0x4, offset = 0x4, fixed_abs, tag = 'smem constant byte address 0x4 - core index']
  #allocation1 [shape = 'u32[72,128]{1,0:T(1,128)}', space=vmem, size = 0x9000, scoped, tag = 'internal scratch']
  #allocation2 [shape = 'bf16[1,8,8,1152]{3,2,1,0:T(8,128)(2,1)}', space=vmem, size = 0x24000, scoped, tag = 'scratch operand']
  %s0 = inlined_call_operand.vmem [shape: f32[2,10,10,128], index: 0, kind: input, shape index: {}]
  %s1 = inlined_call_operand.vmem [shape: bf16[1152,128], index: 1, kind: input, shape index: {}]
  %s2 = inlined_call_operand.vmem [shape: bf16[1152,128], index: 2, kind: input, shape index: {}]
  %s3 = inlined_call_operand.vmem [shape: bf16[1152,128], index: 3, kind: input, shape index: {}]
  %s4 = inlined_call_operand.vmem [shape: f32[1,128], index: 4, kind: input, shape index: {}]
  %s5 = inlined_call_operand.vmem [shape: f32[1,128], index: 5, kind: input, shape index: {}]
  %s6 = inlined_call_operand.vmem [shape: f32[1,128], index: 6, kind: input, shape index: {}]
  %s7 = inlined_call_operand.vmem [shape: bf16[128,128], index: 7, kind: input, shape index: {}]
  %s8 = inlined_call_operand.vmem [shape: f32[1,128], index: 8, kind: input, shape index: {}]
  %s9 = inlined_call_operand.hbm [shape: f32[2,64,128], index: 9, kind: output, shape index: {}]
  %s10 = sld [smem:[#allocation0]]
  $region69: #{attn_block_forward.1} parent=0
    _
  %s12 = ssub.s32 1, %s10
  %s13 = scalar_select 0, %s12, %s10
  $region1: #{attn_block_forward.1} parent=0
    #allocation3 [shape = 'u8[65536]{0}', space=vmem, size = 0x10000, scoped, tag = 'output window, operand 0']
    #allocation4 [shape = 's32[2]{0}', space=sflag, size = 0x8, scoped, tag = 'scoped memory for attn_block_forward.1']
    %14 = vsyncpa [#allocation4], 0
    %s15 = scalar_lea.sflag [#allocation4], 1
    %16 = vsyncpa %s15, 0
    loop: start=0, step=1, limit=4
    $region2: #{attn_block_forward.1} parent=1 // loop_pre_header
      _
    $region3: #{attn_block_forward.1} parent=1 // loop_header
      %s18 = sphi 0, %s22
      %p19 = scmp.ge.s32.totalorder %s18, 4
      %s28 = sphi 0, %s30
      %s31 = sphi 0, %s28
      %s32 = sphi 0, %s31
      %s48 = sphi 0, %s32
      %s52 = sphi 0, %s52
      %s54 = sphi 0, %s52
      %s55 = sphi 0, %s54
      %s69 = sphi 0, %s55
      %s73 = sphi 0, %s73
      %s75 = sphi 0, %s73
      %s76 = sphi 0, %s75
      %s90 = sphi 0, %s76
      %s94 = sphi 0, %s94
      %s96 = sphi 0, %s94
      %s97 = sphi 0, %s96
      %s111 = sphi 0, %s97
      %s115 = sphi 0, %s115
      %s117 = sphi 0, %s115
      %s118 = sphi 0, %s117
      %s132 = sphi 0, %s118
      %s136 = sphi 0, %s136
      %s138 = sphi 0, %s136
      %s139 = sphi 0, %s138
      %s153 = sphi 0, %s139
      %s157 = sphi 0, %s157
      %s159 = sphi 0, %s157
      %s160 = sphi 0, %s159
      %s174 = sphi 0, %s160
      %s178 = sphi 0, %s178
      %s180 = sphi 0, %s178
      %s181 = sphi 0, %s180
      %s195 = sphi 0, %s181
      %s199 = sphi 0, %s199
      %s201 = sphi 0, %s199
      %s202 = sphi 0, %s201
      %s216 = sphi 0, %s202
      %s222 = sphi 0, %s224
      %s225 = sphi 0, %s222
      %s226 = sphi 0, %s225
      %s242 = sphi 0, %s226
    $region4: #{attn_block_forward.1} parent=1 // loop_header_branch
      %21 = sbr.rel (%p19) target = $region8
    $region5: #{attn_block_forward.1} parent=1 // loop_body
      %s23 = ssub.s32 %s18, 1
      %s24 = ssub.s32 %s18, 2
      %s25 = sadd.s32 %s18, 1
      %s26 = ssub.s32 %s18, %s25
      %p27 = scmp.eq.s32.totalorder %s26, 0
      %s29 = sadd.s32 %s28, 1
      %s30 = scalar_select %p27, %s28, %s29
      %p33 = pneg %p27
      %p34 = scmp.eq.s32.totalorder %s18, 1
      %p35 = por %p33, %p34
      %p36 = scmp.ne.s32.totalorder %s28, %s31
      %p37 = scmp.eq.s32.totalorder %s18, 0
      %p38 = por %p36, %p37
      %p39 = scmp.ne.s32.totalorder %s28, %s31
      %p40 = scmp.eq.s32.totalorder %s23, 1
      %p41 = por %p39, %p40
      %p42 = scmp.ne.s32.totalorder %s31, %s32
      %p43 = scmp.eq.s32.totalorder %s23, 0
      %p44 = por %p42, %p43
      %p45 = scmp.ne.s32.totalorder %s31, %s32
      %p46 = scmp.eq.s32.totalorder %s24, 1
      %p47 = por %p45, %p46
      %p49 = scmp.ne.s32.totalorder %s32, %s48
      %p50 = scmp.eq.s32.totalorder %s24, 0
      %p51 = por %p49, %p50
      %s53 = sadd.s32 %s52, 1
      %p56 = scmp.eq.s32.totalorder %s18, 1
      %p57 = scmp.ne.s32.totalorder %s52, %s54
      %p58 = scmp.eq.s32.totalorder %s18, 0
      %p59 = por %p57, %p58
      %p60 = scmp.ne.s32.totalorder %s52, %s54
      %p61 = scmp.eq.s32.totalorder %s23, 1
      %p62 = por %p60, %p61
      %p63 = scmp.ne.s32.totalorder %s54, %s55
      %p64 = scmp.eq.s32.totalorder %s23, 0
      %p65 = por %p63, %p64
      %p66 = scmp.ne.s32.totalorder %s54, %s55
      %p67 = scmp.eq.s32.totalorder %s24, 1
      %p68 = por %p66, %p67
      %p70 = scmp.ne.s32.totalorder %s55, %s69
      %p71 = scmp.eq.s32.totalorder %s24, 0
      %p72 = por %p70, %p71
      %s74 = sadd.s32 %s73, 1
      %p77 = scmp.eq.s32.totalorder %s18, 1
      %p78 = scmp.ne.s32.totalorder %s73, %s75
      %p79 = scmp.eq.s32.totalorder %s18, 0
      %p80 = por %p78, %p79
      %p81 = scmp.ne.s32.totalorder %s73, %s75
      %p82 = scmp.eq.s32.totalorder %s23, 1
      %p83 = por %p81, %p82
      %p84 = scmp.ne.s32.totalorder %s75, %s76
      %p85 = scmp.eq.s32.totalorder %s23, 0
      %p86 = por %p84, %p85
      %p87 = scmp.ne.s32.totalorder %s75, %s76
      %p88 = scmp.eq.s32.totalorder %s24, 1
      %p89 = por %p87, %p88
      %p91 = scmp.ne.s32.totalorder %s76, %s90
      %p92 = scmp.eq.s32.totalorder %s24, 0
      %p93 = por %p91, %p92
      %s95 = sadd.s32 %s94, 1
      %p98 = scmp.eq.s32.totalorder %s18, 1
      %p99 = scmp.ne.s32.totalorder %s94, %s96
      %p100 = scmp.eq.s32.totalorder %s18, 0
      %p101 = por %p99, %p100
      %p102 = scmp.ne.s32.totalorder %s94, %s96
      %p103 = scmp.eq.s32.totalorder %s23, 1
      %p104 = por %p102, %p103
      %p105 = scmp.ne.s32.totalorder %s96, %s97
      %p106 = scmp.eq.s32.totalorder %s23, 0
      %p107 = por %p105, %p106
      %p108 = scmp.ne.s32.totalorder %s96, %s97
      %p109 = scmp.eq.s32.totalorder %s24, 1
      %p110 = por %p108, %p109
      %p112 = scmp.ne.s32.totalorder %s97, %s111
      %p113 = scmp.eq.s32.totalorder %s24, 0
      %p114 = por %p112, %p113
      %s116 = sadd.s32 %s115, 1
      %p119 = scmp.eq.s32.totalorder %s18, 1
      %p120 = scmp.ne.s32.totalorder %s115, %s117
      %p121 = scmp.eq.s32.totalorder %s18, 0
      %p122 = por %p120, %p121
      %p123 = scmp.ne.s32.totalorder %s115, %s117
      %p124 = scmp.eq.s32.totalorder %s23, 1
      %p125 = por %p123, %p124
      %p126 = scmp.ne.s32.totalorder %s117, %s118
      %p127 = scmp.eq.s32.totalorder %s23, 0
      %p128 = por %p126, %p127
      %p129 = scmp.ne.s32.totalorder %s117, %s118
      %p130 = scmp.eq.s32.totalorder %s24, 1
      %p131 = por %p129, %p130
      %p133 = scmp.ne.s32.totalorder %s118, %s132
      %p134 = scmp.eq.s32.totalorder %s24, 0
      %p135 = por %p133, %p134
      %s137 = sadd.s32 %s136, 1
      %p140 = scmp.eq.s32.totalorder %s18, 1
      %p141 = scmp.ne.s32.totalorder %s136, %s138
      %p142 = scmp.eq.s32.totalorder %s18, 0
      %p143 = por %p141, %p142
      %p144 = scmp.ne.s32.totalorder %s136, %s138
      %p145 = scmp.eq.s32.totalorder %s23, 1
      %p146 = por %p144, %p145
      %p147 = scmp.ne.s32.totalorder %s138, %s139
      %p148 = scmp.eq.s32.totalorder %s23, 0
      %p149 = por %p147, %p148
      %p150 = scmp.ne.s32.totalorder %s138, %s139
      %p151 = scmp.eq.s32.totalorder %s24, 1
      %p152 = por %p150, %p151
      %p154 = scmp.ne.s32.totalorder %s139, %s153
      %p155 = scmp.eq.s32.totalorder %s24, 0
      %p156 = por %p154, %p155
      %s158 = sadd.s32 %s157, 1
      %p161 = scmp.eq.s32.totalorder %s18, 1
      %p162 = scmp.ne.s32.totalorder %s157, %s159
      %p163 = scmp.eq.s32.totalorder %s18, 0
      %p164 = por %p162, %p163
      %p165 = scmp.ne.s32.totalorder %s157, %s159
      %p166 = scmp.eq.s32.totalorder %s23, 1
      %p167 = por %p165, %p166
      %p168 = scmp.ne.s32.totalorder %s159, %s160
      %p169 = scmp.eq.s32.totalorder %s23, 0
      %p170 = por %p168, %p169
      %p171 = scmp.ne.s32.totalorder %s159, %s160
      %p172 = scmp.eq.s32.totalorder %s24, 1
      %p173 = por %p171, %p172
      %p175 = scmp.ne.s32.totalorder %s160, %s174
      %p176 = scmp.eq.s32.totalorder %s24, 0
      %p177 = por %p175, %p176
      %s179 = sadd.s32 %s178, 1
      %p182 = scmp.eq.s32.totalorder %s18, 1
      %p183 = scmp.ne.s32.totalorder %s178, %s180
      %p184 = scmp.eq.s32.totalorder %s18, 0
      %p185 = por %p183, %p184
      %p186 = scmp.ne.s32.totalorder %s178, %s180
      %p187 = scmp.eq.s32.totalorder %s23, 1
      %p188 = por %p186, %p187
      %p189 = scmp.ne.s32.totalorder %s180, %s181
      %p190 = scmp.eq.s32.totalorder %s23, 0
      %p191 = por %p189, %p190
      %p192 = scmp.ne.s32.totalorder %s180, %s181
      %p193 = scmp.eq.s32.totalorder %s24, 1
      %p194 = por %p192, %p193
      %p196 = scmp.ne.s32.totalorder %s181, %s195
      %p197 = scmp.eq.s32.totalorder %s24, 0
      %p198 = por %p196, %p197
      %s200 = sadd.s32 %s199, 1
      %p203 = scmp.eq.s32.totalorder %s18, 1
      %p204 = scmp.ne.s32.totalorder %s199, %s201
      %p205 = scmp.eq.s32.totalorder %s18, 0
      %p206 = por %p204, %p205
      %p207 = scmp.ne.s32.totalorder %s199, %s201
      %p208 = scmp.eq.s32.totalorder %s23, 1
      %p209 = por %p207, %p208
      %p210 = scmp.ne.s32.totalorder %s201, %s202
      %p211 = scmp.eq.s32.totalorder %s23, 0
      %p212 = por %p210, %p211
      %p213 = scmp.ne.s32.totalorder %s201, %s202
      %p214 = scmp.eq.s32.totalorder %s24, 1
      %p215 = por %p213, %p214
      %p217 = scmp.ne.s32.totalorder %s202, %s216
      %p218 = scmp.eq.s32.totalorder %s24, 0
      %p219 = por %p217, %p218
      %s220 = ssub.s32 %s18, %s25
      %p221 = scmp.eq.s32.totalorder %s220, 0
      %s223 = sadd.s32 %s222, 1
      %s224 = scalar_select %p221, %s222, %s223
      %p227 = pneg %p221
      %p228 = scmp.eq.s32.totalorder %s18, 1
      %p229 = por %p227, %p228
      %p230 = scmp.ne.s32.totalorder %s222, %s225
      %p231 = scmp.eq.s32.totalorder %s18, 0
      %p232 = por %p230, %p231
      %p233 = scmp.ne.s32.totalorder %s222, %s225
      %p234 = scmp.eq.s32.totalorder %s23, 1
      %p235 = por %p233, %p234
      %p236 = scmp.ne.s32.totalorder %s225, %s226
      %p237 = scmp.eq.s32.totalorder %s23, 0
      %p238 = por %p236, %p237
      %p239 = scmp.ne.s32.totalorder %s225, %s226
      %p240 = scmp.eq.s32.totalorder %s24, 1
      %p241 = por %p239, %p240
      %p243 = scmp.ne.s32.totalorder %s226, %s242
      %p244 = scmp.eq.s32.totalorder %s24, 0
      %p245 = por %p243, %p244
      %p246 = scmp.le.s32.totalorder 1, %s18
      %p247 = scmp.lt.s32.totalorder %s18, 3
      %p248 = pnand %p246, %p247
      %p249 = pneg %p248
      // Predicated region
      $region9: #{attn_block_forward.1} parent=5 // pred_check
        _
      $region10: #{attn_block_forward.1} parent=5 // pred_check_branch
        %251 = sbr.rel (%p248) target = $region12
      $region11: #{attn_block_forward.1} parent=5 // pred_region
        %s252 = ssub.s32 %s18, 1
        // Predicated region
        $region13: #{attn_block_forward.1} parent=11 // pred_check
          %p253 = pneg %p65
        $region14: #{attn_block_forward.1} parent=11 // pred_check_branch
          %255 = sbr.rel (%p253) target = $region16
        $region15: #{attn_block_forward.1} parent=11 // pred_region
          _
        $region16: #{attn_block_forward.1} parent=11 // pred_fallthru
          _
        // Predicated region
        $region17: #{attn_block_forward.1} parent=11 // pred_check
          %p256 = pneg %p86
        $region18: #{attn_block_forward.1} parent=11 // pred_check_branch
          %258 = sbr.rel (%p256) target = $region20
        $region19: #{attn_block_forward.1} parent=11 // pred_region
          _
        $region20: #{attn_block_forward.1} parent=11 // pred_fallthru
          _
        // Predicated region
        $region21: #{attn_block_forward.1} parent=11 // pred_check
          %p259 = pneg %p107
        $region22: #{attn_block_forward.1} parent=11 // pred_check_branch
          %261 = sbr.rel (%p259) target = $region24
        $region23: #{attn_block_forward.1} parent=11 // pred_region
          _
        $region24: #{attn_block_forward.1} parent=11 // pred_fallthru
          _
        // Predicated region
        $region25: #{attn_block_forward.1} parent=11 // pred_check
          %p262 = pneg %p128
        $region26: #{attn_block_forward.1} parent=11 // pred_check_branch
          %264 = sbr.rel (%p262) target = $region28
        $region27: #{attn_block_forward.1} parent=11 // pred_region
          _
        $region28: #{attn_block_forward.1} parent=11 // pred_fallthru
          _
        // Predicated region
        $region29: #{attn_block_forward.1} parent=11 // pred_check
          %p265 = pneg %p149
        $region30: #{attn_block_forward.1} parent=11 // pred_check_branch
          %267 = sbr.rel (%p265) target = $region32
        $region31: #{attn_block_forward.1} parent=11 // pred_region
          _
        $region32: #{attn_block_forward.1} parent=11 // pred_fallthru
          _
        // Predicated region
        $region33: #{attn_block_forward.1} parent=11 // pred_check
          %p268 = pneg %p170
        $region34: #{attn_block_forward.1} parent=11 // pred_check_branch
          %270 = sbr.rel (%p268) target = $region36
        $region35: #{attn_block_forward.1} parent=11 // pred_region
          _
        $region36: #{attn_block_forward.1} parent=11 // pred_fallthru
          _
        // Predicated region
        $region37: #{attn_block_forward.1} parent=11 // pred_check
          %p271 = pneg %p191
        $region38: #{attn_block_forward.1} parent=11 // pred_check_branch
          %273 = sbr.rel (%p271) target = $region40
        $region39: #{attn_block_forward.1} parent=11 // pred_region
          _
        $region40: #{attn_block_forward.1} parent=11 // pred_fallthru
          _
        // Predicated region
        $region41: #{attn_block_forward.1} parent=11 // pred_check
          %p274 = pneg %p212
        $region42: #{attn_block_forward.1} parent=11 // pred_check_branch
          %276 = sbr.rel (%p274) target = $region44
        $region43: #{attn_block_forward.1} parent=11 // pred_region
          _
        $region44: #{attn_block_forward.1} parent=11 // pred_fallthru
          _
      $region12: #{attn_block_forward.1} parent=5 // pred_fallthru
        _
      %p277 = scmp.lt.s32.totalorder %s18, 2
      // Predicated region
      $region45: #{attn_block_forward.1} parent=5 // pred_check
        %p278 = pneg %p277
      $region46: #{attn_block_forward.1} parent=5 // pred_check_branch
        %280 = sbr.rel (%p278) target = $region48
      $region47: #{attn_block_forward.1} parent=5 // pred_region
        // Predicated region
        $region49: #{attn_block_forward.1} parent=47 // pred_check
          %p281 = pneg %p38
        $region50: #{attn_block_forward.1} parent=47 // pred_check_branch
          %283 = sbr.rel (%p281) target = $region52
        $region51: #{attn_block_forward.1} parent=47 // pred_region
          %p284 = scmp.lt.s32.totalorder %s18, 1
          %s285 = scalar_select %p284, %s18, 1
          %s286 = smul.addr %s285, 20
          %s287 = smul.addr %s286, 8
          %s288 = scalar_lea.vmem %s0, %s287
        $region52: #{attn_block_forward.1} parent=47 // pred_fallthru
          _
      $region48: #{attn_block_forward.1} parent=5 // pred_fallthru
        _
      %p289 = scmp.le.s32.totalorder 1, %s18
      %p290 = scmp.lt.s32.totalorder %s18, 3
      %p291 = pnand %p289, %p290
      %p292 = pneg %p291
      // Predicated region
      $region53: #{attn_block_forward.1} parent=5 // pred_check
        _
      $region54: #{attn_block_forward.1} parent=5 // pred_check_branch
        %294 = sbr.rel (%p291) target = $region56
      $region55: #{attn_block_forward.1} parent=5 // pred_region
        %s295 = ssub.s32 %s18, 1
        %p296 = scmp.lt.s32.totalorder %s23, 1
        %s297 = scalar_select %p296, %s23, 1
        %s298 = smul.addr %s297, 20
        %s299 = smul.addr %s298, 8
        %s300 = scalar_lea.vmem %s0, %s299
        %p301 = pneg %p44
        %p302 = pneg %p41
        %p303 = pneg %p65
        %p304 = pneg %p62
        %p305 = pneg %p86
        %p306 = pneg %p83
        %p307 = pneg %p107
        %p308 = pneg %p104
        %p309 = pneg %p128
        %p310 = pneg %p125
        %p311 = pneg %p149
        %p312 = pneg %p146
        %p313 = pneg %p170
        %p314 = pneg %p167
        %p315 = pneg %p191
        %p316 = pneg %p188
        %p317 = pneg %p212
        %p318 = pneg %p209
        %p319 = pneg %p238
        %p320 = pneg %p235
        %s321 = sand.u32 %s225, 1
        %s322 = scalar_lea.sflag [#allocation4], %s321
        %s323 = sand.u32 %s225, 1
        %s324 = smul.addr %s323, 64
        %s325 = scalar_lea.vmem [#allocation3], %s324
        %p326 = scmp.lt.s32.totalorder %s23, 1
        %s327 = scalar_select %p326, %s23, 1
        %s328 = smul.addr %s327, 20
        %s329 = smul.addr %s328, 8
        %s330 = scalar_lea.vmem %s0, %s329
        %v332 = vld [vmem:[%s330] sm:$0xff]
        %v333 = vld [vmem:[%s330 + $0x8] sm:$0x3]
        %v334 = vld [vmem:[%s330 + $0x10] sm:$0xff]
        %v335 = vld [vmem:[%s330 + $0x18] sm:$0x3]
        %v336 = vld [vmem:[%s330 + $0x20] sm:$0xff]
        %v337 = vld [vmem:[%s330 + $0x28] sm:$0x3]
        %v338 = vld [vmem:[%s330 + $0x30] sm:$0xff]
        %v339 = vld [vmem:[%s330 + $0x38] sm:$0x3]
        %v340 = vld [vmem:[%s330 + $0x40] sm:$0xff]
        %v341 = vld [vmem:[%s330 + $0x48] sm:$0x3]
        %v342 = vld [vmem:[%s330 + $0x50] sm:$0xff]
        %v343 = vld [vmem:[%s330 + $0x58] sm:$0x3]
        %v344 = vld [vmem:[%s330 + $0x60] sm:$0xff]
        %v345 = vld [vmem:[%s330 + $0x68] sm:$0x3]
        %v346 = vld [vmem:[%s330 + $0x70] sm:$0xff]
        %v347 = vld [vmem:[%s330 + $0x78] sm:$0x3]
        %v348 = vld [vmem:[%s330 + $0x80] sm:$0xff]
        %v349 = vld [vmem:[%s330 + $0x88] sm:$0x3]
        %v350 = vld [vmem:[%s330 + $0x90] sm:$0xff]
        %v351 = vld [vmem:[%s330 + $0x98] sm:$0x3]
        %v352 = vpack.c.bf16 %v332, %v332
        %v353 = vpack.c.bf16 %v333, %v333
        %v354 = vpack.c.bf16 %v334, %v334
        %v355 = vpack.c.bf16 %v335, %v335
        %v356 = vpack.c.bf16 %v336, %v336
        %v357 = vpack.c.bf16 %v337, %v337
        %v358 = vpack.c.bf16 %v338, %v338
        %v359 = vpack.c.bf16 %v339, %v339
        %v360 = vpack.c.bf16 %v340, %v340
        %v361 = vpack.c.bf16 %v341, %v341
        %v362 = vpack.c.bf16 %v342, %v342
        %v363 = vpack.c.bf16 %v343, %v343
        %v364 = vpack.c.bf16 %v344, %v344
        %v365 = vpack.c.bf16 %v345, %v345
        %v366 = vpack.c.bf16 %v346, %v346
        %v367 = vpack.c.bf16 %v347, %v347
        %v368 = vpack.c.bf16 %v348, %v348
        %v369 = vpack.c.bf16 %v349, %v349
        %v370 = vpack.c.bf16 %v350, %v350
        %v371 = vpack.c.bf16 %v351, %v351
        %372 = vst [vmem:[#allocation2] sm:$0xf] %v352
        %373 = vst [vmem:[#allocation2 + $0x24] sm:$0xf] %v354
        %374 = vst [vmem:[#allocation2 + $0x48] sm:$0xf] %v356
        %375 = vst [vmem:[#allocation2 + $0x6c] sm:$0xf] %v358
        %376 = vst [vmem:[#allocation2 + $0x90] sm:$0xf] %v360
        %377 = vst [vmem:[#allocation2 + $0xb4] sm:$0xf] %v362
        %378 = vst [vmem:[#allocation2 + $0xd8] sm:$0xf] %v364
        %379 = vst [vmem:[#allocation2 + $0xfc] sm:$0xf] %v366
        %vm380 = vsmask.f32 3328
        %vm381 = vsmask.f32 7440
        %vm382 = vmor %vm380, %vm381
        %v384 = vshrl.u32 %v352, 16
        %v386 = vrot.slane %v384, 4
        %v387 = vshll.u32 %v352, 16
        %v389 = vrot.slane %v387, 5
        %v390 = vor.u32 %v386, %v389
        %v391 = vrot.slane %v390, 4
        %v393 = vshll.u32 %v353, 16
        %v395 = vrot.slane %v393, 5
        %v396 = vsel %vm382, %v391, %v395
        %v398 = vshrl.u32 %v354, 16
        %v400 = vrot.slane %v398, 4
        %v401 = vshll.u32 %v354, 16
        %v403 = vrot.slane %v401, 5
        %v404 = vor.u32 %v400, %v403
        %v405 = vrot.slane %v404, 4
        %v407 = vshll.u32 %v355, 16
        %v409 = vrot.slane %v407, 5
        %v410 = vsel %vm382, %v405, %v409
        %v412 = vshrl.u32 %v356, 16
        %v414 = vrot.slane %v412, 4
        %v415 = vshll.u32 %v356, 16
        %v417 = vrot.slane %v415, 5
        %v418 = vor.u32 %v414, %v417
        %v419 = vrot.slane %v418, 4
        %v421 = vshll.u32 %v357, 16
        %v423 = vrot.slane %v421, 5
        %v424 = vsel %vm382, %v419, %v423
        %v426 = vshrl.u32 %v358, 16
        %v428 = vrot.slane %v426, 4
        %v429 = vshll.u32 %v358, 16
        %v431 = vrot.slane %v429, 5
        %v432 = vor.u32 %v428, %v431
        %v433 = vrot.slane %v432, 4
        %v435 = vshll.u32 %v359, 16
        %v437 = vrot.slane %v435, 5
        %v438 = vsel %vm382, %v433, %v437
        %v440 = vshrl.u32 %v360, 16
        %v442 = vrot.slane %v440, 4
        %v443 = vshll.u32 %v360, 16
        %v445 = vrot.slane %v443, 5
        %v446 = vor.u32 %v442, %v445
        %v447 = vrot.slane %v446, 4
        %v449 = vshll.u32 %v361, 16
        %v451 = vrot.slane %v449, 5
        %v452 = vsel %vm382, %v447, %v451
        %v454 = vshrl.u32 %v362, 16
        %v456 = vrot.slane %v454, 4
        %v457 = vshll.u32 %v362, 16
        %v459 = vrot.slane %v457, 5
        %v460 = vor.u32 %v456, %v459
        %v461 = vrot.slane %v460, 4
        %v463 = vshll.u32 %v363, 16
        %v465 = vrot.slane %v463, 5
        %v466 = vsel %vm382, %v461, %v465
        %v468 = vshrl.u32 %v364, 16
        %v470 = vrot.slane %v468, 4
        %v471 = vshll.u32 %v364, 16
        %v473 = vrot.slane %v471, 5
        %v474 = vor.u32 %v470, %v473
        %v475 = vrot.slane %v474, 4
        %v477 = vshll.u32 %v365, 16
        %v479 = vrot.slane %v477, 5
        %v480 = vsel %vm382, %v475, %v479
        %v482 = vshrl.u32 %v366, 16
        %v484 = vrot.slane %v482, 4
        %v485 = vshll.u32 %v366, 16
        %v487 = vrot.slane %v485, 5
        %v488 = vor.u32 %v484, %v487
        %v489 = vrot.slane %v488, 4
        %v491 = vshll.u32 %v367, 16
        %v493 = vrot.slane %v491, 5
        %v494 = vsel %vm382, %v489, %v493
        %503 = vst [vmem:[#allocation2 + $0x4] sm:$0xf] %v396
        %504 = vst [vmem:[#allocation2 + $0x28] sm:$0xf] %v410
        %505 = vst [vmem:[#allocation2 + $0x4c] sm:$0xf] %v424
        %506 = vst [vmem:[#allocation2 + $0x70] sm:$0xf] %v438
        %507 = vst [vmem:[#allocation2 + $0x94] sm:$0xf] %v452
        %508 = vst [vmem:[#allocation2 + $0xb8] sm:$0xf] %v466
        %509 = vst [vmem:[#allocation2 + $0xdc] sm:$0xf] %v480
        %510 = vst [vmem:[#allocation2 + $0x100] sm:$0xf] %v494
        %vm527 = vcmask 1042432
        %vm528 = vcmask 1046532
        %vm529 = vmor %vm527, %vm528
        %v530 = vrot.slane %v352, 5
        %v531 = vrot.slane %v530, 4
        %v532 = vrot.slane %v353, 5
        %v533 = vsel %vm529, %v531, %v532
        %v534 = vrot.slane %v354, 5
        %v535 = vrot.slane %v534, 4
        %v536 = vrot.slane %v355, 5
        %v537 = vsel %vm529, %v535, %v536
        %v538 = vrot.slane %v356, 5
        %v539 = vrot.slane %v538, 4
        %v540 = vrot.slane %v357, 5
        %v541 = vsel %vm529, %v539, %v540
        %v542 = vrot.slane %v358, 5
        %v543 = vrot.slane %v542, 4
        %v544 = vrot.slane %v359, 5
        %v545 = vsel %vm529, %v543, %v544
        %v546 = vrot.slane %v360, 5
        %v547 = vrot.slane %v546, 4
        %v548 = vrot.slane %v361, 5
        %v549 = vsel %vm529, %v547, %v548
        %v550 = vrot.slane %v362, 5
        %v551 = vrot.slane %v550, 4
        %v552 = vrot.slane %v363, 5
        %v553 = vsel %vm529, %v551, %v552
        %v554 = vrot.slane %v364, 5
        %v555 = vrot.slane %v554, 4
        %v556 = vrot.slane %v365, 5
        %v557 = vsel %vm529, %v555, %v556
        %v558 = vrot.slane %v366, 5
        %v559 = vrot.slane %v558, 4
        %v560 = vrot.slane %v367, 5
        %v561 = vsel %vm529, %v559, %v560
        %570 = vst [vmem:[#allocation2 + $0x8] sm:$0xf] %v533
        %571 = vst [vmem:[#allocation2 + $0x2c] sm:$0xf] %v537
        %572 = vst [vmem:[#allocation2 + $0x50] sm:$0xf] %v541
        %573 = vst [vmem:[#allocation2 + $0x74] sm:$0xf] %v545
        %574 = vst [vmem:[#allocation2 + $0x98] sm:$0xf] %v549
        %575 = vst [vmem:[#allocation2 + $0xbc] sm:$0xf] %v553
        %576 = vst [vmem:[#allocation2 + $0xe0] sm:$0xf] %v557
        %577 = vst [vmem:[#allocation2 + $0x104] sm:$0xf] %v561
        %578 = vst [vmem:[#allocation2 + $0xc] sm:$0xf] %v354
        %579 = vst [vmem:[#allocation2 + $0x30] sm:$0xf] %v356
        %580 = vst [vmem:[#allocation2 + $0x54] sm:$0xf] %v358
        %581 = vst [vmem:[#allocation2 + $0x78] sm:$0xf] %v360
        %582 = vst [vmem:[#allocation2 + $0x9c] sm:$0xf] %v362
        %583 = vst [vmem:[#allocation2 + $0xc0] sm:$0xf] %v364
        %584 = vst [vmem:[#allocation2 + $0xe4] sm:$0xf] %v366
        %585 = vst [vmem:[#allocation2 + $0x108] sm:$0xf] %v368
        %v587 = vshrl.u32 %v368, 16
        %v589 = vrot.slane %v587, 4
        %v590 = vshll.u32 %v368, 16
        %v592 = vrot.slane %v590, 5
        %v593 = vor.u32 %v589, %v592
        %v594 = vrot.slane %v593, 4
        %v596 = vshll.u32 %v369, 16
        %v598 = vrot.slane %v596, 5
        %v599 = vsel %vm382, %v594, %v598
        %601 = vst [vmem:[#allocation2 + $0x10] sm:$0xf] %v410
        %602 = vst [vmem:[#allocation2 + $0x34] sm:$0xf] %v424
        %603 = vst [vmem:[#allocation2 + $0x58] sm:$0xf] %v438
        %604 = vst [vmem:[#allocation2 + $0x7c] sm:$0xf] %v452
        %605 = vst [vmem:[#allocation2 + $0xa0] sm:$0xf] %v466
        %606 = vst [vmem:[#allocation2 + $0xc4] sm:$0xf] %v480
        %607 = vst [vmem:[#allocation2 + $0xe8] sm:$0xf] %v494
        %608 = vst [vmem:[#allocation2 + $0x10c] sm:$0xf] %v599
        %v611 = vrot.slane %v368, 5
        %v612 = vrot.slane %v611, 4
        %v613 = vrot.slane %v369, 5
        %v614 = vsel %vm529, %v612, %v613
        %616 = vst [vmem:[#allocation2 + $0x14] sm:$0xf] %v537
        %617 = vst [vmem:[#allocation2 + $0x38] sm:$0xf] %v541
        %618 = vst [vmem:[#allocation2 + $0x5c] sm:$0xf] %v545
        %619 = vst [vmem:[#allocation2 + $0x80] sm:$0xf] %v549
        %620 = vst [vmem:[#allocation2 + $0xa4] sm:$0xf] %v553
        %621 = vst [vmem:[#allocation2 + $0xc8] sm:$0xf] %v557
        %622 = vst [vmem:[#allocation2 + $0xec] sm:$0xf] %v561
        %623 = vst [vmem:[#allocation2 + $0x110] sm:$0xf] %v614
        %624 = vst [vmem:[#allocation2 + $0x18] sm:$0xf] %v356
        %625 = vst [vmem:[#allocation2 + $0x3c] sm:$0xf] %v358
        %626 = vst [vmem:[#allocation2 + $0x60] sm:$0xf] %v360
        %627 = vst [vmem:[#allocation2 + $0x84] sm:$0xf] %v362
        %628 = vst [vmem:[#allocation2 + $0xa8] sm:$0xf] %v364
        %629 = vst [vmem:[#allocation2 + $0xcc] sm:$0xf] %v366
        %630 = vst [vmem:[#allocation2 + $0xf0] sm:$0xf] %v368
        %631 = vst [vmem:[#allocation2 + $0x114] sm:$0xf] %v370
        %v633 = vshrl.u32 %v370, 16
        %v635 = vrot.slane %v633, 4
        %v636 = vshll.u32 %v370, 16
        %v638 = vrot.slane %v636, 5
        %v639 = vor.u32 %v635, %v638
        %v640 = vrot.slane %v639, 4
        %v642 = vshll.u32 %v371, 16
        %v644 = vrot.slane %v642, 5
        %v645 = vsel %vm382, %v640, %v644
        %647 = vst [vmem:[#allocation2 + $0x1c] sm:$0xf] %v424
        %648 = vst [vmem:[#allocation2 + $0x40] sm:$0xf] %v438
        %649 = vst [vmem:[#allocation2 + $0x64] sm:$0xf] %v452
        %650 = vst [vmem:[#allocation2 + $0x88] sm:$0xf] %v466
        %651 = vst [vmem:[#allocation2 + $0xac] sm:$0xf] %v480
        %652 = vst [vmem:[#allocation2 + $0xd0] sm:$0xf] %v494
        %653 = vst [vmem:[#allocation2 + $0xf4] sm:$0xf] %v599
        %654 = vst [vmem:[#allocation2 + $0x118] sm:$0xf] %v645
        %v657 = vrot.slane %v370, 5
        %v658 = vrot.slane %v657, 4
        %v659 = vrot.slane %v371, 5
        %v660 = vsel %vm529, %v658, %v659
        %662 = vst [vmem:[#allocation2 + $0x20] sm:$0xf] %v541
        %663 = vst [vmem:[#allocation2 + $0x44] sm:$0xf] %v545
        %664 = vst [vmem:[#allocation2 + $0x68] sm:$0xf] %v549
        %665 = vst [vmem:[#allocation2 + $0x8c] sm:$0xf] %v553
        %666 = vst [vmem:[#allocation2 + $0xb0] sm:$0xf] %v557
        %667 = vst [vmem:[#allocation2 + $0xd4] sm:$0xf] %v561
        %668 = vst [vmem:[#allocation2 + $0xf8] sm:$0xf] %v614
        %669 = vst [vmem:[#allocation2 + $0x11c] sm:$0xf] %v660
        %v670 = vld [vmem:[#allocation2] sm:$0xff]
        %v671 = vld [vmem:[#allocation2 + $0x8] sm:$0xff]
        %v672 = vld [vmem:[#allocation2 + $0x10] sm:$0xff]
        %v673 = vld [vmem:[#allocation2 + $0x18] sm:$0xff]
        %v674 = vld [vmem:[#allocation2 + $0x20] sm:$0xf]
        %v675 = vld [vmem:[#allocation2 + $0x24] sm:$0xff]
        %v676 = vld [vmem:[#allocation2 + $0x2c] sm:$0xff]
        %v677 = vld [vmem:[#allocation2 + $0x34] sm:$0xff]
        %v678 = vld [vmem:[#allocation2 + $0x3c] sm:$0xff]
        %v679 = vld [vmem:[#allocation2 + $0x44] sm:$0xf]
        %v680 = vld [vmem:[#allocation2 + $0x48] sm:$0xff]
        %v681 = vld [vmem:[#allocation2 + $0x50] sm:$0xff]
        %v682 = vld [vmem:[#allocation2 + $0x58] sm:$0xff]
        %v683 = vld [vmem:[#allocation2 + $0x60] sm:$0xff]
        %v684 = vld [vmem:[#allocation2 + $0x68] sm:$0xf]
        %v685 = vld [vmem:[#allocation2 + $0x6c] sm:$0xff]
        %v686 = vld [vmem:[#allocation2 + $0x74] sm:$0xff]
        %v687 = vld [vmem:[#allocation2 + $0x7c] sm:$0xff]
        %v688 = vld [vmem:[#allocation2 + $0x84] sm:$0xff]
        %v689 = vld [vmem:[#allocation2 + $0x8c] sm:$0xf]
        %v690 = vld [vmem:[#allocation2 + $0x90] sm:$0xff]
        %v691 = vld [vmem:[#allocation2 + $0x98] sm:$0xff]
        %v692 = vld [vmem:[#allocation2 + $0xa0] sm:$0xff]
        %v693 = vld [vmem:[#allocation2 + $0xa8] sm:$0xff]
        %v694 = vld [vmem:[#allocation2 + $0xb0] sm:$0xf]
        %v695 = vld [vmem:[#allocation2 + $0xb4] sm:$0xff]
        %v696 = vld [vmem:[#allocation2 + $0xbc] sm:$0xff]
        %v697 = vld [vmem:[#allocation2 + $0xc4] sm:$0xff]
        %v698 = vld [vmem:[#allocation2 + $0xcc] sm:$0xff]
        %v699 = vld [vmem:[#allocation2 + $0xd4] sm:$0xf]
        %v700 = vld [vmem:[#allocation2 + $0xd8] sm:$0xff]
        %v701 = vld [vmem:[#allocation2 + $0xe0] sm:$0xff]
        %v702 = vld [vmem:[#allocation2 + $0xe8] sm:$0xff]
        %v703 = vld [vmem:[#allocation2 + $0xf0] sm:$0xff]
        %v704 = vld [vmem:[#allocation2 + $0xf8] sm:$0xf]
        %v705 = vld [vmem:[#allocation2 + $0xfc] sm:$0xff]
        %v706 = vld [vmem:[#allocation2 + $0x104] sm:$0xff]
        %v707 = vld [vmem:[#allocation2 + $0x10c] sm:$0xff]
        %v708 = vld [vmem:[#allocation2 + $0x114] sm:$0xff]
        %v709 = vld [vmem:[#allocation2 + $0x11c] sm:$0xf]
        %v710 = vld [vmem:[%s1] sm:$0xf]
        %v711 = vld [vmem:[%s1 + $0x4] sm:$0xf]
        %v712 = vld [vmem:[%s1 + $0x8] sm:$0xf]
        %v713 = vld [vmem:[%s1 + $0xc] sm:$0xf]
        %v714 = vld [vmem:[%s1 + $0x10] sm:$0xf]
        %v715 = vld [vmem:[%s1 + $0x14] sm:$0xf]
        %v716 = vld [vmem:[%s1 + $0x18] sm:$0xf]
        %v717 = vld [vmem:[%s1 + $0x1c] sm:$0xf]
        %v718 = vld [vmem:[%s1 + $0x20] sm:$0xf]
        %v719 = vld [vmem:[%s1 + $0x24] sm:$0xf]
        %v720 = vld [vmem:[%s1 + $0x28] sm:$0xf]
        %v721 = vld [vmem:[%s1 + $0x2c] sm:$0xf]
        %v722 = vld [vmem:[%s1 + $0x30] sm:$0xf]
        %v723 = vld [vmem:[%s1 + $0x34] sm:$0xf]
        %v724 = vld [vmem:[%s1 + $0x38] sm:$0xf]
        %v725 = vld [vmem:[%s1 + $0x3c] sm:$0xf]
        %v726 = vld [vmem:[%s1 + $0x40] sm:$0xf]
        %v727 = vld [vmem:[%s1 + $0x44] sm:$0xf]
        %v728 = vld [vmem:[%s1 + $0x48] sm:$0xf]
        %v729 = vld [vmem:[%s1 + $0x4c] sm:$0xf]
        %v730 = vld [vmem:[%s1 + $0x50] sm:$0xf]
        %v731 = vld [vmem:[%s1 + $0x54] sm:$0xf]
        %v732 = vld [vmem:[%s1 + $0x58] sm:$0xf]
        %v733 = vld [vmem:[%s1 + $0x5c] sm:$0xf]
        %v734 = vld [vmem:[%s1 + $0x60] sm:$0xf]
        %v735 = vld [vmem:[%s1 + $0x64] sm:$0xf]
        %v736 = vld [vmem:[%s1 + $0x68] sm:$0xf]
        %v737 = vld [vmem:[%s1 + $0x6c] sm:$0xf]
        %v738 = vld [vmem:[%s1 + $0x70] sm:$0xf]
        %v739 = vld [vmem:[%s1 + $0x74] sm:$0xf]
        %v740 = vld [vmem:[%s1 + $0x78] sm:$0xf]
        %v741 = vld [vmem:[%s1 + $0x7c] sm:$0xf]
        %v742 = vld [vmem:[%s1 + $0x80] sm:$0xf]
        %v743 = vld [vmem:[%s1 + $0x84] sm:$0xf]
        %v744 = vld [vmem:[%s1 + $0x88] sm:$0xf]
        %v745 = vld [vmem:[%s1 + $0x8c] sm:$0xf]
        %v746 = vld [vmem:[%s1 + $0x90] sm:$0xf]
        %v747 = vld [vmem:[%s1 + $0x94] sm:$0xf]
        %v748 = vld [vmem:[%s1 + $0x98] sm:$0xf]
        %v749 = vld [vmem:[%s1 + $0x9c] sm:$0xf]
        %v750 = vld [vmem:[%s1 + $0xa0] sm:$0xf]
        %v751 = vld [vmem:[%s1 + $0xa4] sm:$0xf]
        %v752 = vld [vmem:[%s1 + $0xa8] sm:$0xf]
        %v753 = vld [vmem:[%s1 + $0xac] sm:$0xf]
        %v754 = vld [vmem:[%s1 + $0xb0] sm:$0xf]
        %v755 = vld [vmem:[%s1 + $0xb4] sm:$0xf]
        %v756 = vld [vmem:[%s1 + $0xb8] sm:$0xf]
        %v757 = vld [vmem:[%s1 + $0xbc] sm:$0xf]
        %v758 = vld [vmem:[%s1 + $0xc0] sm:$0xf]
        %v759 = vld [vmem:[%s1 + $0xc4] sm:$0xf]
        %v760 = vld [vmem:[%s1 + $0xc8] sm:$0xf]
        %v761 = vld [vmem:[%s1 + $0xcc] sm:$0xf]
        %v762 = vld [vmem:[%s1 + $0xd0] sm:$0xf]
        %v763 = vld [vmem:[%s1 + $0xd4] sm:$0xf]
        %v764 = vld [vmem:[%s1 + $0xd8] sm:$0xf]
        %v765 = vld [vmem:[%s1 + $0xdc] sm:$0xf]
        %v766 = vld [vmem:[%s1 + $0xe0] sm:$0xf]
        %v767 = vld [vmem:[%s1 + $0xe4] sm:$0xf]
        %v768 = vld [vmem:[%s1 + $0xe8] sm:$0xf]
        %v769 = vld [vmem:[%s1 + $0xec] sm:$0xf]
        %v770 = vld [vmem:[%s1 + $0xf0] sm:$0xf]
        %v771 = vld [vmem:[%s1 + $0xf4] sm:$0xf]
        %v772 = vld [vmem:[%s1 + $0xf8] sm:$0xf]
        %v773 = vld [vmem:[%s1 + $0xfc] sm:$0xf]
        %v774 = vld [vmem:[%s1 + $0x100] sm:$0xf]
        %v775 = vld [vmem:[%s1 + $0x104] sm:$0xf]
        %v776 = vld [vmem:[%s1 + $0x108] sm:$0xf]
        %v777 = vld [vmem:[%s1 + $0x10c] sm:$0xf]
        %v778 = vld [vmem:[%s1 + $0x110] sm:$0xf]
        %v779 = vld [vmem:[%s1 + $0x114] sm:$0xf]
        %v780 = vld [vmem:[%s1 + $0x118] sm:$0xf]
        %v781 = vld [vmem:[%s1 + $0x11c] sm:$0xf]
        %v782 = vld [vmem:[%s1 + $0x120] sm:$0xf]
        %v783 = vld [vmem:[%s1 + $0x124] sm:$0xf]
        %v784 = vld [vmem:[%s1 + $0x128] sm:$0xf]
        %v785 = vld [vmem:[%s1 + $0x12c] sm:$0xf]
        %v786 = vld [vmem:[%s1 + $0x130] sm:$0xf]
        %v787 = vld [vmem:[%s1 + $0x134] sm:$0xf]
        %v788 = vld [vmem:[%s1 + $0x138] sm:$0xf]
        %v789 = vld [vmem:[%s1 + $0x13c] sm:$0xf]
        %v790 = vld [vmem:[%s1 + $0x140] sm:$0xf]
        %v791 = vld [vmem:[%s1 + $0x144] sm:$0xf]
        %v792 = vld [vmem:[%s1 + $0x148] sm:$0xf]
        %v793 = vld [vmem:[%s1 + $0x14c] sm:$0xf]
        %v794 = vld [vmem:[%s1 + $0x150] sm:$0xf]
        %v795 = vld [vmem:[%s1 + $0x154] sm:$0xf]
        %v796 = vld [vmem:[%s1 + $0x158] sm:$0xf]
        %v797 = vld [vmem:[%s1 + $0x15c] sm:$0xf]
        %v798 = vld [vmem:[%s1 + $0x160] sm:$0xf]
        %v799 = vld [vmem:[%s1 + $0x164] sm:$0xf]
        %v800 = vld [vmem:[%s1 + $0x168] sm:$0xf]
        %v801 = vld [vmem:[%s1 + $0x16c] sm:$0xf]
        %v802 = vld [vmem:[%s1 + $0x170] sm:$0xf]
        %v803 = vld [vmem:[%s1 + $0x174] sm:$0xf]
        %v804 = vld [vmem:[%s1 + $0x178] sm:$0xf]
        %v805 = vld [vmem:[%s1 + $0x17c] sm:$0xf]
        %v806 = vld [vmem:[%s1 + $0x180] sm:$0xf]
        %v807 = vld [vmem:[%s1 + $0x184] sm:$0xf]
        %v808 = vld [vmem:[%s1 + $0x188] sm:$0xf]
        %v809 = vld [vmem:[%s1 + $0x18c] sm:$0xf]
        %v810 = vld [vmem:[%s1 + $0x190] sm:$0xf]
        %v811 = vld [vmem:[%s1 + $0x194] sm:$0xf]
        %v812 = vld [vmem:[%s1 + $0x198] sm:$0xf]
        %v813 = vld [vmem:[%s1 + $0x19c] sm:$0xf]
        %v814 = vld [vmem:[%s1 + $0x1a0] sm:$0xf]
        %v815 = vld [vmem:[%s1 + $0x1a4] sm:$0xf]
        %v816 = vld [vmem:[%s1 + $0x1a8] sm:$0xf]
        %v817 = vld [vmem:[%s1 + $0x1ac] sm:$0xf]
        %v818 = vld [vmem:[%s1 + $0x1b0] sm:$0xf]
        %v819 = vld [vmem:[%s1 + $0x1b4] sm:$0xf]
        %v820 = vld [vmem:[%s1 + $0x1b8] sm:$0xf]
        %v821 = vld [vmem:[%s1 + $0x1bc] sm:$0xf]
        %v822 = vld [vmem:[%s1 + $0x1c0] sm:$0xf]
        %v823 = vld [vmem:[%s1 + $0x1c4] sm:$0xf]
        %v824 = vld [vmem:[%s1 + $0x1c8] sm:$0xf]
        %v825 = vld [vmem:[%s1 + $0x1cc] sm:$0xf]
        %v826 = vld [vmem:[%s1 + $0x1d0] sm:$0xf]
        %v827 = vld [vmem:[%s1 + $0x1d4] sm:$0xf]
        %v828 = vld [vmem:[%s1 + $0x1d8] sm:$0xf]
        %v829 = vld [vmem:[%s1 + $0x1dc] sm:$0xf]
        %v830 = vld [vmem:[%s1 + $0x1e0] sm:$0xf]
        %v831 = vld [vmem:[%s1 + $0x1e4] sm:$0xf]
        %v832 = vld [vmem:[%s1 + $0x1e8] sm:$0xf]
        %v833 = vld [vmem:[%s1 + $0x1ec] sm:$0xf]
        %v834 = vld [vmem:[%s1 + $0x1f0] sm:$0xf]
        %v835 = vld [vmem:[%s1 + $0x1f4] sm:$0xf]
        %v836 = vld [vmem:[%s1 + $0x1f8] sm:$0xf]
        %v837 = vld [vmem:[%s1 + $0x1fc] sm:$0xf]
        %v838 = vld [vmem:[%s1 + $0x200] sm:$0xf]
        %v839 = vld [vmem:[%s1 + $0x204] sm:$0xf]
        %v840 = vld [vmem:[%s1 + $0x208] sm:$0xf]
        %v841 = vld [vmem:[%s1 + $0x20c] sm:$0xf]
        %v842 = vld [vmem:[%s1 + $0x210] sm:$0xf]
        %v843 = vld [vmem:[%s1 + $0x214] sm:$0xf]
        %v844 = vld [vmem:[%s1 + $0x218] sm:$0xf]
        %v845 = vld [vmem:[%s1 + $0x21c] sm:$0xf]
        %v846 = vld [vmem:[%s1 + $0x220] sm:$0xf]
        %v847 = vld [vmem:[%s1 + $0x224] sm:$0xf]
        %v848 = vld [vmem:[%s1 + $0x228] sm:$0xf]
        %v849 = vld [vmem:[%s1 + $0x22c] sm:$0xf]
        %v850 = vld [vmem:[%s1 + $0x230] sm:$0xf]
        %v851 = vld [vmem:[%s1 + $0x234] sm:$0xf]
        %v852 = vld [vmem:[%s1 + $0x238] sm:$0xf]
        %v853 = vld [vmem:[%s1 + $0x23c] sm:$0xf]
        %v854 = vld [vmem:[%s4] sm:$0x1]
        %v856 = vperm.slane %v854, 0
        %v898 = vunpack.c.l.b16 %v670
        %v899 = vunpack.c.h.b16 %v670
        %v900 = vunpack.c.l.b16 %v671
        %v901 = vunpack.c.h.b16 %v671
        %v902 = vunpack.c.l.b16 %v672
        %v903 = vunpack.c.h.b16 %v672
        %v904 = vunpack.c.l.b16 %v673
        %v905 = vunpack.c.h.b16 %v673
        %v906 = vunpack.c.l.b16 %v674
        %v907 = vunpack.c.l.b16 %v675
        %v908 = vunpack.c.h.b16 %v675
        %v909 = vunpack.c.l.b16 %v676
        %v910 = vunpack.c.h.b16 %v676
        %v911 = vunpack.c.l.b16 %v677
        %v912 = vunpack.c.h.b16 %v677
        %v913 = vunpack.c.l.b16 %v678
        %v914 = vunpack.c.h.b16 %v678
        %v915 = vunpack.c.l.b16 %v679
        %v916 = vunpack.c.l.b16 %v680
        %v917 = vunpack.c.h.b16 %v680
        %v918 = vunpack.c.l.b16 %v681
        %v919 = vunpack.c.h.b16 %v681
        %v920 = vunpack.c.l.b16 %v682
        %v921 = vunpack.c.h.b16 %v682
        %v922 = vunpack.c.l.b16 %v683
        %v923 = vunpack.c.h.b16 %v683
        %v924 = vunpack.c.l.b16 %v684
        %v925 = vunpack.c.l.b16 %v685
        %v926 = vunpack.c.h.b16 %v685
        %v927 = vunpack.c.l.b16 %v686
        %v928 = vunpack.c.h.b16 %v686
        %v929 = vunpack.c.l.b16 %v687
        %v930 = vunpack.c.h.b16 %v687
        %v931 = vunpack.c.l.b16 %v688
        %v932 = vunpack.c.h.b16 %v688
        %v933 = vunpack.c.l.b16 %v689
        %v934 = vunpack.c.l.b16 %v690
        %v935 = vunpack.c.h.b16 %v690
        %v936 = vunpack.c.l.b16 %v691
        %v937 = vunpack.c.h.b16 %v691
        %v938 = vunpack.c.l.b16 %v692
        %v939 = vunpack.c.h.b16 %v692
        %v940 = vunpack.c.l.b16 %v693
        %v941 = vunpack.c.h.b16 %v693
        %v942 = vunpack.c.l.b16 %v694
        %v943 = vunpack.c.l.b16 %v695
        %v944 = vunpack.c.h.b16 %v695
        %v945 = vunpack.c.l.b16 %v696
        %v946 = vunpack.c.h.b16 %v696
        %v947 = vunpack.c.l.b16 %v697
        %v948 = vunpack.c.h.b16 %v697
        %v949 = vunpack.c.l.b16 %v698
        %v950 = vunpack.c.h.b16 %v698
        %v951 = vunpack.c.l.b16 %v699
        %v952 = vunpack.c.l.b16 %v700
        %v953 = vunpack.c.h.b16 %v700
        %v954 = vunpack.c.l.b16 %v701
        %v955 = vunpack.c.h.b16 %v701
        %v956 = vunpack.c.l.b16 %v702
        %v957 = vunpack.c.h.b16 %v702
        %v958 = vunpack.c.l.b16 %v703
        %v959 = vunpack.c.h.b16 %v703
        %v960 = vunpack.c.l.b16 %v704
        %v961 = vunpack.c.l.b16 %v705
        %v962 = vunpack.c.h.b16 %v705
        %v963 = vunpack.c.l.b16 %v706
        %v964 = vunpack.c.h.b16 %v706
        %v965 = vunpack.c.l.b16 %v707
        %v966 = vunpack.c.h.b16 %v707
        %v967 = vunpack.c.l.b16 %v708
        %v968 = vunpack.c.h.b16 %v708
        %v969 = vunpack.c.l.b16 %v709
        %v970 = vpack.c.b16 %v907, %v898
        %v971 = vpack.c.b16 %v908, %v899
        %v972 = vpack.c.b16 %v909, %v900
        %v973 = vpack.c.b16 %v910, %v901
        %v974 = vpack.c.b16 %v911, %v902
        %v975 = vpack.c.b16 %v912, %v903
        %v976 = vpack.c.b16 %v913, %v904
        %v977 = vpack.c.b16 %v914, %v905
        %v978 = vpack.c.b16 %v915, %v906
        %v979 = vpack.c.b16 %v925, %v916
        %v980 = vpack.c.b16 %v926, %v917
        %v981 = vpack.c.b16 %v927, %v918
        %v982 = vpack.c.b16 %v928, %v919
        %v983 = vpack.c.b16 %v929, %v920
        %v984 = vpack.c.b16 %v930, %v921
        %v985 = vpack.c.b16 %v931, %v922
        %v986 = vpack.c.b16 %v932, %v923
        %v987 = vpack.c.b16 %v933, %v924
        %v988 = vpack.c.b16 %v943, %v934
        %v989 = vpack.c.b16 %v944, %v935
        %v990 = vpack.c.b16 %v945, %v936
        %v991 = vpack.c.b16 %v946, %v937
        %v992 = vpack.c.b16 %v947, %v938
        %v993 = vpack.c.b16 %v948, %v939
        %v994 = vpack.c.b16 %v949, %v940
        %v995 = vpack.c.b16 %v950, %v941
        %v996 = vpack.c.b16 %v951, %v942
        %v997 = vpack.c.b16 %v961, %v952
        %v998 = vpack.c.b16 %v962, %v953
        %v999 = vpack.c.b16 %v963, %v954
        %v1000 = vpack.c.b16 %v964, %v955
        %v1001 = vpack.c.b16 %v965, %v956
        %v1002 = vpack.c.b16 %v966, %v957
        %v1003 = vpack.c.b16 %v967, %v958
        %v1004 = vpack.c.b16 %v968, %v959
        %v1005 = vpack.c.b16 %v969, %v960
        %v1186 = vunpack.c.l.b16 %v710
        %v1187 = vunpack.c.l.b16 %v711
        %v1188 = vunpack.c.l.b16 %v712
        %v1189 = vunpack.c.l.b16 %v713
        %v1190 = vunpack.c.l.b16 %v714
        %v1191 = vunpack.c.l.b16 %v715
        %v1192 = vunpack.c.l.b16 %v716
        %v1193 = vunpack.c.l.b16 %v717
        %v1194 = vunpack.c.l.b16 %v718
        %v1195 = vunpack.c.l.b16 %v719
        %v1196 = vunpack.c.l.b16 %v720
        %v1197 = vunpack.c.l.b16 %v721
        %v1198 = vunpack.c.l.b16 %v722
        %v1199 = vunpack.c.l.b16 %v723
        %v1200 = vunpack.c.l.b16 %v724
        %v1201 = vunpack.c.l.b16 %v725
        %v1202 = vunpack.c.l.b16 %v726
        %v1203 = vunpack.c.l.b16 %v727
        %v1204 = vunpack.c.l.b16 %v728
        %v1205 = vunpack.c.l.b16 %v729
        %v1206 = vunpack.c.l.b16 %v730
        %v1207 = vunpack.c.l.b16 %v731
        %v1208 = vunpack.c.l.b16 %v732
        %v1209 = vunpack.c.l.b16 %v733
        %v1210 = vunpack.c.l.b16 %v734
        %v1211 = vunpack.c.l.b16 %v735
        %v1212 = vunpack.c.l.b16 %v736
        %v1213 = vunpack.c.l.b16 %v737
        %v1214 = vunpack.c.l.b16 %v738
        %v1215 = vunpack.c.l.b16 %v739
        %v1216 = vunpack.c.l.b16 %v740
        %v1217 = vunpack.c.l.b16 %v741
        %v1218 = vunpack.c.l.b16 %v742
        %v1219 = vunpack.c.l.b16 %v743
        %v1220 = vunpack.c.l.b16 %v744
        %v1221 = vunpack.c.l.b16 %v745
        %v1222 = vunpack.c.l.b16 %v746
        %v1223 = vunpack.c.l.b16 %v747
        %v1224 = vunpack.c.l.b16 %v748
        %v1225 = vunpack.c.l.b16 %v749
        %v1226 = vunpack.c.l.b16 %v750
        %v1227 = vunpack.c.l.b16 %v751
        %v1228 = vunpack.c.l.b16 %v752
        %v1229 = vunpack.c.l.b16 %v753
        %v1230 = vunpack.c.l.b16 %v754
        %v1231 = vunpack.c.l.b16 %v755
        %v1232 = vunpack.c.l.b16 %v756
        %v1233 = vunpack.c.l.b16 %v757
        %v1234 = vunpack.c.l.b16 %v758
        %v1235 = vunpack.c.l.b16 %v759
        %v1236 = vunpack.c.l.b16 %v760
        %v1237 = vunpack.c.l.b16 %v761
        %v1238 = vunpack.c.l.b16 %v762
        %v1239 = vunpack.c.l.b16 %v763
        %v1240 = vunpack.c.l.b16 %v764
        %v1241 = vunpack.c.l.b16 %v765
        %v1242 = vunpack.c.l.b16 %v766
        %v1243 = vunpack.c.l.b16 %v767
        %v1244 = vunpack.c.l.b16 %v768
        %v1245 = vunpack.c.l.b16 %v769
        %v1246 = vunpack.c.l.b16 %v770
        %v1247 = vunpack.c.l.b16 %v771
        %v1248 = vunpack.c.l.b16 %v772
        %v1249 = vunpack.c.l.b16 %v773
        %v1250 = vunpack.c.l.b16 %v774
        %v1251 = vunpack.c.l.b16 %v775
        %v1252 = vunpack.c.l.b16 %v776
        %v1253 = vunpack.c.l.b16 %v777
        %v1254 = vunpack.c.l.b16 %v778
        %v1255 = vunpack.c.l.b16 %v779
        %v1256 = vunpack.c.l.b16 %v780
        %v1257 = vunpack.c.l.b16 %v781
        %v1258 = vunpack.c.l.b16 %v782
        %v1259 = vunpack.c.l.b16 %v783
        %v1260 = vunpack.c.l.b16 %v784
        %v1261 = vunpack.c.l.b16 %v785
        %v1262 = vunpack.c.l.b16 %v786
        %v1263 = vunpack.c.l.b16 %v787
        %v1264 = vunpack.c.l.b16 %v788
        %v1265 = vunpack.c.l.b16 %v789
        %v1266 = vunpack.c.l.b16 %v790
        %v1267 = vunpack.c.l.b16 %v791
        %v1268 = vunpack.c.l.b16 %v792
        %v1269 = vunpack.c.l.b16 %v793
        %v1270 = vunpack.c.l.b16 %v794
        %v1271 = vunpack.c.l.b16 %v795
        %v1272 = vunpack.c.l.b16 %v796
        %v1273 = vunpack.c.l.b16 %v797
        %v1274 = vunpack.c.l.b16 %v798
        %v1275 = vunpack.c.l.b16 %v799
        %v1276 = vunpack.c.l.b16 %v800
        %v1277 = vunpack.c.l.b16 %v801
        %v1278 = vunpack.c.l.b16 %v802
        %v1279 = vunpack.c.l.b16 %v803
        %v1280 = vunpack.c.l.b16 %v804
        %v1281 = vunpack.c.l.b16 %v805
        %v1282 = vunpack.c.l.b16 %v806
        %v1283 = vunpack.c.l.b16 %v807
        %v1284 = vunpack.c.l.b16 %v808
        %v1285 = vunpack.c.l.b16 %v809
        %v1286 = vunpack.c.l.b16 %v810
        %v1287 = vunpack.c.l.b16 %v811
        %v1288 = vunpack.c.l.b16 %v812
        %v1289 = vunpack.c.l.b16 %v813
        %v1290 = vunpack.c.l.b16 %v814
        %v1291 = vunpack.c.l.b16 %v815
        %v1292 = vunpack.c.l.b16 %v816
        %v1293 = vunpack.c.l.b16 %v817
        %v1294 = vunpack.c.l.b16 %v818
        %v1295 = vunpack.c.l.b16 %v819
        %v1296 = vunpack.c.l.b16 %v820
        %v1297 = vunpack.c.l.b16 %v821
        %v1298 = vunpack.c.l.b16 %v822
        %v1299 = vunpack.c.l.b16 %v823
        %v1300 = vunpack.c.l.b16 %v824
        %v1301 = vunpack.c.l.b16 %v825
        %v1302 = vunpack.c.l.b16 %v826
        %v1303 = vunpack.c.l.b16 %v827
        %v1304 = vunpack.c.l.b16 %v828
        %v1305 = vunpack.c.l.b16 %v829
        %v1306 = vunpack.c.l.b16 %v830
        %v1307 = vunpack.c.l.b16 %v831
        %v1308 = vunpack.c.l.b16 %v832
        %v1309 = vunpack.c.l.b16 %v833
        %v1310 = vunpack.c.l.b16 %v834
        %v1311 = vunpack.c.l.b16 %v835
        %v1312 = vunpack.c.l.b16 %v836
        %v1313 = vunpack.c.l.b16 %v837
        %v1314 = vunpack.c.l.b16 %v838
        %v1315 = vunpack.c.l.b16 %v839
        %v1316 = vunpack.c.l.b16 %v840
        %v1317 = vunpack.c.l.b16 %v841
        %v1318 = vunpack.c.l.b16 %v842
        %v1319 = vunpack.c.l.b16 %v843
        %v1320 = vunpack.c.l.b16 %v844
        %v1321 = vunpack.c.l.b16 %v845
        %v1322 = vunpack.c.l.b16 %v846
        %v1323 = vunpack.c.l.b16 %v847
        %v1324 = vunpack.c.l.b16 %v848
        %v1325 = vunpack.c.l.b16 %v849
        %v1326 = vunpack.c.l.b16 %v850
        %v1327 = vunpack.c.l.b16 %v851
        %v1328 = vunpack.c.l.b16 %v852
        %v1329 = vunpack.c.l.b16 %v853
        %v1330 = vpack.c.b16 %v1187, %v1186
        %v1331 = vpack.c.b16 %v1189, %v1188
        %v1332 = vpack.c.b16 %v1191, %v1190
        %v1333 = vpack.c.b16 %v1193, %v1192
        %v1334 = vpack.c.b16 %v1195, %v1194
        %v1335 = vpack.c.b16 %v1197, %v1196
        %v1336 = vpack.c.b16 %v1199, %v1198
        %v1337 = vpack.c.b16 %v1201, %v1200
        %v1338 = vpack.c.b16 %v1203, %v1202
        %v1339 = vpack.c.b16 %v1205, %v1204
        %v1340 = vpack.c.b16 %v1207, %v1206
        %v1341 = vpack.c.b16 %v1209, %v1208
        %v1342 = vpack.c.b16 %v1211, %v1210
        %v1343 = vpack.c.b16 %v1213, %v1212
        %v1344 = vpack.c.b16 %v1215, %v1214
        %v1345 = vpack.c.b16 %v1217, %v1216
        %v1346 = vpack.c.b16 %v1219, %v1218
        %v1347 = vpack.c.b16 %v1221, %v1220
        %v1348 = vpack.c.b16 %v1223, %v1222
        %v1349 = vpack.c.b16 %v1225, %v1224
        %v1350 = vpack.c.b16 %v1227, %v1226
        %v1351 = vpack.c.b16 %v1229, %v1228
        %v1352 = vpack.c.b16 %v1231, %v1230
        %v1353 = vpack.c.b16 %v1233, %v1232
        %v1354 = vpack.c.b16 %v1235, %v1234
        %v1355 = vpack.c.b16 %v1237, %v1236
        %v1356 = vpack.c.b16 %v1239, %v1238
        %v1357 = vpack.c.b16 %v1241, %v1240
        %v1358 = vpack.c.b16 %v1243, %v1242
        %v1359 = vpack.c.b16 %v1245, %v1244
        %v1360 = vpack.c.b16 %v1247, %v1246
        %v1361 = vpack.c.b16 %v1249, %v1248
        %v1362 = vpack.c.b16 %v1251, %v1250
        %v1363 = vpack.c.b16 %v1253, %v1252
        %v1364 = vpack.c.b16 %v1255, %v1254
        %v1365 = vpack.c.b16 %v1257, %v1256
        %v1366 = vpack.c.b16 %v1259, %v1258
        %v1367 = vpack.c.b16 %v1261, %v1260
        %v1368 = vpack.c.b16 %v1263, %v1262
        %v1369 = vpack.c.b16 %v1265, %v1264
        %v1370 = vpack.c.b16 %v1267, %v1266
        %v1371 = vpack.c.b16 %v1269, %v1268
        %v1372 = vpack.c.b16 %v1271, %v1270
        %v1373 = vpack.c.b16 %v1273, %v1272
        %v1374 = vpack.c.b16 %v1275, %v1274
        %v1375 = vpack.c.b16 %v1277, %v1276
        %v1376 = vpack.c.b16 %v1279, %v1278
        %v1377 = vpack.c.b16 %v1281, %v1280
        %v1378 = vpack.c.b16 %v1283, %v1282
        %v1379 = vpack.c.b16 %v1285, %v1284
        %v1380 = vpack.c.b16 %v1287, %v1286
        %v1381 = vpack.c.b16 %v1289, %v1288
        %v1382 = vpack.c.b16 %v1291, %v1290
        %v1383 = vpack.c.b16 %v1293, %v1292
        %v1384 = vpack.c.b16 %v1295, %v1294
        %v1385 = vpack.c.b16 %v1297, %v1296
        %v1386 = vpack.c.b16 %v1299, %v1298
        %v1387 = vpack.c.b16 %v1301, %v1300
        %v1388 = vpack.c.b16 %v1303, %v1302
        %v1389 = vpack.c.b16 %v1305, %v1304
        %v1390 = vpack.c.b16 %v1307, %v1306
        %v1391 = vpack.c.b16 %v1309, %v1308
        %v1392 = vpack.c.b16 %v1311, %v1310
        %v1393 = vpack.c.b16 %v1313, %v1312
        %v1394 = vpack.c.b16 %v1315, %v1314
        %v1395 = vpack.c.b16 %v1317, %v1316
        %v1396 = vpack.c.b16 %v1319, %v1318
        %v1397 = vpack.c.b16 %v1321, %v1320
        %v1398 = vpack.c.b16 %v1323, %v1322
        %v1399 = vpack.c.b16 %v1325, %v1324
        %v1400 = vpack.c.b16 %v1327, %v1326
        %v1401 = vpack.c.b16 %v1329, %v1328
        %1474 = vmatpush.bf16.msra.mxu0 %v1337
        %1475 = vmatpush.bf16.msra.mxu0 %v1336
        %1476 = vmatpush.bf16.msra.mxu0 %v1335
        %1477 = vmatpush.bf16.msra.mxu0 %v1334
        %1478 = vmatpush.bf16.msra.mxu0 %v1333
        %1479 = vmatpush.bf16.msra.mxu0 %v1332
        %1480 = vmatpush.bf16.msra.mxu0 %v1331
        %1481 = vmatpush.bf16.msra.mxu0 %v1330
        %1482 = vmatmul.bf16.gmra.mxu0 %v970
        %v1483 = vpop.f32.mrf.mxu0
        %v1484 = vadd.f32 %v856, %v1483
        %v1485 = vpop.f32.mrf.mxu0
        %v1486 = vadd.f32 %v856, %v1485
        %1487 = vmatmul.bf16.gmra.mxu0 %v979
        %v1488 = vpop.f32.mrf.mxu0
        %v1489 = vadd.f32 %v856, %v1488
        %v1490 = vpop.f32.mrf.mxu0
        %v1491 = vadd.f32 %v856, %v1490
        %1492 = vmatmul.bf16.gmra.mxu0 %v988
        %v1493 = vpop.f32.mrf.mxu0
        %v1494 = vadd.f32 %v856, %v1493
        %v1495 = vpop.f32.mrf.mxu0
        %v1496 = vadd.f32 %v856, %v1495
        %1497 = vmatmul.bf16.gmra.mxu0 %v997
        %v1498 = vpop.f32.mrf.mxu0
        %v1499 = vadd.f32 %v856, %v1498
        %v1500 = vpop.f32.mrf.mxu0
        %v1501 = vadd.f32 %v856, %v1500
        %1502 = vdwg.mxu0
        %1503 = vmatpush.bf16.msra.mxu0 %v1345
        %1504 = vmatpush.bf16.msra.mxu0 %v1344
        %1505 = vmatpush.bf16.msra.mxu0 %v1343
        %1506 = vmatpush.bf16.msra.mxu0 %v1342
        %1507 = vmatpush.bf16.msra.mxu0 %v1341
        %1508 = vmatpush.bf16.msra.mxu0 %v1340
        %1509 = vmatpush.bf16.msra.mxu0 %v1339
        %1510 = vmatpush.bf16.msra.mxu0 %v1338
        %1511 = vmatmul.bf16.gmra.mxu0 %v971
        %v1512 = vpop.f32.mrf.mxu0
        %v1513 = vadd.f32 %v1484, %v1512
        %v1514 = vpop.f32.mrf.mxu0
        %v1515 = vadd.f32 %v1486, %v1514
        %1516 = vmatmul.bf16.gmra.mxu0 %v980
        %v1517 = vpop.f32.mrf.mxu0
        %v1518 = vadd.f32 %v1489, %v1517
        %v1519 = vpop.f32.mrf.mxu0
        %v1520 = vadd.f32 %v1491, %v1519
        %1521 = vmatmul.bf16.gmra.mxu0 %v989
        %v1522 = vpop.f32.mrf.mxu0
        %v1523 = vadd.f32 %v1494, %v1522
        %v1524 = vpop.f32.mrf.mxu0
        %v1525 = vadd.f32 %v1496, %v1524
        %1526 = vmatmul.bf16.gmra.mxu0 %v998
        %v1527 = vpop.f32.mrf.mxu0
        %v1528 = vadd.f32 %v1499, %v1527
        %v1529 = vpop.f32.mrf.mxu0
        %v1530 = vadd.f32 %v1501, %v1529
        %1531 = vdwg.mxu0
        %1532 = vmatpush.bf16.msra.mxu0 %v1353
        %1533 = vmatpush.bf16.msra.mxu0 %v1352
        %1534 = vmatpush.bf16.msra.mxu0 %v1351
        %1535 = vmatpush.bf16.msra.mxu0 %v1350
        %1536 = vmatpush.bf16.msra.mxu0 %v1349
        %1537 = vmatpush.bf16.msra.mxu0 %v1348
        %1538 = vmatpush.bf16.msra.mxu0 %v1347
        %1539 = vmatpush.bf16.msra.mxu0 %v1346
        %1540 = vmatmul.bf16.gmra.mxu0 %v972
        %v1541 = vpop.f32.mrf.mxu0
        %v1542 = vadd.f32 %v1513, %v1541
        %v1543 = vpop.f32.mrf.mxu0
        %v1544 = vadd.f32 %v1515, %v1543
        %1545 = vmatmul.bf16.gmra.mxu0 %v981
        %v1546 = vpop.f32.mrf.mxu0
        %v1547 = vadd.f32 %v1518, %v1546
        %v1548 = vpop.f32.mrf.mxu0
        %v1549 = vadd.f32 %v1520, %v1548
        %1550 = vmatmul.bf16.gmra.mxu0 %v990
        %v1551 = vpop.f32.mrf.mxu0
        %v1552 = vadd.f32 %v1523, %v1551
        %v1553 = vpop.f32.mrf.mxu0
        %v1554 = vadd.f32 %v1525, %v1553
        %1555 = vmatmul.bf16.gmra.mxu0 %v999
        %v1556 = vpop.f32.mrf.mxu0
        %v1557 = vadd.f32 %v1528, %v1556
        %v1558 = vpop.f32.mrf.mxu0
        %v1559 = vadd.f32 %v1530, %v1558
        %1560 = vdwg.mxu0
        %1561 = vmatpush.bf16.msra.mxu0 %v1361
        %1562 = vmatpush.bf16.msra.mxu0 %v1360
        %1563 = vmatpush.bf16.msra.mxu0 %v1359
        %1564 = vmatpush.bf16.msra.mxu0 %v1358
        %1565 = vmatpush.bf16.msra.mxu0 %v1357
        %1566 = vmatpush.bf16.msra.mxu0 %v1356
        %1567 = vmatpush.bf16.msra.mxu0 %v1355
        %1568 = vmatpush.bf16.msra.mxu0 %v1354
        %1569 = vmatmul.bf16.gmra.mxu0 %v973
        %v1570 = vpop.f32.mrf.mxu0
        %v1571 = vadd.f32 %v1542, %v1570
        %v1572 = vpop.f32.mrf.mxu0
        %v1573 = vadd.f32 %v1544, %v1572
        %1574 = vmatmul.bf16.gmra.mxu0 %v982
        %v1575 = vpop.f32.mrf.mxu0
        %v1576 = vadd.f32 %v1547, %v1575
        %v1577 = vpop.f32.mrf.mxu0
        %v1578 = vadd.f32 %v1549, %v1577
        %1579 = vmatmul.bf16.gmra.mxu0 %v991
        %v1580 = vpop.f32.mrf.mxu0
        %v1581 = vadd.f32 %v1552, %v1580
        %v1582 = vpop.f32.mrf.mxu0
        %v1583 = vadd.f32 %v1554, %v1582
        %1584 = vmatmul.bf16.gmra.mxu0 %v1000
        %v1585 = vpop.f32.mrf.mxu0
        %v1586 = vadd.f32 %v1557, %v1585
        %v1587 = vpop.f32.mrf.mxu0
        %v1588 = vadd.f32 %v1559, %v1587
        %1589 = vdwg.mxu0
        %1590 = vmatpush.bf16.msra.mxu0 %v1369
        %1591 = vmatpush.bf16.msra.mxu0 %v1368
        %1592 = vmatpush.bf16.msra.mxu0 %v1367
        %1593 = vmatpush.bf16.msra.mxu0 %v1366
        %1594 = vmatpush.bf16.msra.mxu0 %v1365
        %1595 = vmatpush.bf16.msra.mxu0 %v1364
        %1596 = vmatpush.bf16.msra.mxu0 %v1363
        %1597 = vmatpush.bf16.msra.mxu0 %v1362
        %1598 = vmatmul.bf16.gmra.mxu0 %v974
        %v1599 = vpop.f32.mrf.mxu0
        %v1600 = vadd.f32 %v1571, %v1599
        %v1601 = vpop.f32.mrf.mxu0
        %v1602 = vadd.f32 %v1573, %v1601
        %1603 = vmatmul.bf16.gmra.mxu0 %v983
        %v1604 = vpop.f32.mrf.mxu0
        %v1605 = vadd.f32 %v1576, %v1604
        %v1606 = vpop.f32.mrf.mxu0
        %v1607 = vadd.f32 %v1578, %v1606
        %1608 = vmatmul.bf16.gmra.mxu0 %v992
        %v1609 = vpop.f32.mrf.mxu0
        %v1610 = vadd.f32 %v1581, %v1609
        %v1611 = vpop.f32.mrf.mxu0
        %v1612 = vadd.f32 %v1583, %v1611
        %1613 = vmatmul.bf16.gmra.mxu0 %v1001
        %v1614 = vpop.f32.mrf.mxu0
        %v1615 = vadd.f32 %v1586, %v1614
        %v1616 = vpop.f32.mrf.mxu0
        %v1617 = vadd.f32 %v1588, %v1616
        %1618 = vdwg.mxu0
        %1619 = vmatpush.bf16.msra.mxu0 %v1377
        %1620 = vmatpush.bf16.msra.mxu0 %v1376
        %1621 = vmatpush.bf16.msra.mxu0 %v1375
        %1622 = vmatpush.bf16.msra.mxu0 %v1374
        %1623 = vmatpush.bf16.msra.mxu0 %v1373
        %1624 = vmatpush.bf16.msra.mxu0 %v1372
        %1625 = vmatpush.bf16.msra.mxu0 %v1371
        %1626 = vmatpush.bf16.msra.mxu0 %v1370
        %1627 = vmatmul.bf16.gmra.mxu0 %v975
        %v1628 = vpop.f32.mrf.mxu0
        %v1629 = vadd.f32 %v1600, %v1628
        %v1630 = vpop.f32.mrf.mxu0
        %v1631 = vadd.f32 %v1602, %v1630
        %1632 = vmatmul.bf16.gmra.mxu0 %v984
        %v1633 = vpop.f32.mrf.mxu0
        %v1634 = vadd.f32 %v1605, %v1633
        %v1635 = vpop.f32.mrf.mxu0
        %v1636 = vadd.f32 %v1607, %v1635
        %1637 = vmatmul.bf16.gmra.mxu0 %v993
        %v1638 = vpop.f32.mrf.mxu0
        %v1639 = vadd.f32 %v1610, %v1638
        %v1640 = vpop.f32.mrf.mxu0
        %v1641 = vadd.f32 %v1612, %v1640
        %1642 = vmatmul.bf16.gmra.mxu0 %v1002
        %v1643 = vpop.f32.mrf.mxu0
        %v1644 = vadd.f32 %v1615, %v1643
        %v1645 = vpop.f32.mrf.mxu0
        %v1646 = vadd.f32 %v1617, %v1645
        %1647 = vdwg.mxu0
        %1648 = vmatpush.bf16.msra.mxu0 %v1385
        %1649 = vmatpush.bf16.msra.mxu0 %v1384
        %1650 = vmatpush.bf16.msra.mxu0 %v1383
        %1651 = vmatpush.bf16.msra.mxu0 %v1382
        %1652 = vmatpush.bf16.msra.mxu0 %v1381
        %1653 = vmatpush.bf16.msra.mxu0 %v1380
        %1654 = vmatpush.bf16.msra.mxu0 %v1379
        %1655 = vmatpush.bf16.msra.mxu0 %v1378
        %1656 = vmatmul.bf16.gmra.mxu0 %v976
        %v1657 = vpop.f32.mrf.mxu0
        %v1658 = vadd.f32 %v1629, %v1657
        %v1659 = vpop.f32.mrf.mxu0
        %v1660 = vadd.f32 %v1631, %v1659
        %1661 = vmatmul.bf16.gmra.mxu0 %v985
        %v1662 = vpop.f32.mrf.mxu0
        %v1663 = vadd.f32 %v1634, %v1662
        %v1664 = vpop.f32.mrf.mxu0
        %v1665 = vadd.f32 %v1636, %v1664
        %1666 = vmatmul.bf16.gmra.mxu0 %v994
        %v1667 = vpop.f32.mrf.mxu0
        %v1668 = vadd.f32 %v1639, %v1667
        %v1669 = vpop.f32.mrf.mxu0
        %v1670 = vadd.f32 %v1641, %v1669
        %1671 = vmatmul.bf16.gmra.mxu0 %v1003
        %v1672 = vpop.f32.mrf.mxu0
        %v1673 = vadd.f32 %v1644, %v1672
        %v1674 = vpop.f32.mrf.mxu0
        %v1675 = vadd.f32 %v1646, %v1674
        %1676 = vdwg.mxu0
        %1677 = vmatpush.bf16.msra.mxu0 %v1393
        %1678 = vmatpush.bf16.msra.mxu0 %v1392
        %1679 = vmatpush.bf16.msra.mxu0 %v1391
        %1680 = vmatpush.bf16.msra.mxu0 %v1390
        %1681 = vmatpush.bf16.msra.mxu0 %v1389
        %1682 = vmatpush.bf16.msra.mxu0 %v1388
        %1683 = vmatpush.bf16.msra.mxu0 %v1387
        %1684 = vmatpush.bf16.msra.mxu0 %v1386
        %1685 = vmatmul.bf16.gmra.mxu0 %v977
        %v1686 = vpop.f32.mrf.mxu0
        %v1687 = vadd.f32 %v1658, %v1686
        %v1688 = vpop.f32.mrf.mxu0
        %v1689 = vadd.f32 %v1660, %v1688
        %1690 = vmatmul.bf16.gmra.mxu0 %v986
        %v1691 = vpop.f32.mrf.mxu0
        %v1692 = vadd.f32 %v1663, %v1691
        %v1693 = vpop.f32.mrf.mxu0
        %v1694 = vadd.f32 %v1665, %v1693
        %1695 = vmatmul.bf16.gmra.mxu0 %v995
        %v1696 = vpop.f32.mrf.mxu0
        %v1697 = vadd.f32 %v1668, %v1696
        %v1698 = vpop.f32.mrf.mxu0
        %v1699 = vadd.f32 %v1670, %v1698
        %1700 = vmatmul.bf16.gmra.mxu0 %v1004
        %v1701 = vpop.f32.mrf.mxu0
        %v1702 = vadd.f32 %v1673, %v1701
        %v1703 = vpop.f32.mrf.mxu0
        %v1704 = vadd.f32 %v1675, %v1703
        %1705 = vdwg.mxu0
        %1706 = vmatpush.bf16.msra.mxu0 %v1401
        %1707 = vmatpush.bf16.msra.mxu0 %v1400
        %1708 = vmatpush.bf16.msra.mxu0 %v1399
        %1709 = vmatpush.bf16.msra.mxu0 %v1398
        %1710 = vmatpush.bf16.msra.mxu0 %v1397
        %1711 = vmatpush.bf16.msra.mxu0 %v1396
        %1712 = vmatpush.bf16.msra.mxu0 %v1395
        %1713 = vmatpush.bf16.msra.mxu0 %v1394
        %1714 = vmatmul.bf16.gmra.mxu0 %v978
        %v1715 = vpop.f32.mrf.mxu0
        %v1716 = vadd.f32 %v1687, %v1715
        %v1717 = vpop.f32.mrf.mxu0
        %v1718 = vadd.f32 %v1689, %v1717
        %1719 = vmatmul.bf16.gmra.mxu0 %v987
        %v1720 = vpop.f32.mrf.mxu0
        %v1721 = vadd.f32 %v1692, %v1720
        %v1722 = vpop.f32.mrf.mxu0
        %v1723 = vadd.f32 %v1694, %v1722
        %1724 = vmatmul.bf16.gmra.mxu0 %v996
        %v1725 = vpop.f32.mrf.mxu0
        %v1726 = vadd.f32 %v1697, %v1725
        %v1727 = vpop.f32.mrf.mxu0
        %v1728 = vadd.f32 %v1699, %v1727
        %1729 = vmatmul.bf16.gmra.mxu0 %v1005
        %v1730 = vpop.f32.mrf.mxu0
        %v1731 = vadd.f32 %v1702, %v1730
        %v1732 = vpop.f32.mrf.mxu0
        %v1733 = vadd.f32 %v1704, %v1732
        %1734 = vdwg.mxu0
        %v1735 = vmul.f32 %v1716, 0.088388346
        %v1736 = vmul.f32 %v1718, 0.088388346
        %v1737 = vmul.f32 %v1721, 0.088388346
        %v1738 = vmul.f32 %v1723, 0.088388346
        %v1739 = vmul.f32 %v1726, 0.088388346
        %v1740 = vmul.f32 %v1728, 0.088388346
        %v1741 = vmul.f32 %v1731, 0.088388346
        %v1742 = vmul.f32 %v1733, 0.088388346
        %v1743 = vld [vmem:[%s2] sm:$0xf]
        %v1744 = vld [vmem:[%s2 + $0x4] sm:$0xf]
        %v1745 = vld [vmem:[%s2 + $0x8] sm:$0xf]
        %v1746 = vld [vmem:[%s2 + $0xc] sm:$0xf]
        %v1747 = vld [vmem:[%s2 + $0x10] sm:$0xf]
        %v1748 = vld [vmem:[%s2 + $0x14] sm:$0xf]
        %v1749 = vld [vmem:[%s2 + $0x18] sm:$0xf]
        %v1750 = vld [vmem:[%s2 + $0x1c] sm:$0xf]
        %v1751 = vld [vmem:[%s2 + $0x20] sm:$0xf]
        %v1752 = vld [vmem:[%s2 + $0x24] sm:$0xf]
        %v1753 = vld [vmem:[%s2 + $0x28] sm:$0xf]
        %v1754 = vld [vmem:[%s2 + $0x2c] sm:$0xf]
        %v1755 = vld [vmem:[%s2 + $0x30] sm:$0xf]
        %v1756 = vld [vmem:[%s2 + $0x34] sm:$0xf]
        %v1757 = vld [vmem:[%s2 + $0x38] sm:$0xf]
        %v1758 = vld [vmem:[%s2 + $0x3c] sm:$0xf]
        %v1759 = vld [vmem:[%s2 + $0x40] sm:$0xf]
        %v1760 = vld [vmem:[%s2 + $0x44] sm:$0xf]
        %v1761 = vld [vmem:[%s2 + $0x48] sm:$0xf]
        %v1762 = vld [vmem:[%s2 + $0x4c] sm:$0xf]
        %v1763 = vld [vmem:[%s2 + $0x50] sm:$0xf]
        %v1764 = vld [vmem:[%s2 + $0x54] sm:$0xf]
        %v1765 = vld [vmem:[%s2 + $0x58] sm:$0xf]
        %v1766 = vld [vmem:[%s2 + $0x5c] sm:$0xf]
        %v1767 = vld [vmem:[%s2 + $0x60] sm:$0xf]
        %v1768 = vld [vmem:[%s2 + $0x64] sm:$0xf]
        %v1769 = vld [vmem:[%s2 + $0x68] sm:$0xf]
        %v1770 = vld [vmem:[%s2 + $0x6c] sm:$0xf]
        %v1771 = vld [vmem:[%s2 + $0x70] sm:$0xf]
        %v1772 = vld [vmem:[%s2 + $0x74] sm:$0xf]
        %v1773 = vld [vmem:[%s2 + $0x78] sm:$0xf]
        %v1774 = vld [vmem:[%s2 + $0x7c] sm:$0xf]
        %v1775 = vld [vmem:[%s2 + $0x80] sm:$0xf]
        %v1776 = vld [vmem:[%s2 + $0x84] sm:$0xf]
        %v1777 = vld [vmem:[%s2 + $0x88] sm:$0xf]
        %v1778 = vld [vmem:[%s2 + $0x8c] sm:$0xf]
        %v1779 = vld [vmem:[%s2 + $0x90] sm:$0xf]
        %v1780 = vld [vmem:[%s2 + $0x94] sm:$0xf]
        %v1781 = vld [vmem:[%s2 + $0x98] sm:$0xf]
        %v1782 = vld [vmem:[%s2 + $0x9c] sm:$0xf]
        %v1783 = vld [vmem:[%s2 + $0xa0] sm:$0xf]
        %v1784 = vld [vmem:[%s2 + $0xa4] sm:$0xf]
        %v1785 = vld [vmem:[%s2 + $0xa8] sm:$0xf]
        %v1786 = vld [vmem:[%s2 + $0xac] sm:$0xf]
        %v1787 = vld [vmem:[%s2 + $0xb0] sm:$0xf]
        %v1788 = vld [vmem:[%s2 + $0xb4] sm:$0xf]
        %v1789 = vld [vmem:[%s2 + $0xb8] sm:$0xf]
        %v1790 = vld [vmem:[%s2 + $0xbc] sm:$0xf]
        %v1791 = vld [vmem:[%s2 + $0xc0] sm:$0xf]
        %v1792 = vld [vmem:[%s2 + $0xc4] sm:$0xf]
        %v1793 = vld [vmem:[%s2 + $0xc8] sm:$0xf]
        %v1794 = vld [vmem:[%s2 + $0xcc] sm:$0xf]
        %v1795 = vld [vmem:[%s2 + $0xd0] sm:$0xf]
        %v1796 = vld [vmem:[%s2 + $0xd4] sm:$0xf]
        %v1797 = vld [vmem:[%s2 + $0xd8] sm:$0xf]
        %v1798 = vld [vmem:[%s2 + $0xdc] sm:$0xf]
        %v1799 = vld [vmem:[%s2 + $0xe0] sm:$0xf]
        %v1800 = vld [vmem:[%s2 + $0xe4] sm:$0xf]
        %v1801 = vld [vmem:[%s2 + $0xe8] sm:$0xf]
        %v1802 = vld [vmem:[%s2 + $0xec] sm:$0xf]
        %v1803 = vld [vmem:[%s2 + $0xf0] sm:$0xf]
        %v1804 = vld [vmem:[%s2 + $0xf4] sm:$0xf]
        %v1805 = vld [vmem:[%s2 + $0xf8] sm:$0xf]
        %v1806 = vld [vmem:[%s2 + $0xfc] sm:$0xf]
        %v1807 = vld [vmem:[%s2 + $0x100] sm:$0xf]
        %v1808 = vld [vmem:[%s2 + $0x104] sm:$0xf]
        %v1809 = vld [vmem:[%s2 + $0x108] sm:$0xf]
        %v1810 = vld [vmem:[%s2 + $0x10c] sm:$0xf]
        %v1811 = vld [vmem:[%s2 + $0x110] sm:$0xf]
        %v1812 = vld [vmem:[%s2 + $0x114] sm:$0xf]
        %v1813 = vld [vmem:[%s2 + $0x118] sm:$0xf]
        %v1814 = vld [vmem:[%s2 + $0x11c] sm:$0xf]
        %v1815 = vld [vmem:[%s2 + $0x120] sm:$0xf]
        %v1816 = vld [vmem:[%s2 + $0x124] sm:$0xf]
        %v1817 = vld [vmem:[%s2 + $0x128] sm:$0xf]
        %v1818 = vld [vmem:[%s2 + $0x12c] sm:$0xf]
        %v1819 = vld [vmem:[%s2 + $0x130] sm:$0xf]
        %v1820 = vld [vmem:[%s2 + $0x134] sm:$0xf]
        %v1821 = vld [vmem:[%s2 + $0x138] sm:$0xf]
        %v1822 = vld [vmem:[%s2 + $0x13c] sm:$0xf]
        %v1823 = vld [vmem:[%s2 + $0x140] sm:$0xf]
        %v1824 = vld [vmem:[%s2 + $0x144] sm:$0xf]
        %v1825 = vld [vmem:[%s2 + $0x148] sm:$0xf]
        %v1826 = vld [vmem:[%s2 + $0x14c] sm:$0xf]
        %v1827 = vld [vmem:[%s2 + $0x150] sm:$0xf]
        %v1828 = vld [vmem:[%s2 + $0x154] sm:$0xf]
        %v1829 = vld [vmem:[%s2 + $0x158] sm:$0xf]
        %v1830 = vld [vmem:[%s2 + $0x15c] sm:$0xf]
        %v1831 = vld [vmem:[%s2 + $0x160] sm:$0xf]
        %v1832 = vld [vmem:[%s2 + $0x164] sm:$0xf]
        %v1833 = vld [vmem:[%s2 + $0x168] sm:$0xf]
        %v1834 = vld [vmem:[%s2 + $0x16c] sm:$0xf]
        %v1835 = vld [vmem:[%s2 + $0x170] sm:$0xf]
        %v1836 = vld [vmem:[%s2 + $0x174] sm:$0xf]
        %v1837 = vld [vmem:[%s2 + $0x178] sm:$0xf]
        %v1838 = vld [vmem:[%s2 + $0x17c] sm:$0xf]
        %v1839 = vld [vmem:[%s2 + $0x180] sm:$0xf]
        %v1840 = vld [vmem:[%s2 + $0x184] sm:$0xf]
        %v1841 = vld [vmem:[%s2 + $0x188] sm:$0xf]
        %v1842 = vld [vmem:[%s2 + $0x18c] sm:$0xf]
        %v1843 = vld [vmem:[%s2 + $0x190] sm:$0xf]
        %v1844 = vld [vmem:[%s2 + $0x194] sm:$0xf]
        %v1845 = vld [vmem:[%s2 + $0x198] sm:$0xf]
        %v1846 = vld [vmem:[%s2 + $0x19c] sm:$0xf]
        %v1847 = vld [vmem:[%s2 + $0x1a0] sm:$0xf]
        %v1848 = vld [vmem:[%s2 + $0x1a4] sm:$0xf]
        %v1849 = vld [vmem:[%s2 + $0x1a8] sm:$0xf]
        %v1850 = vld [vmem:[%s2 + $0x1ac] sm:$0xf]
        %v1851 = vld [vmem:[%s2 + $0x1b0] sm:$0xf]
        %v1852 = vld [vmem:[%s2 + $0x1b4] sm:$0xf]
        %v1853 = vld [vmem:[%s2 + $0x1b8] sm:$0xf]
        %v1854 = vld [vmem:[%s2 + $0x1bc] sm:$0xf]
        %v1855 = vld [vmem:[%s2 + $0x1c0] sm:$0xf]
        %v1856 = vld [vmem:[%s2 + $0x1c4] sm:$0xf]
        %v1857 = vld [vmem:[%s2 + $0x1c8] sm:$0xf]
        %v1858 = vld [vmem:[%s2 + $0x1cc] sm:$0xf]
        %v1859 = vld [vmem:[%s2 + $0x1d0] sm:$0xf]
        %v1860 = vld [vmem:[%s2 + $0x1d4] sm:$0xf]
        %v1861 = vld [vmem:[%s2 + $0x1d8] sm:$0xf]
        %v1862 = vld [vmem:[%s2 + $0x1dc] sm:$0xf]
        %v1863 = vld [vmem:[%s2 + $0x1e0] sm:$0xf]
        %v1864 = vld [vmem:[%s2 + $0x1e4] sm:$0xf]
        %v1865 = vld [vmem:[%s2 + $0x1e8] sm:$0xf]
        %v1866 = vld [vmem:[%s2 + $0x1ec] sm:$0xf]
        %v1867 = vld [vmem:[%s2 + $0x1f0] sm:$0xf]
        %v1868 = vld [vmem:[%s2 + $0x1f4] sm:$0xf]
        %v1869 = vld [vmem:[%s2 + $0x1f8] sm:$0xf]
        %v1870 = vld [vmem:[%s2 + $0x1fc] sm:$0xf]
        %v1871 = vld [vmem:[%s2 + $0x200] sm:$0xf]
        %v1872 = vld [vmem:[%s2 + $0x204] sm:$0xf]
        %v1873 = vld [vmem:[%s2 + $0x208] sm:$0xf]
        %v1874 = vld [vmem:[%s2 + $0x20c] sm:$0xf]
        %v1875 = vld [vmem:[%s2 + $0x210] sm:$0xf]
        %v1876 = vld [vmem:[%s2 + $0x214] sm:$0xf]
        %v1877 = vld [vmem:[%s2 + $0x218] sm:$0xf]
        %v1878 = vld [vmem:[%s2 + $0x21c] sm:$0xf]
        %v1879 = vld [vmem:[%s2 + $0x220] sm:$0xf]
        %v1880 = vld [vmem:[%s2 + $0x224] sm:$0xf]
        %v1881 = vld [vmem:[%s2 + $0x228] sm:$0xf]
        %v1882 = vld [vmem:[%s2 + $0x22c] sm:$0xf]
        %v1883 = vld [vmem:[%s2 + $0x230] sm:$0xf]
        %v1884 = vld [vmem:[%s2 + $0x234] sm:$0xf]
        %v1885 = vld [vmem:[%s2 + $0x238] sm:$0xf]
        %v1886 = vld [vmem:[%s2 + $0x23c] sm:$0xf]
        %v1887 = vld [vmem:[%s5] sm:$0x1]
        %v1889 = vperm.slane %v1887, 0
        %v2035 = vunpack.c.l.b16 %v1743
        %v2036 = vunpack.c.l.b16 %v1744
        %v2037 = vunpack.c.l.b16 %v1745
        %v2038 = vunpack.c.l.b16 %v1746
        %v2039 = vunpack.c.l.b16 %v1747
        %v2040 = vunpack.c.l.b16 %v1748
        %v2041 = vunpack.c.l.b16 %v1749
        %v2042 = vunpack.c.l.b16 %v1750
        %v2043 = vunpack.c.l.b16 %v1751
        %v2044 = vunpack.c.l.b16 %v1752
        %v2045 = vunpack.c.l.b16 %v1753
        %v2046 = vunpack.c.l.b16 %v1754
        %v2047 = vunpack.c.l.b16 %v1755
        %v2048 = vunpack.c.l.b16 %v1756
        %v2049 = vunpack.c.l.b16 %v1757
        %v2050 = vunpack.c.l.b16 %v1758
        %v2051 = vunpack.c.l.b16 %v1759
        %v2052 = vunpack.c.l.b16 %v1760
        %v2053 = vunpack.c.l.b16 %v1761
        %v2054 = vunpack.c.l.b16 %v1762
        %v2055 = vunpack.c.l.b16 %v1763
        %v2056 = vunpack.c.l.b16 %v1764
        %v2057 = vunpack.c.l.b16 %v1765
        %v2058 = vunpack.c.l.b16 %v1766
        %v2059 = vunpack.c.l.b16 %v1767
        %v2060 = vunpack.c.l.b16 %v1768
        %v2061 = vunpack.c.l.b16 %v1769
        %v2062 = vunpack.c.l.b16 %v1770
        %v2063 = vunpack.c.l.b16 %v1771
        %v2064 = vunpack.c.l.b16 %v1772
        %v2065 = vunpack.c.l.b16 %v1773
        %v2066 = vunpack.c.l.b16 %v1774
        %v2067 = vunpack.c.l.b16 %v1775
        %v2068 = vunpack.c.l.b16 %v1776
        %v2069 = vunpack.c.l.b16 %v1777
        %v2070 = vunpack.c.l.b16 %v1778
        %v2071 = vunpack.c.l.b16 %v1779
        %v2072 = vunpack.c.l.b16 %v1780
        %v2073 = vunpack.c.l.b16 %v1781
        %v2074 = vunpack.c.l.b16 %v1782
        %v2075 = vunpack.c.l.b16 %v1783
        %v2076 = vunpack.c.l.b16 %v1784
        %v2077 = vunpack.c.l.b16 %v1785
        %v2078 = vunpack.c.l.b16 %v1786
        %v2079 = vunpack.c.l.b16 %v1787
        %v2080 = vunpack.c.l.b16 %v1788
        %v2081 = vunpack.c.l.b16 %v1789
        %v2082 = vunpack.c.l.b16 %v1790
        %v2083 = vunpack.c.l.b16 %v1791
        %v2084 = vunpack.c.l.b16 %v1792
        %v2085 = vunpack.c.l.b16 %v1793
        %v2086 = vunpack.c.l.b16 %v1794
        %v2087 = vunpack.c.l.b16 %v1795
        %v2088 = vunpack.c.l.b16 %v1796
        %v2089 = vunpack.c.l.b16 %v1797
        %v2090 = vunpack.c.l.b16 %v1798
        %v2091 = vunpack.c.l.b16 %v1799
        %v2092 = vunpack.c.l.b16 %v1800
        %v2093 = vunpack.c.l.b16 %v1801
        %v2094 = vunpack.c.l.b16 %v1802
        %v2095 = vunpack.c.l.b16 %v1803
        %v2096 = vunpack.c.l.b16 %v1804
        %v2097 = vunpack.c.l.b16 %v1805
        %v2098 = vunpack.c.l.b16 %v1806
        %v2099 = vunpack.c.l.b16 %v1807
        %v2100 = vunpack.c.l.b16 %v1808
        %v2101 = vunpack.c.l.b16 %v1809
        %v2102 = vunpack.c.l.b16 %v1810
        %v2103 = vunpack.c.l.b16 %v1811
        %v2104 = vunpack.c.l.b16 %v1812
        %v2105 = vunpack.c.l.b16 %v1813
        %v2106 = vunpack.c.l.b16 %v1814
        %v2107 = vunpack.c.l.b16 %v1815
        %v2108 = vunpack.c.l.b16 %v1816
        %v2109 = vunpack.c.l.b16 %v1817
        %v2110 = vunpack.c.l.b16 %v1818
        %v2111 = vunpack.c.l.b16 %v1819
        %v2112 = vunpack.c.l.b16 %v1820
        %v2113 = vunpack.c.l.b16 %v1821
        %v2114 = vunpack.c.l.b16 %v1822
        %v2115 = vunpack.c.l.b16 %v1823
        %v2116 = vunpack.c.l.b16 %v1824
        %v2117 = vunpack.c.l.b16 %v1825
        %v2118 = vunpack.c.l.b16 %v1826
        %v2119 = vunpack.c.l.b16 %v1827
        %v2120 = vunpack.c.l.b16 %v1828
        %v2121 = vunpack.c.l.b16 %v1829
        %v2122 = vunpack.c.l.b16 %v1830
        %v2123 = vunpack.c.l.b16 %v1831
        %v2124 = vunpack.c.l.b16 %v1832
        %v2125 = vunpack.c.l.b16 %v1833
        %v2126 = vunpack.c.l.b16 %v1834
        %v2127 = vunpack.c.l.b16 %v1835
        %v2128 = vunpack.c.l.b16 %v1836
        %v2129 = vunpack.c.l.b16 %v1837
        %v2130 = vunpack.c.l.b16 %v1838
        %v2131 = vunpack.c.l.b16 %v1839
        %v2132 = vunpack.c.l.b16 %v1840
        %v2133 = vunpack.c.l.b16 %v1841
        %v2134 = vunpack.c.l.b16 %v1842
        %v2135 = vunpack.c.l.b16 %v1843
        %v2136 = vunpack.c.l.b16 %v1844
        %v2137 = vunpack.c.l.b16 %v1845
        %v2138 = vunpack.c.l.b16 %v1846
        %v2139 = vunpack.c.l.b16 %v1847
        %v2140 = vunpack.c.l.b16 %v1848
        %v2141 = vunpack.c.l.b16 %v1849
        %v2142 = vunpack.c.l.b16 %v1850
        %v2143 = vunpack.c.l.b16 %v1851
        %v2144 = vunpack.c.l.b16 %v1852
        %v2145 = vunpack.c.l.b16 %v1853
        %v2146 = vunpack.c.l.b16 %v1854
        %v2147 = vunpack.c.l.b16 %v1855
        %v2148 = vunpack.c.l.b16 %v1856
        %v2149 = vunpack.c.l.b16 %v1857
        %v2150 = vunpack.c.l.b16 %v1858
        %v2151 = vunpack.c.l.b16 %v1859
        %v2152 = vunpack.c.l.b16 %v1860
        %v2153 = vunpack.c.l.b16 %v1861
        %v2154 = vunpack.c.l.b16 %v1862
        %v2155 = vunpack.c.l.b16 %v1863
        %v2156 = vunpack.c.l.b16 %v1864
        %v2157 = vunpack.c.l.b16 %v1865
        %v2158 = vunpack.c.l.b16 %v1866
        %v2159 = vunpack.c.l.b16 %v1867
        %v2160 = vunpack.c.l.b16 %v1868
        %v2161 = vunpack.c.l.b16 %v1869
        %v2162 = vunpack.c.l.b16 %v1870
        %v2163 = vunpack.c.l.b16 %v1871
        %v2164 = vunpack.c.l.b16 %v1872
        %v2165 = vunpack.c.l.b16 %v1873
        %v2166 = vunpack.c.l.b16 %v1874
        %v2167 = vunpack.c.l.b16 %v1875
        %v2168 = vunpack.c.l.b16 %v1876
        %v2169 = vunpack.c.l.b16 %v1877
        %v2170 = vunpack.c.l.b16 %v1878
        %v2171 = vunpack.c.l.b16 %v1879
        %v2172 = vunpack.c.l.b16 %v1880
        %v2173 = vunpack.c.l.b16 %v1881
        %v2174 = vunpack.c.l.b16 %v1882
        %v2175 = vunpack.c.l.b16 %v1883
        %v2176 = vunpack.c.l.b16 %v1884
        %v2177 = vunpack.c.l.b16 %v1885
        %v2178 = vunpack.c.l.b16 %v1886
        %v2179 = vpack.c.b16 %v2036, %v2035
        %v2180 = vpack.c.b16 %v2038, %v2037
        %v2181 = vpack.c.b16 %v2040, %v2039
        %v2182 = vpack.c.b16 %v2042, %v2041
        %v2183 = vpack.c.b16 %v2044, %v2043
        %v2184 = vpack.c.b16 %v2046, %v2045
        %v2185 = vpack.c.b16 %v2048, %v2047
        %v2186 = vpack.c.b16 %v2050, %v2049
        %v2187 = vpack.c.b16 %v2052, %v2051
        %v2188 = vpack.c.b16 %v2054, %v2053
        %v2189 = vpack.c.b16 %v2056, %v2055
        %v2190 = vpack.c.b16 %v2058, %v2057
        %v2191 = vpack.c.b16 %v2060, %v2059
        %v2192 = vpack.c.b16 %v2062, %v2061
        %v2193 = vpack.c.b16 %v2064, %v2063
        %v2194 = vpack.c.b16 %v2066, %v2065
        %v2195 = vpack.c.b16 %v2068, %v2067
        %v2196 = vpack.c.b16 %v2070, %v2069
        %v2197 = vpack.c.b16 %v2072, %v2071
        %v2198 = vpack.c.b16 %v2074, %v2073
        %v2199 = vpack.c.b16 %v2076, %v2075
        %v2200 = vpack.c.b16 %v2078, %v2077
        %v2201 = vpack.c.b16 %v2080, %v2079
        %v2202 = vpack.c.b16 %v2082, %v2081
        %v2203 = vpack.c.b16 %v2084, %v2083
        %v2204 = vpack.c.b16 %v2086, %v2085
        %v2205 = vpack.c.b16 %v2088, %v2087
        %v2206 = vpack.c.b16 %v2090, %v2089
        %v2207 = vpack.c.b16 %v2092, %v2091
        %v2208 = vpack.c.b16 %v2094, %v2093
        %v2209 = vpack.c.b16 %v2096, %v2095
        %v2210 = vpack.c.b16 %v2098, %v2097
        %v2211 = vpack.c.b16 %v2100, %v2099
        %v2212 = vpack.c.b16 %v2102, %v2101
        %v2213 = vpack.c.b16 %v2104, %v2103
        %v2214 = vpack.c.b16 %v2106, %v2105
        %v2215 = vpack.c.b16 %v2108, %v2107
        %v2216 = vpack.c.b16 %v2110, %v2109
        %v2217 = vpack.c.b16 %v2112, %v2111
        %v2218 = vpack.c.b16 %v2114, %v2113
        %v2219 = vpack.c.b16 %v2116, %v2115
        %v2220 = vpack.c.b16 %v2118, %v2117
        %v2221 = vpack.c.b16 %v2120, %v2119
        %v2222 = vpack.c.b16 %v2122, %v2121
        %v2223 = vpack.c.b16 %v2124, %v2123
        %v2224 = vpack.c.b16 %v2126, %v2125
        %v2225 = vpack.c.b16 %v2128, %v2127
        %v2226 = vpack.c.b16 %v2130, %v2129
        %v2227 = vpack.c.b16 %v2132, %v2131
        %v2228 = vpack.c.b16 %v2134, %v2133
        %v2229 = vpack.c.b16 %v2136, %v2135
        %v2230 = vpack.c.b16 %v2138, %v2137
        %v2231 = vpack.c.b16 %v2140, %v2139
        %v2232 = vpack.c.b16 %v2142, %v2141
        %v2233 = vpack.c.b16 %v2144, %v2143
        %v2234 = vpack.c.b16 %v2146, %v2145
        %v2235 = vpack.c.b16 %v2148, %v2147
        %v2236 = vpack.c.b16 %v2150, %v2149
        %v2237 = vpack.c.b16 %v2152, %v2151
        %v2238 = vpack.c.b16 %v2154, %v2153
        %v2239 = vpack.c.b16 %v2156, %v2155
        %v2240 = vpack.c.b16 %v2158, %v2157
        %v2241 = vpack.c.b16 %v2160, %v2159
        %v2242 = vpack.c.b16 %v2162, %v2161
        %v2243 = vpack.c.b16 %v2164, %v2163
        %v2244 = vpack.c.b16 %v2166, %v2165
        %v2245 = vpack.c.b16 %v2168, %v2167
        %v2246 = vpack.c.b16 %v2170, %v2169
        %v2247 = vpack.c.b16 %v2172, %v2171
        %v2248 = vpack.c.b16 %v2174, %v2173
        %v2249 = vpack.c.b16 %v2176, %v2175
        %v2250 = vpack.c.b16 %v2178, %v2177
        %2323 = vmatpush.bf16.msra.mxu0 %v2186
        %2324 = vmatpush.bf16.msra.mxu0 %v2185
        %2325 = vmatpush.bf16.msra.mxu0 %v2184
        %2326 = vmatpush.bf16.msra.mxu0 %v2183
        %2327 = vmatpush.bf16.msra.mxu0 %v2182
        %2328 = vmatpush.bf16.msra.mxu0 %v2181
        %2329 = vmatpush.bf16.msra.mxu0 %v2180
        %2330 = vmatpush.bf16.msra.mxu0 %v2179
        %2331 = vmatmul.bf16.gmra.mxu0 %v970
        %v2332 = vpop.f32.mrf.mxu0
        %v2333 = vadd.f32 %v1889, %v2332
        %v2334 = vpop.f32.mrf.mxu0
        %v2335 = vadd.f32 %v1889, %v2334
        %2336 = vmatmul.bf16.gmra.mxu0 %v979
        %v2337 = vpop.f32.mrf.mxu0
        %v2338 = vadd.f32 %v1889, %v2337
        %v2339 = vpop.f32.mrf.mxu0
        %v2340 = vadd.f32 %v1889, %v2339
        %2341 = vmatmul.bf16.gmra.mxu0 %v988
        %v2342 = vpop.f32.mrf.mxu0
        %v2343 = vadd.f32 %v1889, %v2342
        %v2344 = vpop.f32.mrf.mxu0
        %v2345 = vadd.f32 %v1889, %v2344
        %2346 = vmatmul.bf16.gmra.mxu0 %v997
        %v2347 = vpop.f32.mrf.mxu0
        %v2348 = vadd.f32 %v1889, %v2347
        %v2349 = vpop.f32.mrf.mxu0
        %v2350 = vadd.f32 %v1889, %v2349
        %2351 = vdwg.mxu0
        %2352 = vmatpush.bf16.msra.mxu0 %v2194
        %2353 = vmatpush.bf16.msra.mxu0 %v2193
        %2354 = vmatpush.bf16.msra.mxu0 %v2192
        %2355 = vmatpush.bf16.msra.mxu0 %v2191
        %2356 = vmatpush.bf16.msra.mxu0 %v2190
        %2357 = vmatpush.bf16.msra.mxu0 %v2189
        %2358 = vmatpush.bf16.msra.mxu0 %v2188
        %2359 = vmatpush.bf16.msra.mxu0 %v2187
        %2360 = vmatmul.bf16.gmra.mxu0 %v971
        %v2361 = vpop.f32.mrf.mxu0
        %v2362 = vadd.f32 %v2333, %v2361
        %v2363 = vpop.f32.mrf.mxu0
        %v2364 = vadd.f32 %v2335, %v2363
        %2365 = vmatmul.bf16.gmra.mxu0 %v980
        %v2366 = vpop.f32.mrf.mxu0
        %v2367 = vadd.f32 %v2338, %v2366
        %v2368 = vpop.f32.mrf.mxu0
        %v2369 = vadd.f32 %v2340, %v2368
        %2370 = vmatmul.bf16.gmra.mxu0 %v989
        %v2371 = vpop.f32.mrf.mxu0
        %v2372 = vadd.f32 %v2343, %v2371
        %v2373 = vpop.f32.mrf.mxu0
        %v2374 = vadd.f32 %v2345, %v2373
        %2375 = vmatmul.bf16.gmra.mxu0 %v998
        %v2376 = vpop.f32.mrf.mxu0
        %v2377 = vadd.f32 %v2348, %v2376
        %v2378 = vpop.f32.mrf.mxu0
        %v2379 = vadd.f32 %v2350, %v2378
        %2380 = vdwg.mxu0
        %2381 = vmatpush.bf16.msra.mxu0 %v2202
        %2382 = vmatpush.bf16.msra.mxu0 %v2201
        %2383 = vmatpush.bf16.msra.mxu0 %v2200
        %2384 = vmatpush.bf16.msra.mxu0 %v2199
        %2385 = vmatpush.bf16.msra.mxu0 %v2198
        %2386 = vmatpush.bf16.msra.mxu0 %v2197
        %2387 = vmatpush.bf16.msra.mxu0 %v2196
        %2388 = vmatpush.bf16.msra.mxu0 %v2195
        %2389 = vmatmul.bf16.gmra.mxu0 %v972
        %v2390 = vpop.f32.mrf.mxu0
        %v2391 = vadd.f32 %v2362, %v2390
        %v2392 = vpop.f32.mrf.mxu0
        %v2393 = vadd.f32 %v2364, %v2392
        %2394 = vmatmul.bf16.gmra.mxu0 %v981
        %v2395 = vpop.f32.mrf.mxu0
        %v2396 = vadd.f32 %v2367, %v2395
        %v2397 = vpop.f32.mrf.mxu0
        %v2398 = vadd.f32 %v2369, %v2397
        %2399 = vmatmul.bf16.gmra.mxu0 %v990
        %v2400 = vpop.f32.mrf.mxu0
        %v2401 = vadd.f32 %v2372, %v2400
        %v2402 = vpop.f32.mrf.mxu0
        %v2403 = vadd.f32 %v2374, %v2402
        %2404 = vmatmul.bf16.gmra.mxu0 %v999
        %v2405 = vpop.f32.mrf.mxu0
        %v2406 = vadd.f32 %v2377, %v2405
        %v2407 = vpop.f32.mrf.mxu0
        %v2408 = vadd.f32 %v2379, %v2407
        %2409 = vdwg.mxu0
        %2410 = vmatpush.bf16.msra.mxu0 %v2210
        %2411 = vmatpush.bf16.msra.mxu0 %v2209
        %2412 = vmatpush.bf16.msra.mxu0 %v2208
        %2413 = vmatpush.bf16.msra.mxu0 %v2207
        %2414 = vmatpush.bf16.msra.mxu0 %v2206
        %2415 = vmatpush.bf16.msra.mxu0 %v2205
        %2416 = vmatpush.bf16.msra.mxu0 %v2204
        %2417 = vmatpush.bf16.msra.mxu0 %v2203
        %2418 = vmatmul.bf16.gmra.mxu0 %v973
        %v2419 = vpop.f32.mrf.mxu0
        %v2420 = vadd.f32 %v2391, %v2419
        %v2421 = vpop.f32.mrf.mxu0
        %v2422 = vadd.f32 %v2393, %v2421
        %2423 = vmatmul.bf16.gmra.mxu0 %v982
        %v2424 = vpop.f32.mrf.mxu0
        %v2425 = vadd.f32 %v2396, %v2424
        %v2426 = vpop.f32.mrf.mxu0
        %v2427 = vadd.f32 %v2398, %v2426
        %2428 = vmatmul.bf16.gmra.mxu0 %v991
        %v2429 = vpop.f32.mrf.mxu0
        %v2430 = vadd.f32 %v2401, %v2429
        %v2431 = vpop.f32.mrf.mxu0
        %v2432 = vadd.f32 %v2403, %v2431
        %2433 = vmatmul.bf16.gmra.mxu0 %v1000
        %v2434 = vpop.f32.mrf.mxu0
        %v2435 = vadd.f32 %v2406, %v2434
        %v2436 = vpop.f32.mrf.mxu0
        %v2437 = vadd.f32 %v2408, %v2436
        %2438 = vdwg.mxu0
        %2439 = vmatpush.bf16.msra.mxu0 %v2218
        %2440 = vmatpush.bf16.msra.mxu0 %v2217
        %2441 = vmatpush.bf16.msra.mxu0 %v2216
        %2442 = vmatpush.bf16.msra.mxu0 %v2215
        %2443 = vmatpush.bf16.msra.mxu0 %v2214
        %2444 = vmatpush.bf16.msra.mxu0 %v2213
        %2445 = vmatpush.bf16.msra.mxu0 %v2212
        %2446 = vmatpush.bf16.msra.mxu0 %v2211
        %2447 = vmatmul.bf16.gmra.mxu0 %v974
        %v2448 = vpop.f32.mrf.mxu0
        %v2449 = vadd.f32 %v2420, %v2448
        %v2450 = vpop.f32.mrf.mxu0
        %v2451 = vadd.f32 %v2422, %v2450
        %2452 = vmatmul.bf16.gmra.mxu0 %v983
        %v2453 = vpop.f32.mrf.mxu0
        %v2454 = vadd.f32 %v2425, %v2453
        %v2455 = vpop.f32.mrf.mxu0
        %v2456 = vadd.f32 %v2427, %v2455
        %2457 = vmatmul.bf16.gmra.mxu0 %v992
        %v2458 = vpop.f32.mrf.mxu0
        %v2459 = vadd.f32 %v2430, %v2458
        %v2460 = vpop.f32.mrf.mxu0
        %v2461 = vadd.f32 %v2432, %v2460
        %2462 = vmatmul.bf16.gmra.mxu0 %v1001
        %v2463 = vpop.f32.mrf.mxu0
        %v2464 = vadd.f32 %v2435, %v2463
        %v2465 = vpop.f32.mrf.mxu0
        %v2466 = vadd.f32 %v2437, %v2465
        %2467 = vdwg.mxu0
        %2468 = vmatpush.bf16.msra.mxu0 %v2226
        %2469 = vmatpush.bf16.msra.mxu0 %v2225
        %2470 = vmatpush.bf16.msra.mxu0 %v2224
        %2471 = vmatpush.bf16.msra.mxu0 %v2223
        %2472 = vmatpush.bf16.msra.mxu0 %v2222
        %2473 = vmatpush.bf16.msra.mxu0 %v2221
        %2474 = vmatpush.bf16.msra.mxu0 %v2220
        %2475 = vmatpush.bf16.msra.mxu0 %v2219
        %2476 = vmatmul.bf16.gmra.mxu0 %v975
        %v2477 = vpop.f32.mrf.mxu0
        %v2478 = vadd.f32 %v2449, %v2477
        %v2479 = vpop.f32.mrf.mxu0
        %v2480 = vadd.f32 %v2451, %v2479
        %2481 = vmatmul.bf16.gmra.mxu0 %v984
        %v2482 = vpop.f32.mrf.mxu0
        %v2483 = vadd.f32 %v2454, %v2482
        %v2484 = vpop.f32.mrf.mxu0
        %v2485 = vadd.f32 %v2456, %v2484
        %2486 = vmatmul.bf16.gmra.mxu0 %v993
        %v2487 = vpop.f32.mrf.mxu0
        %v2488 = vadd.f32 %v2459, %v2487
        %v2489 = vpop.f32.mrf.mxu0
        %v2490 = vadd.f32 %v2461, %v2489
        %2491 = vmatmul.bf16.gmra.mxu0 %v1002
        %v2492 = vpop.f32.mrf.mxu0
        %v2493 = vadd.f32 %v2464, %v2492
        %v2494 = vpop.f32.mrf.mxu0
        %v2495 = vadd.f32 %v2466, %v2494
        %2496 = vdwg.mxu0
        %2497 = vmatpush.bf16.msra.mxu0 %v2234
        %2498 = vmatpush.bf16.msra.mxu0 %v2233
        %2499 = vmatpush.bf16.msra.mxu0 %v2232
        %2500 = vmatpush.bf16.msra.mxu0 %v2231
        %2501 = vmatpush.bf16.msra.mxu0 %v2230
        %2502 = vmatpush.bf16.msra.mxu0 %v2229
        %2503 = vmatpush.bf16.msra.mxu0 %v2228
        %2504 = vmatpush.bf16.msra.mxu0 %v2227
        %2505 = vmatmul.bf16.gmra.mxu0 %v976
        %v2506 = vpop.f32.mrf.mxu0
        %v2507 = vadd.f32 %v2478, %v2506
        %v2508 = vpop.f32.mrf.mxu0
        %v2509 = vadd.f32 %v2480, %v2508
        %2510 = vmatmul.bf16.gmra.mxu0 %v985
        %v2511 = vpop.f32.mrf.mxu0
        %v2512 = vadd.f32 %v2483, %v2511
        %v2513 = vpop.f32.mrf.mxu0
        %v2514 = vadd.f32 %v2485, %v2513
        %2515 = vmatmul.bf16.gmra.mxu0 %v994
        %v2516 = vpop.f32.mrf.mxu0
        %v2517 = vadd.f32 %v2488, %v2516
        %v2518 = vpop.f32.mrf.mxu0
        %v2519 = vadd.f32 %v2490, %v2518
        %2520 = vmatmul.bf16.gmra.mxu0 %v1003
        %v2521 = vpop.f32.mrf.mxu0
        %v2522 = vadd.f32 %v2493, %v2521
        %v2523 = vpop.f32.mrf.mxu0
        %v2524 = vadd.f32 %v2495, %v2523
        %2525 = vdwg.mxu0
        %2526 = vmatpush.bf16.msra.mxu0 %v2242
        %2527 = vmatpush.bf16.msra.mxu0 %v2241
        %2528 = vmatpush.bf16.msra.mxu0 %v2240
        %2529 = vmatpush.bf16.msra.mxu0 %v2239
        %2530 = vmatpush.bf16.msra.mxu0 %v2238
        %2531 = vmatpush.bf16.msra.mxu0 %v2237
        %2532 = vmatpush.bf16.msra.mxu0 %v2236
        %2533 = vmatpush.bf16.msra.mxu0 %v2235
        %2534 = vmatmul.bf16.gmra.mxu0 %v977
        %v2535 = vpop.f32.mrf.mxu0
        %v2536 = vadd.f32 %v2507, %v2535
        %v2537 = vpop.f32.mrf.mxu0
        %v2538 = vadd.f32 %v2509, %v2537
        %2539 = vmatmul.bf16.gmra.mxu0 %v986
        %v2540 = vpop.f32.mrf.mxu0
        %v2541 = vadd.f32 %v2512, %v2540
        %v2542 = vpop.f32.mrf.mxu0
        %v2543 = vadd.f32 %v2514, %v2542
        %2544 = vmatmul.bf16.gmra.mxu0 %v995
        %v2545 = vpop.f32.mrf.mxu0
        %v2546 = vadd.f32 %v2517, %v2545
        %v2547 = vpop.f32.mrf.mxu0
        %v2548 = vadd.f32 %v2519, %v2547
        %2549 = vmatmul.bf16.gmra.mxu0 %v1004
        %v2550 = vpop.f32.mrf.mxu0
        %v2551 = vadd.f32 %v2522, %v2550
        %v2552 = vpop.f32.mrf.mxu0
        %v2553 = vadd.f32 %v2524, %v2552
        %2554 = vdwg.mxu0
        %2555 = vmatpush.bf16.msra.mxu0 %v2250
        %2556 = vmatpush.bf16.msra.mxu0 %v2249
        %2557 = vmatpush.bf16.msra.mxu0 %v2248
        %2558 = vmatpush.bf16.msra.mxu0 %v2247
        %2559 = vmatpush.bf16.msra.mxu0 %v2246
        %2560 = vmatpush.bf16.msra.mxu0 %v2245
        %2561 = vmatpush.bf16.msra.mxu0 %v2244
        %2562 = vmatpush.bf16.msra.mxu0 %v2243
        %2563 = vmatmul.bf16.gmra.mxu0 %v978
        %v2564 = vpop.f32.mrf.mxu0
        %v2565 = vadd.f32 %v2536, %v2564
        %v2566 = vpop.f32.mrf.mxu0
        %v2567 = vadd.f32 %v2538, %v2566
        %2568 = vmatmul.bf16.gmra.mxu0 %v987
        %v2569 = vpop.f32.mrf.mxu0
        %v2570 = vadd.f32 %v2541, %v2569
        %v2571 = vpop.f32.mrf.mxu0
        %v2572 = vadd.f32 %v2543, %v2571
        %2573 = vmatmul.bf16.gmra.mxu0 %v996
        %v2574 = vpop.f32.mrf.mxu0
        %v2575 = vadd.f32 %v2546, %v2574
        %v2576 = vpop.f32.mrf.mxu0
        %v2577 = vadd.f32 %v2548, %v2576
        %2578 = vmatmul.bf16.gmra.mxu0 %v1005
        %v2579 = vpop.f32.mrf.mxu0
        %v2580 = vadd.f32 %v2551, %v2579
        %v2581 = vpop.f32.mrf.mxu0
        %v2582 = vadd.f32 %v2553, %v2581
        %2583 = vdwg.mxu0
        %v2584 = vld [vmem:[%s3] sm:$0xf]
        %v2585 = vld [vmem:[%s3 + $0x4] sm:$0xf]
        %v2586 = vld [vmem:[%s3 + $0x8] sm:$0xf]
        %v2587 = vld [vmem:[%s3 + $0xc] sm:$0xf]
        %v2588 = vld [vmem:[%s3 + $0x10] sm:$0xf]
        %v2589 = vld [vmem:[%s3 + $0x14] sm:$0xf]
        %v2590 = vld [vmem:[%s3 + $0x18] sm:$0xf]
        %v2591 = vld [vmem:[%s3 + $0x1c] sm:$0xf]
        %v2592 = vld [vmem:[%s3 + $0x20] sm:$0xf]
        %v2593 = vld [vmem:[%s3 + $0x24] sm:$0xf]
        %v2594 = vld [vmem:[%s3 + $0x28] sm:$0xf]
        %v2595 = vld [vmem:[%s3 + $0x2c] sm:$0xf]
        %v2596 = vld [vmem:[%s3 + $0x30] sm:$0xf]
        %v2597 = vld [vmem:[%s3 + $0x34] sm:$0xf]
        %v2598 = vld [vmem:[%s3 + $0x38] sm:$0xf]
        %v2599 = vld [vmem:[%s3 + $0x3c] sm:$0xf]
        %v2600 = vld [vmem:[%s3 + $0x40] sm:$0xf]
        %v2601 = vld [vmem:[%s3 + $0x44] sm:$0xf]
        %v2602 = vld [vmem:[%s3 + $0x48] sm:$0xf]
        %v2603 = vld [vmem:[%s3 + $0x4c] sm:$0xf]
        %v2604 = vld [vmem:[%s3 + $0x50] sm:$0xf]
        %v2605 = vld [vmem:[%s3 + $0x54] sm:$0xf]
        %v2606 = vld [vmem:[%s3 + $0x58] sm:$0xf]
        %v2607 = vld [vmem:[%s3 + $0x5c] sm:$0xf]
        %v2608 = vld [vmem:[%s3 + $0x60] sm:$0xf]
        %v2609 = vld [vmem:[%s3 + $0x64] sm:$0xf]
        %v2610 = vld [vmem:[%s3 + $0x68] sm:$0xf]
        %v2611 = vld [vmem:[%s3 + $0x6c] sm:$0xf]
        %v2612 = vld [vmem:[%s3 + $0x70] sm:$0xf]
        %v2613 = vld [vmem:[%s3 + $0x74] sm:$0xf]
        %v2614 = vld [vmem:[%s3 + $0x78] sm:$0xf]
        %v2615 = vld [vmem:[%s3 + $0x7c] sm:$0xf]
        %v2616 = vld [vmem:[%s3 + $0x80] sm:$0xf]
        %v2617 = vld [vmem:[%s3 + $0x84] sm:$0xf]
        %v2618 = vld [vmem:[%s3 + $0x88] sm:$0xf]
        %v2619 = vld [vmem:[%s3 + $0x8c] sm:$0xf]
        %v2620 = vld [vmem:[%s3 + $0x90] sm:$0xf]
        %v2621 = vld [vmem:[%s3 + $0x94] sm:$0xf]
        %v2622 = vld [vmem:[%s3 + $0x98] sm:$0xf]
        %v2623 = vld [vmem:[%s3 + $0x9c] sm:$0xf]
        %v2624 = vld [vmem:[%s3 + $0xa0] sm:$0xf]
        %v2625 = vld [vmem:[%s3 + $0xa4] sm:$0xf]
        %v2626 = vld [vmem:[%s3 + $0xa8] sm:$0xf]
        %v2627 = vld [vmem:[%s3 + $0xac] sm:$0xf]
        %v2628 = vld [vmem:[%s3 + $0xb0] sm:$0xf]
        %v2629 = vld [vmem:[%s3 + $0xb4] sm:$0xf]
        %v2630 = vld [vmem:[%s3 + $0xb8] sm:$0xf]
        %v2631 = vld [vmem:[%s3 + $0xbc] sm:$0xf]
        %v2632 = vld [vmem:[%s3 + $0xc0] sm:$0xf]
        %v2633 = vld [vmem:[%s3 + $0xc4] sm:$0xf]
        %v2634 = vld [vmem:[%s3 + $0xc8] sm:$0xf]
        %v2635 = vld [vmem:[%s3 + $0xcc] sm:$0xf]
        %v2636 = vld [vmem:[%s3 + $0xd0] sm:$0xf]
        %v2637 = vld [vmem:[%s3 + $0xd4] sm:$0xf]
        %v2638 = vld [vmem:[%s3 + $0xd8] sm:$0xf]
        %v2639 = vld [vmem:[%s3 + $0xdc] sm:$0xf]
        %v2640 = vld [vmem:[%s3 + $0xe0] sm:$0xf]
        %v2641 = vld [vmem:[%s3 + $0xe4] sm:$0xf]
        %v2642 = vld [vmem:[%s3 + $0xe8] sm:$0xf]
        %v2643 = vld [vmem:[%s3 + $0xec] sm:$0xf]
        %v2644 = vld [vmem:[%s3 + $0xf0] sm:$0xf]
        %v2645 = vld [vmem:[%s3 + $0xf4] sm:$0xf]
        %v2646 = vld [vmem:[%s3 + $0xf8] sm:$0xf]
        %v2647 = vld [vmem:[%s3 + $0xfc] sm:$0xf]
        %v2648 = vld [vmem:[%s3 + $0x100] sm:$0xf]
        %v2649 = vld [vmem:[%s3 + $0x104] sm:$0xf]
        %v2650 = vld [vmem:[%s3 + $0x108] sm:$0xf]
        %v2651 = vld [vmem:[%s3 + $0x10c] sm:$0xf]
        %v2652 = vld [vmem:[%s3 + $0x110] sm:$0xf]
        %v2653 = vld [vmem:[%s3 + $0x114] sm:$0xf]
        %v2654 = vld [vmem:[%s3 + $0x118] sm:$0xf]
        %v2655 = vld [vmem:[%s3 + $0x11c] sm:$0xf]
        %v2656 = vld [vmem:[%s3 + $0x120] sm:$0xf]
        %v2657 = vld [vmem:[%s3 + $0x124] sm:$0xf]
        %v2658 = vld [vmem:[%s3 + $0x128] sm:$0xf]
        %v2659 = vld [vmem:[%s3 + $0x12c] sm:$0xf]
        %v2660 = vld [vmem:[%s3 + $0x130] sm:$0xf]
        %v2661 = vld [vmem:[%s3 + $0x134] sm:$0xf]
        %v2662 = vld [vmem:[%s3 + $0x138] sm:$0xf]
        %v2663 = vld [vmem:[%s3 + $0x13c] sm:$0xf]
        %v2664 = vld [vmem:[%s3 + $0x140] sm:$0xf]
        %v2665 = vld [vmem:[%s3 + $0x144] sm:$0xf]
        %v2666 = vld [vmem:[%s3 + $0x148] sm:$0xf]
        %v2667 = vld [vmem:[%s3 + $0x14c] sm:$0xf]
        %v2668 = vld [vmem:[%s3 + $0x150] sm:$0xf]
        %v2669 = vld [vmem:[%s3 + $0x154] sm:$0xf]
        %v2670 = vld [vmem:[%s3 + $0x158] sm:$0xf]
        %v2671 = vld [vmem:[%s3 + $0x15c] sm:$0xf]
        %v2672 = vld [vmem:[%s3 + $0x160] sm:$0xf]
        %v2673 = vld [vmem:[%s3 + $0x164] sm:$0xf]
        %v2674 = vld [vmem:[%s3 + $0x168] sm:$0xf]
        %v2675 = vld [vmem:[%s3 + $0x16c] sm:$0xf]
        %v2676 = vld [vmem:[%s3 + $0x170] sm:$0xf]
        %v2677 = vld [vmem:[%s3 + $0x174] sm:$0xf]
        %v2678 = vld [vmem:[%s3 + $0x178] sm:$0xf]
        %v2679 = vld [vmem:[%s3 + $0x17c] sm:$0xf]
        %v2680 = vld [vmem:[%s3 + $0x180] sm:$0xf]
        %v2681 = vld [vmem:[%s3 + $0x184] sm:$0xf]
        %v2682 = vld [vmem:[%s3 + $0x188] sm:$0xf]
        %v2683 = vld [vmem:[%s3 + $0x18c] sm:$0xf]
        %v2684 = vld [vmem:[%s3 + $0x190] sm:$0xf]
        %v2685 = vld [vmem:[%s3 + $0x194] sm:$0xf]
        %v2686 = vld [vmem:[%s3 + $0x198] sm:$0xf]
        %v2687 = vld [vmem:[%s3 + $0x19c] sm:$0xf]
        %v2688 = vld [vmem:[%s3 + $0x1a0] sm:$0xf]
        %v2689 = vld [vmem:[%s3 + $0x1a4] sm:$0xf]
        %v2690 = vld [vmem:[%s3 + $0x1a8] sm:$0xf]
        %v2691 = vld [vmem:[%s3 + $0x1ac] sm:$0xf]
        %v2692 = vld [vmem:[%s3 + $0x1b0] sm:$0xf]
        %v2693 = vld [vmem:[%s3 + $0x1b4] sm:$0xf]
        %v2694 = vld [vmem:[%s3 + $0x1b8] sm:$0xf]
        %v2695 = vld [vmem:[%s3 + $0x1bc] sm:$0xf]
        %v2696 = vld [vmem:[%s3 + $0x1c0] sm:$0xf]
        %v2697 = vld [vmem:[%s3 + $0x1c4] sm:$0xf]
        %v2698 = vld [vmem:[%s3 + $0x1c8] sm:$0xf]
        %v2699 = vld [vmem:[%s3 + $0x1cc] sm:$0xf]
        %v2700 = vld [vmem:[%s3 + $0x1d0] sm:$0xf]
        %v2701 = vld [vmem:[%s3 + $0x1d4] sm:$0xf]
        %v2702 = vld [vmem:[%s3 + $0x1d8] sm:$0xf]
        %v2703 = vld [vmem:[%s3 + $0x1dc] sm:$0xf]
        %v2704 = vld [vmem:[%s3 + $0x1e0] sm:$0xf]
        %v2705 = vld [vmem:[%s3 + $0x1e4] sm:$0xf]
        %v2706 = vld [vmem:[%s3 + $0x1e8] sm:$0xf]
        %v2707 = vld [vmem:[%s3 + $0x1ec] sm:$0xf]
        %v2708 = vld [vmem:[%s3 + $0x1f0] sm:$0xf]
        %v2709 = vld [vmem:[%s3 + $0x1f4] sm:$0xf]
        %v2710 = vld [vmem:[%s3 + $0x1f8] sm:$0xf]
        %v2711 = vld [vmem:[%s3 + $0x1fc] sm:$0xf]
        %v2712 = vld [vmem:[%s3 + $0x200] sm:$0xf]
        %v2713 = vld [vmem:[%s3 + $0x204] sm:$0xf]
        %v2714 = vld [vmem:[%s3 + $0x208] sm:$0xf]
        %v2715 = vld [vmem:[%s3 + $0x20c] sm:$0xf]
        %v2716 = vld [vmem:[%s3 + $0x210] sm:$0xf]
        %v2717 = vld [vmem:[%s3 + $0x214] sm:$0xf]
        %v2718 = vld [vmem:[%s3 + $0x218] sm:$0xf]
        %v2719 = vld [vmem:[%s3 + $0x21c] sm:$0xf]
        %v2720 = vld [vmem:[%s3 + $0x220] sm:$0xf]
        %v2721 = vld [vmem:[%s3 + $0x224] sm:$0xf]
        %v2722 = vld [vmem:[%s3 + $0x228] sm:$0xf]
        %v2723 = vld [vmem:[%s3 + $0x22c] sm:$0xf]
        %v2724 = vld [vmem:[%s3 + $0x230] sm:$0xf]
        %v2725 = vld [vmem:[%s3 + $0x234] sm:$0xf]
        %v2726 = vld [vmem:[%s3 + $0x238] sm:$0xf]
        %v2727 = vld [vmem:[%s3 + $0x23c] sm:$0xf]
        %v2728 = vld [vmem:[%s6] sm:$0x1]
        %v2730 = vperm.slane %v2728, 0
        %v2876 = vunpack.c.l.b16 %v2584
        %v2877 = vunpack.c.l.b16 %v2585
        %v2878 = vunpack.c.l.b16 %v2586
        %v2879 = vunpack.c.l.b16 %v2587
        %v2880 = vunpack.c.l.b16 %v2588
        %v2881 = vunpack.c.l.b16 %v2589
        %v2882 = vunpack.c.l.b16 %v2590
        %v2883 = vunpack.c.l.b16 %v2591
        %v2884 = vunpack.c.l.b16 %v2592
        %v2885 = vunpack.c.l.b16 %v2593
        %v2886 = vunpack.c.l.b16 %v2594
        %v2887 = vunpack.c.l.b16 %v2595
        %v2888 = vunpack.c.l.b16 %v2596
        %v2889 = vunpack.c.l.b16 %v2597
        %v2890 = vunpack.c.l.b16 %v2598
        %v2891 = vunpack.c.l.b16 %v2599
        %v2892 = vunpack.c.l.b16 %v2600
        %v2893 = vunpack.c.l.b16 %v2601
        %v2894 = vunpack.c.l.b16 %v2602
        %v2895 = vunpack.c.l.b16 %v2603
        %v2896 = vunpack.c.l.b16 %v2604
        %v2897 = vunpack.c.l.b16 %v2605
        %v2898 = vunpack.c.l.b16 %v2606
        %v2899 = vunpack.c.l.b16 %v2607
        %v2900 = vunpack.c.l.b16 %v2608
        %v2901 = vunpack.c.l.b16 %v2609
        %v2902 = vunpack.c.l.b16 %v2610
        %v2903 = vunpack.c.l.b16 %v2611
        %v2904 = vunpack.c.l.b16 %v2612
        %v2905 = vunpack.c.l.b16 %v2613
        %v2906 = vunpack.c.l.b16 %v2614
        %v2907 = vunpack.c.l.b16 %v2615
        %v2908 = vunpack.c.l.b16 %v2616
        %v2909 = vunpack.c.l.b16 %v2617
        %v2910 = vunpack.c.l.b16 %v2618
        %v2911 = vunpack.c.l.b16 %v2619
        %v2912 = vunpack.c.l.b16 %v2620
        %v2913 = vunpack.c.l.b16 %v2621
        %v2914 = vunpack.c.l.b16 %v2622
        %v2915 = vunpack.c.l.b16 %v2623
        %v2916 = vunpack.c.l.b16 %v2624
        %v2917 = vunpack.c.l.b16 %v2625
        %v2918 = vunpack.c.l.b16 %v2626
        %v2919 = vunpack.c.l.b16 %v2627
        %v2920 = vunpack.c.l.b16 %v2628
        %v2921 = vunpack.c.l.b16 %v2629
        %v2922 = vunpack.c.l.b16 %v2630
        %v2923 = vunpack.c.l.b16 %v2631
        %v2924 = vunpack.c.l.b16 %v2632
        %v2925 = vunpack.c.l.b16 %v2633
        %v2926 = vunpack.c.l.b16 %v2634
        %v2927 = vunpack.c.l.b16 %v2635
        %v2928 = vunpack.c.l.b16 %v2636
        %v2929 = vunpack.c.l.b16 %v2637
        %v2930 = vunpack.c.l.b16 %v2638
        %v2931 = vunpack.c.l.b16 %v2639
        %v2932 = vunpack.c.l.b16 %v2640
        %v2933 = vunpack.c.l.b16 %v2641
        %v2934 = vunpack.c.l.b16 %v2642
        %v2935 = vunpack.c.l.b16 %v2643
        %v2936 = vunpack.c.l.b16 %v2644
        %v2937 = vunpack.c.l.b16 %v2645
        %v2938 = vunpack.c.l.b16 %v2646
        %v2939 = vunpack.c.l.b16 %v2647
        %v2940 = vunpack.c.l.b16 %v2648
        %v2941 = vunpack.c.l.b16 %v2649
        %v2942 = vunpack.c.l.b16 %v2650
        %v2943 = vunpack.c.l.b16 %v2651
        %v2944 = vunpack.c.l.b16 %v2652
        %v2945 = vunpack.c.l.b16 %v2653
        %v2946 = vunpack.c.l.b16 %v2654
        %v2947 = vunpack.c.l.b16 %v2655
        %v2948 = vunpack.c.l.b16 %v2656
        %v2949 = vunpack.c.l.b16 %v2657
        %v2950 = vunpack.c.l.b16 %v2658
        %v2951 = vunpack.c.l.b16 %v2659
        %v2952 = vunpack.c.l.b16 %v2660
        %v2953 = vunpack.c.l.b16 %v2661
        %v2954 = vunpack.c.l.b16 %v2662
        %v2955 = vunpack.c.l.b16 %v2663
        %v2956 = vunpack.c.l.b16 %v2664
        %v2957 = vunpack.c.l.b16 %v2665
        %v2958 = vunpack.c.l.b16 %v2666
        %v2959 = vunpack.c.l.b16 %v2667
        %v2960 = vunpack.c.l.b16 %v2668
        %v2961 = vunpack.c.l.b16 %v2669
        %v2962 = vunpack.c.l.b16 %v2670
        %v2963 = vunpack.c.l.b16 %v2671
        %v2964 = vunpack.c.l.b16 %v2672
        %v2965 = vunpack.c.l.b16 %v2673
        %v2966 = vunpack.c.l.b16 %v2674
        %v2967 = vunpack.c.l.b16 %v2675
        %v2968 = vunpack.c.l.b16 %v2676
        %v2969 = vunpack.c.l.b16 %v2677
        %v2970 = vunpack.c.l.b16 %v2678
        %v2971 = vunpack.c.l.b16 %v2679
        %v2972 = vunpack.c.l.b16 %v2680
        %v2973 = vunpack.c.l.b16 %v2681
        %v2974 = vunpack.c.l.b16 %v2682
        %v2975 = vunpack.c.l.b16 %v2683
        %v2976 = vunpack.c.l.b16 %v2684
        %v2977 = vunpack.c.l.b16 %v2685
        %v2978 = vunpack.c.l.b16 %v2686
        %v2979 = vunpack.c.l.b16 %v2687
        %v2980 = vunpack.c.l.b16 %v2688
        %v2981 = vunpack.c.l.b16 %v2689
        %v2982 = vunpack.c.l.b16 %v2690
        %v2983 = vunpack.c.l.b16 %v2691
        %v2984 = vunpack.c.l.b16 %v2692
        %v2985 = vunpack.c.l.b16 %v2693
        %v2986 = vunpack.c.l.b16 %v2694
        %v2987 = vunpack.c.l.b16 %v2695
        %v2988 = vunpack.c.l.b16 %v2696
        %v2989 = vunpack.c.l.b16 %v2697
        %v2990 = vunpack.c.l.b16 %v2698
        %v2991 = vunpack.c.l.b16 %v2699
        %v2992 = vunpack.c.l.b16 %v2700
        %v2993 = vunpack.c.l.b16 %v2701
        %v2994 = vunpack.c.l.b16 %v2702
        %v2995 = vunpack.c.l.b16 %v2703
        %v2996 = vunpack.c.l.b16 %v2704
        %v2997 = vunpack.c.l.b16 %v2705
        %v2998 = vunpack.c.l.b16 %v2706
        %v2999 = vunpack.c.l.b16 %v2707
        %v3000 = vunpack.c.l.b16 %v2708
        %v3001 = vunpack.c.l.b16 %v2709
        %v3002 = vunpack.c.l.b16 %v2710
        %v3003 = vunpack.c.l.b16 %v2711
        %v3004 = vunpack.c.l.b16 %v2712
        %v3005 = vunpack.c.l.b16 %v2713
        %v3006 = vunpack.c.l.b16 %v2714
        %v3007 = vunpack.c.l.b16 %v2715
        %v3008 = vunpack.c.l.b16 %v2716
        %v3009 = vunpack.c.l.b16 %v2717
        %v3010 = vunpack.c.l.b16 %v2718
        %v3011 = vunpack.c.l.b16 %v2719
        %v3012 = vunpack.c.l.b16 %v2720
        %v3013 = vunpack.c.l.b16 %v2721
        %v3014 = vunpack.c.l.b16 %v2722
        %v3015 = vunpack.c.l.b16 %v2723
        %v3016 = vunpack.c.l.b16 %v2724
        %v3017 = vunpack.c.l.b16 %v2725
        %v3018 = vunpack.c.l.b16 %v2726
        %v3019 = vunpack.c.l.b16 %v2727
        %v3020 = vpack.c.b16 %v2877, %v2876
        %v3021 = vpack.c.b16 %v2879, %v2878
        %v3022 = vpack.c.b16 %v2881, %v2880
        %v3023 = vpack.c.b16 %v2883, %v2882
        %v3024 = vpack.c.b16 %v2885, %v2884
        %v3025 = vpack.c.b16 %v2887, %v2886
        %v3026 = vpack.c.b16 %v2889, %v2888
        %v3027 = vpack.c.b16 %v2891, %v2890
        %v3028 = vpack.c.b16 %v2893, %v2892
        %v3029 = vpack.c.b16 %v2895, %v2894
        %v3030 = vpack.c.b16 %v2897, %v2896
        %v3031 = vpack.c.b16 %v2899, %v2898
        %v3032 = vpack.c.b16 %v2901, %v2900
        %v3033 = vpack.c.b16 %v2903, %v2902
        %v3034 = vpack.c.b16 %v2905, %v2904
        %v3035 = vpack.c.b16 %v2907, %v2906
        %v3036 = vpack.c.b16 %v2909, %v2908
        %v3037 = vpack.c.b16 %v2911, %v2910
        %v3038 = vpack.c.b16 %v2913, %v2912
        %v3039 = vpack.c.b16 %v2915, %v2914
        %v3040 = vpack.c.b16 %v2917, %v2916
        %v3041 = vpack.c.b16 %v2919, %v2918
        %v3042 = vpack.c.b16 %v2921, %v2920
        %v3043 = vpack.c.b16 %v2923, %v2922
        %v3044 = vpack.c.b16 %v2925, %v2924
        %v3045 = vpack.c.b16 %v2927, %v2926
        %v3046 = vpack.c.b16 %v2929, %v2928
        %v3047 = vpack.c.b16 %v2931, %v2930
        %v3048 = vpack.c.b16 %v2933, %v2932
        %v3049 = vpack.c.b16 %v2935, %v2934
        %v3050 = vpack.c.b16 %v2937, %v2936
        %v3051 = vpack.c.b16 %v2939, %v2938
        %v3052 = vpack.c.b16 %v2941, %v2940
        %v3053 = vpack.c.b16 %v2943, %v2942
        %v3054 = vpack.c.b16 %v2945, %v2944
        %v3055 = vpack.c.b16 %v2947, %v2946
        %v3056 = vpack.c.b16 %v2949, %v2948
        %v3057 = vpack.c.b16 %v2951, %v2950
        %v3058 = vpack.c.b16 %v2953, %v2952
        %v3059 = vpack.c.b16 %v2955, %v2954
        %v3060 = vpack.c.b16 %v2957, %v2956
        %v3061 = vpack.c.b16 %v2959, %v2958
        %v3062 = vpack.c.b16 %v2961, %v2960
        %v3063 = vpack.c.b16 %v2963, %v2962
        %v3064 = vpack.c.b16 %v2965, %v2964
        %v3065 = vpack.c.b16 %v2967, %v2966
        %v3066 = vpack.c.b16 %v2969, %v2968
        %v3067 = vpack.c.b16 %v2971, %v2970
        %v3068 = vpack.c.b16 %v2973, %v2972
        %v3069 = vpack.c.b16 %v2975, %v2974
        %v3070 = vpack.c.b16 %v2977, %v2976
        %v3071 = vpack.c.b16 %v2979, %v2978
        %v3072 = vpack.c.b16 %v2981, %v2980
        %v3073 = vpack.c.b16 %v2983, %v2982
        %v3074 = vpack.c.b16 %v2985, %v2984
        %v3075 = vpack.c.b16 %v2987, %v2986
        %v3076 = vpack.c.b16 %v2989, %v2988
        %v3077 = vpack.c.b16 %v2991, %v2990
        %v3078 = vpack.c.b16 %v2993, %v2992
        %v3079 = vpack.c.b16 %v2995, %v2994
        %v3080 = vpack.c.b16 %v2997, %v2996
        %v3081 = vpack.c.b16 %v2999, %v2998
        %v3082 = vpack.c.b16 %v3001, %v3000
        %v3083 = vpack.c.b16 %v3003, %v3002
        %v3084 = vpack.c.b16 %v3005, %v3004
        %v3085 = vpack.c.b16 %v3007, %v3006
        %v3086 = vpack.c.b16 %v3009, %v3008
        %v3087 = vpack.c.b16 %v3011, %v3010
        %v3088 = vpack.c.b16 %v3013, %v3012
        %v3089 = vpack.c.b16 %v3015, %v3014
        %v3090 = vpack.c.b16 %v3017, %v3016
        %v3091 = vpack.c.b16 %v3019, %v3018
        %3164 = vmatpush.bf16.msra.mxu0 %v3027
        %3165 = vmatpush.bf16.msra.mxu0 %v3026
        %3166 = vmatpush.bf16.msra.mxu0 %v3025
        %3167 = vmatpush.bf16.msra.mxu0 %v3024
        %3168 = vmatpush.bf16.msra.mxu0 %v3023
        %3169 = vmatpush.bf16.msra.mxu0 %v3022
        %3170 = vmatpush.bf16.msra.mxu0 %v3021
        %3171 = vmatpush.bf16.msra.mxu0 %v3020
        %3172 = vmatmul.bf16.gmra.mxu0 %v970
        %v3173 = vpop.f32.mrf.mxu0
        %v3174 = vadd.f32 %v2730, %v3173
        %v3175 = vpop.f32.mrf.mxu0
        %v3176 = vadd.f32 %v2730, %v3175
        %3177 = vmatmul.bf16.gmra.mxu0 %v979
        %v3178 = vpop.f32.mrf.mxu0
        %v3179 = vadd.f32 %v2730, %v3178
        %v3180 = vpop.f32.mrf.mxu0
        %v3181 = vadd.f32 %v2730, %v3180
        %3182 = vmatmul.bf16.gmra.mxu0 %v988
        %v3183 = vpop.f32.mrf.mxu0
        %v3184 = vadd.f32 %v2730, %v3183
        %v3185 = vpop.f32.mrf.mxu0
        %v3186 = vadd.f32 %v2730, %v3185
        %3187 = vmatmul.bf16.gmra.mxu0 %v997
        %v3188 = vpop.f32.mrf.mxu0
        %v3189 = vadd.f32 %v2730, %v3188
        %v3190 = vpop.f32.mrf.mxu0
        %v3191 = vadd.f32 %v2730, %v3190
        %3192 = vdwg.mxu0
        %3193 = vmatpush.bf16.msra.mxu0 %v3035
        %3194 = vmatpush.bf16.msra.mxu0 %v3034
        %3195 = vmatpush.bf16.msra.mxu0 %v3033
        %3196 = vmatpush.bf16.msra.mxu0 %v3032
        %3197 = vmatpush.bf16.msra.mxu0 %v3031
        %3198 = vmatpush.bf16.msra.mxu0 %v3030
        %3199 = vmatpush.bf16.msra.mxu0 %v3029
        %3200 = vmatpush.bf16.msra.mxu0 %v3028
        %3201 = vmatmul.bf16.gmra.mxu0 %v971
        %v3202 = vpop.f32.mrf.mxu0
        %v3203 = vadd.f32 %v3174, %v3202
        %v3204 = vpop.f32.mrf.mxu0
        %v3205 = vadd.f32 %v3176, %v3204
        %3206 = vmatmul.bf16.gmra.mxu0 %v980
        %v3207 = vpop.f32.mrf.mxu0
        %v3208 = vadd.f32 %v3179, %v3207
        %v3209 = vpop.f32.mrf.mxu0
        %v3210 = vadd.f32 %v3181, %v3209
        %3211 = vmatmul.bf16.gmra.mxu0 %v989
        %v3212 = vpop.f32.mrf.mxu0
        %v3213 = vadd.f32 %v3184, %v3212
        %v3214 = vpop.f32.mrf.mxu0
        %v3215 = vadd.f32 %v3186, %v3214
        %3216 = vmatmul.bf16.gmra.mxu0 %v998
        %v3217 = vpop.f32.mrf.mxu0
        %v3218 = vadd.f32 %v3189, %v3217
        %v3219 = vpop.f32.mrf.mxu0
        %v3220 = vadd.f32 %v3191, %v3219
        %3221 = vdwg.mxu0
        %3222 = vmatpush.bf16.msra.mxu0 %v3043
        %3223 = vmatpush.bf16.msra.mxu0 %v3042
        %3224 = vmatpush.bf16.msra.mxu0 %v3041
        %3225 = vmatpush.bf16.msra.mxu0 %v3040
        %3226 = vmatpush.bf16.msra.mxu0 %v3039
        %3227 = vmatpush.bf16.msra.mxu0 %v3038
        %3228 = vmatpush.bf16.msra.mxu0 %v3037
        %3229 = vmatpush.bf16.msra.mxu0 %v3036
        %3230 = vmatmul.bf16.gmra.mxu0 %v972
        %v3231 = vpop.f32.mrf.mxu0
        %v3232 = vadd.f32 %v3203, %v3231
        %v3233 = vpop.f32.mrf.mxu0
        %v3234 = vadd.f32 %v3205, %v3233
        %3235 = vmatmul.bf16.gmra.mxu0 %v981
        %v3236 = vpop.f32.mrf.mxu0
        %v3237 = vadd.f32 %v3208, %v3236
        %v3238 = vpop.f32.mrf.mxu0
        %v3239 = vadd.f32 %v3210, %v3238
        %3240 = vmatmul.bf16.gmra.mxu0 %v990
        %v3241 = vpop.f32.mrf.mxu0
        %v3242 = vadd.f32 %v3213, %v3241
        %v3243 = vpop.f32.mrf.mxu0
        %v3244 = vadd.f32 %v3215, %v3243
        %3245 = vmatmul.bf16.gmra.mxu0 %v999
        %v3246 = vpop.f32.mrf.mxu0
        %v3247 = vadd.f32 %v3218, %v3246
        %v3248 = vpop.f32.mrf.mxu0
        %v3249 = vadd.f32 %v3220, %v3248
        %3250 = vdwg.mxu0
        %3251 = vmatpush.bf16.msra.mxu0 %v3051
        %3252 = vmatpush.bf16.msra.mxu0 %v3050
        %3253 = vmatpush.bf16.msra.mxu0 %v3049
        %3254 = vmatpush.bf16.msra.mxu0 %v3048
        %3255 = vmatpush.bf16.msra.mxu0 %v3047
        %3256 = vmatpush.bf16.msra.mxu0 %v3046
        %3257 = vmatpush.bf16.msra.mxu0 %v3045
        %3258 = vmatpush.bf16.msra.mxu0 %v3044
        %3259 = vmatmul.bf16.gmra.mxu0 %v973
        %v3260 = vpop.f32.mrf.mxu0
        %v3261 = vadd.f32 %v3232, %v3260
        %v3262 = vpop.f32.mrf.mxu0
        %v3263 = vadd.f32 %v3234, %v3262
        %3264 = vmatmul.bf16.gmra.mxu0 %v982
        %v3265 = vpop.f32.mrf.mxu0
        %v3266 = vadd.f32 %v3237, %v3265
        %v3267 = vpop.f32.mrf.mxu0
        %v3268 = vadd.f32 %v3239, %v3267
        %3269 = vmatmul.bf16.gmra.mxu0 %v991
        %v3270 = vpop.f32.mrf.mxu0
        %v3271 = vadd.f32 %v3242, %v3270
        %v3272 = vpop.f32.mrf.mxu0
        %v3273 = vadd.f32 %v3244, %v3272
        %3274 = vmatmul.bf16.gmra.mxu0 %v1000
        %v3275 = vpop.f32.mrf.mxu0
        %v3276 = vadd.f32 %v3247, %v3275
        %v3277 = vpop.f32.mrf.mxu0
        %v3278 = vadd.f32 %v3249, %v3277
        %3279 = vdwg.mxu0
        %3280 = vmatpush.bf16.msra.mxu0 %v3059
        %3281 = vmatpush.bf16.msra.mxu0 %v3058
        %3282 = vmatpush.bf16.msra.mxu0 %v3057
        %3283 = vmatpush.bf16.msra.mxu0 %v3056
        %3284 = vmatpush.bf16.msra.mxu0 %v3055
        %3285 = vmatpush.bf16.msra.mxu0 %v3054
        %3286 = vmatpush.bf16.msra.mxu0 %v3053
        %3287 = vmatpush.bf16.msra.mxu0 %v3052
        %3288 = vmatmul.bf16.gmra.mxu0 %v974
        %v3289 = vpop.f32.mrf.mxu0
        %v3290 = vadd.f32 %v3261, %v3289
        %v3291 = vpop.f32.mrf.mxu0
        %v3292 = vadd.f32 %v3263, %v3291
        %3293 = vmatmul.bf16.gmra.mxu0 %v983
        %v3294 = vpop.f32.mrf.mxu0
        %v3295 = vadd.f32 %v3266, %v3294
        %v3296 = vpop.f32.mrf.mxu0
        %v3297 = vadd.f32 %v3268, %v3296
        %3298 = vmatmul.bf16.gmra.mxu0 %v992
        %v3299 = vpop.f32.mrf.mxu0
        %v3300 = vadd.f32 %v3271, %v3299
        %v3301 = vpop.f32.mrf.mxu0
        %v3302 = vadd.f32 %v3273, %v3301
        %3303 = vmatmul.bf16.gmra.mxu0 %v1001
        %v3304 = vpop.f32.mrf.mxu0
        %v3305 = vadd.f32 %v3276, %v3304
        %v3306 = vpop.f32.mrf.mxu0
        %v3307 = vadd.f32 %v3278, %v3306
        %3308 = vdwg.mxu0
        %3309 = vmatpush.bf16.msra.mxu0 %v3067
        %3310 = vmatpush.bf16.msra.mxu0 %v3066
        %3311 = vmatpush.bf16.msra.mxu0 %v3065
        %3312 = vmatpush.bf16.msra.mxu0 %v3064
        %3313 = vmatpush.bf16.msra.mxu0 %v3063
        %3314 = vmatpush.bf16.msra.mxu0 %v3062
        %3315 = vmatpush.bf16.msra.mxu0 %v3061
        %3316 = vmatpush.bf16.msra.mxu0 %v3060
        %3317 = vmatmul.bf16.gmra.mxu0 %v975
        %v3318 = vpop.f32.mrf.mxu0
        %v3319 = vadd.f32 %v3290, %v3318
        %v3320 = vpop.f32.mrf.mxu0
        %v3321 = vadd.f32 %v3292, %v3320
        %3322 = vmatmul.bf16.gmra.mxu0 %v984
        %v3323 = vpop.f32.mrf.mxu0
        %v3324 = vadd.f32 %v3295, %v3323
        %v3325 = vpop.f32.mrf.mxu0
        %v3326 = vadd.f32 %v3297, %v3325
        %3327 = vmatmul.bf16.gmra.mxu0 %v993
        %v3328 = vpop.f32.mrf.mxu0
        %v3329 = vadd.f32 %v3300, %v3328
        %v3330 = vpop.f32.mrf.mxu0
        %v3331 = vadd.f32 %v3302, %v3330
        %3332 = vmatmul.bf16.gmra.mxu0 %v1002
        %v3333 = vpop.f32.mrf.mxu0
        %v3334 = vadd.f32 %v3305, %v3333
        %v3335 = vpop.f32.mrf.mxu0
        %v3336 = vadd.f32 %v3307, %v3335
        %3337 = vdwg.mxu0
        %3338 = vmatpush.bf16.msra.mxu0 %v3075
        %3339 = vmatpush.bf16.msra.mxu0 %v3074
        %3340 = vmatpush.bf16.msra.mxu0 %v3073
        %3341 = vmatpush.bf16.msra.mxu0 %v3072
        %3342 = vmatpush.bf16.msra.mxu0 %v3071
        %3343 = vmatpush.bf16.msra.mxu0 %v3070
        %3344 = vmatpush.bf16.msra.mxu0 %v3069
        %3345 = vmatpush.bf16.msra.mxu0 %v3068
        %3346 = vmatmul.bf16.gmra.mxu0 %v976
        %v3347 = vpop.f32.mrf.mxu0
        %v3348 = vadd.f32 %v3319, %v3347
        %v3349 = vpop.f32.mrf.mxu0
        %v3350 = vadd.f32 %v3321, %v3349
        %3351 = vmatmul.bf16.gmra.mxu0 %v985
        %v3352 = vpop.f32.mrf.mxu0
        %v3353 = vadd.f32 %v3324, %v3352
        %v3354 = vpop.f32.mrf.mxu0
        %v3355 = vadd.f32 %v3326, %v3354
        %3356 = vmatmul.bf16.gmra.mxu0 %v994
        %v3357 = vpop.f32.mrf.mxu0
        %v3358 = vadd.f32 %v3329, %v3357
        %v3359 = vpop.f32.mrf.mxu0
        %v3360 = vadd.f32 %v3331, %v3359
        %3361 = vmatmul.bf16.gmra.mxu0 %v1003
        %v3362 = vpop.f32.mrf.mxu0
        %v3363 = vadd.f32 %v3334, %v3362
        %v3364 = vpop.f32.mrf.mxu0
        %v3365 = vadd.f32 %v3336, %v3364
        %3366 = vdwg.mxu0
        %3367 = vmatpush.bf16.msra.mxu0 %v3083
        %3368 = vmatpush.bf16.msra.mxu0 %v3082
        %3369 = vmatpush.bf16.msra.mxu0 %v3081
        %3370 = vmatpush.bf16.msra.mxu0 %v3080
        %3371 = vmatpush.bf16.msra.mxu0 %v3079
        %3372 = vmatpush.bf16.msra.mxu0 %v3078
        %3373 = vmatpush.bf16.msra.mxu0 %v3077
        %3374 = vmatpush.bf16.msra.mxu0 %v3076
        %3375 = vmatmul.bf16.gmra.mxu0 %v977
        %v3376 = vpop.f32.mrf.mxu0
        %v3377 = vadd.f32 %v3348, %v3376
        %v3378 = vpop.f32.mrf.mxu0
        %v3379 = vadd.f32 %v3350, %v3378
        %3380 = vmatmul.bf16.gmra.mxu0 %v986
        %v3381 = vpop.f32.mrf.mxu0
        %v3382 = vadd.f32 %v3353, %v3381
        %v3383 = vpop.f32.mrf.mxu0
        %v3384 = vadd.f32 %v3355, %v3383
        %3385 = vmatmul.bf16.gmra.mxu0 %v995
        %v3386 = vpop.f32.mrf.mxu0
        %v3387 = vadd.f32 %v3358, %v3386
        %v3388 = vpop.f32.mrf.mxu0
        %v3389 = vadd.f32 %v3360, %v3388
        %3390 = vmatmul.bf16.gmra.mxu0 %v1004
        %v3391 = vpop.f32.mrf.mxu0
        %v3392 = vadd.f32 %v3363, %v3391
        %v3393 = vpop.f32.mrf.mxu0
        %v3394 = vadd.f32 %v3365, %v3393
        %3395 = vdwg.mxu0
        %3396 = vmatpush.bf16.msra.mxu0 %v3091
        %3397 = vmatpush.bf16.msra.mxu0 %v3090
        %3398 = vmatpush.bf16.msra.mxu0 %v3089
        %3399 = vmatpush.bf16.msra.mxu0 %v3088
        %3400 = vmatpush.bf16.msra.mxu0 %v3087
        %3401 = vmatpush.bf16.msra.mxu0 %v3086
        %3402 = vmatpush.bf16.msra.mxu0 %v3085
        %3403 = vmatpush.bf16.msra.mxu0 %v3084
        %3404 = vmatmul.bf16.gmra.mxu0 %v978
        %v3405 = vpop.f32.mrf.mxu0
        %v3406 = vadd.f32 %v3377, %v3405
        %v3407 = vpop.f32.mrf.mxu0
        %v3408 = vadd.f32 %v3379, %v3407
        %3409 = vmatmul.bf16.gmra.mxu0 %v987
        %v3410 = vpop.f32.mrf.mxu0
        %v3411 = vadd.f32 %v3382, %v3410
        %v3412 = vpop.f32.mrf.mxu0
        %v3413 = vadd.f32 %v3384, %v3412
        %3414 = vmatmul.bf16.gmra.mxu0 %v996
        %v3415 = vpop.f32.mrf.mxu0
        %v3416 = vadd.f32 %v3387, %v3415
        %v3417 = vpop.f32.mrf.mxu0
        %v3418 = vadd.f32 %v3389, %v3417
        %3419 = vmatmul.bf16.gmra.mxu0 %v1005
        %v3420 = vpop.f32.mrf.mxu0
        %v3421 = vadd.f32 %v3392, %v3420
        %v3422 = vpop.f32.mrf.mxu0
        %v3423 = vadd.f32 %v3394, %v3422
        %3424 = vdwg.mxu0
        %v3425 = vpack.c.bf16 %v1735, %v1735
        %v3426 = vpack.c.bf16 %v1736, %v1736
        %v3427 = vpack.c.bf16 %v1737, %v1737
        %v3428 = vpack.c.bf16 %v1738, %v1738
        %v3429 = vpack.c.bf16 %v1739, %v1739
        %v3430 = vpack.c.bf16 %v1740, %v1740
        %v3431 = vpack.c.bf16 %v1741, %v1741
        %v3432 = vpack.c.bf16 %v1742, %v1742
        %v3433 = vpack.c.bf16 %v2565, %v2565
        %v3434 = vpack.c.bf16 %v2567, %v2567
        %v3435 = vpack.c.bf16 %v2570, %v2570
        %v3436 = vpack.c.bf16 %v2572, %v2572
        %v3437 = vpack.c.bf16 %v2575, %v2575
        %v3438 = vpack.c.bf16 %v2577, %v2577
        %v3439 = vpack.c.bf16 %v2580, %v2580
        %v3440 = vpack.c.bf16 %v2582, %v2582
        %v3441 = vpack.c.bf16 %v3406, %v3406
        %v3442 = vpack.c.bf16 %v3408, %v3408
        %v3443 = vpack.c.bf16 %v3411, %v3411
        %v3444 = vpack.c.bf16 %v3413, %v3413
        %v3445 = vpack.c.bf16 %v3416, %v3416
        %v3446 = vpack.c.bf16 %v3418, %v3418
        %v3447 = vpack.c.bf16 %v3421, %v3421
        %v3448 = vpack.c.bf16 %v3423, %v3423
        %v3457 = vunpack.c.l.b16 %v3425
        %v3458 = vunpack.c.l.b16 %v3426
        %v3459 = vunpack.c.l.b16 %v3427
        %v3460 = vunpack.c.l.b16 %v3428
        %v3461 = vunpack.c.l.b16 %v3429
        %v3462 = vunpack.c.l.b16 %v3430
        %v3463 = vunpack.c.l.b16 %v3431
        %v3464 = vunpack.c.l.b16 %v3432
        %v3465 = vpack.c.b16 %v3458, %v3457
        %v3466 = vpack.c.b16 %v3460, %v3459
        %v3467 = vpack.c.b16 %v3462, %v3461
        %v3468 = vpack.c.b16 %v3464, %v3463
        %v3481 = vunpack.c.l.b16 %v3433
        %v3482 = vunpack.c.l.b16 %v3434
        %v3483 = vunpack.c.l.b16 %v3435
        %v3484 = vunpack.c.l.b16 %v3436
        %v3485 = vunpack.c.l.b16 %v3437
        %v3486 = vunpack.c.l.b16 %v3438
        %v3487 = vunpack.c.l.b16 %v3439
        %v3488 = vunpack.c.l.b16 %v3440
        %v3489 = vpack.c.b16 %v3482, %v3481
        %v3490 = vpack.c.b16 %v3484, %v3483
        %v3491 = vpack.c.b16 %v3486, %v3485
        %v3492 = vpack.c.b16 %v3488, %v3487
        %3497 = vmatpush.bf16.xpose.msra.mxu0 0
        %3498 = vmatpush.bf16.xpose.msra.mxu0 0
        %3499 = vmatpush.bf16.xpose.msra.mxu0 0
        %3500 = vmatpush.bf16.xpose.msra.mxu0 0
        %3501 = vmatpush.bf16.xpose.msra.mxu0 %v3492
        %3502 = vmatpush.bf16.xpose.msra.mxu0 %v3491
        %3503 = vmatpush.bf16.xpose.msra.mxu0 %v3490
        %3504 = vmatpush.bf16.xpose.msra.mxu0 %v3489
        %3505 = vmatmul.bf16.gmra.mxu0 %v3465
        %v3506 = vpop.f32.mrf.mxu0
        %v3507 = vadd.f32 0.0, %v3506
        %v3508 = vpop.f32.mrf.mxu0
        %v3509 = vadd.f32 0.0, %v3508
        %3510 = vmatmul.bf16.gmra.mxu0 %v3466
        %v3511 = vpop.f32.mrf.mxu0
        %v3512 = vadd.f32 0.0, %v3511
        %v3513 = vpop.f32.mrf.mxu0
        %v3514 = vadd.f32 0.0, %v3513
        %3515 = vmatmul.bf16.gmra.mxu0 %v3467
        %v3516 = vpop.f32.mrf.mxu0
        %v3517 = vadd.f32 0.0, %v3516
        %v3518 = vpop.f32.mrf.mxu0
        %v3519 = vadd.f32 0.0, %v3518
        %3520 = vmatmul.bf16.gmra.mxu0 %v3468
        %v3521 = vpop.f32.mrf.mxu0
        %v3522 = vadd.f32 0.0, %v3521
        %v3523 = vpop.f32.mrf.mxu0
        %v3524 = vadd.f32 0.0, %v3523
        %3525 = vdwg.mxu0
        %vm3526 = vcmask 523264
        %v3527 = vsel %vm3526, %v3507, -inf
        %3528 = vmax.xlane.f32.xlu0 %v3527
        %v3529 = vpop.xlane.xlu0 %3528
        %v3530 = vsel %vm3526, %v3509, -inf
        %3531 = vmax.xlane.f32.xlu0 %v3530
        %v3532 = vpop.xlane.xlu0 %3531
        %v3533 = vsel %vm3526, %v3512, -inf
        %3534 = vmax.xlane.f32.xlu0 %v3533
        %v3535 = vpop.xlane.xlu0 %3534
        %v3536 = vsel %vm3526, %v3514, -inf
        %3537 = vmax.xlane.f32.xlu0 %v3536
        %v3538 = vpop.xlane.xlu0 %3537
        %v3539 = vsel %vm3526, %v3517, -inf
        %3540 = vmax.xlane.f32.xlu0 %v3539
        %v3541 = vpop.xlane.xlu0 %3540
        %v3542 = vsel %vm3526, %v3519, -inf
        %3543 = vmax.xlane.f32.xlu0 %v3542
        %v3544 = vpop.xlane.xlu0 %3543
        %v3545 = vsel %vm3526, %v3522, -inf
        %3546 = vmax.xlane.f32.xlu0 %v3545
        %v3547 = vpop.xlane.xlu0 %3546
        %v3548 = vsel %vm3526, %v3524, -inf
        %3549 = vmax.xlane.f32.xlu0 %v3548
        %v3550 = vpop.xlane.xlu0 %3549
        %v3551 = vsub.f32 %v3507, %v3529
        %v3552 = vsub.f32 %v3509, %v3532
        %v3553 = vsub.f32 %v3512, %v3535
        %v3554 = vsub.f32 %v3514, %v3538
        %v3555 = vsub.f32 %v3517, %v3541
        %v3556 = vsub.f32 %v3519, %v3544
        %v3557 = vsub.f32 %v3522, %v3547
        %v3558 = vsub.f32 %v3524, %v3550
        %v3559 = vmul.f32 %v3551, 1.442695
        %v3560 = vpow.pop %v3559
        %v3561 = vmul.f32 %v3552, 1.442695
        %v3562 = vpow.pop %v3561
        %v3563 = vmul.f32 %v3553, 1.442695
        %v3564 = vpow.pop %v3563
        %v3565 = vmul.f32 %v3554, 1.442695
        %v3566 = vpow.pop %v3565
        %v3567 = vmul.f32 %v3555, 1.442695
        %v3568 = vpow.pop %v3567
        %v3569 = vmul.f32 %v3556, 1.442695
        %v3570 = vpow.pop %v3569
        %v3571 = vmul.f32 %v3557, 1.442695
        %v3572 = vpow.pop %v3571
        %v3573 = vmul.f32 %v3558, 1.442695
        %v3574 = vpow.pop %v3573
        %v3575 = vsel %vm3526, %v3560, 0.0
        %3576 = vadd.xlane.f32.xlu0 %v3575
        %v3577 = vpop.xlane.xlu0 %3576
        %v3578 = vsel %vm3526, %v3562, 0.0
        %3579 = vadd.xlane.f32.xlu0 %v3578
        %v3580 = vpop.xlane.xlu0 %3579
        %v3581 = vsel %vm3526, %v3564, 0.0
        %3582 = vadd.xlane.f32.xlu0 %v3581
        %v3583 = vpop.xlane.xlu0 %3582
        %v3584 = vsel %vm3526, %v3566, 0.0
        %3585 = vadd.xlane.f32.xlu0 %v3584
        %v3586 = vpop.xlane.xlu0 %3585
        %v3587 = vsel %vm3526, %v3568, 0.0
        %3588 = vadd.xlane.f32.xlu0 %v3587
        %v3589 = vpop.xlane.xlu0 %3588
        %v3590 = vsel %vm3526, %v3570, 0.0
        %3591 = vadd.xlane.f32.xlu0 %v3590
        %v3592 = vpop.xlane.xlu0 %3591
        %v3593 = vsel %vm3526, %v3572, 0.0
        %3594 = vadd.xlane.f32.xlu0 %v3593
        %v3595 = vpop.xlane.xlu0 %3594
        %v3596 = vsel %vm3526, %v3574, 0.0
        %3597 = vadd.xlane.f32.xlu0 %v3596
        %v3598 = vpop.xlane.xlu0 %3597
        %v3599 = vpack.c.bf16 %v3560, %v3560
        %v3600 = vpack.c.bf16 %v3562, %v3562
        %v3601 = vpack.c.bf16 %v3564, %v3564
        %v3602 = vpack.c.bf16 %v3566, %v3566
        %v3603 = vpack.c.bf16 %v3568, %v3568
        %v3604 = vpack.c.bf16 %v3570, %v3570
        %v3605 = vpack.c.bf16 %v3572, %v3572
        %v3606 = vpack.c.bf16 %v3574, %v3574
        %v3615 = vunpack.c.l.b16 %v3599
        %v3616 = vunpack.c.l.b16 %v3600
        %v3617 = vunpack.c.l.b16 %v3601
        %v3618 = vunpack.c.l.b16 %v3602
        %v3619 = vunpack.c.l.b16 %v3603
        %v3620 = vunpack.c.l.b16 %v3604
        %v3621 = vunpack.c.l.b16 %v3605
        %v3622 = vunpack.c.l.b16 %v3606
        %v3623 = vpack.c.b16 %v3616, %v3615
        %v3624 = vpack.c.b16 %v3618, %v3617
        %v3625 = vpack.c.b16 %v3620, %v3619
        %v3626 = vpack.c.b16 %v3622, %v3621
        %v3635 = vunpack.c.l.b16 %v3441
        %v3636 = vunpack.c.l.b16 %v3442
        %v3637 = vunpack.c.l.b16 %v3443
        %v3638 = vunpack.c.l.b16 %v3444
        %v3639 = vunpack.c.l.b16 %v3445
        %v3640 = vunpack.c.l.b16 %v3446
        %v3641 = vunpack.c.l.b16 %v3447
        %v3642 = vunpack.c.l.b16 %v3448
        %v3643 = vpack.c.b16 %v3636, %v3635
        %v3644 = vpack.c.b16 %v3638, %v3637
        %v3645 = vpack.c.b16 %v3640, %v3639
        %v3646 = vpack.c.b16 %v3642, %v3641
        %v3652 = vsel %vm3526, %v3623, 0
        %v3655 = vsel %vm3526, %v3624, 0
        %v3658 = vsel %vm3526, %v3625, 0
        %v3661 = vsel %vm3526, %v3626, 0
        %3663 = vmatpush.bf16.msra.mxu0 0
        %3664 = vmatpush.bf16.msra.mxu0 0
        %3665 = vmatpush.bf16.msra.mxu0 0
        %3666 = vmatpush.bf16.msra.mxu0 0
        %3667 = vmatpush.bf16.msra.mxu0 %v3646
        %3668 = vmatpush.bf16.msra.mxu0 %v3645
        %3669 = vmatpush.bf16.msra.mxu0 %v3644
        %3670 = vmatpush.bf16.msra.mxu0 %v3643
        %3671 = vmatmul.bf16.gmra.mxu0 %v3652
        %v3672 = vpop.f32.mrf.mxu0
        %v3673 = vadd.f32 0.0, %v3672
        %v3674 = vpop.f32.mrf.mxu0
        %v3675 = vadd.f32 0.0, %v3674
        %3676 = vmatmul.bf16.gmra.mxu0 %v3655
        %v3677 = vpop.f32.mrf.mxu0
        %v3678 = vadd.f32 0.0, %v3677
        %v3679 = vpop.f32.mrf.mxu0
        %v3680 = vadd.f32 0.0, %v3679
        %3681 = vmatmul.bf16.gmra.mxu0 %v3658
        %v3682 = vpop.f32.mrf.mxu0
        %v3683 = vadd.f32 0.0, %v3682
        %v3684 = vpop.f32.mrf.mxu0
        %v3685 = vadd.f32 0.0, %v3684
        %3686 = vmatmul.bf16.gmra.mxu0 %v3661
        %v3687 = vpop.f32.mrf.mxu0
        %v3688 = vadd.f32 0.0, %v3687
        %v3689 = vpop.f32.mrf.mxu0
        %v3690 = vadd.f32 0.0, %v3689
        %3691 = vdwg.mxu0
        %v3692 = vrcp.pop %v3577
        %v3693 = vmul.f32 %v3577, %v3692
        %v3694 = vsub.f32 1.0, %v3693
        %v3695 = vmul.f32 %v3692, %v3694
        %v3696 = vadd.f32 %v3692, %v3695
        %vm3697 = vweird.f32 %v3577
        %vm3698 = vweird.f32 %v3692
        %vm3699 = vmor %vm3697, %vm3698
        %v3700 = vsel %vm3699, %v3692, %v3696
        %v3701 = vand.u32 2147483647, %v3577
        %vm3702 = vcmp.eq.f32.partialorder %v3701, 8.507059e+37
        %v3703 = vand.u32 %v3577, 2147483648
        %v3704 = vor.u32 1.1754944e-38, %v3703
        %v3705 = vsel %vm3702, %v3704, %v3700
        %v3706 = vrcp.pop %v3580
        %v3707 = vmul.f32 %v3580, %v3706
        %v3708 = vsub.f32 1.0, %v3707
        %v3709 = vmul.f32 %v3706, %v3708
        %v3710 = vadd.f32 %v3706, %v3709
        %vm3711 = vweird.f32 %v3580
        %vm3712 = vweird.f32 %v3706
        %vm3713 = vmor %vm3711, %vm3712
        %v3714 = vsel %vm3713, %v3706, %v3710
        %v3715 = vand.u32 2147483647, %v3580
        %vm3716 = vcmp.eq.f32.partialorder %v3715, 8.507059e+37
        %v3717 = vand.u32 %v3580, 2147483648
        %v3718 = vor.u32 1.1754944e-38, %v3717
        %v3719 = vsel %vm3716, %v3718, %v3714
        %v3720 = vrcp.pop %v3583
        %v3721 = vmul.f32 %v3583, %v3720
        %v3722 = vsub.f32 1.0, %v3721
        %v3723 = vmul.f32 %v3720, %v3722
        %v3724 = vadd.f32 %v3720, %v3723
        %vm3725 = vweird.f32 %v3583
        %vm3726 = vweird.f32 %v3720
        %vm3727 = vmor %vm3725, %vm3726
        %v3728 = vsel %vm3727, %v3720, %v3724
        %v3729 = vand.u32 2147483647, %v3583
        %vm3730 = vcmp.eq.f32.partialorder %v3729, 8.507059e+37
        %v3731 = vand.u32 %v3583, 2147483648
        %v3732 = vor.u32 1.1754944e-38, %v3731
        %v3733 = vsel %vm3730, %v3732, %v3728
        %v3734 = vrcp.pop %v3586
        %v3735 = vmul.f32 %v3586, %v3734
        %v3736 = vsub.f32 1.0, %v3735
        %v3737 = vmul.f32 %v3734, %v3736
        %v3738 = vadd.f32 %v3734, %v3737
        %vm3739 = vweird.f32 %v3586
        %vm3740 = vweird.f32 %v3734
        %vm3741 = vmor %vm3739, %vm3740
        %v3742 = vsel %vm3741, %v3734, %v3738
        %v3743 = vand.u32 2147483647, %v3586
        %vm3744 = vcmp.eq.f32.partialorder %v3743, 8.507059e+37
        %v3745 = vand.u32 %v3586, 2147483648
        %v3746 = vor.u32 1.1754944e-38, %v3745
        %v3747 = vsel %vm3744, %v3746, %v3742
        %v3748 = vrcp.pop %v3589
        %v3749 = vmul.f32 %v3589, %v3748
        %v3750 = vsub.f32 1.0, %v3749
        %v3751 = vmul.f32 %v3748, %v3750
        %v3752 = vadd.f32 %v3748, %v3751
        %vm3753 = vweird.f32 %v3589
        %vm3754 = vweird.f32 %v3748
        %vm3755 = vmor %vm3753, %vm3754
        %v3756 = vsel %vm3755, %v3748, %v3752
        %v3757 = vand.u32 2147483647, %v3589
        %vm3758 = vcmp.eq.f32.partialorder %v3757, 8.507059e+37
        %v3759 = vand.u32 %v3589, 2147483648
        %v3760 = vor.u32 1.1754944e-38, %v3759
        %v3761 = vsel %vm3758, %v3760, %v3756
        %v3762 = vrcp.pop %v3592
        %v3763 = vmul.f32 %v3592, %v3762
        %v3764 = vsub.f32 1.0, %v3763
        %v3765 = vmul.f32 %v3762, %v3764
        %v3766 = vadd.f32 %v3762, %v3765
        %vm3767 = vweird.f32 %v3592
        %vm3768 = vweird.f32 %v3762
        %vm3769 = vmor %vm3767, %vm3768
        %v3770 = vsel %vm3769, %v3762, %v3766
        %v3771 = vand.u32 2147483647, %v3592
        %vm3772 = vcmp.eq.f32.partialorder %v3771, 8.507059e+37
        %v3773 = vand.u32 %v3592, 2147483648
        %v3774 = vor.u32 1.1754944e-38, %v3773
        %v3775 = vsel %vm3772, %v3774, %v3770
        %v3776 = vrcp.pop %v3595
        %v3777 = vmul.f32 %v3595, %v3776
        %v3778 = vsub.f32 1.0, %v3777
        %v3779 = vmul.f32 %v3776, %v3778
        %v3780 = vadd.f32 %v3776, %v3779
        %vm3781 = vweird.f32 %v3595
        %vm3782 = vweird.f32 %v3776
        %vm3783 = vmor %vm3781, %vm3782
        %v3784 = vsel %vm3783, %v3776, %v3780
        %v3785 = vand.u32 2147483647, %v3595
        %vm3786 = vcmp.eq.f32.partialorder %v3785, 8.507059e+37
        %v3787 = vand.u32 %v3595, 2147483648
        %v3788 = vor.u32 1.1754944e-38, %v3787
        %v3789 = vsel %vm3786, %v3788, %v3784
        %v3790 = vrcp.pop %v3598
        %v3791 = vmul.f32 %v3598, %v3790
        %v3792 = vsub.f32 1.0, %v3791
        %v3793 = vmul.f32 %v3790, %v3792
        %v3794 = vadd.f32 %v3790, %v3793
        %vm3795 = vweird.f32 %v3598
        %vm3796 = vweird.f32 %v3790
        %vm3797 = vmor %vm3795, %vm3796
        %v3798 = vsel %vm3797, %v3790, %v3794
        %v3799 = vand.u32 2147483647, %v3598
        %vm3800 = vcmp.eq.f32.partialorder %v3799, 8.507059e+37
        %v3801 = vand.u32 %v3598, 2147483648
        %v3802 = vor.u32 1.1754944e-38, %v3801
        %v3803 = vsel %vm3800, %v3802, %v3798
        %v3804 = vmul.f32 %v3673, %v3705
        %v3805 = vmul.f32 %v3675, %v3719
        %v3806 = vmul.f32 %v3678, %v3733
        %v3807 = vmul.f32 %v3680, %v3747
        %v3808 = vmul.f32 %v3683, %v3761
        %v3809 = vmul.f32 %v3685, %v3775
        %v3810 = vmul.f32 %v3688, %v3789
        %v3811 = vmul.f32 %v3690, %v3803
        %v3812 = vpack.c.bf16 %v3805, %v3804
        %v3813 = vpack.c.bf16 %v3807, %v3806
        %v3814 = vpack.c.bf16 %v3809, %v3808
        %v3815 = vpack.c.bf16 %v3811, %v3810
        %v3816 = vld [vmem:[%s7] sm:$0xf]
        %v3817 = vld [vmem:[%s7 + $0x4] sm:$0xf]
        %v3818 = vld [vmem:[%s7 + $0x8] sm:$0xf]
        %v3819 = vld [vmem:[%s7 + $0xc] sm:$0xf]
        %v3820 = vld [vmem:[%s7 + $0x10] sm:$0xf]
        %v3821 = vld [vmem:[%s7 + $0x14] sm:$0xf]
        %v3822 = vld [vmem:[%s7 + $0x18] sm:$0xf]
        %v3823 = vld [vmem:[%s7 + $0x1c] sm:$0xf]
        %v3824 = vld [vmem:[%s7 + $0x20] sm:$0xf]
        %v3825 = vld [vmem:[%s7 + $0x24] sm:$0xf]
        %v3826 = vld [vmem:[%s7 + $0x28] sm:$0xf]
        %v3827 = vld [vmem:[%s7 + $0x2c] sm:$0xf]
        %v3828 = vld [vmem:[%s7 + $0x30] sm:$0xf]
        %v3829 = vld [vmem:[%s7 + $0x34] sm:$0xf]
        %v3830 = vld [vmem:[%s7 + $0x38] sm:$0xf]
        %v3831 = vld [vmem:[%s7 + $0x3c] sm:$0xf]
        %v3832 = vld [vmem:[%s8] sm:$0x1]
        %v3834 = vperm.slane %v3832, 0
        %v3852 = vunpack.c.l.b16 %v3816
        %v3853 = vunpack.c.l.b16 %v3817
        %v3854 = vunpack.c.l.b16 %v3818
        %v3855 = vunpack.c.l.b16 %v3819
        %v3856 = vunpack.c.l.b16 %v3820
        %v3857 = vunpack.c.l.b16 %v3821
        %v3858 = vunpack.c.l.b16 %v3822
        %v3859 = vunpack.c.l.b16 %v3823
        %v3860 = vunpack.c.l.b16 %v3824
        %v3861 = vunpack.c.l.b16 %v3825
        %v3862 = vunpack.c.l.b16 %v3826
        %v3863 = vunpack.c.l.b16 %v3827
        %v3864 = vunpack.c.l.b16 %v3828
        %v3865 = vunpack.c.l.b16 %v3829
        %v3866 = vunpack.c.l.b16 %v3830
        %v3867 = vunpack.c.l.b16 %v3831
        %v3868 = vpack.c.b16 %v3853, %v3852
        %v3869 = vpack.c.b16 %v3855, %v3854
        %v3870 = vpack.c.b16 %v3857, %v3856
        %v3871 = vpack.c.b16 %v3859, %v3858
        %v3872 = vpack.c.b16 %v3861, %v3860
        %v3873 = vpack.c.b16 %v3863, %v3862
        %v3874 = vpack.c.b16 %v3865, %v3864
        %v3875 = vpack.c.b16 %v3867, %v3866
        %3884 = vmatpush.bf16.msra.mxu0 %v3875
        %3885 = vmatpush.bf16.msra.mxu0 %v3874
        %3886 = vmatpush.bf16.msra.mxu0 %v3873
        %3887 = vmatpush.bf16.msra.mxu0 %v3872
        %3888 = vmatpush.bf16.msra.mxu0 %v3871
        %3889 = vmatpush.bf16.msra.mxu0 %v3870
        %3890 = vmatpush.bf16.msra.mxu0 %v3869
        %3891 = vmatpush.bf16.msra.mxu0 %v3868
        %3892 = vmatmul.bf16.gmra.mxu0 %v3812
        %v3893 = vpop.f32.mrf.mxu0
        %v3894 = vadd.f32 %v3834, %v3893
        %v3895 = vpop.f32.mrf.mxu0
        %v3896 = vadd.f32 %v3834, %v3895
        %3897 = vmatmul.bf16.gmra.mxu0 %v3813
        %v3898 = vpop.f32.mrf.mxu0
        %v3899 = vadd.f32 %v3834, %v3898
        %v3900 = vpop.f32.mrf.mxu0
        %v3901 = vadd.f32 %v3834, %v3900
        %3902 = vmatmul.bf16.gmra.mxu0 %v3814
        %v3903 = vpop.f32.mrf.mxu0
        %v3904 = vadd.f32 %v3834, %v3903
        %v3905 = vpop.f32.mrf.mxu0
        %v3906 = vadd.f32 %v3834, %v3905
        %3907 = vmatmul.bf16.gmra.mxu0 %v3815
        %v3908 = vpop.f32.mrf.mxu0
        %v3909 = vadd.f32 %v3834, %v3908
        %v3910 = vpop.f32.mrf.mxu0
        %v3911 = vadd.f32 %v3834, %v3910
        %3912 = vdwg.mxu0
        %vm3929 = vcmask 1046528
        %v3930 = vrot.slane %v334, 1
        %v3931 = vrot.slane %v335, 1
        %v3932 = vsel %vm3929, %v3930, %v3931
        %v3933 = vrot.slane %v336, 1
        %v3934 = vrot.slane %v337, 1
        %v3935 = vsel %vm3929, %v3933, %v3934
        %v3936 = vrot.slane %v338, 1
        %v3937 = vrot.slane %v339, 1
        %v3938 = vsel %vm3929, %v3936, %v3937
        %v3939 = vrot.slane %v340, 1
        %v3940 = vrot.slane %v341, 1
        %v3941 = vsel %vm3929, %v3939, %v3940
        %v3942 = vrot.slane %v342, 1
        %v3943 = vrot.slane %v343, 1
        %v3944 = vsel %vm3929, %v3942, %v3943
        %v3945 = vrot.slane %v344, 1
        %v3946 = vrot.slane %v345, 1
        %v3947 = vsel %vm3929, %v3945, %v3946
        %v3948 = vrot.slane %v346, 1
        %v3949 = vrot.slane %v347, 1
        %v3950 = vsel %vm3929, %v3948, %v3949
        %v3951 = vrot.slane %v348, 1
        %v3952 = vrot.slane %v349, 1
        %v3953 = vsel %vm3929, %v3951, %v3952
        %v3962 = vadd.f32 %v3932, %v3894
        %v3963 = vadd.f32 %v3935, %v3896
        %v3964 = vadd.f32 %v3938, %v3899
        %v3965 = vadd.f32 %v3941, %v3901
        %v3966 = vadd.f32 %v3944, %v3904
        %v3967 = vadd.f32 %v3947, %v3906
        %v3968 = vadd.f32 %v3950, %v3909
        %v3969 = vadd.f32 %v3953, %v3911
        %3970 = vst [vmem:[%s325] sm:$0xff] %v3962
        %3971 = vst [vmem:[%s325 + $0x8] sm:$0xff] %v3963
        %3972 = vst [vmem:[%s325 + $0x10] sm:$0xff] %v3964
        %3973 = vst [vmem:[%s325 + $0x18] sm:$0xff] %v3965
        %3974 = vst [vmem:[%s325 + $0x20] sm:$0xff] %v3966
        %3975 = vst [vmem:[%s325 + $0x28] sm:$0xff] %v3967
        %3976 = vst [vmem:[%s325 + $0x30] sm:$0xff] %v3968
        %3977 = vst [vmem:[%s325 + $0x38] sm:$0xff] %v3969
        %s3978 = sand.u32 %s225, 1
        %s3979 = scalar_lea.sflag [#allocation4], %s3978
        %s3980 = sand.u32 %s225, 1
        %s3981 = smul.addr %s3980, 64
        %s3982 = scalar_lea.vmem [#allocation3], %s3981
        // Predicated region
        $region57: #{attn_block_forward.1} parent=55 // pred_check
          %p3983 = pneg %p235
        $region58: #{attn_block_forward.1} parent=55 // pred_check_branch
          %3985 = sbr.rel (%p3983) target = $region60
        $region59: #{attn_block_forward.1} parent=55 // pred_region
          %3987 = vsyncadd %s3979, 0
          %s3988 = smul.addr %s23, 8
          %s3989 = smul.addr %s3988, 8
          %s3990 = scalar_lea.hbm %s9, %s3989
          %s3991 = sshll.u32 %s3982, 4
          %s3992 = int_to_ptr.vmem [resolvable:$true] %s3991
          %s3993 = sshll.u32 %s3990, 4
          %s3994 = int_to_ptr.hbm [resolvable:$true] %s3993
          %3999 = dma.vmem_to_hbm [thread:$0]  %s3992, 1024, %s3994, %s3979, 128, 128, 8
        $region60: #{attn_block_forward.1} parent=55 // pred_fallthru
          _
      $region56: #{attn_block_forward.1} parent=5 // pred_fallthru
        _
      %p4000 = scmp.le.s32.totalorder 2, %s18
      // Predicated region
      $region61: #{attn_block_forward.1} parent=5 // pred_check
        %p4001 = pneg %p4000
      $region62: #{attn_block_forward.1} parent=5 // pred_check_branch
        %4003 = sbr.rel (%p4001) target = $region64
      $region63: #{attn_block_forward.1} parent=5 // pred_region
        %s4004 = ssub.s32 %s18, 2
        // Predicated region
        $region65: #{attn_block_forward.1} parent=63 // pred_check
          %p4005 = pneg %p241
        $region66: #{attn_block_forward.1} parent=63 // pred_check_branch
          %4007 = sbr.rel (%p4005) target = $region68
        $region67: #{attn_block_forward.1} parent=63 // pred_region
          %s4008 = sand.u32 %s226, 1
          %s4009 = scalar_lea.sflag [#allocation4], %s4008
          %s4010 = sand.u32 %s226, 1
          %s4011 = smul.addr %s4010, 64
          %s4012 = scalar_lea.vmem [#allocation3], %s4011
          %4014 = dma.done %s4009, 1024
        $region68: #{attn_block_forward.1} parent=63 // pred_fallthru
          _
      $region64: #{attn_block_forward.1} parent=5 // pred_fallthru
        _
    $region6: #{attn_block_forward.1} parent=1 // loop_footer
      %s22 = sadd.s32 1, %s18
    $region7: #{attn_block_forward.1} parent=1 // loop_footer_branch
      %17 = sbr.rel target = $region3
    $region8: #{attn_block_forward.1} parent=1 // loop_exit
      _
    %4015 = vsyncpa [#allocation4], 1
    %s4016 = scalar_lea.sflag [#allocation4], 1
    %4017 = vsyncpa %s4016, 1

// kernel: attn_block_forward.1
$region0: #{attn_block_forward.1}
  #allocation0 [shape = 'u32[]', space=smem, size = 0x4, offset = 0x4, fixed_abs, tag = 'smem constant byte address 0x4 - core index']
  #allocation1 [shape = 'u32[72,128]{1,0:T(1,128)}', space=vmem, size = 0x9000, scoped, tag = 'internal scratch']
  #allocation2 [shape = 'bf16[1,8,8,1152]{3,2,1,0:T(8,128)(2,1)}', space=vmem, size = 0x24000, scoped, tag = 'scratch operand']
  %s0 = inlined_call_operand.vmem [shape: f32[2,10,10,128], index: 0, kind: input, shape index: {}]
  %s1 = inlined_call_operand.vmem [shape: bf16[1152,128], index: 1, kind: input, shape index: {}]
  %s2 = inlined_call_operand.vmem [shape: bf16[1152,128], index: 2, kind: input, shape index: {}]
  %s3 = inlined_call_operand.vmem [shape: bf16[1152,128], index: 3, kind: input, shape index: {}]
  %s4 = inlined_call_operand.vmem [shape: f32[1,128], index: 4, kind: input, shape index: {}]
  %s5 = inlined_call_operand.vmem [shape: f32[1,128], index: 5, kind: input, shape index: {}]
  %s6 = inlined_call_operand.vmem [shape: f32[1,128], index: 6, kind: input, shape index: {}]
  %s7 = inlined_call_operand.vmem [shape: bf16[128,128], index: 7, kind: input, shape index: {}]
  %s8 = inlined_call_operand.vmem [shape: f32[1,128], index: 8, kind: input, shape index: {}]
  %s9 = inlined_call_operand.hbm [shape: f32[2,64,128], index: 9, kind: output, shape index: {}]
  %s10 = sld [smem:[#allocation0]]
  $region69: #{attn_block_forward.1} parent=0
    _
  %s12 = ssub.s32 1, %s10
  %s13 = scalar_select 0, %s12, %s10
  $region1: #{attn_block_forward.1} parent=0
    #allocation3 [shape = 'u8[65536]{0}', space=vmem, size = 0x10000, scoped, tag = 'output window, operand 0']
    #allocation4 [shape = 's32[2]{0}', space=sflag, size = 0x8, scoped, tag = 'scoped memory for attn_block_forward.1']
    %14 = vsyncpa [#allocation4], 0
    %s15 = scalar_lea.sflag [#allocation4], 1
    %16 = vsyncpa %s15, 0
    loop: start=0, step=1, limit=4
    $region2: #{attn_block_forward.1} parent=1 // loop_pre_header
      _
    $region3: #{attn_block_forward.1} parent=1 // loop_header
      %s18 = sphi 0, %s22
      %p19 = scmp.ge.s32.totalorder %s18, 4
      %s28 = sphi 0, %s30
      %s31 = sphi 0, %s28
      %s32 = sphi 0, %s31
      %s48 = sphi 0, %s32
      %s52 = sphi 0, %s52
      %s54 = sphi 0, %s52
      %s55 = sphi 0, %s54
      %s69 = sphi 0, %s55
      %s73 = sphi 0, %s73
      %s75 = sphi 0, %s73
      %s76 = sphi 0, %s75
      %s90 = sphi 0, %s76
      %s94 = sphi 0, %s94
      %s96 = sphi 0, %s94
      %s97 = sphi 0, %s96
      %s111 = sphi 0, %s97
      %s115 = sphi 0, %s115
      %s117 = sphi 0, %s115
      %s118 = sphi 0, %s117
      %s132 = sphi 0, %s118
      %s136 = sphi 0, %s136
      %s138 = sphi 0, %s136
      %s139 = sphi 0, %s138
      %s153 = sphi 0, %s139
      %s157 = sphi 0, %s157
      %s159 = sphi 0, %s157
      %s160 = sphi 0, %s159
      %s174 = sphi 0, %s160
      %s178 = sphi 0, %s178
      %s180 = sphi 0, %s178
      %s181 = sphi 0, %s180
      %s195 = sphi 0, %s181
      %s199 = sphi 0, %s199
      %s201 = sphi 0, %s199
      %s202 = sphi 0, %s201
      %s216 = sphi 0, %s202
      %s222 = sphi 0, %s224
      %s225 = sphi 0, %s222
      %s226 = sphi 0, %s225
      %s242 = sphi 0, %s226
    $region4: #{attn_block_forward.1} parent=1 // loop_header_branch
      %21 = sbr.rel (%p19) target = $region8
    $region5: #{attn_block_forward.1} parent=1 // loop_body
      %s23 = ssub.s32 %s18, 1
      %s24 = ssub.s32 %s18, 2
      %s25 = sadd.s32 %s18, 1
      %s26 = ssub.s32 %s18, %s25
      %p27 = scmp.eq.s32.totalorder %s26, 0
      %s29 = sadd.s32 %s28, 1
      %s30 = scalar_select %p27, %s28, %s29
      %p33 = pneg %p27
      %p34 = scmp.eq.s32.totalorder %s18, 1
      %p35 = por %p33, %p34
      %p36 = scmp.ne.s32.totalorder %s28, %s31
      %p37 = scmp.eq.s32.totalorder %s18, 0
      %p38 = por %p36, %p37
      %p39 = scmp.ne.s32.totalorder %s28, %s31
      %p40 = scmp.eq.s32.totalorder %s23, 1
      %p41 = por %p39, %p40
      %p42 = scmp.ne.s32.totalorder %s31, %s32
      %p43 = scmp.eq.s32.totalorder %s23, 0
      %p44 = por %p42, %p43
      %p45 = scmp.ne.s32.totalorder %s31, %s32
      %p46 = scmp.eq.s32.totalorder %s24, 1
      %p47 = por %p45, %p46
      %p49 = scmp.ne.s32.totalorder %s32, %s48
      %p50 = scmp.eq.s32.totalorder %s24, 0
      %p51 = por %p49, %p50
      %s53 = sadd.s32 %s52, 1
      %p56 = scmp.eq.s32.totalorder %s18, 1
      %p57 = scmp.ne.s32.totalorder %s52, %s54
      %p58 = scmp.eq.s32.totalorder %s18, 0
      %p59 = por %p57, %p58
      %p60 = scmp.ne.s32.totalorder %s52, %s54
      %p61 = scmp.eq.s32.totalorder %s23, 1
      %p62 = por %p60, %p61
      %p63 = scmp.ne.s32.totalorder %s54, %s55
      %p64 = scmp.eq.s32.totalorder %s23, 0
      %p65 = por %p63, %p64
      %p66 = scmp.ne.s32.totalorder %s54, %s55
      %p67 = scmp.eq.s32.totalorder %s24, 1
      %p68 = por %p66, %p67
      %p70 = scmp.ne.s32.totalorder %s55, %s69
      %p71 = scmp.eq.s32.totalorder %s24, 0
      %p72 = por %p70, %p71
      %s74 = sadd.s32 %s73, 1
      %p77 = scmp.eq.s32.totalorder %s18, 1
      %p78 = scmp.ne.s32.totalorder %s73, %s75
      %p79 = scmp.eq.s32.totalorder %s18, 0
      %p80 = por %p78, %p79
      %p81 = scmp.ne.s32.totalorder %s73, %s75
      %p82 = scmp.eq.s32.totalorder %s23, 1
      %p83 = por %p81, %p82
      %p84 = scmp.ne.s32.totalorder %s75, %s76
      %p85 = scmp.eq.s32.totalorder %s23, 0
      %p86 = por %p84, %p85
      %p87 = scmp.ne.s32.totalorder %s75, %s76
      %p88 = scmp.eq.s32.totalorder %s24, 1
      %p89 = por %p87, %p88
      %p91 = scmp.ne.s32.totalorder %s76, %s90
      %p92 = scmp.eq.s32.totalorder %s24, 0
      %p93 = por %p91, %p92
      %s95 = sadd.s32 %s94, 1
      %p98 = scmp.eq.s32.totalorder %s18, 1
      %p99 = scmp.ne.s32.totalorder %s94, %s96
      %p100 = scmp.eq.s32.totalorder %s18, 0
      %p101 = por %p99, %p100
      %p102 = scmp.ne.s32.totalorder %s94, %s96
      %p103 = scmp.eq.s32.totalorder %s23, 1
      %p104 = por %p102, %p103
      %p105 = scmp.ne.s32.totalorder %s96, %s97
      %p106 = scmp.eq.s32.totalorder %s23, 0
      %p107 = por %p105, %p106
      %p108 = scmp.ne.s32.totalorder %s96, %s97
      %p109 = scmp.eq.s32.totalorder %s24, 1
      %p110 = por %p108, %p109
      %p112 = scmp.ne.s32.totalorder %s97, %s111
      %p113 = scmp.eq.s32.totalorder %s24, 0
      %p114 = por %p112, %p113
      %s116 = sadd.s32 %s115, 1
      %p119 = scmp.eq.s32.totalorder %s18, 1
      %p120 = scmp.ne.s32.totalorder %s115, %s117
      %p121 = scmp.eq.s32.totalorder %s18, 0
      %p122 = por %p120, %p121
      %p123 = scmp.ne.s32.totalorder %s115, %s117
      %p124 = scmp.eq.s32.totalorder %s23, 1
      %p125 = por %p123, %p124
      %p126 = scmp.ne.s32.totalorder %s117, %s118
      %p127 = scmp.eq.s32.totalorder %s23, 0
      %p128 = por %p126, %p127
      %p129 = scmp.ne.s32.totalorder %s117, %s118
      %p130 = scmp.eq.s32.totalorder %s24, 1
      %p131 = por %p129, %p130
      %p133 = scmp.ne.s32.totalorder %s118, %s132
      %p134 = scmp.eq.s32.totalorder %s24, 0
      %p135 = por %p133, %p134
      %s137 = sadd.s32 %s136, 1
      %p140 = scmp.eq.s32.totalorder %s18, 1
      %p141 = scmp.ne.s32.totalorder %s136, %s138
      %p142 = scmp.eq.s32.totalorder %s18, 0
      %p143 = por %p141, %p142
      %p144 = scmp.ne.s32.totalorder %s136, %s138
      %p145 = scmp.eq.s32.totalorder %s23, 1
      %p146 = por %p144, %p145
      %p147 = scmp.ne.s32.totalorder %s138, %s139
      %p148 = scmp.eq.s32.totalorder %s23, 0
      %p149 = por %p147, %p148
      %p150 = scmp.ne.s32.totalorder %s138, %s139
      %p151 = scmp.eq.s32.totalorder %s24, 1
      %p152 = por %p150, %p151
      %p154 = scmp.ne.s32.totalorder %s139, %s153
      %p155 = scmp.eq.s32.totalorder %s24, 0
      %p156 = por %p154, %p155
      %s158 = sadd.s32 %s157, 1
      %p161 = scmp.eq.s32.totalorder %s18, 1
      %p162 = scmp.ne.s32.totalorder %s157, %s159
      %p163 = scmp.eq.s32.totalorder %s18, 0
      %p164 = por %p162, %p163
      %p165 = scmp.ne.s32.totalorder %s157, %s159
      %p166 = scmp.eq.s32.totalorder %s23, 1
      %p167 = por %p165, %p166
      %p168 = scmp.ne.s32.totalorder %s159, %s160
      %p169 = scmp.eq.s32.totalorder %s23, 0
      %p170 = por %p168, %p169
      %p171 = scmp.ne.s32.totalorder %s159, %s160
      %p172 = scmp.eq.s32.totalorder %s24, 1
      %p173 = por %p171, %p172
      %p175 = scmp.ne.s32.totalorder %s160, %s174
      %p176 = scmp.eq.s32.totalorder %s24, 0
      %p177 = por %p175, %p176
      %s179 = sadd.s32 %s178, 1
      %p182 = scmp.eq.s32.totalorder %s18, 1
      %p183 = scmp.ne.s32.totalorder %s178, %s180
      %p184 = scmp.eq.s32.totalorder %s18, 0
      %p185 = por %p183, %p184
      %p186 = scmp.ne.s32.totalorder %s178, %s180
      %p187 = scmp.eq.s32.totalorder %s23, 1
      %p188 = por %p186, %p187
      %p189 = scmp.ne.s32.totalorder %s180, %s181
      %p190 = scmp.eq.s32.totalorder %s23, 0
      %p191 = por %p189, %p190
      %p192 = scmp.ne.s32.totalorder %s180, %s181
      %p193 = scmp.eq.s32.totalorder %s24, 1
      %p194 = por %p192, %p193
      %p196 = scmp.ne.s32.totalorder %s181, %s195
      %p197 = scmp.eq.s32.totalorder %s24, 0
      %p198 = por %p196, %p197
      %s200 = sadd.s32 %s199, 1
      %p203 = scmp.eq.s32.totalorder %s18, 1
      %p204 = scmp.ne.s32.totalorder %s199, %s201
      %p205 = scmp.eq.s32.totalorder %s18, 0
      %p206 = por %p204, %p205
      %p207 = scmp.ne.s32.totalorder %s199, %s201
      %p208 = scmp.eq.s32.totalorder %s23, 1
      %p209 = por %p207, %p208
      %p210 = scmp.ne.s32.totalorder %s201, %s202
      %p211 = scmp.eq.s32.totalorder %s23, 0
      %p212 = por %p210, %p211
      %p213 = scmp.ne.s32.totalorder %s201, %s202
      %p214 = scmp.eq.s32.totalorder %s24, 1
      %p215 = por %p213, %p214
      %p217 = scmp.ne.s32.totalorder %s202, %s216
      %p218 = scmp.eq.s32.totalorder %s24, 0
      %p219 = por %p217, %p218
      %s220 = ssub.s32 %s18, %s25
      %p221 = scmp.eq.s32.totalorder %s220, 0
      %s223 = sadd.s32 %s222, 1
      %s224 = scalar_select %p221, %s222, %s223
      %p227 = pneg %p221
      %p228 = scmp.eq.s32.totalorder %s18, 1
      %p229 = por %p227, %p228
      %p230 = scmp.ne.s32.totalorder %s222, %s225
      %p231 = scmp.eq.s32.totalorder %s18, 0
      %p232 = por %p230, %p231
      %p233 = scmp.ne.s32.totalorder %s222, %s225
      %p234 = scmp.eq.s32.totalorder %s23, 1
      %p235 = por %p233, %p234
      %p236 = scmp.ne.s32.totalorder %s225, %s226
      %p237 = scmp.eq.s32.totalorder %s23, 0
      %p238 = por %p236, %p237
      %p239 = scmp.ne.s32.totalorder %s225, %s226
      %p240 = scmp.eq.s32.totalorder %s24, 1
      %p241 = por %p239, %p240
      %p243 = scmp.ne.s32.totalorder %s226, %s242
      %p244 = scmp.eq.s32.totalorder %s24, 0
      %p245 = por %p243, %p244
      %p246 = scmp.le.s32.totalorder 1, %s18
      %p247 = scmp.lt.s32.totalorder %s18, 3
      %p248 = pnand %p246, %p247
      %p249 = pneg %p248
      // Predicated region
      $region9: #{attn_block_forward.1} parent=5 // pred_check
        _
      $region10: #{attn_block_forward.1} parent=5 // pred_check_branch
        %251 = sbr.rel (%p248) target = $region12
      $region11: #{attn_block_forward.1} parent=5 // pred_region
        %s252 = ssub.s32 %s18, 1
        // Predicated region
        $region13: #{attn_block_forward.1} parent=11 // pred_check
          %p253 = pneg %p65
        $region14: #{attn_block_forward.1} parent=11 // pred_check_branch
          %255 = sbr.rel (%p253) target = $region16
        $region15: #{attn_block_forward.1} parent=11 // pred_region
          _
        $region16: #{attn_block_forward.1} parent=11 // pred_fallthru
          _
        // Predicated region
        $region17: #{attn_block_forward.1} parent=11 // pred_check
          %p256 = pneg %p86
        $region18: #{attn_block_forward.1} parent=11 // pred_check_branch
          %258 = sbr.rel (%p256) target = $region20
        $region19: #{attn_block_forward.1} parent=11 // pred_region
          _
        $region20: #{attn_block_forward.1} parent=11 // pred_fallthru
          _
        // Predicated region
        $region21: #{attn_block_forward.1} parent=11 // pred_check
          %p259 = pneg %p107
        $region22: #{attn_block_forward.1} parent=11 // pred_check_branch
          %261 = sbr.rel (%p259) target = $region24
        $region23: #{attn_block_forward.1} parent=11 // pred_region
          _
        $region24: #{attn_block_forward.1} parent=11 // pred_fallthru
          _
        // Predicated region
        $region25: #{attn_block_forward.1} parent=11 // pred_check
          %p262 = pneg %p128
        $region26: #{attn_block_forward.1} parent=11 // pred_check_branch
          %264 = sbr.rel (%p262) target = $region28
        $region27: #{attn_block_forward.1} parent=11 // pred_region
          _
        $region28: #{attn_block_forward.1} parent=11 // pred_fallthru
          _
        // Predicated region
        $region29: #{attn_block_forward.1} parent=11 // pred_check
          %p265 = pneg %p149
        $region30: #{attn_block_forward.1} parent=11 // pred_check_branch
          %267 = sbr.rel (%p265) target = $region32
        $region31: #{attn_block_forward.1} parent=11 // pred_region
          _
        $region32: #{attn_block_forward.1} parent=11 // pred_fallthru
          _
        // Predicated region
        $region33: #{attn_block_forward.1} parent=11 // pred_check
          %p268 = pneg %p170
        $region34: #{attn_block_forward.1} parent=11 // pred_check_branch
          %270 = sbr.rel (%p268) target = $region36
        $region35: #{attn_block_forward.1} parent=11 // pred_region
          _
        $region36: #{attn_block_forward.1} parent=11 // pred_fallthru
          _
        // Predicated region
        $region37: #{attn_block_forward.1} parent=11 // pred_check
          %p271 = pneg %p191
        $region38: #{attn_block_forward.1} parent=11 // pred_check_branch
          %273 = sbr.rel (%p271) target = $region40
        $region39: #{attn_block_forward.1} parent=11 // pred_region
          _
        $region40: #{attn_block_forward.1} parent=11 // pred_fallthru
          _
        // Predicated region
        $region41: #{attn_block_forward.1} parent=11 // pred_check
          %p274 = pneg %p212
        $region42: #{attn_block_forward.1} parent=11 // pred_check_branch
          %276 = sbr.rel (%p274) target = $region44
        $region43: #{attn_block_forward.1} parent=11 // pred_region
          _
        $region44: #{attn_block_forward.1} parent=11 // pred_fallthru
          _
      $region12: #{attn_block_forward.1} parent=5 // pred_fallthru
        _
      %p277 = scmp.lt.s32.totalorder %s18, 2
      // Predicated region
      $region45: #{attn_block_forward.1} parent=5 // pred_check
        %p278 = pneg %p277
      $region46: #{attn_block_forward.1} parent=5 // pred_check_branch
        %280 = sbr.rel (%p278) target = $region48
      $region47: #{attn_block_forward.1} parent=5 // pred_region
        // Predicated region
        $region49: #{attn_block_forward.1} parent=47 // pred_check
          %p281 = pneg %p38
        $region50: #{attn_block_forward.1} parent=47 // pred_check_branch
          %283 = sbr.rel (%p281) target = $region52
        $region51: #{attn_block_forward.1} parent=47 // pred_region
          %p284 = scmp.lt.s32.totalorder %s18, 1
          %s285 = scalar_select %p284, %s18, 1
          %s286 = smul.addr %s285, 20
          %s287 = smul.addr %s286, 8
          %s288 = scalar_lea.vmem %s0, %s287
        $region52: #{attn_block_forward.1} parent=47 // pred_fallthru
          _
      $region48: #{attn_block_forward.1} parent=5 // pred_fallthru
        _
      %p289 = scmp.le.s32.totalorder 1, %s18
      %p290 = scmp.lt.s32.totalorder %s18, 3
      %p291 = pnand %p289, %p290
      %p292 = pneg %p291
      // Predicated region
      $region53: #{attn_block_forward.1} parent=5 // pred_check
        _
      $region54: #{attn_block_forward.1} parent=5 // pred_check_branch
        %294 = sbr.rel (%p291) target = $region56
      $region55: #{attn_block_forward.1} parent=5 // pred_region
        %s295 = ssub.s32 %s18, 1
        %p296 = scmp.lt.s32.totalorder %s23, 1
        %s297 = scalar_select %p296, %s23, 1
        %s298 = smul.addr %s297, 20
        %s299 = smul.addr %s298, 8
        %s300 = scalar_lea.vmem %s0, %s299
        %p301 = pneg %p44
        %p302 = pneg %p41
        %p303 = pneg %p65
        %p304 = pneg %p62
        %p305 = pneg %p86
        %p306 = pneg %p83
        %p307 = pneg %p107
        %p308 = pneg %p104
        %p309 = pneg %p128
        %p310 = pneg %p125
        %p311 = pneg %p149
        %p312 = pneg %p146
        %p313 = pneg %p170
        %p314 = pneg %p167
        %p315 = pneg %p191
        %p316 = pneg %p188
        %p317 = pneg %p212
        %p318 = pneg %p209
        %p319 = pneg %p238
        %p320 = pneg %p235
        %s321 = sand.u32 %s225, 1
        %s322 = scalar_lea.sflag [#allocation4], %s321
        %s323 = sand.u32 %s225, 1
        %s324 = smul.addr %s323, 64
        %s325 = scalar_lea.vmem [#allocation3], %s324
        %p326 = scmp.lt.s32.totalorder %s23, 1
        %s327 = scalar_select %p326, %s23, 1
        %s328 = smul.addr %s327, 20
        %s329 = smul.addr %s328, 8
        %s330 = scalar_lea.vmem %s0, %s329
        %v332 = vld [vmem:[%s330] sm:$0xff]
        %v333 = vld [vmem:[%s330 + $0x8] sm:$0x3]
        %v334 = vld [vmem:[%s330 + $0x10] sm:$0xff]
        %v335 = vld [vmem:[%s330 + $0x18] sm:$0x3]
        %v336 = vld [vmem:[%s330 + $0x20] sm:$0xff]
        %v337 = vld [vmem:[%s330 + $0x28] sm:$0x3]
        %v338 = vld [vmem:[%s330 + $0x30] sm:$0xff]
        %v339 = vld [vmem:[%s330 + $0x38] sm:$0x3]
        %v340 = vld [vmem:[%s330 + $0x40] sm:$0xff]
        %v341 = vld [vmem:[%s330 + $0x48] sm:$0x3]
        %v342 = vld [vmem:[%s330 + $0x50] sm:$0xff]
        %v343 = vld [vmem:[%s330 + $0x58] sm:$0x3]
        %v344 = vld [vmem:[%s330 + $0x60] sm:$0xff]
        %v345 = vld [vmem:[%s330 + $0x68] sm:$0x3]
        %v346 = vld [vmem:[%s330 + $0x70] sm:$0xff]
        %v347 = vld [vmem:[%s330 + $0x78] sm:$0x3]
        %v348 = vld [vmem:[%s330 + $0x80] sm:$0xff]
        %v349 = vld [vmem:[%s330 + $0x88] sm:$0x3]
        %v350 = vld [vmem:[%s330 + $0x90] sm:$0xff]
        %v351 = vld [vmem:[%s330 + $0x98] sm:$0x3]
        %v352 = vpack.c.bf16 %v332, %v332
        %v353 = vpack.c.bf16 %v333, %v333
        %v354 = vpack.c.bf16 %v334, %v334
        %v355 = vpack.c.bf16 %v335, %v335
        %v356 = vpack.c.bf16 %v336, %v336
        %v357 = vpack.c.bf16 %v337, %v337
        %v358 = vpack.c.bf16 %v338, %v338
        %v359 = vpack.c.bf16 %v339, %v339
        %v360 = vpack.c.bf16 %v340, %v340
        %v361 = vpack.c.bf16 %v341, %v341
        %v362 = vpack.c.bf16 %v342, %v342
        %v363 = vpack.c.bf16 %v343, %v343
        %v364 = vpack.c.bf16 %v344, %v344
        %v365 = vpack.c.bf16 %v345, %v345
        %v366 = vpack.c.bf16 %v346, %v346
        %v367 = vpack.c.bf16 %v347, %v347
        %v368 = vpack.c.bf16 %v348, %v348
        %v369 = vpack.c.bf16 %v349, %v349
        %v370 = vpack.c.bf16 %v350, %v350
        %v371 = vpack.c.bf16 %v351, %v351
        %372 = vst [vmem:[#allocation2] sm:$0xf] %v352
        %373 = vst [vmem:[#allocation2 + $0x24] sm:$0xf] %v354
        %374 = vst [vmem:[#allocation2 + $0x48] sm:$0xf] %v356
        %375 = vst [vmem:[#allocation2 + $0x6c] sm:$0xf] %v358
        %376 = vst [vmem:[#allocation2 + $0x90] sm:$0xf] %v360
        %377 = vst [vmem:[#allocation2 + $0xb4] sm:$0xf] %v362
        %378 = vst [vmem:[#allocation2 + $0xd8] sm:$0xf] %v364
        %379 = vst [vmem:[#allocation2 + $0xfc] sm:$0xf] %v366
        %vm380 = vsmask.f32 3328
        %vm381 = vsmask.f32 7440
        %vm382 = vmor %vm380, %vm381
        %v384 = vshrl.u32 %v352, 16
        %v386 = vrot.slane %v384, 4
        %v387 = vshll.u32 %v352, 16
        %v389 = vrot.slane %v387, 5
        %v390 = vor.u32 %v386, %v389
        %v391 = vrot.slane %v390, 4
        %v393 = vshll.u32 %v353, 16
        %v395 = vrot.slane %v393, 5
        %v396 = vsel %vm382, %v391, %v395
        %v398 = vshrl.u32 %v354, 16
        %v400 = vrot.slane %v398, 4
        %v401 = vshll.u32 %v354, 16
        %v403 = vrot.slane %v401, 5
        %v404 = vor.u32 %v400, %v403
        %v405 = vrot.slane %v404, 4
        %v407 = vshll.u32 %v355, 16
        %v409 = vrot.slane %v407, 5
        %v410 = vsel %vm382, %v405, %v409
        %v412 = vshrl.u32 %v356, 16
        %v414 = vrot.slane %v412, 4
        %v415 = vshll.u32 %v356, 16
        %v417 = vrot.slane %v415, 5
        %v418 = vor.u32 %v414, %v417
        %v419 = vrot.slane %v418, 4
        %v421 = vshll.u32 %v357, 16
        %v423 = vrot.slane %v421, 5
        %v424 = vsel %vm382, %v419, %v423
        %v426 = vshrl.u32 %v358, 16
        %v428 = vrot.slane %v426, 4
        %v429 = vshll.u32 %v358, 16
        %v431 = vrot.slane %v429, 5
        %v432 = vor.u32 %v428, %v431
        %v433 = vrot.slane %v432, 4
        %v435 = vshll.u32 %v359, 16
        %v437 = vrot.slane %v435, 5
        %v438 = vsel %vm382, %v433, %v437
        %v440 = vshrl.u32 %v360, 16
        %v442 = vrot.slane %v440, 4
        %v443 = vshll.u32 %v360, 16
        %v445 = vrot.slane %v443, 5
        %v446 = vor.u32 %v442, %v445
        %v447 = vrot.slane %v446, 4
        %v449 = vshll.u32 %v361, 16
        %v451 = vrot.slane %v449, 5
        %v452 = vsel %vm382, %v447, %v451
        %v454 = vshrl.u32 %v362, 16
        %v456 = vrot.slane %v454, 4
        %v457 = vshll.u32 %v362, 16
        %v459 = vrot.slane %v457, 5
        %v460 = vor.u32 %v456, %v459
        %v461 = vrot.slane %v460, 4
        %v463 = vshll.u32 %v363, 16
        %v465 = vrot.slane %v463, 5
        %v466 = vsel %vm382, %v461, %v465
        %v468 = vshrl.u32 %v364, 16
        %v470 = vrot.slane %v468, 4
        %v471 = vshll.u32 %v364, 16
        %v473 = vrot.slane %v471, 5
        %v474 = vor.u32 %v470, %v473
        %v475 = vrot.slane %v474, 4
        %v477 = vshll.u32 %v365, 16
        %v479 = vrot.slane %v477, 5
        %v480 = vsel %vm382, %v475, %v479
        %v482 = vshrl.u32 %v366, 16
        %v484 = vrot.slane %v482, 4
        %v485 = vshll.u32 %v366, 16
        %v487 = vrot.slane %v485, 5
        %v488 = vor.u32 %v484, %v487
        %v489 = vrot.slane %v488, 4
        %v491 = vshll.u32 %v367, 16
        %v493 = vrot.slane %v491, 5
        %v494 = vsel %vm382, %v489, %v493
        %503 = vst [vmem:[#allocation2 + $0x4] sm:$0xf] %v396
        %504 = vst [vmem:[#allocation2 + $0x28] sm:$0xf] %v410
        %505 = vst [vmem:[#allocation2 + $0x4c] sm:$0xf] %v424
        %506 = vst [vmem:[#allocation2 + $0x70] sm:$0xf] %v438
        %507 = vst [vmem:[#allocation2 + $0x94] sm:$0xf] %v452
        %508 = vst [vmem:[#allocation2 + $0xb8] sm:$0xf] %v466
        %509 = vst [vmem:[#allocation2 + $0xdc] sm:$0xf] %v480
        %510 = vst [vmem:[#allocation2 + $0x100] sm:$0xf] %v494
        %vm527 = vcmask 1042432
        %vm528 = vcmask 1046532
        %vm529 = vmor %vm527, %vm528
        %v530 = vrot.slane %v352, 5
        %v531 = vrot.slane %v530, 4
        %v532 = vrot.slane %v353, 5
        %v533 = vsel %vm529, %v531, %v532
        %v534 = vrot.slane %v354, 5
        %v535 = vrot.slane %v534, 4
        %v536 = vrot.slane %v355, 5
        %v537 = vsel %vm529, %v535, %v536
        %v538 = vrot.slane %v356, 5
        %v539 = vrot.slane %v538, 4
        %v540 = vrot.slane %v357, 5
        %v541 = vsel %vm529, %v539, %v540
        %v542 = vrot.slane %v358, 5
        %v543 = vrot.slane %v542, 4
        %v544 = vrot.slane %v359, 5
        %v545 = vsel %vm529, %v543, %v544
        %v546 = vrot.slane %v360, 5
        %v547 = vrot.slane %v546, 4
        %v548 = vrot.slane %v361, 5
        %v549 = vsel %vm529, %v547, %v548
        %v550 = vrot.slane %v362, 5
        %v551 = vrot.slane %v550, 4
        %v552 = vrot.slane %v363, 5
        %v553 = vsel %vm529, %v551, %v552
        %v554 = vrot.slane %v364, 5
        %v555 = vrot.slane %v554, 4
        %v556 = vrot.slane %v365, 5
        %v557 = vsel %vm529, %v555, %v556
        %v558 = vrot.slane %v366, 5
        %v559 = vrot.slane %v558, 4
        %v560 = vrot.slane %v367, 5
        %v561 = vsel %vm529, %v559, %v560
        %570 = vst [vmem:[#allocation2 + $0x8] sm:$0xf] %v533
        %571 = vst [vmem:[#allocation2 + $0x2c] sm:$0xf] %v537
        %572 = vst [vmem:[#allocation2 + $0x50] sm:$0xf] %v541
        %573 = vst [vmem:[#allocation2 + $0x74] sm:$0xf] %v545
        %574 = vst [vmem:[#allocation2 + $0x98] sm:$0xf] %v549
        %575 = vst [vmem:[#allocation2 + $0xbc] sm:$0xf] %v553
        %576 = vst [vmem:[#allocation2 + $0xe0] sm:$0xf] %v557
        %577 = vst [vmem:[#allocation2 + $0x104] sm:$0xf] %v561
        %578 = vst [vmem:[#allocation2 + $0xc] sm:$0xf] %v354
        %579 = vst [vmem:[#allocation2 + $0x30] sm:$0xf] %v356
        %580 = vst [vmem:[#allocation2 + $0x54] sm:$0xf] %v358
        %581 = vst [vmem:[#allocation2 + $0x78] sm:$0xf] %v360
        %582 = vst [vmem:[#allocation2 + $0x9c] sm:$0xf] %v362
        %583 = vst [vmem:[#allocation2 + $0xc0] sm:$0xf] %v364
        %584 = vst [vmem:[#allocation2 + $0xe4] sm:$0xf] %v366
        %585 = vst [vmem:[#allocation2 + $0x108] sm:$0xf] %v368
        %v587 = vshrl.u32 %v368, 16
        %v589 = vrot.slane %v587, 4
        %v590 = vshll.u32 %v368, 16
        %v592 = vrot.slane %v590, 5
        %v593 = vor.u32 %v589, %v592
        %v594 = vrot.slane %v593, 4
        %v596 = vshll.u32 %v369, 16
        %v598 = vrot.slane %v596, 5
        %v599 = vsel %vm382, %v594, %v598
        %601 = vst [vmem:[#allocation2 + $0x10] sm:$0xf] %v410
        %602 = vst [vmem:[#allocation2 + $0x34] sm:$0xf] %v424
        %603 = vst [vmem:[#allocation2 + $0x58] sm:$0xf] %v438
        %604 = vst [vmem:[#allocation2 + $0x7c] sm:$0xf] %v452
        %605 = vst [vmem:[#allocation2 + $0xa0] sm:$0xf] %v466
        %606 = vst [vmem:[#allocation2 + $0xc4] sm:$0xf] %v480
        %607 = vst [vmem:[#allocation2 + $0xe8] sm:$0xf] %v494
        %608 = vst [vmem:[#allocation2 + $0x10c] sm:$0xf] %v599
        %v611 = vrot.slane %v368, 5
        %v612 = vrot.slane %v611, 4
        %v613 = vrot.slane %v369, 5
        %v614 = vsel %vm529, %v612, %v613
        %616 = vst [vmem:[#allocation2 + $0x14] sm:$0xf] %v537
        %617 = vst [vmem:[#allocation2 + $0x38] sm:$0xf] %v541
        %618 = vst [vmem:[#allocation2 + $0x5c] sm:$0xf] %v545
        %619 = vst [vmem:[#allocation2 + $0x80] sm:$0xf] %v549
        %620 = vst [vmem:[#allocation2 + $0xa4] sm:$0xf] %v553
        %621 = vst [vmem:[#allocation2 + $0xc8] sm:$0xf] %v557
        %622 = vst [vmem:[#allocation2 + $0xec] sm:$0xf] %v561
        %623 = vst [vmem:[#allocation2 + $0x110] sm:$0xf] %v614
        %624 = vst [vmem:[#allocation2 + $0x18] sm:$0xf] %v356
        %625 = vst [vmem:[#allocation2 + $0x3c] sm:$0xf] %v358
        %626 = vst [vmem:[#allocation2 + $0x60] sm:$0xf] %v360
        %627 = vst [vmem:[#allocation2 + $0x84] sm:$0xf] %v362
        %628 = vst [vmem:[#allocation2 + $0xa8] sm:$0xf] %v364
        %629 = vst [vmem:[#allocation2 + $0xcc] sm:$0xf] %v366
        %630 = vst [vmem:[#allocation2 + $0xf0] sm:$0xf] %v368
        %631 = vst [vmem:[#allocation2 + $0x114] sm:$0xf] %v370
        %v633 = vshrl.u32 %v370, 16
        %v635 = vrot.slane %v633, 4
        %v636 = vshll.u32 %v370, 16
        %v638 = vrot.slane %v636, 5
        %v639 = vor.u32 %v635, %v638
        %v640 = vrot.slane %v639, 4
        %v642 = vshll.u32 %v371, 16
        %v644 = vrot.slane %v642, 5
        %v645 = vsel %vm382, %v640, %v644
        %647 = vst [vmem:[#allocation2 + $0x1c] sm:$0xf] %v424
        %648 = vst [vmem:[#allocation2 + $0x40] sm:$0xf] %v438
        %649 = vst [vmem:[#allocation2 + $0x64] sm:$0xf] %v452
        %650 = vst [vmem:[#allocation2 + $0x88] sm:$0xf] %v466
        %651 = vst [vmem:[#allocation2 + $0xac] sm:$0xf] %v480
        %652 = vst [vmem:[#allocation2 + $0xd0] sm:$0xf] %v494
        %653 = vst [vmem:[#allocation2 + $0xf4] sm:$0xf] %v599
        %654 = vst [vmem:[#allocation2 + $0x118] sm:$0xf] %v645
        %v657 = vrot.slane %v370, 5
        %v658 = vrot.slane %v657, 4
        %v659 = vrot.slane %v371, 5
        %v660 = vsel %vm529, %v658, %v659
        %662 = vst [vmem:[#allocation2 + $0x20] sm:$0xf] %v541
        %663 = vst [vmem:[#allocation2 + $0x44] sm:$0xf] %v545
        %664 = vst [vmem:[#allocation2 + $0x68] sm:$0xf] %v549
        %665 = vst [vmem:[#allocation2 + $0x8c] sm:$0xf] %v553
        %666 = vst [vmem:[#allocation2 + $0xb0] sm:$0xf] %v557
        %667 = vst [vmem:[#allocation2 + $0xd4] sm:$0xf] %v561
        %668 = vst [vmem:[#allocation2 + $0xf8] sm:$0xf] %v614
        %669 = vst [vmem:[#allocation2 + $0x11c] sm:$0xf] %v660
        %v670 = vld [vmem:[#allocation2] sm:$0xff]
        %v671 = vld [vmem:[#allocation2 + $0x8] sm:$0xff]
        %v672 = vld [vmem:[#allocation2 + $0x10] sm:$0xff]
        %v673 = vld [vmem:[#allocation2 + $0x18] sm:$0xff]
        %v674 = vld [vmem:[#allocation2 + $0x20] sm:$0xf]
        %v675 = vld [vmem:[#allocation2 + $0x24] sm:$0xff]
        %v676 = vld [vmem:[#allocation2 + $0x2c] sm:$0xff]
        %v677 = vld [vmem:[#allocation2 + $0x34] sm:$0xff]
        %v678 = vld [vmem:[#allocation2 + $0x3c] sm:$0xff]
        %v679 = vld [vmem:[#allocation2 + $0x44] sm:$0xf]
        %v680 = vld [vmem:[#allocation2 + $0x48] sm:$0xff]
        %v681 = vld [vmem:[#allocation2 + $0x50] sm:$0xff]
        %v682 = vld [vmem:[#allocation2 + $0x58] sm:$0xff]
        %v683 = vld [vmem:[#allocation2 + $0x60] sm:$0xff]
        %v684 = vld [vmem:[#allocation2 + $0x68] sm:$0xf]
        %v685 = vld [vmem:[#allocation2 + $0x6c] sm:$0xff]
        %v686 = vld [vmem:[#allocation2 + $0x74] sm:$0xff]
        %v687 = vld [vmem:[#allocation2 + $0x7c] sm:$0xff]
        %v688 = vld [vmem:[#allocation2 + $0x84] sm:$0xff]
        %v689 = vld [vmem:[#allocation2 + $0x8c] sm:$0xf]
        %v690 = vld [vmem:[#allocation2 + $0x90] sm:$0xff]
        %v691 = vld [vmem:[#allocation2 + $0x98] sm:$0xff]
        %v692 = vld [vmem:[#allocation2 + $0xa0] sm:$0xff]
        %v693 = vld [vmem:[#allocation2 + $0xa8] sm:$0xff]
        %v694 = vld [vmem:[#allocation2 + $0xb0] sm:$0xf]
        %v695 = vld [vmem:[#allocation2 + $0xb4] sm:$0xff]
        %v696 = vld [vmem:[#allocation2 + $0xbc] sm:$0xff]
        %v697 = vld [vmem:[#allocation2 + $0xc4] sm:$0xff]
        %v698 = vld [vmem:[#allocation2 + $0xcc] sm:$0xff]
        %v699 = vld [vmem:[#allocation2 + $0xd4] sm:$0xf]
        %v700 = vld [vmem:[#allocation2 + $0xd8] sm:$0xff]
        %v701 = vld [vmem:[#allocation2 + $0xe0] sm:$0xff]
        %v702 = vld [vmem:[#allocation2 + $0xe8] sm:$0xff]
        %v703 = vld [vmem:[#allocation2 + $0xf0] sm:$0xff]
        %v704 = vld [vmem:[#allocation2 + $0xf8] sm:$0xf]
        %v705 = vld [vmem:[#allocation2 + $0xfc] sm:$0xff]
        %v706 = vld [vmem:[#allocation2 + $0x104] sm:$0xff]
        %v707 = vld [vmem:[#allocation2 + $0x10c] sm:$0xff]
        %v708 = vld [vmem:[#allocation2 + $0x114] sm:$0xff]
        %v709 = vld [vmem:[#allocation2 + $0x11c] sm:$0xf]
        %v710 = vld [vmem:[%s1] sm:$0xf]
        %v711 = vld [vmem:[%s1 + $0x4] sm:$0xf]
        %v712 = vld [vmem:[%s1 + $0x8] sm:$0xf]
        %v713 = vld [vmem:[%s1 + $0xc] sm:$0xf]
        %v714 = vld [vmem:[%s1 + $0x10] sm:$0xf]
        %v715 = vld [vmem:[%s1 + $0x14] sm:$0xf]
        %v716 = vld [vmem:[%s1 + $0x18] sm:$0xf]
        %v717 = vld [vmem:[%s1 + $0x1c] sm:$0xf]
        %v718 = vld [vmem:[%s1 + $0x20] sm:$0xf]
        %v719 = vld [vmem:[%s1 + $0x24] sm:$0xf]
        %v720 = vld [vmem:[%s1 + $0x28] sm:$0xf]
        %v721 = vld [vmem:[%s1 + $0x2c] sm:$0xf]
        %v722 = vld [vmem:[%s1 + $0x30] sm:$0xf]
        %v723 = vld [vmem:[%s1 + $0x34] sm:$0xf]
        %v724 = vld [vmem:[%s1 + $0x38] sm:$0xf]
        %v725 = vld [vmem:[%s1 + $0x3c] sm:$0xf]
        %v726 = vld [vmem:[%s1 + $0x40] sm:$0xf]
        %v727 = vld [vmem:[%s1 + $0x44] sm:$0xf]
        %v728 = vld [vmem:[%s1 + $0x48] sm:$0xf]
        %v729 = vld [vmem:[%s1 + $0x4c] sm:$0xf]
        %v730 = vld [vmem:[%s1 + $0x50] sm:$0xf]
        %v731 = vld [vmem:[%s1 + $0x54] sm:$0xf]
        %v732 = vld [vmem:[%s1 + $0x58] sm:$0xf]
        %v733 = vld [vmem:[%s1 + $0x5c] sm:$0xf]
        %v734 = vld [vmem:[%s1 + $0x60] sm:$0xf]
        %v735 = vld [vmem:[%s1 + $0x64] sm:$0xf]
        %v736 = vld [vmem:[%s1 + $0x68] sm:$0xf]
        %v737 = vld [vmem:[%s1 + $0x6c] sm:$0xf]
        %v738 = vld [vmem:[%s1 + $0x70] sm:$0xf]
        %v739 = vld [vmem:[%s1 + $0x74] sm:$0xf]
        %v740 = vld [vmem:[%s1 + $0x78] sm:$0xf]
        %v741 = vld [vmem:[%s1 + $0x7c] sm:$0xf]
        %v742 = vld [vmem:[%s1 + $0x80] sm:$0xf]
        %v743 = vld [vmem:[%s1 + $0x84] sm:$0xf]
        %v744 = vld [vmem:[%s1 + $0x88] sm:$0xf]
        %v745 = vld [vmem:[%s1 + $0x8c] sm:$0xf]
        %v746 = vld [vmem:[%s1 + $0x90] sm:$0xf]
        %v747 = vld [vmem:[%s1 + $0x94] sm:$0xf]
        %v748 = vld [vmem:[%s1 + $0x98] sm:$0xf]
        %v749 = vld [vmem:[%s1 + $0x9c] sm:$0xf]
        %v750 = vld [vmem:[%s1 + $0xa0] sm:$0xf]
        %v751 = vld [vmem:[%s1 + $0xa4] sm:$0xf]
        %v752 = vld [vmem:[%s1 + $0xa8] sm:$0xf]
        %v753 = vld [vmem:[%s1 + $0xac] sm:$0xf]
        %v754 = vld [vmem:[%s1 + $0xb0] sm:$0xf]
        %v755 = vld [vmem:[%s1 + $0xb4] sm:$0xf]
        %v756 = vld [vmem:[%s1 + $0xb8] sm:$0xf]
        %v757 = vld [vmem:[%s1 + $0xbc] sm:$0xf]
        %v758 = vld [vmem:[%s1 + $0xc0] sm:$0xf]
        %v759 = vld [vmem:[%s1 + $0xc4] sm:$0xf]
        %v760 = vld [vmem:[%s1 + $0xc8] sm:$0xf]
        %v761 = vld [vmem:[%s1 + $0xcc] sm:$0xf]
        %v762 = vld [vmem:[%s1 + $0xd0] sm:$0xf]
        %v763 = vld [vmem:[%s1 + $0xd4] sm:$0xf]
        %v764 = vld [vmem:[%s1 + $0xd8] sm:$0xf]
        %v765 = vld [vmem:[%s1 + $0xdc] sm:$0xf]
        %v766 = vld [vmem:[%s1 + $0xe0] sm:$0xf]
        %v767 = vld [vmem:[%s1 + $0xe4] sm:$0xf]
        %v768 = vld [vmem:[%s1 + $0xe8] sm:$0xf]
        %v769 = vld [vmem:[%s1 + $0xec] sm:$0xf]
        %v770 = vld [vmem:[%s1 + $0xf0] sm:$0xf]
        %v771 = vld [vmem:[%s1 + $0xf4] sm:$0xf]
        %v772 = vld [vmem:[%s1 + $0xf8] sm:$0xf]
        %v773 = vld [vmem:[%s1 + $0xfc] sm:$0xf]
        %v774 = vld [vmem:[%s1 + $0x100] sm:$0xf]
        %v775 = vld [vmem:[%s1 + $0x104] sm:$0xf]
        %v776 = vld [vmem:[%s1 + $0x108] sm:$0xf]
        %v777 = vld [vmem:[%s1 + $0x10c] sm:$0xf]
        %v778 = vld [vmem:[%s1 + $0x110] sm:$0xf]
        %v779 = vld [vmem:[%s1 + $0x114] sm:$0xf]
        %v780 = vld [vmem:[%s1 + $0x118] sm:$0xf]
        %v781 = vld [vmem:[%s1 + $0x11c] sm:$0xf]
        %v782 = vld [vmem:[%s1 + $0x120] sm:$0xf]
        %v783 = vld [vmem:[%s1 + $0x124] sm:$0xf]
        %v784 = vld [vmem:[%s1 + $0x128] sm:$0xf]
        %v785 = vld [vmem:[%s1 + $0x12c] sm:$0xf]
        %v786 = vld [vmem:[%s1 + $0x130] sm:$0xf]
        %v787 = vld [vmem:[%s1 + $0x134] sm:$0xf]
        %v788 = vld [vmem:[%s1 + $0x138] sm:$0xf]
        %v789 = vld [vmem:[%s1 + $0x13c] sm:$0xf]
        %v790 = vld [vmem:[%s1 + $0x140] sm:$0xf]
        %v791 = vld [vmem:[%s1 + $0x144] sm:$0xf]
        %v792 = vld [vmem:[%s1 + $0x148] sm:$0xf]
        %v793 = vld [vmem:[%s1 + $0x14c] sm:$0xf]
        %v794 = vld [vmem:[%s1 + $0x150] sm:$0xf]
        %v795 = vld [vmem:[%s1 + $0x154] sm:$0xf]
        %v796 = vld [vmem:[%s1 + $0x158] sm:$0xf]
        %v797 = vld [vmem:[%s1 + $0x15c] sm:$0xf]
        %v798 = vld [vmem:[%s1 + $0x160] sm:$0xf]
        %v799 = vld [vmem:[%s1 + $0x164] sm:$0xf]
        %v800 = vld [vmem:[%s1 + $0x168] sm:$0xf]
        %v801 = vld [vmem:[%s1 + $0x16c] sm:$0xf]
        %v802 = vld [vmem:[%s1 + $0x170] sm:$0xf]
        %v803 = vld [vmem:[%s1 + $0x174] sm:$0xf]
        %v804 = vld [vmem:[%s1 + $0x178] sm:$0xf]
        %v805 = vld [vmem:[%s1 + $0x17c] sm:$0xf]
        %v806 = vld [vmem:[%s1 + $0x180] sm:$0xf]
        %v807 = vld [vmem:[%s1 + $0x184] sm:$0xf]
        %v808 = vld [vmem:[%s1 + $0x188] sm:$0xf]
        %v809 = vld [vmem:[%s1 + $0x18c] sm:$0xf]
        %v810 = vld [vmem:[%s1 + $0x190] sm:$0xf]
        %v811 = vld [vmem:[%s1 + $0x194] sm:$0xf]
        %v812 = vld [vmem:[%s1 + $0x198] sm:$0xf]
        %v813 = vld [vmem:[%s1 + $0x19c] sm:$0xf]
        %v814 = vld [vmem:[%s1 + $0x1a0] sm:$0xf]
        %v815 = vld [vmem:[%s1 + $0x1a4] sm:$0xf]
        %v816 = vld [vmem:[%s1 + $0x1a8] sm:$0xf]
        %v817 = vld [vmem:[%s1 + $0x1ac] sm:$0xf]
        %v818 = vld [vmem:[%s1 + $0x1b0] sm:$0xf]
        %v819 = vld [vmem:[%s1 + $0x1b4] sm:$0xf]
        %v820 = vld [vmem:[%s1 + $0x1b8] sm:$0xf]
        %v821 = vld [vmem:[%s1 + $0x1bc] sm:$0xf]
        %v822 = vld [vmem:[%s1 + $0x1c0] sm:$0xf]
        %v823 = vld [vmem:[%s1 + $0x1c4] sm:$0xf]
        %v824 = vld [vmem:[%s1 + $0x1c8] sm:$0xf]
        %v825 = vld [vmem:[%s1 + $0x1cc] sm:$0xf]
        %v826 = vld [vmem:[%s1 + $0x1d0] sm:$0xf]
        %v827 = vld [vmem:[%s1 + $0x1d4] sm:$0xf]
        %v828 = vld [vmem:[%s1 + $0x1d8] sm:$0xf]
        %v829 = vld [vmem:[%s1 + $0x1dc] sm:$0xf]
        %v830 = vld [vmem:[%s1 + $0x1e0] sm:$0xf]
        %v831 = vld [vmem:[%s1 + $0x1e4] sm:$0xf]
        %v832 = vld [vmem:[%s1 + $0x1e8] sm:$0xf]
        %v833 = vld [vmem:[%s1 + $0x1ec] sm:$0xf]
        %v834 = vld [vmem:[%s1 + $0x1f0] sm:$0xf]
        %v835 = vld [vmem:[%s1 + $0x1f4] sm:$0xf]
        %v836 = vld [vmem:[%s1 + $0x1f8] sm:$0xf]
        %v837 = vld [vmem:[%s1 + $0x1fc] sm:$0xf]
        %v838 = vld [vmem:[%s1 + $0x200] sm:$0xf]
        %v839 = vld [vmem:[%s1 + $0x204] sm:$0xf]
        %v840 = vld [vmem:[%s1 + $0x208] sm:$0xf]
        %v841 = vld [vmem:[%s1 + $0x20c] sm:$0xf]
        %v842 = vld [vmem:[%s1 + $0x210] sm:$0xf]
        %v843 = vld [vmem:[%s1 + $0x214] sm:$0xf]
        %v844 = vld [vmem:[%s1 + $0x218] sm:$0xf]
        %v845 = vld [vmem:[%s1 + $0x21c] sm:$0xf]
        %v846 = vld [vmem:[%s1 + $0x220] sm:$0xf]
        %v847 = vld [vmem:[%s1 + $0x224] sm:$0xf]
        %v848 = vld [vmem:[%s1 + $0x228] sm:$0xf]
        %v849 = vld [vmem:[%s1 + $0x22c] sm:$0xf]
        %v850 = vld [vmem:[%s1 + $0x230] sm:$0xf]
        %v851 = vld [vmem:[%s1 + $0x234] sm:$0xf]
        %v852 = vld [vmem:[%s1 + $0x238] sm:$0xf]
        %v853 = vld [vmem:[%s1 + $0x23c] sm:$0xf]
        %v854 = vld [vmem:[%s4] sm:$0x1]
        %v856 = vperm.slane %v854, 0
        %v898 = vunpack.c.l.b16 %v670
        %v899 = vunpack.c.h.b16 %v670
        %v900 = vunpack.c.l.b16 %v671
        %v901 = vunpack.c.h.b16 %v671
        %v902 = vunpack.c.l.b16 %v672
        %v903 = vunpack.c.h.b16 %v672
        %v904 = vunpack.c.l.b16 %v673
        %v905 = vunpack.c.h.b16 %v673
        %v906 = vunpack.c.l.b16 %v674
        %v907 = vunpack.c.l.b16 %v675
        %v908 = vunpack.c.h.b16 %v675
        %v909 = vunpack.c.l.b16 %v676
        %v910 = vunpack.c.h.b16 %v676
        %v911 = vunpack.c.l.b16 %v677
        %v912 = vunpack.c.h.b16 %v677
        %v913 = vunpack.c.l.b16 %v678
        %v914 = vunpack.c.h.b16 %v678
        %v915 = vunpack.c.l.b16 %v679
        %v916 = vunpack.c.l.b16 %v680
        %v917 = vunpack.c.h.b16 %v680
        %v918 = vunpack.c.l.b16 %v681
        %v919 = vunpack.c.h.b16 %v681
        %v920 = vunpack.c.l.b16 %v682
        %v921 = vunpack.c.h.b16 %v682
        %v922 = vunpack.c.l.b16 %v683
        %v923 = vunpack.c.h.b16 %v683
        %v924 = vunpack.c.l.b16 %v684
        %v925 = vunpack.c.l.b16 %v685
        %v926 = vunpack.c.h.b16 %v685
        %v927 = vunpack.c.l.b16 %v686
        %v928 = vunpack.c.h.b16 %v686
        %v929 = vunpack.c.l.b16 %v687
        %v930 = vunpack.c.h.b16 %v687
        %v931 = vunpack.c.l.b16 %v688
        %v932 = vunpack.c.h.b16 %v688
        %v933 = vunpack.c.l.b16 %v689
        %v934 = vunpack.c.l.b16 %v690
        %v935 = vunpack.c.h.b16 %v690
        %v936 = vunpack.c.l.b16 %v691
        %v937 = vunpack.c.h.b16 %v691
        %v938 = vunpack.c.l.b16 %v692
        %v939 = vunpack.c.h.b16 %v692
        %v940 = vunpack.c.l.b16 %v693
        %v941 = vunpack.c.h.b16 %v693
        %v942 = vunpack.c.l.b16 %v694
        %v943 = vunpack.c.l.b16 %v695
        %v944 = vunpack.c.h.b16 %v695
        %v945 = vunpack.c.l.b16 %v696
        %v946 = vunpack.c.h.b16 %v696
        %v947 = vunpack.c.l.b16 %v697
        %v948 = vunpack.c.h.b16 %v697
        %v949 = vunpack.c.l.b16 %v698
        %v950 = vunpack.c.h.b16 %v698
        %v951 = vunpack.c.l.b16 %v699
        %v952 = vunpack.c.l.b16 %v700
        %v953 = vunpack.c.h.b16 %v700
        %v954 = vunpack.c.l.b16 %v701
        %v955 = vunpack.c.h.b16 %v701
        %v956 = vunpack.c.l.b16 %v702
        %v957 = vunpack.c.h.b16 %v702
        %v958 = vunpack.c.l.b16 %v703
        %v959 = vunpack.c.h.b16 %v703
        %v960 = vunpack.c.l.b16 %v704
        %v961 = vunpack.c.l.b16 %v705
        %v962 = vunpack.c.h.b16 %v705
        %v963 = vunpack.c.l.b16 %v706
        %v964 = vunpack.c.h.b16 %v706
        %v965 = vunpack.c.l.b16 %v707
        %v966 = vunpack.c.h.b16 %v707
        %v967 = vunpack.c.l.b16 %v708
        %v968 = vunpack.c.h.b16 %v708
        %v969 = vunpack.c.l.b16 %v709
        %v970 = vpack.c.b16 %v907, %v898
        %v971 = vpack.c.b16 %v908, %v899
        %v972 = vpack.c.b16 %v909, %v900
        %v973 = vpack.c.b16 %v910, %v901
        %v974 = vpack.c.b16 %v911, %v902
        %v975 = vpack.c.b16 %v912, %v903
        %v976 = vpack.c.b16 %v913, %v904
        %v977 = vpack.c.b16 %v914, %v905
        %v978 = vpack.c.b16 %v915, %v906
        %v979 = vpack.c.b16 %v925, %v916
        %v980 = vpack.c.b16 %v926, %v917
        %v981 = vpack.c.b16 %v927, %v918
        %v982 = vpack.c.b16 %v928, %v919
        %v983 = vpack.c.b16 %v929, %v920
        %v984 = vpack.c.b16 %v930, %v921
        %v985 = vpack.c.b16 %v931, %v922
        %v986 = vpack.c.b16 %v932, %v923
        %v987 = vpack.c.b16 %v933, %v924
        %v988 = vpack.c.b16 %v943, %v934
        %v989 = vpack.c.b16 %v944, %v935
        %v990 = vpack.c.b16 %v945, %v936
        %v991 = vpack.c.b16 %v946, %v937
        %v992 = vpack.c.b16 %v947, %v938
        %v993 = vpack.c.b16 %v948, %v939
        %v994 = vpack.c.b16 %v949, %v940
        %v995 = vpack.c.b16 %v950, %v941
        %v996 = vpack.c.b16 %v951, %v942
        %v997 = vpack.c.b16 %v961, %v952
        %v998 = vpack.c.b16 %v962, %v953
        %v999 = vpack.c.b16 %v963, %v954
        %v1000 = vpack.c.b16 %v964, %v955
        %v1001 = vpack.c.b16 %v965, %v956
        %v1002 = vpack.c.b16 %v966, %v957
        %v1003 = vpack.c.b16 %v967, %v958
        %v1004 = vpack.c.b16 %v968, %v959
        %v1005 = vpack.c.b16 %v969, %v960
        %v1186 = vunpack.c.l.b16 %v710
        %v1187 = vunpack.c.l.b16 %v711
        %v1188 = vunpack.c.l.b16 %v712
        %v1189 = vunpack.c.l.b16 %v713
        %v1190 = vunpack.c.l.b16 %v714
        %v1191 = vunpack.c.l.b16 %v715
        %v1192 = vunpack.c.l.b16 %v716
        %v1193 = vunpack.c.l.b16 %v717
        %v1194 = vunpack.c.l.b16 %v718
        %v1195 = vunpack.c.l.b16 %v719
        %v1196 = vunpack.c.l.b16 %v720
        %v1197 = vunpack.c.l.b16 %v721
        %v1198 = vunpack.c.l.b16 %v722
        %v1199 = vunpack.c.l.b16 %v723
        %v1200 = vunpack.c.l.b16 %v724
        %v1201 = vunpack.c.l.b16 %v725
        %v1202 = vunpack.c.l.b16 %v726
        %v1203 = vunpack.c.l.b16 %v727
        %v1204 = vunpack.c.l.b16 %v728
        %v1205 = vunpack.c.l.b16 %v729
        %v1206 = vunpack.c.l.b16 %v730
        %v1207 = vunpack.c.l.b16 %v731
        %v1208 = vunpack.c.l.b16 %v732
        %v1209 = vunpack.c.l.b16 %v733
        %v1210 = vunpack.c.l.b16 %v734
        %v1211 = vunpack.c.l.b16 %v735
        %v1212 = vunpack.c.l.b16 %v736
        %v1213 = vunpack.c.l.b16 %v737
        %v1214 = vunpack.c.l.b16 %v738
        %v1215 = vunpack.c.l.b16 %v739
        %v1216 = vunpack.c.l.b16 %v740
        %v1217 = vunpack.c.l.b16 %v741
        %v1218 = vunpack.c.l.b16 %v742
        %v1219 = vunpack.c.l.b16 %v743
        %v1220 = vunpack.c.l.b16 %v744
        %v1221 = vunpack.c.l.b16 %v745
        %v1222 = vunpack.c.l.b16 %v746
        %v1223 = vunpack.c.l.b16 %v747
        %v1224 = vunpack.c.l.b16 %v748
        %v1225 = vunpack.c.l.b16 %v749
        %v1226 = vunpack.c.l.b16 %v750
        %v1227 = vunpack.c.l.b16 %v751
        %v1228 = vunpack.c.l.b16 %v752
        %v1229 = vunpack.c.l.b16 %v753
        %v1230 = vunpack.c.l.b16 %v754
        %v1231 = vunpack.c.l.b16 %v755
        %v1232 = vunpack.c.l.b16 %v756
        %v1233 = vunpack.c.l.b16 %v757
        %v1234 = vunpack.c.l.b16 %v758
        %v1235 = vunpack.c.l.b16 %v759
        %v1236 = vunpack.c.l.b16 %v760
        %v1237 = vunpack.c.l.b16 %v761
        %v1238 = vunpack.c.l.b16 %v762
        %v1239 = vunpack.c.l.b16 %v763
        %v1240 = vunpack.c.l.b16 %v764
        %v1241 = vunpack.c.l.b16 %v765
        %v1242 = vunpack.c.l.b16 %v766
        %v1243 = vunpack.c.l.b16 %v767
        %v1244 = vunpack.c.l.b16 %v768
        %v1245 = vunpack.c.l.b16 %v769
        %v1246 = vunpack.c.l.b16 %v770
        %v1247 = vunpack.c.l.b16 %v771
        %v1248 = vunpack.c.l.b16 %v772
        %v1249 = vunpack.c.l.b16 %v773
        %v1250 = vunpack.c.l.b16 %v774
        %v1251 = vunpack.c.l.b16 %v775
        %v1252 = vunpack.c.l.b16 %v776
        %v1253 = vunpack.c.l.b16 %v777
        %v1254 = vunpack.c.l.b16 %v778
        %v1255 = vunpack.c.l.b16 %v779
        %v1256 = vunpack.c.l.b16 %v780
        %v1257 = vunpack.c.l.b16 %v781
        %v1258 = vunpack.c.l.b16 %v782
        %v1259 = vunpack.c.l.b16 %v783
        %v1260 = vunpack.c.l.b16 %v784
        %v1261 = vunpack.c.l.b16 %v785
        %v1262 = vunpack.c.l.b16 %v786
        %v1263 = vunpack.c.l.b16 %v787
        %v1264 = vunpack.c.l.b16 %v788
        %v1265 = vunpack.c.l.b16 %v789
        %v1266 = vunpack.c.l.b16 %v790
        %v1267 = vunpack.c.l.b16 %v791
        %v1268 = vunpack.c.l.b16 %v792
        %v1269 = vunpack.c.l.b16 %v793
        %v1270 = vunpack.c.l.b16 %v794
        %v1271 = vunpack.c.l.b16 %v795
        %v1272 = vunpack.c.l.b16 %v796
        %v1273 = vunpack.c.l.b16 %v797
        %v1274 = vunpack.c.l.b16 %v798
        %v1275 = vunpack.c.l.b16 %v799
        %v1276 = vunpack.c.l.b16 %v800
        %v1277 = vunpack.c.l.b16 %v801
        %v1278 = vunpack.c.l.b16 %v802
        %v1279 = vunpack.c.l.b16 %v803
        %v1280 = vunpack.c.l.b16 %v804
        %v1281 = vunpack.c.l.b16 %v805
        %v1282 = vunpack.c.l.b16 %v806
        %v1283 = vunpack.c.l.b16 %v807
        %v1284 = vunpack.c.l.b16 %v808
        %v1285 = vunpack.c.l.b16 %v809
        %v1286 = vunpack.c.l.b16 %v810
        %v1287 = vunpack.c.l.b16 %v811
        %v1288 = vunpack.c.l.b16 %v812
        %v1289 = vunpack.c.l.b16 %v813
        %v1290 = vunpack.c.l.b16 %v814
        %v1291 = vunpack.c.l.b16 %v815
        %v1292 = vunpack.c.l.b16 %v816
        %v1293 = vunpack.c.l.b16 %v817
        %v1294 = vunpack.c.l.b16 %v818
        %v1295 = vunpack.c.l.b16 %v819
        %v1296 = vunpack.c.l.b16 %v820
        %v1297 = vunpack.c.l.b16 %v821
        %v1298 = vunpack.c.l.b16 %v822
        %v1299 = vunpack.c.l.b16 %v823
        %v1300 = vunpack.c.l.b16 %v824
        %v1301 = vunpack.c.l.b16 %v825
        %v1302 = vunpack.c.l.b16 %v826
        %v1303 = vunpack.c.l.b16 %v827
        %v1304 = vunpack.c.l.b16 %v828
        %v1305 = vunpack.c.l.b16 %v829
        %v1306 = vunpack.c.l.b16 %v830
        %v1307 = vunpack.c.l.b16 %v831
        %v1308 = vunpack.c.l.b16 %v832
        %v1309 = vunpack.c.l.b16 %v833
        %v1310 = vunpack.c.l.b16 %v834
        %v1311 = vunpack.c.l.b16 %v835
        %v1312 = vunpack.c.l.b16 %v836
        %v1313 = vunpack.c.l.b16 %v837
        %v1314 = vunpack.c.l.b16 %v838
        %v1315 = vunpack.c.l.b16 %v839
        %v1316 = vunpack.c.l.b16 %v840
        %v1317 = vunpack.c.l.b16 %v841
        %v1318 = vunpack.c.l.b16 %v842
        %v1319 = vunpack.c.l.b16 %v843
        %v1320 = vunpack.c.l.b16 %v844
        %v1321 = vunpack.c.l.b16 %v845
        %v1322 = vunpack.c.l.b16 %v846
        %v1323 = vunpack.c.l.b16 %v847
        %v1324 = vunpack.c.l.b16 %v848
        %v1325 = vunpack.c.l.b16 %v849
        %v1326 = vunpack.c.l.b16 %v850
        %v1327 = vunpack.c.l.b16 %v851
        %v1328 = vunpack.c.l.b16 %v852
        %v1329 = vunpack.c.l.b16 %v853
        %v1330 = vpack.c.b16 %v1187, %v1186
        %v1331 = vpack.c.b16 %v1189, %v1188
        %v1332 = vpack.c.b16 %v1191, %v1190
        %v1333 = vpack.c.b16 %v1193, %v1192
        %v1334 = vpack.c.b16 %v1195, %v1194
        %v1335 = vpack.c.b16 %v1197, %v1196
        %v1336 = vpack.c.b16 %v1199, %v1198
        %v1337 = vpack.c.b16 %v1201, %v1200
        %v1338 = vpack.c.b16 %v1203, %v1202
        %v1339 = vpack.c.b16 %v1205, %v1204
        %v1340 = vpack.c.b16 %v1207, %v1206
        %v1341 = vpack.c.b16 %v1209, %v1208
        %v1342 = vpack.c.b16 %v1211, %v1210
        %v1343 = vpack.c.b16 %v1213, %v1212
        %v1344 = vpack.c.b16 %v1215, %v1214
        %v1345 = vpack.c.b16 %v1217, %v1216
        %v1346 = vpack.c.b16 %v1219, %v1218
        %v1347 = vpack.c.b16 %v1221, %v1220
        %v1348 = vpack.c.b16 %v1223, %v1222
        %v1349 = vpack.c.b16 %v1225, %v1224
        %v1350 = vpack.c.b16 %v1227, %v1226
        %v1351 = vpack.c.b16 %v1229, %v1228
        %v1352 = vpack.c.b16 %v1231, %v1230
        %v1353 = vpack.c.b16 %v1233, %v1232
        %v1354 = vpack.c.b16 %v1235, %v1234
        %v1355 = vpack.c.b16 %v1237, %v1236
        %v1356 = vpack.c.b16 %v1239, %v1238
        %v1357 = vpack.c.b16 %v1241, %v1240
        %v1358 = vpack.c.b16 %v1243, %v1242
        %v1359 = vpack.c.b16 %v1245, %v1244
        %v1360 = vpack.c.b16 %v1247, %v1246
        %v1361 = vpack.c.b16 %v1249, %v1248
        %v1362 = vpack.c.b16 %v1251, %v1250
        %v1363 = vpack.c.b16 %v1253, %v1252
        %v1364 = vpack.c.b16 %v1255, %v1254
        %v1365 = vpack.c.b16 %v1257, %v1256
        %v1366 = vpack.c.b16 %v1259, %v1258
        %v1367 = vpack.c.b16 %v1261, %v1260
        %v1368 = vpack.c.b16 %v1263, %v1262
        %v1369 = vpack.c.b16 %v1265, %v1264
        %v1370 = vpack.c.b16 %v1267, %v1266
        %v1371 = vpack.c.b16 %v1269, %v1268
        %v1372 = vpack.c.b16 %v1271, %v1270
        %v1373 = vpack.c.b16 %v1273, %v1272
        %v1374 = vpack.c.b16 %v1275, %v1274
        %v1375 = vpack.c.b16 %v1277, %v1276
        %v1376 = vpack.c.b16 %v1279, %v1278
        %v1377 = vpack.c.b16 %v1281, %v1280
        %v1378 = vpack.c.b16 %v1283, %v1282
        %v1379 = vpack.c.b16 %v1285, %v1284
        %v1380 = vpack.c.b16 %v1287, %v1286
        %v1381 = vpack.c.b16 %v1289, %v1288
        %v1382 = vpack.c.b16 %v1291, %v1290
        %v1383 = vpack.c.b16 %v1293, %v1292
        %v1384 = vpack.c.b16 %v1295, %v1294
        %v1385 = vpack.c.b16 %v1297, %v1296
        %v1386 = vpack.c.b16 %v1299, %v1298
        %v1387 = vpack.c.b16 %v1301, %v1300
        %v1388 = vpack.c.b16 %v1303, %v1302
        %v1389 = vpack.c.b16 %v1305, %v1304
        %v1390 = vpack.c.b16 %v1307, %v1306
        %v1391 = vpack.c.b16 %v1309, %v1308
        %v1392 = vpack.c.b16 %v1311, %v1310
        %v1393 = vpack.c.b16 %v1313, %v1312
        %v1394 = vpack.c.b16 %v1315, %v1314
        %v1395 = vpack.c.b16 %v1317, %v1316
        %v1396 = vpack.c.b16 %v1319, %v1318
        %v1397 = vpack.c.b16 %v1321, %v1320
        %v1398 = vpack.c.b16 %v1323, %v1322
        %v1399 = vpack.c.b16 %v1325, %v1324
        %v1400 = vpack.c.b16 %v1327, %v1326
        %v1401 = vpack.c.b16 %v1329, %v1328
        %1474 = vmatpush.bf16.msra.mxu0 %v1337
        %1475 = vmatpush.bf16.msra.mxu0 %v1336
        %1476 = vmatpush.bf16.msra.mxu0 %v1335
        %1477 = vmatpush.bf16.msra.mxu0 %v1334
        %1478 = vmatpush.bf16.msra.mxu0 %v1333
        %1479 = vmatpush.bf16.msra.mxu0 %v1332
        %1480 = vmatpush.bf16.msra.mxu0 %v1331
        %1481 = vmatpush.bf16.msra.mxu0 %v1330
        %1482 = vmatmul.bf16.gmra.mxu0 %v970
        %v1483 = vpop.f32.mrf.mxu0
        %v1484 = vadd.f32 %v856, %v1483
        %v1485 = vpop.f32.mrf.mxu0
        %v1486 = vadd.f32 %v856, %v1485
        %1487 = vmatmul.bf16.gmra.mxu0 %v979
        %v1488 = vpop.f32.mrf.mxu0
        %v1489 = vadd.f32 %v856, %v1488
        %v1490 = vpop.f32.mrf.mxu0
        %v1491 = vadd.f32 %v856, %v1490
        %1492 = vmatmul.bf16.gmra.mxu0 %v988
        %v1493 = vpop.f32.mrf.mxu0
        %v1494 = vadd.f32 %v856, %v1493
        %v1495 = vpop.f32.mrf.mxu0
        %v1496 = vadd.f32 %v856, %v1495
        %1497 = vmatmul.bf16.gmra.mxu0 %v997
        %v1498 = vpop.f32.mrf.mxu0
        %v1499 = vadd.f32 %v856, %v1498
        %v1500 = vpop.f32.mrf.mxu0
        %v1501 = vadd.f32 %v856, %v1500
        %1502 = vdwg.mxu0
        %1503 = vmatpush.bf16.msra.mxu0 %v1345
        %1504 = vmatpush.bf16.msra.mxu0 %v1344
        %1505 = vmatpush.bf16.msra.mxu0 %v1343
        %1506 = vmatpush.bf16.msra.mxu0 %v1342
        %1507 = vmatpush.bf16.msra.mxu0 %v1341
        %1508 = vmatpush.bf16.msra.mxu0 %v1340
        %1509 = vmatpush.bf16.msra.mxu0 %v1339
        %1510 = vmatpush.bf16.msra.mxu0 %v1338
        %1511 = vmatmul.bf16.gmra.mxu0 %v971
        %v1512 = vpop.f32.mrf.mxu0
        %v1513 = vadd.f32 %v1484, %v1512
        %v1514 = vpop.f32.mrf.mxu0
        %v1515 = vadd.f32 %v1486, %v1514
        %1516 = vmatmul.bf16.gmra.mxu0 %v980
        %v1517 = vpop.f32.mrf.mxu0
        %v1518 = vadd.f32 %v1489, %v1517
        %v1519 = vpop.f32.mrf.mxu0
        %v1520 = vadd.f32 %v1491, %v1519
        %1521 = vmatmul.bf16.gmra.mxu0 %v989
        %v1522 = vpop.f32.mrf.mxu0
        %v1523 = vadd.f32 %v1494, %v1522
        %v1524 = vpop.f32.mrf.mxu0
        %v1525 = vadd.f32 %v1496, %v1524
        %1526 = vmatmul.bf16.gmra.mxu0 %v998
        %v1527 = vpop.f32.mrf.mxu0
        %v1528 = vadd.f32 %v1499, %v1527
        %v1529 = vpop.f32.mrf.mxu0
        %v1530 = vadd.f32 %v1501, %v1529
        %1531 = vdwg.mxu0
        %1532 = vmatpush.bf16.msra.mxu0 %v1353
        %1533 = vmatpush.bf16.msra.mxu0 %v1352
        %1534 = vmatpush.bf16.msra.mxu0 %v1351
        %1535 = vmatpush.bf16.msra.mxu0 %v1350
        %1536 = vmatpush.bf16.msra.mxu0 %v1349
        %1537 = vmatpush.bf16.msra.mxu0 %v1348
        %1538 = vmatpush.bf16.msra.mxu0 %v1347
        %1539 = vmatpush.bf16.msra.mxu0 %v1346
        %1540 = vmatmul.bf16.gmra.mxu0 %v972
        %v1541 = vpop.f32.mrf.mxu0
        %v1542 = vadd.f32 %v1513, %v1541
        %v1543 = vpop.f32.mrf.mxu0
        %v1544 = vadd.f32 %v1515, %v1543
        %1545 = vmatmul.bf16.gmra.mxu0 %v981
        %v1546 = vpop.f32.mrf.mxu0
        %v1547 = vadd.f32 %v1518, %v1546
        %v1548 = vpop.f32.mrf.mxu0
        %v1549 = vadd.f32 %v1520, %v1548
        %1550 = vmatmul.bf16.gmra.mxu0 %v990
        %v1551 = vpop.f32.mrf.mxu0
        %v1552 = vadd.f32 %v1523, %v1551
        %v1553 = vpop.f32.mrf.mxu0
        %v1554 = vadd.f32 %v1525, %v1553
        %1555 = vmatmul.bf16.gmra.mxu0 %v999
        %v1556 = vpop.f32.mrf.mxu0
        %v1557 = vadd.f32 %v1528, %v1556
        %v1558 = vpop.f32.mrf.mxu0
        %v1559 = vadd.f32 %v1530, %v1558
        %1560 = vdwg.mxu0
        %1561 = vmatpush.bf16.msra.mxu0 %v1361
        %1562 = vmatpush.bf16.msra.mxu0 %v1360
        %1563 = vmatpush.bf16.msra.mxu0 %v1359
        %1564 = vmatpush.bf16.msra.mxu0 %v1358
        %1565 = vmatpush.bf16.msra.mxu0 %v1357
        %1566 = vmatpush.bf16.msra.mxu0 %v1356
        %1567 = vmatpush.bf16.msra.mxu0 %v1355
        %1568 = vmatpush.bf16.msra.mxu0 %v1354
        %1569 = vmatmul.bf16.gmra.mxu0 %v973
        %v1570 = vpop.f32.mrf.mxu0
        %v1571 = vadd.f32 %v1542, %v1570
        %v1572 = vpop.f32.mrf.mxu0
        %v1573 = vadd.f32 %v1544, %v1572
        %1574 = vmatmul.bf16.gmra.mxu0 %v982
        %v1575 = vpop.f32.mrf.mxu0
        %v1576 = vadd.f32 %v1547, %v1575
        %v1577 = vpop.f32.mrf.mxu0
        %v1578 = vadd.f32 %v1549, %v1577
        %1579 = vmatmul.bf16.gmra.mxu0 %v991
        %v1580 = vpop.f32.mrf.mxu0
        %v1581 = vadd.f32 %v1552, %v1580
        %v1582 = vpop.f32.mrf.mxu0
        %v1583 = vadd.f32 %v1554, %v1582
        %1584 = vmatmul.bf16.gmra.mxu0 %v1000
        %v1585 = vpop.f32.mrf.mxu0
        %v1586 = vadd.f32 %v1557, %v1585
        %v1587 = vpop.f32.mrf.mxu0
        %v1588 = vadd.f32 %v1559, %v1587
        %1589 = vdwg.mxu0
        %1590 = vmatpush.bf16.msra.mxu0 %v1369
        %1591 = vmatpush.bf16.msra.mxu0 %v1368
        %1592 = vmatpush.bf16.msra.mxu0 %v1367
        %1593 = vmatpush.bf16.msra.mxu0 %v1366
        %1594 = vmatpush.bf16.msra.mxu0 %v1365
        %1595 = vmatpush.bf16.msra.mxu0 %v1364
        %1596 = vmatpush.bf16.msra.mxu0 %v1363
        %1597 = vmatpush.bf16.msra.mxu0 %v1362
        %1598 = vmatmul.bf16.gmra.mxu0 %v974
        %v1599 = vpop.f32.mrf.mxu0
        %v1600 = vadd.f32 %v1571, %v1599
        %v1601 = vpop.f32.mrf.mxu0
        %v1602 = vadd.f32 %v1573, %v1601
        %1603 = vmatmul.bf16.gmra.mxu0 %v983
        %v1604 = vpop.f32.mrf.mxu0
        %v1605 = vadd.f32 %v1576, %v1604
        %v1606 = vpop.f32.mrf.mxu0
        %v1607 = vadd.f32 %v1578, %v1606
        %1608 = vmatmul.bf16.gmra.mxu0 %v992
        %v1609 = vpop.f32.mrf.mxu0
        %v1610 = vadd.f32 %v1581, %v1609
        %v1611 = vpop.f32.mrf.mxu0
        %v1612 = vadd.f32 %v1583, %v1611
        %1613 = vmatmul.bf16.gmra.mxu0 %v1001
        %v1614 = vpop.f32.mrf.mxu0
        %v1615 = vadd.f32 %v1586, %v1614
        %v1616 = vpop.f32.mrf.mxu0
        %v1617 = vadd.f32 %v1588, %v1616
        %1618 = vdwg.mxu0
        %1619 = vmatpush.bf16.msra.mxu0 %v1377
        %1620 = vmatpush.bf16.msra.mxu0 %v1376
        %1621 = vmatpush.bf16.msra.mxu0 %v1375
        %1622 = vmatpush.bf16.msra.mxu0 %v1374
        %1623 = vmatpush.bf16.msra.mxu0 %v1373
        %1624 = vmatpush.bf16.msra.mxu0 %v1372
        %1625 = vmatpush.bf16.msra.mxu0 %v1371
        %1626 = vmatpush.bf16.msra.mxu0 %v1370
        %1627 = vmatmul.bf16.gmra.mxu0 %v975
        %v1628 = vpop.f32.mrf.mxu0
        %v1629 = vadd.f32 %v1600, %v1628
        %v1630 = vpop.f32.mrf.mxu0
        %v1631 = vadd.f32 %v1602, %v1630
        %1632 = vmatmul.bf16.gmra.mxu0 %v984
        %v1633 = vpop.f32.mrf.mxu0
        %v1634 = vadd.f32 %v1605, %v1633
        %v1635 = vpop.f32.mrf.mxu0
        %v1636 = vadd.f32 %v1607, %v1635
        %1637 = vmatmul.bf16.gmra.mxu0 %v993
        %v1638 = vpop.f32.mrf.mxu0
        %v1639 = vadd.f32 %v1610, %v1638
        %v1640 = vpop.f32.mrf.mxu0
        %v1641 = vadd.f32 %v1612, %v1640
        %1642 = vmatmul.bf16.gmra.mxu0 %v1002
        %v1643 = vpop.f32.mrf.mxu0
        %v1644 = vadd.f32 %v1615, %v1643
        %v1645 = vpop.f32.mrf.mxu0
        %v1646 = vadd.f32 %v1617, %v1645
        %1647 = vdwg.mxu0
        %1648 = vmatpush.bf16.msra.mxu0 %v1385
        %1649 = vmatpush.bf16.msra.mxu0 %v1384
        %1650 = vmatpush.bf16.msra.mxu0 %v1383
        %1651 = vmatpush.bf16.msra.mxu0 %v1382
        %1652 = vmatpush.bf16.msra.mxu0 %v1381
        %1653 = vmatpush.bf16.msra.mxu0 %v1380
        %1654 = vmatpush.bf16.msra.mxu0 %v1379
        %1655 = vmatpush.bf16.msra.mxu0 %v1378
        %1656 = vmatmul.bf16.gmra.mxu0 %v976
        %v1657 = vpop.f32.mrf.mxu0
        %v1658 = vadd.f32 %v1629, %v1657
        %v1659 = vpop.f32.mrf.mxu0
        %v1660 = vadd.f32 %v1631, %v1659
        %1661 = vmatmul.bf16.gmra.mxu0 %v985
        %v1662 = vpop.f32.mrf.mxu0
        %v1663 = vadd.f32 %v1634, %v1662
        %v1664 = vpop.f32.mrf.mxu0
        %v1665 = vadd.f32 %v1636, %v1664
        %1666 = vmatmul.bf16.gmra.mxu0 %v994
        %v1667 = vpop.f32.mrf.mxu0
        %v1668 = vadd.f32 %v1639, %v1667
        %v1669 = vpop.f32.mrf.mxu0
        %v1670 = vadd.f32 %v1641, %v1669
        %1671 = vmatmul.bf16.gmra.mxu0 %v1003
        %v1672 = vpop.f32.mrf.mxu0
        %v1673 = vadd.f32 %v1644, %v1672
        %v1674 = vpop.f32.mrf.mxu0
        %v1675 = vadd.f32 %v1646, %v1674
        %1676 = vdwg.mxu0
        %1677 = vmatpush.bf16.msra.mxu0 %v1393
        %1678 = vmatpush.bf16.msra.mxu0 %v1392
        %1679 = vmatpush.bf16.msra.mxu0 %v1391
        %1680 = vmatpush.bf16.msra.mxu0 %v1390
        %1681 = vmatpush.bf16.msra.mxu0 %v1389
        %1682 = vmatpush.bf16.msra.mxu0 %v1388
        %1683 = vmatpush.bf16.msra.mxu0 %v1387
        %1684 = vmatpush.bf16.msra.mxu0 %v1386
        %1685 = vmatmul.bf16.gmra.mxu0 %v977
        %v1686 = vpop.f32.mrf.mxu0
        %v1687 = vadd.f32 %v1658, %v1686
        %v1688 = vpop.f32.mrf.mxu0
        %v1689 = vadd.f32 %v1660, %v1688
        %1690 = vmatmul.bf16.gmra.mxu0 %v986
        %v1691 = vpop.f32.mrf.mxu0
        %v1692 = vadd.f32 %v1663, %v1691
        %v1693 = vpop.f32.mrf.mxu0
        %v1694 = vadd.f32 %v1665, %v1693
        %1695 = vmatmul.bf16.gmra.mxu0 %v995
        %v1696 = vpop.f32.mrf.mxu0
        %v1697 = vadd.f32 %v1668, %v1696
        %v1698 = vpop.f32.mrf.mxu0
        %v1699 = vadd.f32 %v1670, %v1698
        %1700 = vmatmul.bf16.gmra.mxu0 %v1004
        %v1701 = vpop.f32.mrf.mxu0
        %v1702 = vadd.f32 %v1673, %v1701
        %v1703 = vpop.f32.mrf.mxu0
        %v1704 = vadd.f32 %v1675, %v1703
        %1705 = vdwg.mxu0
        %1706 = vmatpush.bf16.msra.mxu0 %v1401
        %1707 = vmatpush.bf16.msra.mxu0 %v1400
        %1708 = vmatpush.bf16.msra.mxu0 %v1399
        %1709 = vmatpush.bf16.msra.mxu0 %v1398
        %1710 = vmatpush.bf16.msra.mxu0 %v1397
        %1711 = vmatpush.bf16.msra.mxu0 %v1396
        %1712 = vmatpush.bf16.msra.mxu0 %v1395
        %1713 = vmatpush.bf16.msra.mxu0 %v1394
        %1714 = vmatmul.bf16.gmra.mxu0 %v978
        %v1715 = vpop.f32.mrf.mxu0
        %v1716 = vadd.f32 %v1687, %v1715
        %v1717 = vpop.f32.mrf.mxu0
        %v1718 = vadd.f32 %v1689, %v1717
        %1719 = vmatmul.bf16.gmra.mxu0 %v987
        %v1720 = vpop.f32.mrf.mxu0
        %v1721 = vadd.f32 %v1692, %v1720
        %v1722 = vpop.f32.mrf.mxu0
        %v1723 = vadd.f32 %v1694, %v1722
        %1724 = vmatmul.bf16.gmra.mxu0 %v996
        %v1725 = vpop.f32.mrf.mxu0
        %v1726 = vadd.f32 %v1697, %v1725
        %v1727 = vpop.f32.mrf.mxu0
        %v1728 = vadd.f32 %v1699, %v1727
        %1729 = vmatmul.bf16.gmra.mxu0 %v1005
        %v1730 = vpop.f32.mrf.mxu0
        %v1731 = vadd.f32 %v1702, %v1730
        %v1732 = vpop.f32.mrf.mxu0
        %v1733 = vadd.f32 %v1704, %v1732
        %1734 = vdwg.mxu0
        %v1735 = vmul.f32 %v1716, 0.088388346
        %v1736 = vmul.f32 %v1718, 0.088388346
        %v1737 = vmul.f32 %v1721, 0.088388346
        %v1738 = vmul.f32 %v1723, 0.088388346
        %v1739 = vmul.f32 %v1726, 0.088388346
        %v1740 = vmul.f32 %v1728, 0.088388346
        %v1741 = vmul.f32 %v1731, 0.088388346
        %v1742 = vmul.f32 %v1733, 0.088388346
        %v1743 = vld [vmem:[%s2] sm:$0xf]
        %v1744 = vld [vmem:[%s2 + $0x4] sm:$0xf]
        %v1745 = vld [vmem:[%s2 + $0x8] sm:$0xf]
        %v1746 = vld [vmem:[%s2 + $0xc] sm:$0xf]
        %v1747 = vld [vmem:[%s2 + $0x10] sm:$0xf]
        %v1748 = vld [vmem:[%s2 + $0x14] sm:$0xf]
        %v1749 = vld [vmem:[%s2 + $0x18] sm:$0xf]
        %v1750 = vld [vmem:[%s2 + $0x1c] sm:$0xf]
        %v1751 = vld [vmem:[%s2 + $0x20] sm:$0xf]
        %v1752 = vld [vmem:[%s2 + $0x24] sm:$0xf]
        %v1753 = vld [vmem:[%s2 + $0x28] sm:$0xf]
        %v1754 = vld [vmem:[%s2 + $0x2c] sm:$0xf]
        %v1755 = vld [vmem:[%s2 + $0x30] sm:$0xf]
        %v1756 = vld [vmem:[%s2 + $0x34] sm:$0xf]
        %v1757 = vld [vmem:[%s2 + $0x38] sm:$0xf]
        %v1758 = vld [vmem:[%s2 + $0x3c] sm:$0xf]
        %v1759 = vld [vmem:[%s2 + $0x40] sm:$0xf]
        %v1760 = vld [vmem:[%s2 + $0x44] sm:$0xf]
        %v1761 = vld [vmem:[%s2 + $0x48] sm:$0xf]
        %v1762 = vld [vmem:[%s2 + $0x4c] sm:$0xf]
        %v1763 = vld [vmem:[%s2 + $0x50] sm:$0xf]
        %v1764 = vld [vmem:[%s2 + $0x54] sm:$0xf]
        %v1765 = vld [vmem:[%s2 + $0x58] sm:$0xf]
        %v1766 = vld [vmem:[%s2 + $0x5c] sm:$0xf]
        %v1767 = vld [vmem:[%s2 + $0x60] sm:$0xf]
        %v1768 = vld [vmem:[%s2 + $0x64] sm:$0xf]
        %v1769 = vld [vmem:[%s2 + $0x68] sm:$0xf]
        %v1770 = vld [vmem:[%s2 + $0x6c] sm:$0xf]
        %v1771 = vld [vmem:[%s2 + $0x70] sm:$0xf]
        %v1772 = vld [vmem:[%s2 + $0x74] sm:$0xf]
        %v1773 = vld [vmem:[%s2 + $0x78] sm:$0xf]
        %v1774 = vld [vmem:[%s2 + $0x7c] sm:$0xf]
        %v1775 = vld [vmem:[%s2 + $0x80] sm:$0xf]
        %v1776 = vld [vmem:[%s2 + $0x84] sm:$0xf]
        %v1777 = vld [vmem:[%s2 + $0x88] sm:$0xf]
        %v1778 = vld [vmem:[%s2 + $0x8c] sm:$0xf]
        %v1779 = vld [vmem:[%s2 + $0x90] sm:$0xf]
        %v1780 = vld [vmem:[%s2 + $0x94] sm:$0xf]
        %v1781 = vld [vmem:[%s2 + $0x98] sm:$0xf]
        %v1782 = vld [vmem:[%s2 + $0x9c] sm:$0xf]
        %v1783 = vld [vmem:[%s2 + $0xa0] sm:$0xf]
        %v1784 = vld [vmem:[%s2 + $0xa4] sm:$0xf]
        %v1785 = vld [vmem:[%s2 + $0xa8] sm:$0xf]
        %v1786 = vld [vmem:[%s2 + $0xac] sm:$0xf]
        %v1787 = vld [vmem:[%s2 + $0xb0] sm:$0xf]
        %v1788 = vld [vmem:[%s2 + $0xb4] sm:$0xf]
        %v1789 = vld [vmem:[%s2 + $0xb8] sm:$0xf]
        %v1790 = vld [vmem:[%s2 + $0xbc] sm:$0xf]
        %v1791 = vld [vmem:[%s2 + $0xc0] sm:$0xf]
        %v1792 = vld [vmem:[%s2 + $0xc4] sm:$0xf]
        %v1793 = vld [vmem:[%s2 + $0xc8] sm:$0xf]
        %v1794 = vld [vmem:[%s2 + $0xcc] sm:$0xf]
        %v1795 = vld [vmem:[%s2 + $0xd0] sm:$0xf]
        %v1796 = vld [vmem:[%s2 + $0xd4] sm:$0xf]
        %v1797 = vld [vmem:[%s2 + $0xd8] sm:$0xf]
        %v1798 = vld [vmem:[%s2 + $0xdc] sm:$0xf]
        %v1799 = vld [vmem:[%s2 + $0xe0] sm:$0xf]
        %v1800 = vld [vmem:[%s2 + $0xe4] sm:$0xf]
        %v1801 = vld [vmem:[%s2 + $0xe8] sm:$0xf]
        %v1802 = vld [vmem:[%s2 + $0xec] sm:$0xf]
        %v1803 = vld [vmem:[%s2 + $0xf0] sm:$0xf]
        %v1804 = vld [vmem:[%s2 + $0xf4] sm:$0xf]
        %v1805 = vld [vmem:[%s2 + $0xf8] sm:$0xf]
        %v1806 = vld [vmem:[%s2 + $0xfc] sm:$0xf]
        %v1807 = vld [vmem:[%s2 + $0x100] sm:$0xf]
        %v1808 = vld [vmem:[%s2 + $0x104] sm:$0xf]
        %v1809 = vld [vmem:[%s2 + $0x108] sm:$0xf]
        %v1810 = vld [vmem:[%s2 + $0x10c] sm:$0xf]
        %v1811 = vld [vmem:[%s2 + $0x110] sm:$0xf]
        %v1812 = vld [vmem:[%s2 + $0x114] sm:$0xf]
        %v1813 = vld [vmem:[%s2 + $0x118] sm:$0xf]
        %v1814 = vld [vmem:[%s2 + $0x11c] sm:$0xf]
        %v1815 = vld [vmem:[%s2 + $0x120] sm:$0xf]
        %v1816 = vld [vmem:[%s2 + $0x124] sm:$0xf]
        %v1817 = vld [vmem:[%s2 + $0x128] sm:$0xf]
        %v1818 = vld [vmem:[%s2 + $0x12c] sm:$0xf]
        %v1819 = vld [vmem:[%s2 + $0x130] sm:$0xf]
        %v1820 = vld [vmem:[%s2 + $0x134] sm:$0xf]
        %v1821 = vld [vmem:[%s2 + $0x138] sm:$0xf]
        %v1822 = vld [vmem:[%s2 + $0x13c] sm:$0xf]
        %v1823 = vld [vmem:[%s2 + $0x140] sm:$0xf]
        %v1824 = vld [vmem:[%s2 + $0x144] sm:$0xf]
        %v1825 = vld [vmem:[%s2 + $0x148] sm:$0xf]
        %v1826 = vld [vmem:[%s2 + $0x14c] sm:$0xf]
        %v1827 = vld [vmem:[%s2 + $0x150] sm:$0xf]
        %v1828 = vld [vmem:[%s2 + $0x154] sm:$0xf]
        %v1829 = vld [vmem:[%s2 + $0x158] sm:$0xf]
        %v1830 = vld [vmem:[%s2 + $0x15c] sm:$0xf]
        %v1831 = vld [vmem:[%s2 + $0x160] sm:$0xf]
        %v1832 = vld [vmem:[%s2 + $0x164] sm:$0xf]
        %v1833 = vld [vmem:[%s2 + $0x168] sm:$0xf]
        %v1834 = vld [vmem:[%s2 + $0x16c] sm:$0xf]
        %v1835 = vld [vmem:[%s2 + $0x170] sm:$0xf]
        %v1836 = vld [vmem:[%s2 + $0x174] sm:$0xf]
        %v1837 = vld [vmem:[%s2 + $0x178] sm:$0xf]
        %v1838 = vld [vmem:[%s2 + $0x17c] sm:$0xf]
        %v1839 = vld [vmem:[%s2 + $0x180] sm:$0xf]
        %v1840 = vld [vmem:[%s2 + $0x184] sm:$0xf]
        %v1841 = vld [vmem:[%s2 + $0x188] sm:$0xf]
        %v1842 = vld [vmem:[%s2 + $0x18c] sm:$0xf]
        %v1843 = vld [vmem:[%s2 + $0x190] sm:$0xf]
        %v1844 = vld [vmem:[%s2 + $0x194] sm:$0xf]
        %v1845 = vld [vmem:[%s2 + $0x198] sm:$0xf]
        %v1846 = vld [vmem:[%s2 + $0x19c] sm:$0xf]
        %v1847 = vld [vmem:[%s2 + $0x1a0] sm:$0xf]
        %v1848 = vld [vmem:[%s2 + $0x1a4] sm:$0xf]
        %v1849 = vld [vmem:[%s2 + $0x1a8] sm:$0xf]
        %v1850 = vld [vmem:[%s2 + $0x1ac] sm:$0xf]
        %v1851 = vld [vmem:[%s2 + $0x1b0] sm:$0xf]
        %v1852 = vld [vmem:[%s2 + $0x1b4] sm:$0xf]
        %v1853 = vld [vmem:[%s2 + $0x1b8] sm:$0xf]
        %v1854 = vld [vmem:[%s2 + $0x1bc] sm:$0xf]
        %v1855 = vld [vmem:[%s2 + $0x1c0] sm:$0xf]
        %v1856 = vld [vmem:[%s2 + $0x1c4] sm:$0xf]
        %v1857 = vld [vmem:[%s2 + $0x1c8] sm:$0xf]
        %v1858 = vld [vmem:[%s2 + $0x1cc] sm:$0xf]
        %v1859 = vld [vmem:[%s2 + $0x1d0] sm:$0xf]
        %v1860 = vld [vmem:[%s2 + $0x1d4] sm:$0xf]
        %v1861 = vld [vmem:[%s2 + $0x1d8] sm:$0xf]
        %v1862 = vld [vmem:[%s2 + $0x1dc] sm:$0xf]
        %v1863 = vld [vmem:[%s2 + $0x1e0] sm:$0xf]
        %v1864 = vld [vmem:[%s2 + $0x1e4] sm:$0xf]
        %v1865 = vld [vmem:[%s2 + $0x1e8] sm:$0xf]
        %v1866 = vld [vmem:[%s2 + $0x1ec] sm:$0xf]
        %v1867 = vld [vmem:[%s2 + $0x1f0] sm:$0xf]
        %v1868 = vld [vmem:[%s2 + $0x1f4] sm:$0xf]
        %v1869 = vld [vmem:[%s2 + $0x1f8] sm:$0xf]
        %v1870 = vld [vmem:[%s2 + $0x1fc] sm:$0xf]
        %v1871 = vld [vmem:[%s2 + $0x200] sm:$0xf]
        %v1872 = vld [vmem:[%s2 + $0x204] sm:$0xf]
        %v1873 = vld [vmem:[%s2 + $0x208] sm:$0xf]
        %v1874 = vld [vmem:[%s2 + $0x20c] sm:$0xf]
        %v1875 = vld [vmem:[%s2 + $0x210] sm:$0xf]
        %v1876 = vld [vmem:[%s2 + $0x214] sm:$0xf]
        %v1877 = vld [vmem:[%s2 + $0x218] sm:$0xf]
        %v1878 = vld [vmem:[%s2 + $0x21c] sm:$0xf]
        %v1879 = vld [vmem:[%s2 + $0x220] sm:$0xf]
        %v1880 = vld [vmem:[%s2 + $0x224] sm:$0xf]
        %v1881 = vld [vmem:[%s2 + $0x228] sm:$0xf]
        %v1882 = vld [vmem:[%s2 + $0x22c] sm:$0xf]
        %v1883 = vld [vmem:[%s2 + $0x230] sm:$0xf]
        %v1884 = vld [vmem:[%s2 + $0x234] sm:$0xf]
        %v1885 = vld [vmem:[%s2 + $0x238] sm:$0xf]
        %v1886 = vld [vmem:[%s2 + $0x23c] sm:$0xf]
        %v1887 = vld [vmem:[%s5] sm:$0x1]
        %v1889 = vperm.slane %v1887, 0
        %v2035 = vunpack.c.l.b16 %v1743
        %v2036 = vunpack.c.l.b16 %v1744
        %v2037 = vunpack.c.l.b16 %v1745
        %v2038 = vunpack.c.l.b16 %v1746
        %v2039 = vunpack.c.l.b16 %v1747
        %v2040 = vunpack.c.l.b16 %v1748
        %v2041 = vunpack.c.l.b16 %v1749
        %v2042 = vunpack.c.l.b16 %v1750
        %v2043 = vunpack.c.l.b16 %v1751
        %v2044 = vunpack.c.l.b16 %v1752
        %v2045 = vunpack.c.l.b16 %v1753
        %v2046 = vunpack.c.l.b16 %v1754
        %v2047 = vunpack.c.l.b16 %v1755
        %v2048 = vunpack.c.l.b16 %v1756
        %v2049 = vunpack.c.l.b16 %v1757
        %v2050 = vunpack.c.l.b16 %v1758
        %v2051 = vunpack.c.l.b16 %v1759
        %v2052 = vunpack.c.l.b16 %v1760
        %v2053 = vunpack.c.l.b16 %v1761
        %v2054 = vunpack.c.l.b16 %v1762
        %v2055 = vunpack.c.l.b16 %v1763
        %v2056 = vunpack.c.l.b16 %v1764
        %v2057 = vunpack.c.l.b16 %v1765
        %v2058 = vunpack.c.l.b16 %v1766
        %v2059 = vunpack.c.l.b16 %v1767
        %v2060 = vunpack.c.l.b16 %v1768
        %v2061 = vunpack.c.l.b16 %v1769
        %v2062 = vunpack.c.l.b16 %v1770
        %v2063 = vunpack.c.l.b16 %v1771
        %v2064 = vunpack.c.l.b16 %v1772
        %v2065 = vunpack.c.l.b16 %v1773
        %v2066 = vunpack.c.l.b16 %v1774
        %v2067 = vunpack.c.l.b16 %v1775
        %v2068 = vunpack.c.l.b16 %v1776
        %v2069 = vunpack.c.l.b16 %v1777
        %v2070 = vunpack.c.l.b16 %v1778
        %v2071 = vunpack.c.l.b16 %v1779
        %v2072 = vunpack.c.l.b16 %v1780
        %v2073 = vunpack.c.l.b16 %v1781
        %v2074 = vunpack.c.l.b16 %v1782
        %v2075 = vunpack.c.l.b16 %v1783
        %v2076 = vunpack.c.l.b16 %v1784
        %v2077 = vunpack.c.l.b16 %v1785
        %v2078 = vunpack.c.l.b16 %v1786
        %v2079 = vunpack.c.l.b16 %v1787
        %v2080 = vunpack.c.l.b16 %v1788
        %v2081 = vunpack.c.l.b16 %v1789
        %v2082 = vunpack.c.l.b16 %v1790
        %v2083 = vunpack.c.l.b16 %v1791
        %v2084 = vunpack.c.l.b16 %v1792
        %v2085 = vunpack.c.l.b16 %v1793
        %v2086 = vunpack.c.l.b16 %v1794
        %v2087 = vunpack.c.l.b16 %v1795
        %v2088 = vunpack.c.l.b16 %v1796
        %v2089 = vunpack.c.l.b16 %v1797
        %v2090 = vunpack.c.l.b16 %v1798
        %v2091 = vunpack.c.l.b16 %v1799
        %v2092 = vunpack.c.l.b16 %v1800
        %v2093 = vunpack.c.l.b16 %v1801
        %v2094 = vunpack.c.l.b16 %v1802
        %v2095 = vunpack.c.l.b16 %v1803
        %v2096 = vunpack.c.l.b16 %v1804
        %v2097 = vunpack.c.l.b16 %v1805
        %v2098 = vunpack.c.l.b16 %v1806
        %v2099 = vunpack.c.l.b16 %v1807
        %v2100 = vunpack.c.l.b16 %v1808
        %v2101 = vunpack.c.l.b16 %v1809
        %v2102 = vunpack.c.l.b16 %v1810
        %v2103 = vunpack.c.l.b16 %v1811
        %v2104 = vunpack.c.l.b16 %v1812
        %v2105 = vunpack.c.l.b16 %v1813
        %v2106 = vunpack.c.l.b16 %v1814
        %v2107 = vunpack.c.l.b16 %v1815
        %v2108 = vunpack.c.l.b16 %v1816
        %v2109 = vunpack.c.l.b16 %v1817
        %v2110 = vunpack.c.l.b16 %v1818
        %v2111 = vunpack.c.l.b16 %v1819
        %v2112 = vunpack.c.l.b16 %v1820
        %v2113 = vunpack.c.l.b16 %v1821
        %v2114 = vunpack.c.l.b16 %v1822
        %v2115 = vunpack.c.l.b16 %v1823
        %v2116 = vunpack.c.l.b16 %v1824
        %v2117 = vunpack.c.l.b16 %v1825
        %v2118 = vunpack.c.l.b16 %v1826
        %v2119 = vunpack.c.l.b16 %v1827
        %v2120 = vunpack.c.l.b16 %v1828
        %v2121 = vunpack.c.l.b16 %v1829
        %v2122 = vunpack.c.l.b16 %v1830
        %v2123 = vunpack.c.l.b16 %v1831
        %v2124 = vunpack.c.l.b16 %v1832
        %v2125 = vunpack.c.l.b16 %v1833
        %v2126 = vunpack.c.l.b16 %v1834
        %v2127 = vunpack.c.l.b16 %v1835
        %v2128 = vunpack.c.l.b16 %v1836
        %v2129 = vunpack.c.l.b16 %v1837
        %v2130 = vunpack.c.l.b16 %v1838
        %v2131 = vunpack.c.l.b16 %v1839
        %v2132 = vunpack.c.l.b16 %v1840
        %v2133 = vunpack.c.l.b16 %v1841
        %v2134 = vunpack.c.l.b16 %v1842
        %v2135 = vunpack.c.l.b16 %v1843
        %v2136 = vunpack.c.l.b16 %v1844
        %v2137 = vunpack.c.l.b16 %v1845
        %v2138 = vunpack.c.l.b16 %v1846
        %v2139 = vunpack.c.l.b16 %v1847
        %v2140 = vunpack.c.l.b16 %v1848
        %v2141 = vunpack.c.l.b16 %v1849
        %v2142 = vunpack.c.l.b16 %v1850
        %v2143 = vunpack.c.l.b16 %v1851
        %v2144 = vunpack.c.l.b16 %v1852
        %v2145 = vunpack.c.l.b16 %v1853
        %v2146 = vunpack.c.l.b16 %v1854
        %v2147 = vunpack.c.l.b16 %v1855
        %v2148 = vunpack.c.l.b16 %v1856
        %v2149 = vunpack.c.l.b16 %v1857
        %v2150 = vunpack.c.l.b16 %v1858
        %v2151 = vunpack.c.l.b16 %v1859
        %v2152 = vunpack.c.l.b16 %v1860
        %v2153 = vunpack.c.l.b16 %v1861
        %v2154 = vunpack.c.l.b16 %v1862
        %v2155 = vunpack.c.l.b16 %v1863
        %v2156 = vunpack.c.l.b16 %v1864
        %v2157 = vunpack.c.l.b16 %v1865
        %v2158 = vunpack.c.l.b16 %v1866
        %v2159 = vunpack.c.l.b16 %v1867
        %v2160 = vunpack.c.l.b16 %v1868
        %v2161 = vunpack.c.l.b16 %v1869
        %v2162 = vunpack.c.l.b16 %v1870
        %v2163 = vunpack.c.l.b16 %v1871
        %v2164 = vunpack.c.l.b16 %v1872
        %v2165 = vunpack.c.l.b16 %v1873
        %v2166 = vunpack.c.l.b16 %v1874
        %v2167 = vunpack.c.l.b16 %v1875
        %v2168 = vunpack.c.l.b16 %v1876
        %v2169 = vunpack.c.l.b16 %v1877
        %v2170 = vunpack.c.l.b16 %v1878
        %v2171 = vunpack.c.l.b16 %v1879
        %v2172 = vunpack.c.l.b16 %v1880
        %v2173 = vunpack.c.l.b16 %v1881
        %v2174 = vunpack.c.l.b16 %v1882
        %v2175 = vunpack.c.l.b16 %v1883
        %v2176 = vunpack.c.l.b16 %v1884
        %v2177 = vunpack.c.l.b16 %v1885
        %v2178 = vunpack.c.l.b16 %v1886
        %v2179 = vpack.c.b16 %v2036, %v2035
        %v2180 = vpack.c.b16 %v2038, %v2037
        %v2181 = vpack.c.b16 %v2040, %v2039
        %v2182 = vpack.c.b16 %v2042, %v2041
        %v2183 = vpack.c.b16 %v2044, %v2043
        %v2184 = vpack.c.b16 %v2046, %v2045
        %v2185 = vpack.c.b16 %v2048, %v2047
        %v2186 = vpack.c.b16 %v2050, %v2049
        %v2187 = vpack.c.b16 %v2052, %v2051
        %v2188 = vpack.c.b16 %v2054, %v2053
        %v2189 = vpack.c.b16 %v2056, %v2055
        %v2190 = vpack.c.b16 %v2058, %v2057
        %v2191 = vpack.c.b16 %v2060, %v2059
        %v2192 = vpack.c.b16 %v2062, %v2061
        %v2193 = vpack.c.b16 %v2064, %v2063
        %v2194 = vpack.c.b16 %v2066, %v2065
        %v2195 = vpack.c.b16 %v2068, %v2067
        %v2196 = vpack.c.b16 %v2070, %v2069
        %v2197 = vpack.c.b16 %v2072, %v2071
        %v2198 = vpack.c.b16 %v2074, %v2073
        %v2199 = vpack.c.b16 %v2076, %v2075
        %v2200 = vpack.c.b16 %v2078, %v2077
        %v2201 = vpack.c.b16 %v2080, %v2079
        %v2202 = vpack.c.b16 %v2082, %v2081
        %v2203 = vpack.c.b16 %v2084, %v2083
        %v2204 = vpack.c.b16 %v2086, %v2085
        %v2205 = vpack.c.b16 %v2088, %v2087
        %v2206 = vpack.c.b16 %v2090, %v2089
        %v2207 = vpack.c.b16 %v2092, %v2091
        %v2208 = vpack.c.b16 %v2094, %v2093
        %v2209 = vpack.c.b16 %v2096, %v2095
        %v2210 = vpack.c.b16 %v2098, %v2097
        %v2211 = vpack.c.b16 %v2100, %v2099
        %v2212 = vpack.c.b16 %v2102, %v2101
        %v2213 = vpack.c.b16 %v2104, %v2103
        %v2214 = vpack.c.b16 %v2106, %v2105
        %v2215 = vpack.c.b16 %v2108, %v2107
        %v2216 = vpack.c.b16 %v2110, %v2109
        %v2217 = vpack.c.b16 %v2112, %v2111
        %v2218 = vpack.c.b16 %v2114, %v2113
        %v2219 = vpack.c.b16 %v2116, %v2115
        %v2220 = vpack.c.b16 %v2118, %v2117
        %v2221 = vpack.c.b16 %v2120, %v2119
        %v2222 = vpack.c.b16 %v2122, %v2121
        %v2223 = vpack.c.b16 %v2124, %v2123
        %v2224 = vpack.c.b16 %v2126, %v2125
        %v2225 = vpack.c.b16 %v2128, %v2127
        %v2226 = vpack.c.b16 %v2130, %v2129
        %v2227 = vpack.c.b16 %v2132, %v2131
        %v2228 = vpack.c.b16 %v2134, %v2133
        %v2229 = vpack.c.b16 %v2136, %v2135
        %v2230 = vpack.c.b16 %v2138, %v2137
        %v2231 = vpack.c.b16 %v2140, %v2139
        %v2232 = vpack.c.b16 %v2142, %v2141
        %v2233 = vpack.c.b16 %v2144, %v2143
        %v2234 = vpack.c.b16 %v2146, %v2145
        %v2235 = vpack.c.b16 %v2148, %v2147
        %v2236 = vpack.c.b16 %v2150, %v2149
        %v2237 = vpack.c.b16 %v2152, %v2151
        %v2238 = vpack.c.b16 %v2154, %v2153
        %v2239 = vpack.c.b16 %v2156, %v2155
        %v2240 = vpack.c.b16 %v2158, %v2157
        %v2241 = vpack.c.b16 %v2160, %v2159
        %v2242 = vpack.c.b16 %v2162, %v2161
        %v2243 = vpack.c.b16 %v2164, %v2163
        %v2244 = vpack.c.b16 %v2166, %v2165
        %v2245 = vpack.c.b16 %v2168, %v2167
        %v2246 = vpack.c.b16 %v2170, %v2169
        %v2247 = vpack.c.b16 %v2172, %v2171
        %v2248 = vpack.c.b16 %v2174, %v2173
        %v2249 = vpack.c.b16 %v2176, %v2175
        %v2250 = vpack.c.b16 %v2178, %v2177
        %2323 = vmatpush.bf16.msra.mxu0 %v2186
        %2324 = vmatpush.bf16.msra.mxu0 %v2185
        %2325 = vmatpush.bf16.msra.mxu0 %v2184
        %2326 = vmatpush.bf16.msra.mxu0 %v2183
        %2327 = vmatpush.bf16.msra.mxu0 %v2182
        %2328 = vmatpush.bf16.msra.mxu0 %v2181
        %2329 = vmatpush.bf16.msra.mxu0 %v2180
        %2330 = vmatpush.bf16.msra.mxu0 %v2179
        %2331 = vmatmul.bf16.gmra.mxu0 %v970
        %v2332 = vpop.f32.mrf.mxu0
        %v2333 = vadd.f32 %v1889, %v2332
        %v2334 = vpop.f32.mrf.mxu0
        %v2335 = vadd.f32 %v1889, %v2334
        %2336 = vmatmul.bf16.gmra.mxu0 %v979
        %v2337 = vpop.f32.mrf.mxu0
        %v2338 = vadd.f32 %v1889, %v2337
        %v2339 = vpop.f32.mrf.mxu0
        %v2340 = vadd.f32 %v1889, %v2339
        %2341 = vmatmul.bf16.gmra.mxu0 %v988
        %v2342 = vpop.f32.mrf.mxu0
        %v2343 = vadd.f32 %v1889, %v2342
        %v2344 = vpop.f32.mrf.mxu0
        %v2345 = vadd.f32 %v1889, %v2344
        %2346 = vmatmul.bf16.gmra.mxu0 %v997
        %v2347 = vpop.f32.mrf.mxu0
        %v2348 = vadd.f32 %v1889, %v2347
        %v2349 = vpop.f32.mrf.mxu0
        %v2350 = vadd.f32 %v1889, %v2349
        %2351 = vdwg.mxu0
        %2352 = vmatpush.bf16.msra.mxu0 %v2194
        %2353 = vmatpush.bf16.msra.mxu0 %v2193
        %2354 = vmatpush.bf16.msra.mxu0 %v2192
        %2355 = vmatpush.bf16.msra.mxu0 %v2191
        %2356 = vmatpush.bf16.msra.mxu0 %v2190
        %2357 = vmatpush.bf16.msra.mxu0 %v2189
        %2358 = vmatpush.bf16.msra.mxu0 %v2188
        %2359 = vmatpush.bf16.msra.mxu0 %v2187
        %2360 = vmatmul.bf16.gmra.mxu0 %v971
        %v2361 = vpop.f32.mrf.mxu0
        %v2362 = vadd.f32 %v2333, %v2361
        %v2363 = vpop.f32.mrf.mxu0
        %v2364 = vadd.f32 %v2335, %v2363
        %2365 = vmatmul.bf16.gmra.mxu0 %v980
        %v2366 = vpop.f32.mrf.mxu0
        %v2367 = vadd.f32 %v2338, %v2366
        %v2368 = vpop.f32.mrf.mxu0
        %v2369 = vadd.f32 %v2340, %v2368
        %2370 = vmatmul.bf16.gmra.mxu0 %v989
        %v2371 = vpop.f32.mrf.mxu0
        %v2372 = vadd.f32 %v2343, %v2371
        %v2373 = vpop.f32.mrf.mxu0
        %v2374 = vadd.f32 %v2345, %v2373
        %2375 = vmatmul.bf16.gmra.mxu0 %v998
        %v2376 = vpop.f32.mrf.mxu0
        %v2377 = vadd.f32 %v2348, %v2376
        %v2378 = vpop.f32.mrf.mxu0
        %v2379 = vadd.f32 %v2350, %v2378
        %2380 = vdwg.mxu0
        %2381 = vmatpush.bf16.msra.mxu0 %v2202
        %2382 = vmatpush.bf16.msra.mxu0 %v2201
        %2383 = vmatpush.bf16.msra.mxu0 %v2200
        %2384 = vmatpush.bf16.msra.mxu0 %v2199
        %2385 = vmatpush.bf16.msra.mxu0 %v2198
        %2386 = vmatpush.bf16.msra.mxu0 %v2197
        %2387 = vmatpush.bf16.msra.mxu0 %v2196
        %2388 = vmatpush.bf16.msra.mxu0 %v2195
        %2389 = vmatmul.bf16.gmra.mxu0 %v972
        %v2390 = vpop.f32.mrf.mxu0
        %v2391 = vadd.f32 %v2362, %v2390
        %v2392 = vpop.f32.mrf.mxu0
        %v2393 = vadd.f32 %v2364, %v2392
        %2394 = vmatmul.bf16.gmra.mxu0 %v981
        %v2395 = vpop.f32.mrf.mxu0
        %v2396 = vadd.f32 %v2367, %v2395
        %v2397 = vpop.f32.mrf.mxu0
        %v2398 = vadd.f32 %v2369, %v2397
        %2399 = vmatmul.bf16.gmra.mxu0 %v990
        %v2400 = vpop.f32.mrf.mxu0
        %v2401 = vadd.f32 %v2372, %v2400
        %v2402 = vpop.f32.mrf.mxu0
        %v2403 = vadd.f32 %v2374, %v2402
        %2404 = vmatmul.bf16.gmra.mxu0 %v999
        %v2405 = vpop.f32.mrf.mxu0
        %v2406 = vadd.f32 %v2377, %v2405
        %v2407 = vpop.f32.mrf.mxu0
        %v2408 = vadd.f32 %v2379, %v2407
        %2409 = vdwg.mxu0
        %2410 = vmatpush.bf16.msra.mxu0 %v2210
        %2411 = vmatpush.bf16.msra.mxu0 %v2209
        %2412 = vmatpush.bf16.msra.mxu0 %v2208
        %2413 = vmatpush.bf16.msra.mxu0 %v2207
        %2414 = vmatpush.bf16.msra.mxu0 %v2206
        %2415 = vmatpush.bf16.msra.mxu0 %v2205
        %2416 = vmatpush.bf16.msra.mxu0 %v2204
        %2417 = vmatpush.bf16.msra.mxu0 %v2203
        %2418 = vmatmul.bf16.gmra.mxu0 %v973
        %v2419 = vpop.f32.mrf.mxu0
        %v2420 = vadd.f32 %v2391, %v2419
        %v2421 = vpop.f32.mrf.mxu0
        %v2422 = vadd.f32 %v2393, %v2421
        %2423 = vmatmul.bf16.gmra.mxu0 %v982
        %v2424 = vpop.f32.mrf.mxu0
        %v2425 = vadd.f32 %v2396, %v2424
        %v2426 = vpop.f32.mrf.mxu0
        %v2427 = vadd.f32 %v2398, %v2426
        %2428 = vmatmul.bf16.gmra.mxu0 %v991
        %v2429 = vpop.f32.mrf.mxu0
        %v2430 = vadd.f32 %v2401, %v2429
        %v2431 = vpop.f32.mrf.mxu0
        %v2432 = vadd.f32 %v2403, %v2431
        %2433 = vmatmul.bf16.gmra.mxu0 %v1000
        %v2434 = vpop.f32.mrf.mxu0
        %v2435 = vadd.f32 %v2406, %v2434
        %v2436 = vpop.f32.mrf.mxu0
        %v2437 = vadd.f32 %v2408, %v2436
        %2438 = vdwg.mxu0
        %2439 = vmatpush.bf16.msra.mxu0 %v2218
        %2440 = vmatpush.bf16.msra.mxu0 %v2217
        %2441 = vmatpush.bf16.msra.mxu0 %v2216
        %2442 = vmatpush.bf16.msra.mxu0 %v2215
        %2443 = vmatpush.bf16.msra.mxu0 %v2214
        %2444 = vmatpush.bf16.msra.mxu0 %v2213
        %2445 = vmatpush.bf16.msra.mxu0 %v2212
        %2446 = vmatpush.bf16.msra.mxu0 %v2211
        %2447 = vmatmul.bf16.gmra.mxu0 %v974
        %v2448 = vpop.f32.mrf.mxu0
        %v2449 = vadd.f32 %v2420, %v2448
        %v2450 = vpop.f32.mrf.mxu0
        %v2451 = vadd.f32 %v2422, %v2450
        %2452 = vmatmul.bf16.gmra.mxu0 %v983
        %v2453 = vpop.f32.mrf.mxu0
        %v2454 = vadd.f32 %v2425, %v2453
        %v2455 = vpop.f32.mrf.mxu0
        %v2456 = vadd.f32 %v2427, %v2455
        %2457 = vmatmul.bf16.gmra.mxu0 %v992
        %v2458 = vpop.f32.mrf.mxu0
        %v2459 = vadd.f32 %v2430, %v2458
        %v2460 = vpop.f32.mrf.mxu0
        %v2461 = vadd.f32 %v2432, %v2460
        %2462 = vmatmul.bf16.gmra.mxu0 %v1001
        %v2463 = vpop.f32.mrf.mxu0
        %v2464 = vadd.f32 %v2435, %v2463
        %v2465 = vpop.f32.mrf.mxu0
        %v2466 = vadd.f32 %v2437, %v2465
        %2467 = vdwg.mxu0
        %2468 = vmatpush.bf16.msra.mxu0 %v2226
        %2469 = vmatpush.bf16.msra.mxu0 %v2225
        %2470 = vmatpush.bf16.msra.mxu0 %v2224
        %2471 = vmatpush.bf16.msra.mxu0 %v2223
        %2472 = vmatpush.bf16.msra.mxu0 %v2222
        %2473 = vmatpush.bf16.msra.mxu0 %v2221
        %2474 = vmatpush.bf16.msra.mxu0 %v2220
        %2475 = vmatpush.bf16.msra.mxu0 %v2219
        %2476 = vmatmul.bf16.gmra.mxu0 %v975
        %v2477 = vpop.f32.mrf.mxu0
        %v2478 = vadd.f32 %v2449, %v2477
        %v2479 = vpop.f32.mrf.mxu0
        %v2480 = vadd.f32 %v2451, %v2479
        %2481 = vmatmul.bf16.gmra.mxu0 %v984
        %v2482 = vpop.f32.mrf.mxu0
        %v2483 = vadd.f32 %v2454, %v2482
        %v2484 = vpop.f32.mrf.mxu0
        %v2485 = vadd.f32 %v2456, %v2484
        %2486 = vmatmul.bf16.gmra.mxu0 %v993
        %v2487 = vpop.f32.mrf.mxu0
        %v2488 = vadd.f32 %v2459, %v2487
        %v2489 = vpop.f32.mrf.mxu0
        %v2490 = vadd.f32 %v2461, %v2489
        %2491 = vmatmul.bf16.gmra.mxu0 %v1002
        %v2492 = vpop.f32.mrf.mxu0
        %v2493 = vadd.f32 %v2464, %v2492
        %v2494 = vpop.f32.mrf.mxu0
        %v2495 = vadd.f32 %v2466, %v2494
        %2496 = vdwg.mxu0
        %2497 = vmatpush.bf16.msra.mxu0 %v2234
        %2498 = vmatpush.bf16.msra.mxu0 %v2233
        %2499 = vmatpush.bf16.msra.mxu0 %v2232
        %2500 = vmatpush.bf16.msra.mxu0 %v2231
        %2501 = vmatpush.bf16.msra.mxu0 %v2230
        %2502 = vmatpush.bf16.msra.mxu0 %v2229
        %2503 = vmatpush.bf16.msra.mxu0 %v2228
        %2504 = vmatpush.bf16.msra.mxu0 %v2227
        %2505 = vmatmul.bf16.gmra.mxu0 %v976
        %v2506 = vpop.f32.mrf.mxu0
        %v2507 = vadd.f32 %v2478, %v2506
        %v2508 = vpop.f32.mrf.mxu0
        %v2509 = vadd.f32 %v2480, %v2508
        %2510 = vmatmul.bf16.gmra.mxu0 %v985
        %v2511 = vpop.f32.mrf.mxu0
        %v2512 = vadd.f32 %v2483, %v2511
        %v2513 = vpop.f32.mrf.mxu0
        %v2514 = vadd.f32 %v2485, %v2513
        %2515 = vmatmul.bf16.gmra.mxu0 %v994
        %v2516 = vpop.f32.mrf.mxu0
        %v2517 = vadd.f32 %v2488, %v2516
        %v2518 = vpop.f32.mrf.mxu0
        %v2519 = vadd.f32 %v2490, %v2518
        %2520 = vmatmul.bf16.gmra.mxu0 %v1003
        %v2521 = vpop.f32.mrf.mxu0
        %v2522 = vadd.f32 %v2493, %v2521
        %v2523 = vpop.f32.mrf.mxu0
        %v2524 = vadd.f32 %v2495, %v2523
        %2525 = vdwg.mxu0
        %2526 = vmatpush.bf16.msra.mxu0 %v2242
        %2527 = vmatpush.bf16.msra.mxu0 %v2241
        %2528 = vmatpush.bf16.msra.mxu0 %v2240
        %2529 = vmatpush.bf16.msra.mxu0 %v2239
        %2530 = vmatpush.bf16.msra.mxu0 %v2238
        %2531 = vmatpush.bf16.msra.mxu0 %v2237
        %2532 = vmatpush.bf16.msra.mxu0 %v2236
        %2533 = vmatpush.bf16.msra.mxu0 %v2235
        %2534 = vmatmul.bf16.gmra.mxu0 %v977
        %v2535 = vpop.f32.mrf.mxu0
        %v2536 = vadd.f32 %v2507, %v2535
        %v2537 = vpop.f32.mrf.mxu0
        %v2538 = vadd.f32 %v2509, %v2537
        %2539 = vmatmul.bf16.gmra.mxu0 %v986
        %v2540 = vpop.f32.mrf.mxu0
        %v2541 = vadd.f32 %v2512, %v2540
        %v2542 = vpop.f32.mrf.mxu0
        %v2543 = vadd.f32 %v2514, %v2542
        %2544 = vmatmul.bf16.gmra.mxu0 %v995
        %v2545 = vpop.f32.mrf.mxu0
        %v2546 = vadd.f32 %v2517, %v2545
        %v2547 = vpop.f32.mrf.mxu0
        %v2548 = vadd.f32 %v2519, %v2547
        %2549 = vmatmul.bf16.gmra.mxu0 %v1004
        %v2550 = vpop.f32.mrf.mxu0
        %v2551 = vadd.f32 %v2522, %v2550
        %v2552 = vpop.f32.mrf.mxu0
        %v2553 = vadd.f32 %v2524, %v2552
        %2554 = vdwg.mxu0
        %2555 = vmatpush.bf16.msra.mxu0 %v2250
        %2556 = vmatpush.bf16.msra.mxu0 %v2249
        %2557 = vmatpush.bf16.msra.mxu0 %v2248
        %2558 = vmatpush.bf16.msra.mxu0 %v2247
        %2559 = vmatpush.bf16.msra.mxu0 %v2246
        %2560 = vmatpush.bf16.msra.mxu0 %v2245
        %2561 = vmatpush.bf16.msra.mxu0 %v2244
        %2562 = vmatpush.bf16.msra.mxu0 %v2243
        %2563 = vmatmul.bf16.gmra.mxu0 %v978
        %v2564 = vpop.f32.mrf.mxu0
        %v2565 = vadd.f32 %v2536, %v2564
        %v2566 = vpop.f32.mrf.mxu0
        %v2567 = vadd.f32 %v2538, %v2566
        %2568 = vmatmul.bf16.gmra.mxu0 %v987
        %v2569 = vpop.f32.mrf.mxu0
        %v2570 = vadd.f32 %v2541, %v2569
        %v2571 = vpop.f32.mrf.mxu0
        %v2572 = vadd.f32 %v2543, %v2571
        %2573 = vmatmul.bf16.gmra.mxu0 %v996
        %v2574 = vpop.f32.mrf.mxu0
        %v2575 = vadd.f32 %v2546, %v2574
        %v2576 = vpop.f32.mrf.mxu0
        %v2577 = vadd.f32 %v2548, %v2576
        %2578 = vmatmul.bf16.gmra.mxu0 %v1005
        %v2579 = vpop.f32.mrf.mxu0
        %v2580 = vadd.f32 %v2551, %v2579
        %v2581 = vpop.f32.mrf.mxu0
        %v2582 = vadd.f32 %v2553, %v2581
        %2583 = vdwg.mxu0
        %v2584 = vld [vmem:[%s3] sm:$0xf]
        %v2585 = vld [vmem:[%s3 + $0x4] sm:$0xf]
        %v2586 = vld [vmem:[%s3 + $0x8] sm:$0xf]
        %v2587 = vld [vmem:[%s3 + $0xc] sm:$0xf]
        %v2588 = vld [vmem:[%s3 + $0x10] sm:$0xf]
        %v2589 = vld [vmem:[%s3 + $0x14] sm:$0xf]
        %v2590 = vld [vmem:[%s3 + $0x18] sm:$0xf]
        %v2591 = vld [vmem:[%s3 + $0x1c] sm:$0xf]
        %v2592 = vld [vmem:[%s3 + $0x20] sm:$0xf]
        %v2593 = vld [vmem:[%s3 + $0x24] sm:$0xf]
        %v2594 = vld [vmem:[%s3 + $0x28] sm:$0xf]
        %v2595 = vld [vmem:[%s3 + $0x2c] sm:$0xf]
        %v2596 = vld [vmem:[%s3 + $0x30] sm:$0xf]
        %v2597 = vld [vmem:[%s3 + $0x34] sm:$0xf]
        %v2598 = vld [vmem:[%s3 + $0x38] sm:$0xf]
        %v2599 = vld [vmem:[%s3 + $0x3c] sm:$0xf]
        %v2600 = vld [vmem:[%s3 + $0x40] sm:$0xf]
        %v2601 = vld [vmem:[%s3 + $0x44] sm:$0xf]
        %v2602 = vld [vmem:[%s3 + $0x48] sm:$0xf]
        %v2603 = vld [vmem:[%s3 + $0x4c] sm:$0xf]
        %v2604 = vld [vmem:[%s3 + $0x50] sm:$0xf]
        %v2605 = vld [vmem:[%s3 + $0x54] sm:$0xf]
        %v2606 = vld [vmem:[%s3 + $0x58] sm:$0xf]
        %v2607 = vld [vmem:[%s3 + $0x5c] sm:$0xf]
        %v2608 = vld [vmem:[%s3 + $0x60] sm:$0xf]
        %v2609 = vld [vmem:[%s3 + $0x64] sm:$0xf]
        %v2610 = vld [vmem:[%s3 + $0x68] sm:$0xf]
        %v2611 = vld [vmem:[%s3 + $0x6c] sm:$0xf]
        %v2612 = vld [vmem:[%s3 + $0x70] sm:$0xf]
        %v2613 = vld [vmem:[%s3 + $0x74] sm:$0xf]
        %v2614 = vld [vmem:[%s3 + $0x78] sm:$0xf]
        %v2615 = vld [vmem:[%s3 + $0x7c] sm:$0xf]
        %v2616 = vld [vmem:[%s3 + $0x80] sm:$0xf]
        %v2617 = vld [vmem:[%s3 + $0x84] sm:$0xf]
        %v2618 = vld [vmem:[%s3 + $0x88] sm:$0xf]
        %v2619 = vld [vmem:[%s3 + $0x8c] sm:$0xf]
        %v2620 = vld [vmem:[%s3 + $0x90] sm:$0xf]
        %v2621 = vld [vmem:[%s3 + $0x94] sm:$0xf]
        %v2622 = vld [vmem:[%s3 + $0x98] sm:$0xf]
        %v2623 = vld [vmem:[%s3 + $0x9c] sm:$0xf]
        %v2624 = vld [vmem:[%s3 + $0xa0] sm:$0xf]
        %v2625 = vld [vmem:[%s3 + $0xa4] sm:$0xf]
        %v2626 = vld [vmem:[%s3 + $0xa8] sm:$0xf]
        %v2627 = vld [vmem:[%s3 + $0xac] sm:$0xf]
        %v2628 = vld [vmem:[%s3 + $0xb0] sm:$0xf]
        %v2629 = vld [vmem:[%s3 + $0xb4] sm:$0xf]
        %v2630 = vld [vmem:[%s3 + $0xb8] sm:$0xf]
        %v2631 = vld [vmem:[%s3 + $0xbc] sm:$0xf]
        %v2632 = vld [vmem:[%s3 + $0xc0] sm:$0xf]
        %v2633 = vld [vmem:[%s3 + $0xc4] sm:$0xf]
        %v2634 = vld [vmem:[%s3 + $0xc8] sm:$0xf]
        %v2635 = vld [vmem:[%s3 + $0xcc] sm:$0xf]
        %v2636 = vld [vmem:[%s3 + $0xd0] sm:$0xf]
        %v2637 = vld [vmem:[%s3 + $0xd4] sm:$0xf]
        %v2638 = vld [vmem:[%s3 + $0xd8] sm:$0xf]
        %v2639 = vld [vmem:[%s3 + $0xdc] sm:$0xf]
        %v2640 = vld [vmem:[%s3 + $0xe0] sm:$0xf]
        %v2641 = vld [vmem:[%s3 + $0xe4] sm:$0xf]
        %v2642 = vld [vmem:[%s3 + $0xe8] sm:$0xf]
        %v2643 = vld [vmem:[%s3 + $0xec] sm:$0xf]
        %v2644 = vld [vmem:[%s3 + $0xf0] sm:$0xf]
        %v2645 = vld [vmem:[%s3 + $0xf4] sm:$0xf]
        %v2646 = vld [vmem:[%s3 + $0xf8] sm:$0xf]
        %v2647 = vld [vmem:[%s3 + $0xfc] sm:$0xf]
        %v2648 = vld [vmem:[%s3 + $0x100] sm:$0xf]
        %v2649 = vld [vmem:[%s3 + $0x104] sm:$0xf]
        %v2650 = vld [vmem:[%s3 + $0x108] sm:$0xf]
        %v2651 = vld [vmem:[%s3 + $0x10c] sm:$0xf]
        %v2652 = vld [vmem:[%s3 + $0x110] sm:$0xf]
        %v2653 = vld [vmem:[%s3 + $0x114] sm:$0xf]
        %v2654 = vld [vmem:[%s3 + $0x118] sm:$0xf]
        %v2655 = vld [vmem:[%s3 + $0x11c] sm:$0xf]
        %v2656 = vld [vmem:[%s3 + $0x120] sm:$0xf]
        %v2657 = vld [vmem:[%s3 + $0x124] sm:$0xf]
        %v2658 = vld [vmem:[%s3 + $0x128] sm:$0xf]
        %v2659 = vld [vmem:[%s3 + $0x12c] sm:$0xf]
        %v2660 = vld [vmem:[%s3 + $0x130] sm:$0xf]
        %v2661 = vld [vmem:[%s3 + $0x134] sm:$0xf]
        %v2662 = vld [vmem:[%s3 + $0x138] sm:$0xf]
        %v2663 = vld [vmem:[%s3 + $0x13c] sm:$0xf]
        %v2664 = vld [vmem:[%s3 + $0x140] sm:$0xf]
        %v2665 = vld [vmem:[%s3 + $0x144] sm:$0xf]
        %v2666 = vld [vmem:[%s3 + $0x148] sm:$0xf]
        %v2667 = vld [vmem:[%s3 + $0x14c] sm:$0xf]
        %v2668 = vld [vmem:[%s3 + $0x150] sm:$0xf]
        %v2669 = vld [vmem:[%s3 + $0x154] sm:$0xf]
        %v2670 = vld [vmem:[%s3 + $0x158] sm:$0xf]
        %v2671 = vld [vmem:[%s3 + $0x15c] sm:$0xf]
        %v2672 = vld [vmem:[%s3 + $0x160] sm:$0xf]
        %v2673 = vld [vmem:[%s3 + $0x164] sm:$0xf]
        %v2674 = vld [vmem:[%s3 + $0x168] sm:$0xf]
        %v2675 = vld [vmem:[%s3 + $0x16c] sm:$0xf]
        %v2676 = vld [vmem:[%s3 + $0x170] sm:$0xf]
        %v2677 = vld [vmem:[%s3 + $0x174] sm:$0xf]
        %v2678 = vld [vmem:[%s3 + $0x178] sm:$0xf]
        %v2679 = vld [vmem:[%s3 + $0x17c] sm:$0xf]
        %v2680 = vld [vmem:[%s3 + $0x180] sm:$0xf]
        %v2681 = vld [vmem:[%s3 + $0x184] sm:$0xf]
        %v2682 = vld [vmem:[%s3 + $0x188] sm:$0xf]
        %v2683 = vld [vmem:[%s3 + $0x18c] sm:$0xf]
        %v2684 = vld [vmem:[%s3 + $0x190] sm:$0xf]
        %v2685 = vld [vmem:[%s3 + $0x194] sm:$0xf]
        %v2686 = vld [vmem:[%s3 + $0x198] sm:$0xf]
        %v2687 = vld [vmem:[%s3 + $0x19c] sm:$0xf]
        %v2688 = vld [vmem:[%s3 + $0x1a0] sm:$0xf]
        %v2689 = vld [vmem:[%s3 + $0x1a4] sm:$0xf]
        %v2690 = vld [vmem:[%s3 + $0x1a8] sm:$0xf]
        %v2691 = vld [vmem:[%s3 + $0x1ac] sm:$0xf]
        %v2692 = vld [vmem:[%s3 + $0x1b0] sm:$0xf]
        %v2693 = vld [vmem:[%s3 + $0x1b4] sm:$0xf]
        %v2694 = vld [vmem:[%s3 + $0x1b8] sm:$0xf]
        %v2695 = vld [vmem:[%s3 + $0x1bc] sm:$0xf]
        %v2696 = vld [vmem:[%s3 + $0x1c0] sm:$0xf]
        %v2697 = vld [vmem:[%s3 + $0x1c4] sm:$0xf]
        %v2698 = vld [vmem:[%s3 + $0x1c8] sm:$0xf]
        %v2699 = vld [vmem:[%s3 + $0x1cc] sm:$0xf]
        %v2700 = vld [vmem:[%s3 + $0x1d0] sm:$0xf]
        %v2701 = vld [vmem:[%s3 + $0x1d4] sm:$0xf]
        %v2702 = vld [vmem:[%s3 + $0x1d8] sm:$0xf]
        %v2703 = vld [vmem:[%s3 + $0x1dc] sm:$0xf]
        %v2704 = vld [vmem:[%s3 + $0x1e0] sm:$0xf]
        %v2705 = vld [vmem:[%s3 + $0x1e4] sm:$0xf]
        %v2706 = vld [vmem:[%s3 + $0x1e8] sm:$0xf]
        %v2707 = vld [vmem:[%s3 + $0x1ec] sm:$0xf]
        %v2708 = vld [vmem:[%s3 + $0x1f0] sm:$0xf]
        %v2709 = vld [vmem:[%s3 + $0x1f4] sm:$0xf]
        %v2710 = vld [vmem:[%s3 + $0x1f8] sm:$0xf]
        %v2711 = vld [vmem:[%s3 + $0x1fc] sm:$0xf]
        %v2712 = vld [vmem:[%s3 + $0x200] sm:$0xf]
        %v2713 = vld [vmem:[%s3 + $0x204] sm:$0xf]
        %v2714 = vld [vmem:[%s3 + $0x208] sm:$0xf]
        %v2715 = vld [vmem:[%s3 + $0x20c] sm:$0xf]
        %v2716 = vld [vmem:[%s3 + $0x210] sm:$0xf]
        %v2717 = vld [vmem:[%s3 + $0x214] sm:$0xf]
        %v2718 = vld [vmem:[%s3 + $0x218] sm:$0xf]
        %v2719 = vld [vmem:[%s3 + $0x21c] sm:$0xf]
        %v2720 = vld [vmem:[%s3 + $0x220] sm:$0xf]
        %v2721 = vld [vmem:[%s3 + $0x224] sm:$0xf]
        %v2722 = vld [vmem:[%s3 + $0x228] sm:$0xf]
        %v2723 = vld [vmem:[%s3 + $0x22c] sm:$0xf]
        %v2724 = vld [vmem:[%s3 + $0x230] sm:$0xf]
        %v2725 = vld [vmem:[%s3 + $0x234] sm:$0xf]
        %v2726 = vld [vmem:[%s3 + $0x238] sm:$0xf]
        %v2727 = vld [vmem:[%s3 + $0x23c] sm:$0xf]
        %v2728 = vld [vmem:[%s6] sm:$0x1]
        %v2730 = vperm.slane %v2728, 0
        %v2876 = vunpack.c.l.b16 %v2584
        %v2877 = vunpack.c.l.b16 %v2585
        %v2878 = vunpack.c.l.b16 %v2586
        %v2879 = vunpack.c.l.b16 %v2587
        %v2880 = vunpack.c.l.b16 %v2588
        %v2881 = vunpack.c.l.b16 %v2589
        %v2882 = vunpack.c.l.b16 %v2590
        %v2883 = vunpack.c.l.b16 %v2591
        %v2884 = vunpack.c.l.b16 %v2592
        %v2885 = vunpack.c.l.b16 %v2593
        %v2886 = vunpack.c.l.b16 %v2594
        %v2887 = vunpack.c.l.b16 %v2595
        %v2888 = vunpack.c.l.b16 %v2596
        %v2889 = vunpack.c.l.b16 %v2597
        %v2890 = vunpack.c.l.b16 %v2598
        %v2891 = vunpack.c.l.b16 %v2599
        %v2892 = vunpack.c.l.b16 %v2600
        %v2893 = vunpack.c.l.b16 %v2601
        %v2894 = vunpack.c.l.b16 %v2602
        %v2895 = vunpack.c.l.b16 %v2603
        %v2896 = vunpack.c.l.b16 %v2604
        %v2897 = vunpack.c.l.b16 %v2605
        %v2898 = vunpack.c.l.b16 %v2606
        %v2899 = vunpack.c.l.b16 %v2607
        %v2900 = vunpack.c.l.b16 %v2608
        %v2901 = vunpack.c.l.b16 %v2609
        %v2902 = vunpack.c.l.b16 %v2610
        %v2903 = vunpack.c.l.b16 %v2611
        %v2904 = vunpack.c.l.b16 %v2612
        %v2905 = vunpack.c.l.b16 %v2613
        %v2906 = vunpack.c.l.b16 %v2614
        %v2907 = vunpack.c.l.b16 %v2615
        %v2908 = vunpack.c.l.b16 %v2616
        %v2909 = vunpack.c.l.b16 %v2617
        %v2910 = vunpack.c.l.b16 %v2618
        %v2911 = vunpack.c.l.b16 %v2619
        %v2912 = vunpack.c.l.b16 %v2620
        %v2913 = vunpack.c.l.b16 %v2621
        %v2914 = vunpack.c.l.b16 %v2622
        %v2915 = vunpack.c.l.b16 %v2623
        %v2916 = vunpack.c.l.b16 %v2624
        %v2917 = vunpack.c.l.b16 %v2625
        %v2918 = vunpack.c.l.b16 %v2626
        %v2919 = vunpack.c.l.b16 %v2627
        %v2920 = vunpack.c.l.b16 %v2628
        %v2921 = vunpack.c.l.b16 %v2629
        %v2922 = vunpack.c.l.b16 %v2630
        %v2923 = vunpack.c.l.b16 %v2631
        %v2924 = vunpack.c.l.b16 %v2632
        %v2925 = vunpack.c.l.b16 %v2633
        %v2926 = vunpack.c.l.b16 %v2634
        %v2927 = vunpack.c.l.b16 %v2635
        %v2928 = vunpack.c.l.b16 %v2636
        %v2929 = vunpack.c.l.b16 %v2637
        %v2930 = vunpack.c.l.b16 %v2638
        %v2931 = vunpack.c.l.b16 %v2639
        %v2932 = vunpack.c.l.b16 %v2640
        %v2933 = vunpack.c.l.b16 %v2641
        %v2934 = vunpack.c.l.b16 %v2642
        %v2935 = vunpack.c.l.b16 %v2643
        %v2936 = vunpack.c.l.b16 %v2644
        %v2937 = vunpack.c.l.b16 %v2645
        %v2938 = vunpack.c.l.b16 %v2646
        %v2939 = vunpack.c.l.b16 %v2647
        %v2940 = vunpack.c.l.b16 %v2648
        %v2941 = vunpack.c.l.b16 %v2649
        %v2942 = vunpack.c.l.b16 %v2650
        %v2943 = vunpack.c.l.b16 %v2651
        %v2944 = vunpack.c.l.b16 %v2652
        %v2945 = vunpack.c.l.b16 %v2653
        %v2946 = vunpack.c.l.b16 %v2654
        %v2947 = vunpack.c.l.b16 %v2655
        %v2948 = vunpack.c.l.b16 %v2656
        %v2949 = vunpack.c.l.b16 %v2657
        %v2950 = vunpack.c.l.b16 %v2658
        %v2951 = vunpack.c.l.b16 %v2659
        %v2952 = vunpack.c.l.b16 %v2660
        %v2953 = vunpack.c.l.b16 %v2661
        %v2954 = vunpack.c.l.b16 %v2662
        %v2955 = vunpack.c.l.b16 %v2663
        %v2956 = vunpack.c.l.b16 %v2664
        %v2957 = vunpack.c.l.b16 %v2665
        %v2958 = vunpack.c.l.b16 %v2666
        %v2959 = vunpack.c.l.b16 %v2667
        %v2960 = vunpack.c.l.b16 %v2668
        %v2961 = vunpack.c.l.b16 %v2669
        %v2962 = vunpack.c.l.b16 %v2670
        %v2963 = vunpack.c.l.b16 %v2671
        %v2964 = vunpack.c.l.b16 %v2672
        %v2965 = vunpack.c.l.b16 %v2673
        %v2966 = vunpack.c.l.b16 %v2674
        %v2967 = vunpack.c.l.b16 %v2675
        %v2968 = vunpack.c.l.b16 %v2676
        %v2969 = vunpack.c.l.b16 %v2677
        %v2970 = vunpack.c.l.b16 %v2678
        %v2971 = vunpack.c.l.b16 %v2679
        %v2972 = vunpack.c.l.b16 %v2680
        %v2973 = vunpack.c.l.b16 %v2681
        %v2974 = vunpack.c.l.b16 %v2682
        %v2975 = vunpack.c.l.b16 %v2683
        %v2976 = vunpack.c.l.b16 %v2684
        %v2977 = vunpack.c.l.b16 %v2685
        %v2978 = vunpack.c.l.b16 %v2686
        %v2979 = vunpack.c.l.b16 %v2687
        %v2980 = vunpack.c.l.b16 %v2688
        %v2981 = vunpack.c.l.b16 %v2689
        %v2982 = vunpack.c.l.b16 %v2690
        %v2983 = vunpack.c.l.b16 %v2691
        %v2984 = vunpack.c.l.b16 %v2692
        %v2985 = vunpack.c.l.b16 %v2693
        %v2986 = vunpack.c.l.b16 %v2694
        %v2987 = vunpack.c.l.b16 %v2695
        %v2988 = vunpack.c.l.b16 %v2696
        %v2989 = vunpack.c.l.b16 %v2697
        %v2990 = vunpack.c.l.b16 %v2698
        %v2991 = vunpack.c.l.b16 %v2699
        %v2992 = vunpack.c.l.b16 %v2700
        %v2993 = vunpack.c.l.b16 %v2701
        %v2994 = vunpack.c.l.b16 %v2702
        %v2995 = vunpack.c.l.b16 %v2703
        %v2996 = vunpack.c.l.b16 %v2704
        %v2997 = vunpack.c.l.b16 %v2705
        %v2998 = vunpack.c.l.b16 %v2706
        %v2999 = vunpack.c.l.b16 %v2707
        %v3000 = vunpack.c.l.b16 %v2708
        %v3001 = vunpack.c.l.b16 %v2709
        %v3002 = vunpack.c.l.b16 %v2710
        %v3003 = vunpack.c.l.b16 %v2711
        %v3004 = vunpack.c.l.b16 %v2712
        %v3005 = vunpack.c.l.b16 %v2713
        %v3006 = vunpack.c.l.b16 %v2714
        %v3007 = vunpack.c.l.b16 %v2715
        %v3008 = vunpack.c.l.b16 %v2716
        %v3009 = vunpack.c.l.b16 %v2717
        %v3010 = vunpack.c.l.b16 %v2718
        %v3011 = vunpack.c.l.b16 %v2719
        %v3012 = vunpack.c.l.b16 %v2720
        %v3013 = vunpack.c.l.b16 %v2721
        %v3014 = vunpack.c.l.b16 %v2722
        %v3015 = vunpack.c.l.b16 %v2723
        %v3016 = vunpack.c.l.b16 %v2724
        %v3017 = vunpack.c.l.b16 %v2725
        %v3018 = vunpack.c.l.b16 %v2726
        %v3019 = vunpack.c.l.b16 %v2727
        %v3020 = vpack.c.b16 %v2877, %v2876
        %v3021 = vpack.c.b16 %v2879, %v2878
        %v3022 = vpack.c.b16 %v2881, %v2880
        %v3023 = vpack.c.b16 %v2883, %v2882
        %v3024 = vpack.c.b16 %v2885, %v2884
        %v3025 = vpack.c.b16 %v2887, %v2886
        %v3026 = vpack.c.b16 %v2889, %v2888
        %v3027 = vpack.c.b16 %v2891, %v2890
        %v3028 = vpack.c.b16 %v2893, %v2892
        %v3029 = vpack.c.b16 %v2895, %v2894
        %v3030 = vpack.c.b16 %v2897, %v2896
        %v3031 = vpack.c.b16 %v2899, %v2898
        %v3032 = vpack.c.b16 %v2901, %v2900
        %v3033 = vpack.c.b16 %v2903, %v2902
        %v3034 = vpack.c.b16 %v2905, %v2904
        %v3035 = vpack.c.b16 %v2907, %v2906
        %v3036 = vpack.c.b16 %v2909, %v2908
        %v3037 = vpack.c.b16 %v2911, %v2910
        %v3038 = vpack.c.b16 %v2913, %v2912
        %v3039 = vpack.c.b16 %v2915, %v2914
        %v3040 = vpack.c.b16 %v2917, %v2916
        %v3041 = vpack.c.b16 %v2919, %v2918
        %v3042 = vpack.c.b16 %v2921, %v2920
        %v3043 = vpack.c.b16 %v2923, %v2922
        %v3044 = vpack.c.b16 %v2925, %v2924
        %v3045 = vpack.c.b16 %v2927, %v2926
        %v3046 = vpack.c.b16 %v2929, %v2928
        %v3047 = vpack.c.b16 %v2931, %v2930
        %v3048 = vpack.c.b16 %v2933, %v2932
        %v3049 = vpack.c.b16 %v2935, %v2934
        %v3050 = vpack.c.b16 %v2937, %v2936
        %v3051 = vpack.c.b16 %v2939, %v2938
        %v3052 = vpack.c.b16 %v2941, %v2940
        %v3053 = vpack.c.b16 %v2943, %v2942
        %v3054 = vpack.c.b16 %v2945, %v2944
        %v3055 = vpack.c.b16 %v2947, %v2946
        %v3056 = vpack.c.b16 %v2949, %v2948
        %v3057 = vpack.c.b16 %v2951, %v2950
        %v3058 = vpack.c.b16 %v2953, %v2952
        %v3059 = vpack.c.b16 %v2955, %v2954
        %v3060 = vpack.c.b16 %v2957, %v2956
        %v3061 = vpack.c.b16 %v2959, %v2958
        %v3062 = vpack.c.b16 %v2961, %v2960
        %v3063 = vpack.c.b16 %v2963, %v2962
        %v3064 = vpack.c.b16 %v2965, %v2964
        %v3065 = vpack.c.b16 %v2967, %v2966
        %v3066 = vpack.c.b16 %v2969, %v2968
        %v3067 = vpack.c.b16 %v2971, %v2970
        %v3068 = vpack.c.b16 %v2973, %v2972
        %v3069 = vpack.c.b16 %v2975, %v2974
        %v3070 = vpack.c.b16 %v2977, %v2976
        %v3071 = vpack.c.b16 %v2979, %v2978
        %v3072 = vpack.c.b16 %v2981, %v2980
        %v3073 = vpack.c.b16 %v2983, %v2982
        %v3074 = vpack.c.b16 %v2985, %v2984
        %v3075 = vpack.c.b16 %v2987, %v2986
        %v3076 = vpack.c.b16 %v2989, %v2988
        %v3077 = vpack.c.b16 %v2991, %v2990
        %v3078 = vpack.c.b16 %v2993, %v2992
        %v3079 = vpack.c.b16 %v2995, %v2994
        %v3080 = vpack.c.b16 %v2997, %v2996
        %v3081 = vpack.c.b16 %v2999, %v2998
        %v3082 = vpack.c.b16 %v3001, %v3000
        %v3083 = vpack.c.b16 %v3003, %v3002
        %v3084 = vpack.c.b16 %v3005, %v3004
        %v3085 = vpack.c.b16 %v3007, %v3006
        %v3086 = vpack.c.b16 %v3009, %v3008
        %v3087 = vpack.c.b16 %v3011, %v3010
        %v3088 = vpack.c.b16 %v3013, %v3012
        %v3089 = vpack.c.b16 %v3015, %v3014
        %v3090 = vpack.c.b16 %v3017, %v3016
        %v3091 = vpack.c.b16 %v3019, %v3018
        %3164 = vmatpush.bf16.msra.mxu0 %v3027
        %3165 = vmatpush.bf16.msra.mxu0 %v3026
        %3166 = vmatpush.bf16.msra.mxu0 %v3025
        %3167 = vmatpush.bf16.msra.mxu0 %v3024
        %3168 = vmatpush.bf16.msra.mxu0 %v3023
        %3169 = vmatpush.bf16.msra.mxu0 %v3022
        %3170 = vmatpush.bf16.msra.mxu0 %v3021
        %3171 = vmatpush.bf16.msra.mxu0 %v3020
        %3172 = vmatmul.bf16.gmra.mxu0 %v970
        %v3173 = vpop.f32.mrf.mxu0
        %v3174 = vadd.f32 %v2730, %v3173
        %v3175 = vpop.f32.mrf.mxu0
        %v3176 = vadd.f32 %v2730, %v3175
        %3177 = vmatmul.bf16.gmra.mxu0 %v979
        %v3178 = vpop.f32.mrf.mxu0
        %v3179 = vadd.f32 %v2730, %v3178
        %v3180 = vpop.f32.mrf.mxu0
        %v3181 = vadd.f32 %v2730, %v3180
        %3182 = vmatmul.bf16.gmra.mxu0 %v988
        %v3183 = vpop.f32.mrf.mxu0
        %v3184 = vadd.f32 %v2730, %v3183
        %v3185 = vpop.f32.mrf.mxu0
        %v3186 = vadd.f32 %v2730, %v3185
        %3187 = vmatmul.bf16.gmra.mxu0 %v997
        %v3188 = vpop.f32.mrf.mxu0
        %v3189 = vadd.f32 %v2730, %v3188
        %v3190 = vpop.f32.mrf.mxu0
        %v3191 = vadd.f32 %v2730, %v3190
        %3192 = vdwg.mxu0
        %3193 = vmatpush.bf16.msra.mxu0 %v3035
        %3194 = vmatpush.bf16.msra.mxu0 %v3034
        %3195 = vmatpush.bf16.msra.mxu0 %v3033
        %3196 = vmatpush.bf16.msra.mxu0 %v3032
        %3197 = vmatpush.bf16.msra.mxu0 %v3031
        %3198 = vmatpush.bf16.msra.mxu0 %v3030
        %3199 = vmatpush.bf16.msra.mxu0 %v3029
        %3200 = vmatpush.bf16.msra.mxu0 %v3028
        %3201 = vmatmul.bf16.gmra.mxu0 %v971
        %v3202 = vpop.f32.mrf.mxu0
        %v3203 = vadd.f32 %v3174, %v3202
        %v3204 = vpop.f32.mrf.mxu0
        %v3205 = vadd.f32 %v3176, %v3204
        %3206 = vmatmul.bf16.gmra.mxu0 %v980
        %v3207 = vpop.f32.mrf.mxu0
        %v3208 = vadd.f32 %v3179, %v3207
        %v3209 = vpop.f32.mrf.mxu0
        %v3210 = vadd.f32 %v3181, %v3209
        %3211 = vmatmul.bf16.gmra.mxu0 %v989
        %v3212 = vpop.f32.mrf.mxu0
        %v3213 = vadd.f32 %v3184, %v3212
        %v3214 = vpop.f32.mrf.mxu0
        %v3215 = vadd.f32 %v3186, %v3214
        %3216 = vmatmul.bf16.gmra.mxu0 %v998
        %v3217 = vpop.f32.mrf.mxu0
        %v3218 = vadd.f32 %v3189, %v3217
        %v3219 = vpop.f32.mrf.mxu0
        %v3220 = vadd.f32 %v3191, %v3219
        %3221 = vdwg.mxu0
        %3222 = vmatpush.bf16.msra.mxu0 %v3043
        %3223 = vmatpush.bf16.msra.mxu0 %v3042
        %3224 = vmatpush.bf16.msra.mxu0 %v3041
        %3225 = vmatpush.bf16.msra.mxu0 %v3040
        %3226 = vmatpush.bf16.msra.mxu0 %v3039
        %3227 = vmatpush.bf16.msra.mxu0 %v3038
        %3228 = vmatpush.bf16.msra.mxu0 %v3037
        %3229 = vmatpush.bf16.msra.mxu0 %v3036
        %3230 = vmatmul.bf16.gmra.mxu0 %v972
        %v3231 = vpop.f32.mrf.mxu0
        %v3232 = vadd.f32 %v3203, %v3231
        %v3233 = vpop.f32.mrf.mxu0
        %v3234 = vadd.f32 %v3205, %v3233
        %3235 = vmatmul.bf16.gmra.mxu0 %v981
        %v3236 = vpop.f32.mrf.mxu0
        %v3237 = vadd.f32 %v3208, %v3236
        %v3238 = vpop.f32.mrf.mxu0
        %v3239 = vadd.f32 %v3210, %v3238
        %3240 = vmatmul.bf16.gmra.mxu0 %v990
        %v3241 = vpop.f32.mrf.mxu0
        %v3242 = vadd.f32 %v3213, %v3241
        %v3243 = vpop.f32.mrf.mxu0
        %v3244 = vadd.f32 %v3215, %v3243
        %3245 = vmatmul.bf16.gmra.mxu0 %v999
        %v3246 = vpop.f32.mrf.mxu0
        %v3247 = vadd.f32 %v3218, %v3246
        %v3248 = vpop.f32.mrf.mxu0
        %v3249 = vadd.f32 %v3220, %v3248
        %3250 = vdwg.mxu0
        %3251 = vmatpush.bf16.msra.mxu0 %v3051
        %3252 = vmatpush.bf16.msra.mxu0 %v3050
        %3253 = vmatpush.bf16.msra.mxu0 %v3049
        %3254 = vmatpush.bf16.msra.mxu0 %v3048
        %3255 = vmatpush.bf16.msra.mxu0 %v3047
        %3256 = vmatpush.bf16.msra.mxu0 %v3046
        %3257 = vmatpush.bf16.msra.mxu0 %v3045
        %3258 = vmatpush.bf16.msra.mxu0 %v3044
        %3259 = vmatmul.bf16.gmra.mxu0 %v973
        %v3260 = vpop.f32.mrf.mxu0
        %v3261 = vadd.f32 %v3232, %v3260
        %v3262 = vpop.f32.mrf.mxu0
        %v3263 = vadd.f32 %v3234, %v3262
        %3264 = vmatmul.bf16.gmra.mxu0 %v982
        %v3265 = vpop.f32.mrf.mxu0
        %v3266 = vadd.f32 %v3237, %v3265
        %v3267 = vpop.f32.mrf.mxu0
        %v3268 = vadd.f32 %v3239, %v3267
        %3269 = vmatmul.bf16.gmra.mxu0 %v991
        %v3270 = vpop.f32.mrf.mxu0
        %v3271 = vadd.f32 %v3242, %v3270
        %v3272 = vpop.f32.mrf.mxu0
        %v3273 = vadd.f32 %v3244, %v3272
        %3274 = vmatmul.bf16.gmra.mxu0 %v1000
        %v3275 = vpop.f32.mrf.mxu0
        %v3276 = vadd.f32 %v3247, %v3275
        %v3277 = vpop.f32.mrf.mxu0
        %v3278 = vadd.f32 %v3249, %v3277
        %3279 = vdwg.mxu0
        %3280 = vmatpush.bf16.msra.mxu0 %v3059
        %3281 = vmatpush.bf16.msra.mxu0 %v3058
        %3282 = vmatpush.bf16.msra.mxu0 %v3057
        %3283 = vmatpush.bf16.msra.mxu0 %v3056
        %3284 = vmatpush.bf16.msra.mxu0 %v3055
        %3285 = vmatpush.bf16.msra.mxu0 %v3054
        %3286 = vmatpush.bf16.msra.mxu0 %v3053
        %3287 = vmatpush.bf16.msra.mxu0 %v3052
        %3288 = vmatmul.bf16.gmra.mxu0 %v974
        %v3289 = vpop.f32.mrf.mxu0
        %v3290 = vadd.f32 %v3261, %v3289
        %v3291 = vpop.f32.mrf.mxu0
        %v3292 = vadd.f32 %v3263, %v3291
        %3293 = vmatmul.bf16.gmra.mxu0 %v983
        %v3294 = vpop.f32.mrf.mxu0
        %v3295 = vadd.f32 %v3266, %v3294
        %v3296 = vpop.f32.mrf.mxu0
        %v3297 = vadd.f32 %v3268, %v3296
        %3298 = vmatmul.bf16.gmra.mxu0 %v992
        %v3299 = vpop.f32.mrf.mxu0
        %v3300 = vadd.f32 %v3271, %v3299
        %v3301 = vpop.f32.mrf.mxu0
        %v3302 = vadd.f32 %v3273, %v3301
        %3303 = vmatmul.bf16.gmra.mxu0 %v1001
        %v3304 = vpop.f32.mrf.mxu0
        %v3305 = vadd.f32 %v3276, %v3304
        %v3306 = vpop.f32.mrf.mxu0
        %v3307 = vadd.f32 %v3278, %v3306
        %3308 = vdwg.mxu0
        %3309 = vmatpush.bf16.msra.mxu0 %v3067
        %3310 = vmatpush.bf16.msra.mxu0 %v3066
        %3311 = vmatpush.bf16.msra.mxu0 %v3065
        %3312 = vmatpush.bf16.msra.mxu0 %v3064
        %3313 = vmatpush.bf16.msra.mxu0 %v3063
        %3314 = vmatpush.bf16.msra.mxu0 %v3062
        %3315 = vmatpush.bf16.msra.mxu0 %v3061
        %3316 = vmatpush.bf16.msra.mxu0 %v3060
        %3317 = vmatmul.bf16.gmra.mxu0 %v975
        %v3318 = vpop.f32.mrf.mxu0
        %v3319 = vadd.f32 %v3290, %v3318
        %v3320 = vpop.f32.mrf.mxu0
        %v3321 = vadd.f32 %v3292, %v3320
        %3322 = vmatmul.bf16.gmra.mxu0 %v984
        %v3323 = vpop.f32.mrf.mxu0
        %v3324 = vadd.f32 %v3295, %v3323
        %v3325 = vpop.f32.mrf.mxu0
        %v3326 = vadd.f32 %v3297, %v3325
        %3327 = vmatmul.bf16.gmra.mxu0 %v993
        %v3328 = vpop.f32.mrf.mxu0
        %v3329 = vadd.f32 %v3300, %v3328
        %v3330 = vpop.f32.mrf.mxu0
        %v3331 = vadd.f32 %v3302, %v3330
        %3332 = vmatmul.bf16.gmra.mxu0 %v1002
        %v3333 = vpop.f32.mrf.mxu0
        %v3334 = vadd.f32 %v3305, %v3333
        %v3335 = vpop.f32.mrf.mxu0
        %v3336 = vadd.f32 %v3307, %v3335
        %3337 = vdwg.mxu0
        %3338 = vmatpush.bf16.msra.mxu0 %v3075
        %3339 = vmatpush.bf16.msra.mxu0 %v3074
        %3340 = vmatpush.bf16.msra.mxu0 %v3073
        %3341 = vmatpush.bf16.msra.mxu0 %v3072
        %3342 = vmatpush.bf16.msra.mxu0 %v3071
        %3343 = vmatpush.bf16.msra.mxu0 %v3070
        %3344 = vmatpush.bf16.msra.mxu0 %v3069
        %3345 = vmatpush.bf16.msra.mxu0 %v3068
        %3346 = vmatmul.bf16.gmra.mxu0 %v976
        %v3347 = vpop.f32.mrf.mxu0
        %v3348 = vadd.f32 %v3319, %v3347
        %v3349 = vpop.f32.mrf.mxu0
        %v3350 = vadd.f32 %v3321, %v3349
        %3351 = vmatmul.bf16.gmra.mxu0 %v985
        %v3352 = vpop.f32.mrf.mxu0
        %v3353 = vadd.f32 %v3324, %v3352
        %v3354 = vpop.f32.mrf.mxu0
        %v3355 = vadd.f32 %v3326, %v3354
        %3356 = vmatmul.bf16.gmra.mxu0 %v994
        %v3357 = vpop.f32.mrf.mxu0
        %v3358 = vadd.f32 %v3329, %v3357
        %v3359 = vpop.f32.mrf.mxu0
        %v3360 = vadd.f32 %v3331, %v3359
        %3361 = vmatmul.bf16.gmra.mxu0 %v1003
        %v3362 = vpop.f32.mrf.mxu0
        %v3363 = vadd.f32 %v3334, %v3362
        %v3364 = vpop.f32.mrf.mxu0
        %v3365 = vadd.f32 %v3336, %v3364
        %3366 = vdwg.mxu0
        %3367 = vmatpush.bf16.msra.mxu0 %v3083
        %3368 = vmatpush.bf16.msra.mxu0 %v3082
        %3369 = vmatpush.bf16.msra.mxu0 %v3081
        %3370 = vmatpush.bf16.msra.mxu0 %v3080
        %3371 = vmatpush.bf16.msra.mxu0 %v3079
        %3372 = vmatpush.bf16.msra.mxu0 %v3078
        %3373 = vmatpush.bf16.msra.mxu0 %v3077
        %3374 = vmatpush.bf16.msra.mxu0 %v3076
        %3375 = vmatmul.bf16.gmra.mxu0 %v977
        %v3376 = vpop.f32.mrf.mxu0
        %v3377 = vadd.f32 %v3348, %v3376
        %v3378 = vpop.f32.mrf.mxu0
        %v3379 = vadd.f32 %v3350, %v3378
        %3380 = vmatmul.bf16.gmra.mxu0 %v986
        %v3381 = vpop.f32.mrf.mxu0
        %v3382 = vadd.f32 %v3353, %v3381
        %v3383 = vpop.f32.mrf.mxu0
        %v3384 = vadd.f32 %v3355, %v3383
        %3385 = vmatmul.bf16.gmra.mxu0 %v995
        %v3386 = vpop.f32.mrf.mxu0
        %v3387 = vadd.f32 %v3358, %v3386
        %v3388 = vpop.f32.mrf.mxu0
        %v3389 = vadd.f32 %v3360, %v3388
        %3390 = vmatmul.bf16.gmra.mxu0 %v1004
        %v3391 = vpop.f32.mrf.mxu0
        %v3392 = vadd.f32 %v3363, %v3391
        %v3393 = vpop.f32.mrf.mxu0
        %v3394 = vadd.f32 %v3365, %v3393
        %3395 = vdwg.mxu0
        %3396 = vmatpush.bf16.msra.mxu0 %v3091
        %3397 = vmatpush.bf16.msra.mxu0 %v3090
        %3398 = vmatpush.bf16.msra.mxu0 %v3089
        %3399 = vmatpush.bf16.msra.mxu0 %v3088
        %3400 = vmatpush.bf16.msra.mxu0 %v3087
        %3401 = vmatpush.bf16.msra.mxu0 %v3086
        %3402 = vmatpush.bf16.msra.mxu0 %v3085
        %3403 = vmatpush.bf16.msra.mxu0 %v3084
        %3404 = vmatmul.bf16.gmra.mxu0 %v978
        %v3405 = vpop.f32.mrf.mxu0
        %v3406 = vadd.f32 %v3377, %v3405
        %v3407 = vpop.f32.mrf.mxu0
        %v3408 = vadd.f32 %v3379, %v3407
        %3409 = vmatmul.bf16.gmra.mxu0 %v987
        %v3410 = vpop.f32.mrf.mxu0
        %v3411 = vadd.f32 %v3382, %v3410
        %v3412 = vpop.f32.mrf.mxu0
        %v3413 = vadd.f32 %v3384, %v3412
        %3414 = vmatmul.bf16.gmra.mxu0 %v996
        %v3415 = vpop.f32.mrf.mxu0
        %v3416 = vadd.f32 %v3387, %v3415
        %v3417 = vpop.f32.mrf.mxu0
        %v3418 = vadd.f32 %v3389, %v3417
        %3419 = vmatmul.bf16.gmra.mxu0 %v1005
        %v3420 = vpop.f32.mrf.mxu0
        %v3421 = vadd.f32 %v3392, %v3420
        %v3422 = vpop.f32.mrf.mxu0
        %v3423 = vadd.f32 %v3394, %v3422
        %3424 = vdwg.mxu0
        %v3425 = vpack.c.bf16 %v1735, %v1735
        %v3426 = vpack.c.bf16 %v1736, %v1736
        %v3427 = vpack.c.bf16 %v1737, %v1737
        %v3428 = vpack.c.bf16 %v1738, %v1738
        %v3429 = vpack.c.bf16 %v1739, %v1739
        %v3430 = vpack.c.bf16 %v1740, %v1740
        %v3431 = vpack.c.bf16 %v1741, %v1741
        %v3432 = vpack.c.bf16 %v1742, %v1742
        %v3433 = vpack.c.bf16 %v2565, %v2565
        %v3434 = vpack.c.bf16 %v2567, %v2567
        %v3435 = vpack.c.bf16 %v2570, %v2570
        %v3436 = vpack.c.bf16 %v2572, %v2572
        %v3437 = vpack.c.bf16 %v2575, %v2575
        %v3438 = vpack.c.bf16 %v2577, %v2577
        %v3439 = vpack.c.bf16 %v2580, %v2580
        %v3440 = vpack.c.bf16 %v2582, %v2582
        %v3441 = vpack.c.bf16 %v3406, %v3406
        %v3442 = vpack.c.bf16 %v3408, %v3408
        %v3443 = vpack.c.bf16 %v3411, %v3411
        %v3444 = vpack.c.bf16 %v3413, %v3413
        %v3445 = vpack.c.bf16 %v3416, %v3416
        %v3446 = vpack.c.bf16 %v3418, %v3418
        %v3447 = vpack.c.bf16 %v3421, %v3421
        %v3448 = vpack.c.bf16 %v3423, %v3423
        %v3457 = vunpack.c.l.b16 %v3425
        %v3458 = vunpack.c.l.b16 %v3426
        %v3459 = vunpack.c.l.b16 %v3427
        %v3460 = vunpack.c.l.b16 %v3428
        %v3461 = vunpack.c.l.b16 %v3429
        %v3462 = vunpack.c.l.b16 %v3430
        %v3463 = vunpack.c.l.b16 %v3431
        %v3464 = vunpack.c.l.b16 %v3432
        %v3465 = vpack.c.b16 %v3458, %v3457
        %v3466 = vpack.c.b16 %v3460, %v3459
        %v3467 = vpack.c.b16 %v3462, %v3461
        %v3468 = vpack.c.b16 %v3464, %v3463
        %v3481 = vunpack.c.l.b16 %v3433
        %v3482 = vunpack.c.l.b16 %v3434
        %v3483 = vunpack.c.l.b16 %v3435
        %v3484 = vunpack.c.l.b16 %v3436
        %v3485 = vunpack.c.l.b16 %v3437
        %v3486 = vunpack.c.l.b16 %v3438
        %v3487 = vunpack.c.l.b16 %v3439
        %v3488 = vunpack.c.l.b16 %v3440
        %v3489 = vpack.c.b16 %v3482, %v3481
        %v3490 = vpack.c.b16 %v3484, %v3483
        %v3491 = vpack.c.b16 %v3486, %v3485
        %v3492 = vpack.c.b16 %v3488, %v3487
        %3497 = vmatpush.bf16.xpose.msra.mxu0 0
        %3498 = vmatpush.bf16.xpose.msra.mxu0 0
        %3499 = vmatpush.bf16.xpose.msra.mxu0 0
        %3500 = vmatpush.bf16.xpose.msra.mxu0 0
        %3501 = vmatpush.bf16.xpose.msra.mxu0 %v3492
        %3502 = vmatpush.bf16.xpose.msra.mxu0 %v3491
        %3503 = vmatpush.bf16.xpose.msra.mxu0 %v3490
        %3504 = vmatpush.bf16.xpose.msra.mxu0 %v3489
        %3505 = vmatmul.bf16.gmra.mxu0 %v3465
        %v3506 = vpop.f32.mrf.mxu0
        %v3507 = vadd.f32 0.0, %v3506
        %v3508 = vpop.f32.mrf.mxu0
        %v3509 = vadd.f32 0.0, %v3508
        %3510 = vmatmul.bf16.gmra.mxu0 %v3466
        %v3511 = vpop.f32.mrf.mxu0
        %v3512 = vadd.f32 0.0, %v3511
        %v3513 = vpop.f32.mrf.mxu0
        %v3514 = vadd.f32 0.0, %v3513
        %3515 = vmatmul.bf16.gmra.mxu0 %v3467
        %v3516 = vpop.f32.mrf.mxu0
        %v3517 = vadd.f32 0.0, %v3516
        %v3518 = vpop.f32.mrf.mxu0
        %v3519 = vadd.f32 0.0, %v3518
        %3520 = vmatmul.bf16.gmra.mxu0 %v3468
        %v3521 = vpop.f32.mrf.mxu0
        %v3522 = vadd.f32 0.0, %v3521
        %v3523 = vpop.f32.mrf.mxu0
        %v3524 = vadd.f32 0.0, %v3523
        %3525 = vdwg.mxu0
        %vm3526 = vcmask 523264
        %v3527 = vsel %vm3526, %v3507, -inf
        %3528 = vmax.xlane.f32.xlu0 %v3527
        %v3529 = vpop.xlane.xlu0 %3528
        %v3530 = vsel %vm3526, %v3509, -inf
        %3531 = vmax.xlane.f32.xlu0 %v3530
        %v3532 = vpop.xlane.xlu0 %3531
        %v3533 = vsel %vm3526, %v3512, -inf
        %3534 = vmax.xlane.f32.xlu0 %v3533
        %v3535 = vpop.xlane.xlu0 %3534
        %v3536 = vsel %vm3526, %v3514, -inf
        %3537 = vmax.xlane.f32.xlu0 %v3536
        %v3538 = vpop.xlane.xlu0 %3537
        %v3539 = vsel %vm3526, %v3517, -inf
        %3540 = vmax.xlane.f32.xlu0 %v3539
        %v3541 = vpop.xlane.xlu0 %3540
        %v3542 = vsel %vm3526, %v3519, -inf
        %3543 = vmax.xlane.f32.xlu0 %v3542
        %v3544 = vpop.xlane.xlu0 %3543
        %v3545 = vsel %vm3526, %v3522, -inf
        %3546 = vmax.xlane.f32.xlu0 %v3545
        %v3547 = vpop.xlane.xlu0 %3546
        %v3548 = vsel %vm3526, %v3524, -inf
        %3549 = vmax.xlane.f32.xlu0 %v3548
        %v3550 = vpop.xlane.xlu0 %3549
        %v3551 = vsub.f32 %v3507, %v3529
        %v3552 = vsub.f32 %v3509, %v3532
        %v3553 = vsub.f32 %v3512, %v3535
        %v3554 = vsub.f32 %v3514, %v3538
        %v3555 = vsub.f32 %v3517, %v3541
        %v3556 = vsub.f32 %v3519, %v3544
        %v3557 = vsub.f32 %v3522, %v3547
        %v3558 = vsub.f32 %v3524, %v3550
        %v3559 = vmul.f32 %v3551, 1.442695
        %v3560 = vpow.pop %v3559
        %v3561 = vmul.f32 %v3552, 1.442695
        %v3562 = vpow.pop %v3561
        %v3563 = vmul.f32 %v3553, 1.442695
        %v3564 = vpow.pop %v3563
        %v3565 = vmul.f32 %v3554, 1.442695
        %v3566 = vpow.pop %v3565
        %v3567 = vmul.f32 %v3555, 1.442695
        %v3568 = vpow.pop %v3567
        %v3569 = vmul.f32 %v3556, 1.442695
        %v3570 = vpow.pop %v3569
        %v3571 = vmul.f32 %v3557, 1.442695
        %v3572 = vpow.pop %v3571
        %v3573 = vmul.f32 %v3558, 1.442695
        %v3574 = vpow.pop %v3573
        %v3575 = vsel %vm3526, %v3560, 0.0
        %3576 = vadd.xlane.f32.xlu0 %v3575
        %v3577 = vpop.xlane.xlu0 %3576
        %v3578 = vsel %vm3526, %v3562, 0.0
        %3579 = vadd.xlane.f32.xlu0 %v3578
        %v3580 = vpop.xlane.xlu0 %3579
        %v3581 = vsel %vm3526, %v3564, 0.0
        %3582 = vadd.xlane.f32.xlu0 %v3581
        %v3583 = vpop.xlane.xlu0 %3582
        %v3584 = vsel %vm3526, %v3566, 0.0
        %3585 = vadd.xlane.f32.xlu0 %v3584
        %v3586 = vpop.xlane.xlu0 %3585
        %v3587 = vsel %vm3526, %v3568, 0.0
        %3588 = vadd.xlane.f32.xlu0 %v3587
        %v3589 = vpop.xlane.xlu0 %3588
        %v3590 = vsel %vm3526, %v3570, 0.0
        %3591 = vadd.xlane.f32.xlu0 %v3590
        %v3592 = vpop.xlane.xlu0 %3591
        %v3593 = vsel %vm3526, %v3572, 0.0
        %3594 = vadd.xlane.f32.xlu0 %v3593
        %v3595 = vpop.xlane.xlu0 %3594
        %v3596 = vsel %vm3526, %v3574, 0.0
        %3597 = vadd.xlane.f32.xlu0 %v3596
        %v3598 = vpop.xlane.xlu0 %3597
        %v3599 = vpack.c.bf16 %v3560, %v3560
        %v3600 = vpack.c.bf16 %v3562, %v3562
        %v3601 = vpack.c.bf16 %v3564, %v3564
        %v3602 = vpack.c.bf16 %v3566, %v3566
        %v3603 = vpack.c.bf16 %v3568, %v3568
        %v3604 = vpack.c.bf16 %v3570, %v3570
        %v3605 = vpack.c.bf16 %v3572, %v3572
        %v3606 = vpack.c.bf16 %v3574, %v3574
        %v3615 = vunpack.c.l.b16 %v3599
        %v3616 = vunpack.c.l.b16 %v3600
        %v3617 = vunpack.c.l.b16 %v3601
        %v3618 = vunpack.c.l.b16 %v3602
        %v3619 = vunpack.c.l.b16 %v3603
        %v3620 = vunpack.c.l.b16 %v3604
        %v3621 = vunpack.c.l.b16 %v3605
        %v3622 = vunpack.c.l.b16 %v3606
        %v3623 = vpack.c.b16 %v3616, %v3615
        %v3624 = vpack.c.b16 %v3618, %v3617
        %v3625 = vpack.c.b16 %v3620, %v3619
        %v3626 = vpack.c.b16 %v3622, %v3621
        %v3635 = vunpack.c.l.b16 %v3441
        %v3636 = vunpack.c.l.b16 %v3442
        %v3637 = vunpack.c.l.b16 %v3443
        %v3638 = vunpack.c.l.b16 %v3444
        %v3639 = vunpack.c.l.b16 %v3445
        %v3640 = vunpack.c.l.b16 %v3446
        %v3641 = vunpack.c.l.b16 %v3447
        %v3642 = vunpack.c.l.b16 %v3448
        %v3643 = vpack.c.b16 %v3636, %v3635
        %v3644 = vpack.c.b16 %v3638, %v3637
        %v3645 = vpack.c.b16 %v3640, %v3639
        %v3646 = vpack.c.b16 %v3642, %v3641
        %v3652 = vsel %vm3526, %v3623, 0
        %v3655 = vsel %vm3526, %v3624, 0
        %v3658 = vsel %vm3526, %v3625, 0
        %v3661 = vsel %vm3526, %v3626, 0
        %3663 = vmatpush.bf16.msra.mxu0 0
        %3664 = vmatpush.bf16.msra.mxu0 0
        %3665 = vmatpush.bf16.msra.mxu0 0
        %3666 = vmatpush.bf16.msra.mxu0 0
        %3667 = vmatpush.bf16.msra.mxu0 %v3646
        %3668 = vmatpush.bf16.msra.mxu0 %v3645
        %3669 = vmatpush.bf16.msra.mxu0 %v3644
        %3670 = vmatpush.bf16.msra.mxu0 %v3643
        %3671 = vmatmul.bf16.gmra.mxu0 %v3652
        %v3672 = vpop.f32.mrf.mxu0
        %v3673 = vadd.f32 0.0, %v3672
        %v3674 = vpop.f32.mrf.mxu0
        %v3675 = vadd.f32 0.0, %v3674
        %3676 = vmatmul.bf16.gmra.mxu0 %v3655
        %v3677 = vpop.f32.mrf.mxu0
        %v3678 = vadd.f32 0.0, %v3677
        %v3679 = vpop.f32.mrf.mxu0
        %v3680 = vadd.f32 0.0, %v3679
        %3681 = vmatmul.bf16.gmra.mxu0 %v3658
        %v3682 = vpop.f32.mrf.mxu0
        %v3683 = vadd.f32 0.0, %v3682
        %v3684 = vpop.f32.mrf.mxu0
        %v3685 = vadd.f32 0.0, %v3684
        %3686 = vmatmul.bf16.gmra.mxu0 %v3661
        %v3687 = vpop.f32.mrf.mxu0
        %v3688 = vadd.f32 0.0, %v3687
        %v3689 = vpop.f32.mrf.mxu0
        %v3690 = vadd.f32 0.0, %v3689
        %3691 = vdwg.mxu0
        %v3692 = vrcp.pop %v3577
        %v3693 = vmul.f32 %v3577, %v3692
        %v3694 = vsub.f32 1.0, %v3693
        %v3695 = vmul.f32 %v3692, %v3694
        %v3696 = vadd.f32 %v3692, %v3695
        %vm3697 = vweird.f32 %v3577
        %vm3698 = vweird.f32 %v3692
        %vm3699 = vmor %vm3697, %vm3698
        %v3700 = vsel %vm3699, %v3692, %v3696
        %v3701 = vand.u32 2147483647, %v3577
        %vm3702 = vcmp.eq.f32.partialorder %v3701, 8.507059e+37
        %v3703 = vand.u32 %v3577, 2147483648
        %v3704 = vor.u32 1.1754944e-38, %v3703
        %v3705 = vsel %vm3702, %v3704, %v3700
        %v3706 = vrcp.pop %v3580
        %v3707 = vmul.f32 %v3580, %v3706
        %v3708 = vsub.f32 1.0, %v3707
        %v3709 = vmul.f32 %v3706, %v3708
        %v3710 = vadd.f32 %v3706, %v3709
        %vm3711 = vweird.f32 %v3580
        %vm3712 = vweird.f32 %v3706
        %vm3713 = vmor %vm3711, %vm3712
        %v3714 = vsel %vm3713, %v3706, %v3710
        %v3715 = vand.u32 2147483647, %v3580
        %vm3716 = vcmp.eq.f32.partialorder %v3715, 8.507059e+37
        %v3717 = vand.u32 %v3580, 2147483648
        %v3718 = vor.u32 1.1754944e-38, %v3717
        %v3719 = vsel %vm3716, %v3718, %v3714
        %v3720 = vrcp.pop %v3583
        %v3721 = vmul.f32 %v3583, %v3720
        %v3722 = vsub.f32 1.0, %v3721
        %v3723 = vmul.f32 %v3720, %v3722
        %v3724 = vadd.f32 %v3720, %v3723
        %vm3725 = vweird.f32 %v3583
        %vm3726 = vweird.f32 %v3720
        %vm3727 = vmor %vm3725, %vm3726
        %v3728 = vsel %vm3727, %v3720, %v3724
        %v3729 = vand.u32 2147483647, %v3583
        %vm3730 = vcmp.eq.f32.partialorder %v3729, 8.507059e+37
        %v3731 = vand.u32 %v3583, 2147483648
        %v3732 = vor.u32 1.1754944e-38, %v3731
        %v3733 = vsel %vm3730, %v3732, %v3728
        %v3734 = vrcp.pop %v3586
        %v3735 = vmul.f32 %v3586, %v3734
        %v3736 = vsub.f32 1.0, %v3735
        %v3737 = vmul.f32 %v3734, %v3736
        %v3738 = vadd.f32 %v3734, %v3737
        %vm3739 = vweird.f32 %v3586
        %vm3740 = vweird.f32 %v3734
        %vm3741 = vmor %vm3739, %vm3740
        %v3742 = vsel %vm3741, %v3734, %v3738
        %v3743 = vand.u32 2147483647, %v3586
        %vm3744 = vcmp.eq.f32.partialorder %v3743, 8.507059e+37
        %v3745 = vand.u32 %v3586, 2147483648
        %v3746 = vor.u32 1.1754944e-38, %v3745
        %v3747 = vsel %vm3744, %v3746, %v3742
        %v3748 = vrcp.pop %v3589
        %v3749 = vmul.f32 %v3589, %v3748
        %v3750 = vsub.f32 1.0, %v3749
        %v3751 = vmul.f32 %v3748, %v3750
        %v3752 = vadd.f32 %v3748, %v3751
        %vm3753 = vweird.f32 %v3589
        %vm3754 = vweird.f32 %v3748
        %vm3755 = vmor %vm3753, %vm3754
        %v3756 = vsel %vm3755, %v3748, %v3752
        %v3757 = vand.u32 2147483647, %v3589
        %vm3758 = vcmp.eq.f32.partialorder %v3757, 8.507059e+37
        %v3759 = vand.u32 %v3589, 2147483648
        %v3760 = vor.u32 1.1754944e-38, %v3759
        %v3761 = vsel %vm3758, %v3760, %v3756
        %v3762 = vrcp.pop %v3592
        %v3763 = vmul.f32 %v3592, %v3762
        %v3764 = vsub.f32 1.0, %v3763
        %v3765 = vmul.f32 %v3762, %v3764
        %v3766 = vadd.f32 %v3762, %v3765
        %vm3767 = vweird.f32 %v3592
        %vm3768 = vweird.f32 %v3762
        %vm3769 = vmor %vm3767, %vm3768
        %v3770 = vsel %vm3769, %v3762, %v3766
        %v3771 = vand.u32 2147483647, %v3592
        %vm3772 = vcmp.eq.f32.partialorder %v3771, 8.507059e+37
        %v3773 = vand.u32 %v3592, 2147483648
        %v3774 = vor.u32 1.1754944e-38, %v3773
        %v3775 = vsel %vm3772, %v3774, %v3770
        %v3776 = vrcp.pop %v3595
        %v3777 = vmul.f32 %v3595, %v3776
        %v3778 = vsub.f32 1.0, %v3777
        %v3779 = vmul.f32 %v3776, %v3778
        %v3780 = vadd.f32 %v3776, %v3779
        %vm3781 = vweird.f32 %v3595
        %vm3782 = vweird.f32 %v3776
        %vm3783 = vmor %vm3781, %vm3782
        %v3784 = vsel %vm3783, %v3776, %v3780
        %v3785 = vand.u32 2147483647, %v3595
        %vm3786 = vcmp.eq.f32.partialorder %v3785, 8.507059e+37
        %v3787 = vand.u32 %v3595, 2147483648
        %v3788 = vor.u32 1.1754944e-38, %v3787
        %v3789 = vsel %vm3786, %v3788, %v3784
        %v3790 = vrcp.pop %v3598
        %v3791 = vmul.f32 %v3598, %v3790
        %v3792 = vsub.f32 1.0, %v3791
        %v3793 = vmul.f32 %v3790, %v3792
        %v3794 = vadd.f32 %v3790, %v3793
        %vm3795 = vweird.f32 %v3598
        %vm3796 = vweird.f32 %v3790
        %vm3797 = vmor %vm3795, %vm3796
        %v3798 = vsel %vm3797, %v3790, %v3794
        %v3799 = vand.u32 2147483647, %v3598
        %vm3800 = vcmp.eq.f32.partialorder %v3799, 8.507059e+37
        %v3801 = vand.u32 %v3598, 2147483648
        %v3802 = vor.u32 1.1754944e-38, %v3801
        %v3803 = vsel %vm3800, %v3802, %v3798
        %v3804 = vmul.f32 %v3673, %v3705
        %v3805 = vmul.f32 %v3675, %v3719
        %v3806 = vmul.f32 %v3678, %v3733
        %v3807 = vmul.f32 %v3680, %v3747
        %v3808 = vmul.f32 %v3683, %v3761
        %v3809 = vmul.f32 %v3685, %v3775
        %v3810 = vmul.f32 %v3688, %v3789
        %v3811 = vmul.f32 %v3690, %v3803
        %v3812 = vpack.c.bf16 %v3805, %v3804
        %v3813 = vpack.c.bf16 %v3807, %v3806
        %v3814 = vpack.c.bf16 %v3809, %v3808
        %v3815 = vpack.c.bf16 %v3811, %v3810
        %v3816 = vld [vmem:[%s7] sm:$0xf]
        %v3817 = vld [vmem:[%s7 + $0x4] sm:$0xf]
        %v3818 = vld [vmem:[%s7 + $0x8] sm:$0xf]
        %v3819 = vld [vmem:[%s7 + $0xc] sm:$0xf]
        %v3820 = vld [vmem:[%s7 + $0x10] sm:$0xf]
        %v3821 = vld [vmem:[%s7 + $0x14] sm:$0xf]
        %v3822 = vld [vmem:[%s7 + $0x18] sm:$0xf]
        %v3823 = vld [vmem:[%s7 + $0x1c] sm:$0xf]
        %v3824 = vld [vmem:[%s7 + $0x20] sm:$0xf]
        %v3825 = vld [vmem:[%s7 + $0x24] sm:$0xf]
        %v3826 = vld [vmem:[%s7 + $0x28] sm:$0xf]
        %v3827 = vld [vmem:[%s7 + $0x2c] sm:$0xf]
        %v3828 = vld [vmem:[%s7 + $0x30] sm:$0xf]
        %v3829 = vld [vmem:[%s7 + $0x34] sm:$0xf]
        %v3830 = vld [vmem:[%s7 + $0x38] sm:$0xf]
        %v3831 = vld [vmem:[%s7 + $0x3c] sm:$0xf]
        %v3832 = vld [vmem:[%s8] sm:$0x1]
        %v3834 = vperm.slane %v3832, 0
        %v3852 = vunpack.c.l.b16 %v3816
        %v3853 = vunpack.c.l.b16 %v3817
        %v3854 = vunpack.c.l.b16 %v3818
        %v3855 = vunpack.c.l.b16 %v3819
        %v3856 = vunpack.c.l.b16 %v3820
        %v3857 = vunpack.c.l.b16 %v3821
        %v3858 = vunpack.c.l.b16 %v3822
        %v3859 = vunpack.c.l.b16 %v3823
        %v3860 = vunpack.c.l.b16 %v3824
        %v3861 = vunpack.c.l.b16 %v3825
        %v3862 = vunpack.c.l.b16 %v3826
        %v3863 = vunpack.c.l.b16 %v3827
        %v3864 = vunpack.c.l.b16 %v3828
        %v3865 = vunpack.c.l.b16 %v3829
        %v3866 = vunpack.c.l.b16 %v3830
        %v3867 = vunpack.c.l.b16 %v3831
        %v3868 = vpack.c.b16 %v3853, %v3852
        %v3869 = vpack.c.b16 %v3855, %v3854
        %v3870 = vpack.c.b16 %v3857, %v3856
        %v3871 = vpack.c.b16 %v3859, %v3858
        %v3872 = vpack.c.b16 %v3861, %v3860
        %v3873 = vpack.c.b16 %v3863, %v3862
        %v3874 = vpack.c.b16 %v3865, %v3864
        %v3875 = vpack.c.b16 %v3867, %v3866
        %3884 = vmatpush.bf16.msra.mxu0 %v3875
        %3885 = vmatpush.bf16.msra.mxu0 %v3874
        %3886 = vmatpush.bf16.msra.mxu0 %v3873
        %3887 = vmatpush.bf16.msra.mxu0 %v3872
        %3888 = vmatpush.bf16.msra.mxu0 %v3871
        %3889 = vmatpush.bf16.msra.mxu0 %v3870
        %3890 = vmatpush.bf16.msra.mxu0 %v3869
        %3891 = vmatpush.bf16.msra.mxu0 %v3868
        %3892 = vmatmul.bf16.gmra.mxu0 %v3812
        %v3893 = vpop.f32.mrf.mxu0
        %v3894 = vadd.f32 %v3834, %v3893
        %v3895 = vpop.f32.mrf.mxu0
        %v3896 = vadd.f32 %v3834, %v3895
        %3897 = vmatmul.bf16.gmra.mxu0 %v3813
        %v3898 = vpop.f32.mrf.mxu0
        %v3899 = vadd.f32 %v3834, %v3898
        %v3900 = vpop.f32.mrf.mxu0
        %v3901 = vadd.f32 %v3834, %v3900
        %3902 = vmatmul.bf16.gmra.mxu0 %v3814
        %v3903 = vpop.f32.mrf.mxu0
        %v3904 = vadd.f32 %v3834, %v3903
        %v3905 = vpop.f32.mrf.mxu0
        %v3906 = vadd.f32 %v3834, %v3905
        %3907 = vmatmul.bf16.gmra.mxu0 %v3815
        %v3908 = vpop.f32.mrf.mxu0
        %v3909 = vadd.f32 %v3834, %v3908
        %v3910 = vpop.f32.mrf.mxu0
        %v3911 = vadd.f32 %v3834, %v3910
        %3912 = vdwg.mxu0
        %vm3929 = vcmask 1046528
        %v3930 = vrot.slane %v334, 1
        %v3931 = vrot.slane %v335, 1
        %v3932 = vsel %vm3929, %v3930, %v3931
        %v3933 = vrot.slane %v336, 1
        %v3934 = vrot.slane %v337, 1
        %v3935 = vsel %vm3929, %v3933, %v3934
        %v3936 = vrot.slane %v338, 1
        %v3937 = vrot.slane %v339, 1
        %v3938 = vsel %vm3929, %v3936, %v3937
        %v3939 = vrot.slane %v340, 1
        %v3940 = vrot.slane %v341, 1
        %v3941 = vsel %vm3929, %v3939, %v3940
        %v3942 = vrot.slane %v342, 1
        %v3943 = vrot.slane %v343, 1
        %v3944 = vsel %vm3929, %v3942, %v3943
        %v3945 = vrot.slane %v344, 1
        %v3946 = vrot.slane %v345, 1
        %v3947 = vsel %vm3929, %v3945, %v3946
        %v3948 = vrot.slane %v346, 1
        %v3949 = vrot.slane %v347, 1
        %v3950 = vsel %vm3929, %v3948, %v3949
        %v3951 = vrot.slane %v348, 1
        %v3952 = vrot.slane %v349, 1
        %v3953 = vsel %vm3929, %v3951, %v3952
        %v3962 = vadd.f32 %v3932, %v3894
        %v3963 = vadd.f32 %v3935, %v3896
        %v3964 = vadd.f32 %v3938, %v3899
        %v3965 = vadd.f32 %v3941, %v3901
        %v3966 = vadd.f32 %v3944, %v3904
        %v3967 = vadd.f32 %v3947, %v3906
        %v3968 = vadd.f32 %v3950, %v3909
        %v3969 = vadd.f32 %v3953, %v3911
        %3970 = vst [vmem:[%s325] sm:$0xff] %v3962
        %3971 = vst [vmem:[%s325 + $0x8] sm:$0xff] %v3963
        %3972 = vst [vmem:[%s325 + $0x10] sm:$0xff] %v3964
        %3973 = vst [vmem:[%s325 + $0x18] sm:$0xff] %v3965
        %3974 = vst [vmem:[%s325 + $0x20] sm:$0xff] %v3966
        %3975 = vst [vmem:[%s325 + $0x28] sm:$0xff] %v3967
        %3976 = vst [vmem:[%s325 + $0x30] sm:$0xff] %v3968
        %3977 = vst [vmem:[%s325 + $0x38] sm:$0xff] %v3969
        %s3978 = sand.u32 %s225, 1
        %s3979 = scalar_lea.sflag [#allocation4], %s3978
        %s3980 = sand.u32 %s225, 1
        %s3981 = smul.addr %s3980, 64
        %s3982 = scalar_lea.vmem [#allocation3], %s3981
        // Predicated region
        $region57: #{attn_block_forward.1} parent=55 // pred_check
          %p3983 = pneg %p235
        $region58: #{attn_block_forward.1} parent=55 // pred_check_branch
          %3985 = sbr.rel (%p3983) target = $region60
        $region59: #{attn_block_forward.1} parent=55 // pred_region
          %3987 = vsyncadd %s3979, 0
          %s3988 = smul.addr %s23, 8
          %s3989 = smul.addr %s3988, 8
          %s3990 = scalar_lea.hbm %s9, %s3989
          %s3991 = sshll.u32 %s3982, 4
          %s3992 = int_to_ptr.vmem [resolvable:$true] %s3991
          %s3993 = sshll.u32 %s3990, 4
          %s3994 = int_to_ptr.hbm [resolvable:$true] %s3993
          %3999 = dma.vmem_to_hbm [thread:$0]  %s3992, 1024, %s3994, %s3979, 128, 128, 8
        $region60: #{attn_block_forward.1} parent=55 // pred_fallthru
          _
      $region56: #{attn_block_forward.1} parent=5 // pred_fallthru
        _
      %p4000 = scmp.le.s32.totalorder 2, %s18
      // Predicated region
      $region61: #{attn_block_forward.1} parent=5 // pred_check
        %p4001 = pneg %p4000
      $region62: #{attn_block_forward.1} parent=5 // pred_check_branch
        %4003 = sbr.rel (%p4001) target = $region64
      $region63: #{attn_block_forward.1} parent=5 // pred_region
        %s4004 = ssub.s32 %s18, 2
        // Predicated region
        $region65: #{attn_block_forward.1} parent=63 // pred_check
          %p4005 = pneg %p241
        $region66: #{attn_block_forward.1} parent=63 // pred_check_branch
          %4007 = sbr.rel (%p4005) target = $region68
        $region67: #{attn_block_forward.1} parent=63 // pred_region
          %s4008 = sand.u32 %s226, 1
          %s4009 = scalar_lea.sflag [#allocation4], %s4008
          %s4010 = sand.u32 %s226, 1
          %s4011 = smul.addr %s4010, 64
          %s4012 = scalar_lea.vmem [#allocation3], %s4011
          %4014 = dma.done %s4009, 1024
        $region68: #{attn_block_forward.1} parent=63 // pred_fallthru
          _
      $region64: #{attn_block_forward.1} parent=5 // pred_fallthru
        _
    $region6: #{attn_block_forward.1} parent=1 // loop_footer
      %s22 = sadd.s32 1, %s18
    $region7: #{attn_block_forward.1} parent=1 // loop_footer_branch
      %17 = sbr.rel target = $region3
    $region8: #{attn_block_forward.1} parent=1 // loop_exit
      _
    %4015 = vsyncpa [#allocation4], 1
    %s4016 = scalar_lea.sflag [#allocation4], 1
    %4017 = vsyncpa %s4016, 1

</llo_original>
